<compile_context>
chip_gen: v6e
topology: v6e:2x2x1
jax: 0.10.0
libtpu: 0.0.40
codegen_flags: <defaults>
</compile_context>

<pallas_src>
import math
import jax
import jax.numpy as jnp
from jax.experimental import pallas as pl
from jax.experimental.pallas import tpu as pltpu

INPUT_DIM = 62
LATENT_DIM = 30
HIDDEN_DIMS = [512, 256]
BN_EPS = 1e-5
LEAKY_SLOPE = 0.2

PAD_OUT = 128   # lane-padded reconstruction feature dim (62 -> 128)
PAD_LAT = 128   # lane-padded fused mu|logvar dim
MU_OFF = 0      # mu occupies lanes [0, 30)
LV_OFF = 64     # logvar occupies lanes [64, 94)  (half-vreg offset -> roll 64)


def _matmul(h_f32, w_ref):
    # bf16 x bf16 on the MXU with f32 accumulation.
    return jnp.dot(h_f32.astype(jnp.bfloat16), w_ref[...],
                   preferred_element_type=jnp.float32)


def _bn_lrelu(h, gamma, beta):
    # Training-mode BatchNorm1d (batch mean, biased variance) folded into a
    # single scale/shift and fused with LeakyReLU(0.2) = max(y, 0.2*y).
    # One-pass variance: var = E[h^2] - mean^2 (one read of h and one
    # cross-sublane reduction fewer than mean -> subtract -> mean(d*d)).
    inv_b = 1.0 / h.shape[0]
    mean = jnp.sum(h, axis=0, keepdims=True) * inv_b
    ex2 = jnp.sum(h * h, axis=0, keepdims=True) * inv_b
    var = ex2 - mean * mean
    scale = jax.lax.rsqrt(var + BN_EPS) * gamma
    shift = beta - mean * scale
    y = h * scale + shift
    return jnp.maximum(y, LEAKY_SLOPE * y)


def hand_pose_vae_kernel(
    # inputs (activations f32, weights bf16, BN params / biases f32)
    x_ref, eps_ref,
    w1_ref, g1_ref, be1_ref,
    w2_ref, g2_ref, be2_ref,
    wmv_ref, bmv_ref,
    wd1_ref, gd1_ref, bed1_ref,
    wd2_ref, gd2_ref, bed2_ref,
    wd3_ref, bd3_ref,
    # outputs
    recon_ref, muvar_ref,
):
    x = x_ref[...]                                                   # (B, 62)

    # ----- encoder -----
    h = _bn_lrelu(_matmul(x, w1_ref), g1_ref[...], be1_ref[...])     # (B, 512)
    h = _bn_lrelu(_matmul(h, w2_ref), g2_ref[...], be2_ref[...])     # (B, 256)

    # Fused mu|logvar head: mu in lanes [0,30), logvar in lanes [64,94).
    muvar = _matmul(h, wmv_ref) + bmv_ref[...]                       # (B, 128)
    muvar_ref[...] = muvar

    # ----- reparameterize (eps ~ N(0,1) from host, padded to 128 lanes) -----
    # roll by 64 on a 128-lane axis aligns logvar with mu's lanes (shift of
    # half the width -> identical result for either roll direction).
    logvar_aligned = pltpu.roll(muvar, shift=64, axis=1)
    z = muvar + eps_ref[...] * jnp.exp(0.5 * logvar_aligned)         # (B, 128)
    # Guard: zero every lane >= LATENT_DIM so nothing from the padded /
    # mu-carrying lanes (exp(0.5*mu) could overflow for extreme mu) can
    # contaminate the decoder MXU accumulation.
    lane = jax.lax.broadcasted_iota(jnp.int32, z.shape, 1)
    z = jnp.where(lane < LATENT_DIM, z, 0.0)

    # ----- decoder -----
    d = _bn_lrelu(_matmul(z, wd1_ref), gd1_ref[...], bed1_ref[...])  # (B, 256)
    d = _bn_lrelu(_matmul(d, wd2_ref), gd2_ref[...], bed2_ref[...])  # (B, 512)
    recon_ref[...] = _matmul(d, wd3_ref) + bd3_ref[...]              # (B, 128)


def _uniform(key, shape, bound):
    return jax.random.uniform(key, shape, jnp.float32, -bound, bound)


def _pad_to(a, shape):
    return jnp.pad(a, [(0, t - s) for s, t in zip(a.shape, shape)])


def init_params(key):
    """nn.Linear-style init (U(+-1/sqrt(fan_in))).

    Weights are stored transposed (in, out) and cast to bf16 for the MXU.
    Output-side dims below 128 are zero-padded to 128 lanes (lane-dense
    matmul outputs / stores); the input feature dim (62) is NOT padded.
    Biases of Linear layers followed by BatchNorm are dropped (cancelled by
    the batch-mean subtraction in training-mode BN).
    """
    H0, H1 = HIDDEN_DIMS
    keys = jax.random.split(key, 10)
    p = {}

    # enc1: Linear(62, 512)  (bias dropped: BN follows)
    bnd = 1.0 / math.sqrt(INPUT_DIM)
    p["enc1_w"] = _uniform(keys[0], (INPUT_DIM, H0), bnd).astype(jnp.bfloat16)
    p["enc1_g"] = jnp.ones((1, H0), jnp.float32)
    p["enc1_be"] = jnp.zeros((1, H0), jnp.float32)

    # enc2: Linear(512, 256)  (bias dropped)
    bnd = 1.0 / math.sqrt(H0)
    p["enc2_w"] = _uniform(keys[1], (H0, H1), bnd).astype(jnp.bfloat16)
    p["enc2_g"] = jnp.ones((1, H1), jnp.float32)
    p["enc2_be"] = jnp.zeros((1, H1), jnp.float32)

    # fused mu|logvar head: two Linear(256, 30) packed into one (256, 128)
    bnd = 1.0 / math.sqrt(H1)
    wmu = _uniform(keys[2], (H1, LATENT_DIM), bnd)
    bmu = _uniform(keys[3], (1, LATENT_DIM), bnd)
    wvar = _uniform(keys[4], (H1, LATENT_DIM), bnd)
    bvar = _uniform(keys[5], (1, LATENT_DIM), bnd)
    wmv = jnp.zeros((H1, PAD_LAT), jnp.float32)
    wmv = wmv.at[:, MU_OFF:MU_OFF + LATENT_DIM].set(wmu)
    wmv = wmv.at[:, LV_OFF:LV_OFF + LATENT_DIM].set(wvar)
    bmv = jnp.zeros((1, PAD_LAT), jnp.float32)
    bmv = bmv.at[:, MU_OFF:MU_OFF + LATENT_DIM].set(bmu)
    bmv = bmv.at[:, LV_OFF:LV_OFF + LATENT_DIM].set(bvar)
    p["muvar_w"] = wmv.astype(jnp.bfloat16)
    p["muvar_b"] = bmv

    # dec1: Linear(30, 256)  (bias dropped), rows 30..127 zero-padded
    bnd = 1.0 / math.sqrt(LATENT_DIM)
    p["dec1_w"] = _pad_to(_uniform(keys[6], (LATENT_DIM, H1), bnd),
                          (PAD_LAT, H1)).astype(jnp.bfloat16)
    p["dec1_g"] = jnp.ones((1, H1), jnp.float32)
    p["dec1_be"] = jnp.zeros((1, H1), jnp.float32)

    # dec2: Linear(256, 512)  (bias dropped)
    bnd = 1.0 / math.sqrt(H1)
    p["dec2_w"] = _uniform(keys[7], (H1, H0), bnd).astype(jnp.bfloat16)
    p["dec2_g"] = jnp.ones((1, H0), jnp.float32)
    p["dec2_be"] = jnp.zeros((1, H0), jnp.float32)

    # dec3: Linear(512, 62), output cols padded 62 -> 128 (bias kept, no BN)
    bnd = 1.0 / math.sqrt(H0)
    p["dec3_w"] = _pad_to(_uniform(keys[8], (H0, INPUT_DIM), bnd),
                          (H0, PAD_OUT)).astype(jnp.bfloat16)
    p["dec3_b"] = _pad_to(_uniform(keys[9], (1, INPUT_DIM), bnd), (1, PAD_OUT))
    return p


def hand_pose_vae_forward(x, eps, params):
    batch = x.shape[0]
    # BatchNorm couples the whole batch, so the full batch lives in one VMEM
    # block.  Live set ~0.9 MB of bf16 weights + ~16 KB/row of f32
    # activations; keep well under v7x's ~32 MiB scoped-VMEM default.
    assert batch % 8 == 0, "keep the batch a multiple of 8 (f32 sublane)"
    assert batch <= 1024, "single-block BN cap derived from v7x VMEM budget"

    # x stays unpadded (full-array block, exempt from the (8,128) rule; the
    # K=62 matmul is handled directly).  eps is tiny -> pad to 128 lanes so
    # the reparameterization stays lane-dense.
    eps_pad = jnp.pad(eps.astype(jnp.float32),
                      ((0, 0), (0, PAD_LAT - LATENT_DIM)))

    args = (
        x.astype(jnp.float32), eps_pad,
        params["enc1_w"], params["enc1_g"], params["enc1_be"],
        params["enc2_w"], params["enc2_g"], params["enc2_be"],
        params["muvar_w"], params["muvar_b"],
        params["dec1_w"], params["dec1_g"], params["dec1_be"],
        params["dec2_w"], params["dec2_g"], params["dec2_be"],
        params["dec3_w"], params["dec3_b"],
    )

    # Advisory cost estimate so XLA can overlap surrounding host-graph ops.
    H0, H1 = HIDDEN_DIMS
    weight_elems = (INPUT_DIM * H0 + H0 * H1 + H1 * PAD_LAT
                    + PAD_LAT * H1 + H1 * H0 + H0 * PAD_OUT)
    vec_elems = 2 * (H0 + H1 + H1 + H0) + PAD_LAT + PAD_OUT
    cost = pl.CostEstimate(
        flops=2 * batch * weight_elems,
        transcendentals=batch * PAD_LAT,
        bytes_accessed=(2 * weight_elems + 4 * vec_elems
                        + 4 * batch * (INPUT_DIM + 3 * PAD_LAT)),
    )

    vmem = pl.BlockSpec(memory_space=pltpu.MemorySpace.VMEM)
    out_shapes = (
        jax.ShapeDtypeStruct((batch, PAD_OUT), jnp.float32),   # recon (padded)
        jax.ShapeDtypeStruct((batch, PAD_LAT), jnp.float32),   # fused mu|logvar
    )
    recon_pad, muvar = pl.pallas_call(
        hand_pose_vae_kernel,
        out_shape=out_shapes,
        in_specs=[vmem] * len(args),
        out_specs=(vmem, vmem),
        cost_estimate=cost,
    )(*args)

    recon = recon_pad[:, :INPUT_DIM]
    mu = muvar[:, MU_OFF:MU_OFF + LATENT_DIM]
    logvar = muvar[:, LV_OFF:LV_OFF + LATENT_DIM]
    return recon, mu, logvar


if __name__ == "__main__":
    key = jax.random.PRNGKey(0)
    k_param, k_x, k_eps = jax.random.split(key, 3)

    # 256 rows: fills the MXU row dimension on v6e/v7x (2x256^2), 2x the v5e
    # 4x128^2 arrays, and amortizes the ~0.9 MB weight DMA over the batch,
    # while the whole-batch VMEM block stays ~5 MB (fits every generation).
    batch = 256
    x = jax.random.normal(k_x, (batch, INPUT_DIM), jnp.float32)
    eps = jax.random.normal(k_eps, (batch, LATENT_DIM), jnp.float32)

    params = init_params(k_param)

    recon, mu, logvar = hand_pose_vae_forward(x, eps, params)
    jax.block_until_ready((recon, mu, logvar))

    assert recon.shape == (batch, INPUT_DIM)
    assert mu.shape == (batch, LATENT_DIM)
    assert logvar.shape == (batch, LATENT_DIM)
    assert bool(jnp.all(jnp.isfinite(recon)))
    assert bool(jnp.all(jnp.isfinite(mu)))
    assert bool(jnp.all(jnp.isfinite(logvar)))
    print("KERNEL_OK")
</pallas_src>

<mosaic_0001>
module attributes {stable_mosaic.version = 11 : i64} {
  func.func @hand_pose_vae_kernel(%arg0: memref<256x62xf32, #tpu.memory_space<vmem>>, %arg1: memref<256x128xf32, #tpu.memory_space<vmem>>, %arg2: memref<62x512xbf16, #tpu.memory_space<vmem>>, %arg3: memref<1x512xf32, #tpu.memory_space<vmem>>, %arg4: memref<1x512xf32, #tpu.memory_space<vmem>>, %arg5: memref<512x256xbf16, #tpu.memory_space<vmem>>, %arg6: memref<1x256xf32, #tpu.memory_space<vmem>>, %arg7: memref<1x256xf32, #tpu.memory_space<vmem>>, %arg8: memref<256x128xbf16, #tpu.memory_space<vmem>>, %arg9: memref<1x128xf32, #tpu.memory_space<vmem>>, %arg10: memref<128x256xbf16, #tpu.memory_space<vmem>>, %arg11: memref<1x256xf32, #tpu.memory_space<vmem>>, %arg12: memref<1x256xf32, #tpu.memory_space<vmem>>, %arg13: memref<256x512xbf16, #tpu.memory_space<vmem>>, %arg14: memref<1x512xf32, #tpu.memory_space<vmem>>, %arg15: memref<1x512xf32, #tpu.memory_space<vmem>>, %arg16: memref<512x128xbf16, #tpu.memory_space<vmem>>, %arg17: memref<1x128xf32, #tpu.memory_space<vmem>>, %arg18: memref<256x128xf32, #tpu.memory_space<vmem>>, %arg19: memref<256x128xf32, #tpu.memory_space<vmem>>) attributes {dimension_semantics = [], scalar_prefetch = 0 : i64, scratch_operands = 0 : i64, tpu.core_type = #tpu.core_type<tc>} {
    %c0 = arith.constant 0 : index
    %c0_0 = arith.constant 0 : index
    %0 = vector.load %arg0[%c0, %c0_0] : memref<256x62xf32, #tpu.memory_space<vmem>>, vector<256x62xf32>
    %1 = arith.truncf %0 : vector<256x62xf32> to vector<256x62xbf16>
    %c0_1 = arith.constant 0 : index
    %c0_2 = arith.constant 0 : index
    %2 = vector.load %arg2[%c0_1, %c0_2] : memref<62x512xbf16, #tpu.memory_space<vmem>>, vector<62x512xbf16>
    %cst = arith.constant dense<0.000000e+00> : vector<256x512xf32>
    %3 = tpu.matmul %1, %2, %cst {dimension_numbers = #tpu.dot_dimension_numbers<[1], [0], [0], [1], [0, 0, 1, 1], [], []>} : vector<256x62xbf16>, vector<62x512xbf16>, vector<256x512xf32> -> vector<256x512xf32>
    %c0_3 = arith.constant 0 : index
    %c0_4 = arith.constant 0 : index
    %4 = vector.load %arg3[%c0_3, %c0_4] : memref<1x512xf32, #tpu.memory_space<vmem>>, vector<1x512xf32>
    %c0_5 = arith.constant 0 : index
    %c0_6 = arith.constant 0 : index
    %5 = vector.load %arg4[%c0_5, %c0_6] : memref<1x512xf32, #tpu.memory_space<vmem>>, vector<1x512xf32>
    %cst_7 = arith.constant dense<0.000000e+00> : vector<512xf32>
    %6 = vector.multi_reduction <add>, %3, %cst_7 [0] : vector<256x512xf32> to vector<512xf32>
    %7 = vector.shape_cast %6 : vector<512xf32> to vector<1x512xf32>
    %cst_8 = arith.constant 3.906250e-03 : f32
    %8 = vector.broadcast %cst_8 : f32 to vector<1x512xf32>
    %9 = arith.mulf %7, %8 : vector<1x512xf32>
    %10 = arith.mulf %3, %3 : vector<256x512xf32>
    %cst_9 = arith.constant dense<0.000000e+00> : vector<512xf32>
    %11 = vector.multi_reduction <add>, %10, %cst_9 [0] : vector<256x512xf32> to vector<512xf32>
    %12 = vector.shape_cast %11 : vector<512xf32> to vector<1x512xf32>
    %cst_10 = arith.constant 3.906250e-03 : f32
    %13 = vector.broadcast %cst_10 : f32 to vector<1x512xf32>
    %14 = arith.mulf %12, %13 : vector<1x512xf32>
    %15 = arith.mulf %9, %9 : vector<1x512xf32>
    %16 = arith.subf %14, %15 : vector<1x512xf32>
    %cst_11 = arith.constant 9.99999974E-6 : f32
    %17 = vector.broadcast %cst_11 : f32 to vector<1x512xf32>
    %18 = arith.addf %16, %17 : vector<1x512xf32>
    %19 = math.rsqrt %18 : vector<1x512xf32>
    %20 = arith.mulf %19, %4 : vector<1x512xf32>
    %21 = arith.mulf %9, %20 : vector<1x512xf32>
    %22 = arith.subf %5, %21 : vector<1x512xf32>
    %23 = vector.broadcast %20 : vector<1x512xf32> to vector<256x512xf32>
    %24 = arith.mulf %3, %23 : vector<256x512xf32>
    %25 = vector.broadcast %22 : vector<1x512xf32> to vector<256x512xf32>
    %26 = arith.addf %24, %25 : vector<256x512xf32>
    %cst_12 = arith.constant 2.000000e-01 : f32
    %27 = vector.broadcast %cst_12 : f32 to vector<256x512xf32>
    %28 = arith.mulf %27, %26 : vector<256x512xf32>
    %29 = arith.maximumf %26, %28 : vector<256x512xf32>
    %30 = arith.truncf %29 : vector<256x512xf32> to vector<256x512xbf16>
    %c0_13 = arith.constant 0 : index
    %c0_14 = arith.constant 0 : index
    %31 = vector.load %arg5[%c0_13, %c0_14] : memref<512x256xbf16, #tpu.memory_space<vmem>>, vector<512x256xbf16>
    %cst_15 = arith.constant dense<0.000000e+00> : vector<256x256xf32>
    %32 = tpu.matmul %30, %31, %cst_15 {dimension_numbers = #tpu.dot_dimension_numbers<[1], [0], [0], [1], [0, 0, 1, 1], [], []>} : vector<256x512xbf16>, vector<512x256xbf16>, vector<256x256xf32> -> vector<256x256xf32>
    %c0_16 = arith.constant 0 : index
    %c0_17 = arith.constant 0 : index
    %33 = vector.load %arg6[%c0_16, %c0_17] : memref<1x256xf32, #tpu.memory_space<vmem>>, vector<1x256xf32>
    %c0_18 = arith.constant 0 : index
    %c0_19 = arith.constant 0 : index
    %34 = vector.load %arg7[%c0_18, %c0_19] : memref<1x256xf32, #tpu.memory_space<vmem>>, vector<1x256xf32>
    %cst_20 = arith.constant dense<0.000000e+00> : vector<256xf32>
    %35 = vector.multi_reduction <add>, %32, %cst_20 [0] : vector<256x256xf32> to vector<256xf32>
    %36 = vector.shape_cast %35 : vector<256xf32> to vector<1x256xf32>
    %cst_21 = arith.constant 3.906250e-03 : f32
    %37 = vector.broadcast %cst_21 : f32 to vector<1x256xf32>
    %38 = arith.mulf %36, %37 : vector<1x256xf32>
    %39 = arith.mulf %32, %32 : vector<256x256xf32>
    %cst_22 = arith.constant dense<0.000000e+00> : vector<256xf32>
    %40 = vector.multi_reduction <add>, %39, %cst_22 [0] : vector<256x256xf32> to vector<256xf32>
    %41 = vector.shape_cast %40 : vector<256xf32> to vector<1x256xf32>
    %cst_23 = arith.constant 3.906250e-03 : f32
    %42 = vector.broadcast %cst_23 : f32 to vector<1x256xf32>
    %43 = arith.mulf %41, %42 : vector<1x256xf32>
    %44 = arith.mulf %38, %38 : vector<1x256xf32>
    %45 = arith.subf %43, %44 : vector<1x256xf32>
    %cst_24 = arith.constant 9.99999974E-6 : f32
    %46 = vector.broadcast %cst_24 : f32 to vector<1x256xf32>
    %47 = arith.addf %45, %46 : vector<1x256xf32>
    %48 = math.rsqrt %47 : vector<1x256xf32>
    %49 = arith.mulf %48, %33 : vector<1x256xf32>
    %50 = arith.mulf %38, %49 : vector<1x256xf32>
    %51 = arith.subf %34, %50 : vector<1x256xf32>
    %52 = vector.broadcast %49 : vector<1x256xf32> to vector<256x256xf32>
    %53 = arith.mulf %32, %52 : vector<256x256xf32>
    %54 = vector.broadcast %51 : vector<1x256xf32> to vector<256x256xf32>
    %55 = arith.addf %53, %54 : vector<256x256xf32>
    %cst_25 = arith.constant 2.000000e-01 : f32
    %56 = vector.broadcast %cst_25 : f32 to vector<256x256xf32>
    %57 = arith.mulf %56, %55 : vector<256x256xf32>
    %58 = arith.maximumf %55, %57 : vector<256x256xf32>
    %59 = arith.truncf %58 : vector<256x256xf32> to vector<256x256xbf16>
    %c0_26 = arith.constant 0 : index
    %c0_27 = arith.constant 0 : index
    %60 = vector.load %arg8[%c0_26, %c0_27] : memref<256x128xbf16, #tpu.memory_space<vmem>>, vector<256x128xbf16>
    %cst_28 = arith.constant dense<0.000000e+00> : vector<256x128xf32>
    %61 = tpu.matmul %59, %60, %cst_28 {dimension_numbers = #tpu.dot_dimension_numbers<[1], [0], [0], [1], [0, 0, 1, 1], [], []>} : vector<256x256xbf16>, vector<256x128xbf16>, vector<256x128xf32> -> vector<256x128xf32>
    %c0_29 = arith.constant 0 : index
    %c0_30 = arith.constant 0 : index
    %62 = vector.load %arg9[%c0_29, %c0_30] : memref<1x128xf32, #tpu.memory_space<vmem>>, vector<1x128xf32>
    %63 = vector.broadcast %62 : vector<1x128xf32> to vector<256x128xf32>
    %64 = arith.addf %61, %63 : vector<256x128xf32>
    %c0_31 = arith.constant 0 : index
    %c0_32 = arith.constant 0 : index
    %65 = vector.load %arg19[%c0_31, %c0_32] : memref<256x128xf32, #tpu.memory_space<vmem>>, vector<256x128xf32>
    tpu.vector_store %arg19[%c0_31, %c0_32], %64 {strides = array<i32>} : memref<256x128xf32, #tpu.memory_space<vmem>>, vector<256x128xf32>,
    %c64_i32 = arith.constant 64 : i32
    %66 = tpu.dynamic_rotate %64 by %c64_i32 dim 1 : vector<256x128xf32>, i32 -> vector<256x128xf32>
    %c0_33 = arith.constant 0 : index
    %c0_34 = arith.constant 0 : index
    %67 = vector.load %arg1[%c0_33, %c0_34] : memref<256x128xf32, #tpu.memory_space<vmem>>, vector<256x128xf32>
    %cst_35 = arith.constant 5.000000e-01 : f32
    %68 = vector.broadcast %cst_35 : f32 to vector<256x128xf32>
    %69 = arith.mulf %68, %66 : vector<256x128xf32>
    %70 = math.exp %69 : vector<256x128xf32>
    %71 = arith.mulf %67, %70 : vector<256x128xf32>
    %72 = arith.addf %64, %71 : vector<256x128xf32>
    %73 = tpu.iota {dimensions = array<i32: 1>} : vector<256x128xi32>
    %c30_i32 = arith.constant 30 : i32
    %74 = vector.broadcast %c30_i32 : i32 to vector<256x128xi32>
    %75 = arith.cmpi slt, %73, %74 : vector<256x128xi32>
    %cst_36 = arith.constant 0.000000e+00 : f32
    %76 = vector.broadcast %cst_36 : f32 to vector<256x128xf32>
    %77 = arith.select %75, %72, %76 : vector<256x128xi1>, vector<256x128xf32>
    %78 = arith.truncf %77 : vector<256x128xf32> to vector<256x128xbf16>
    %c0_37 = arith.constant 0 : index
    %c0_38 = arith.constant 0 : index
    %79 = vector.load %arg10[%c0_37, %c0_38] : memref<128x256xbf16, #tpu.memory_space<vmem>>, vector<128x256xbf16>
    %cst_39 = arith.constant dense<0.000000e+00> : vector<256x256xf32>
    %80 = tpu.matmul %78, %79, %cst_39 {dimension_numbers = #tpu.dot_dimension_numbers<[1], [0], [0], [1], [0, 0, 1, 1], [], []>} : vector<256x128xbf16>, vector<128x256xbf16>, vector<256x256xf32> -> vector<256x256xf32>
    %c0_40 = arith.constant 0 : index
    %c0_41 = arith.constant 0 : index
    %81 = vector.load %arg11[%c0_40, %c0_41] : memref<1x256xf32, #tpu.memory_space<vmem>>, vector<1x256xf32>
    %c0_42 = arith.constant 0 : index
    %c0_43 = arith.constant 0 : index
    %82 = vector.load %arg12[%c0_42, %c0_43] : memref<1x256xf32, #tpu.memory_space<vmem>>, vector<1x256xf32>
    %cst_44 = arith.constant dense<0.000000e+00> : vector<256xf32>
    %83 = vector.multi_reduction <add>, %80, %cst_44 [0] : vector<256x256xf32> to vector<256xf32>
    %84 = vector.shape_cast %83 : vector<256xf32> to vector<1x256xf32>
    %cst_45 = arith.constant 3.906250e-03 : f32
    %85 = vector.broadcast %cst_45 : f32 to vector<1x256xf32>
    %86 = arith.mulf %84, %85 : vector<1x256xf32>
    %87 = arith.mulf %80, %80 : vector<256x256xf32>
    %cst_46 = arith.constant dense<0.000000e+00> : vector<256xf32>
    %88 = vector.multi_reduction <add>, %87, %cst_46 [0] : vector<256x256xf32> to vector<256xf32>
    %89 = vector.shape_cast %88 : vector<256xf32> to vector<1x256xf32>
    %cst_47 = arith.constant 3.906250e-03 : f32
    %90 = vector.broadcast %cst_47 : f32 to vector<1x256xf32>
    %91 = arith.mulf %89, %90 : vector<1x256xf32>
    %92 = arith.mulf %86, %86 : vector<1x256xf32>
    %93 = arith.subf %91, %92 : vector<1x256xf32>
    %cst_48 = arith.constant 9.99999974E-6 : f32
    %94 = vector.broadcast %cst_48 : f32 to vector<1x256xf32>
    %95 = arith.addf %93, %94 : vector<1x256xf32>
    %96 = math.rsqrt %95 : vector<1x256xf32>
    %97 = arith.mulf %96, %81 : vector<1x256xf32>
    %98 = arith.mulf %86, %97 : vector<1x256xf32>
    %99 = arith.subf %82, %98 : vector<1x256xf32>
    %100 = vector.broadcast %97 : vector<1x256xf32> to vector<256x256xf32>
    %101 = arith.mulf %80, %100 : vector<256x256xf32>
    %102 = vector.broadcast %99 : vector<1x256xf32> to vector<256x256xf32>
    %103 = arith.addf %101, %102 : vector<256x256xf32>
    %cst_49 = arith.constant 2.000000e-01 : f32
    %104 = vector.broadcast %cst_49 : f32 to vector<256x256xf32>
    %105 = arith.mulf %104, %103 : vector<256x256xf32>
    %106 = arith.maximumf %103, %105 : vector<256x256xf32>
    %107 = arith.truncf %106 : vector<256x256xf32> to vector<256x256xbf16>
    %c0_50 = arith.constant 0 : index
    %c0_51 = arith.constant 0 : index
    %108 = vector.load %arg13[%c0_50, %c0_51] : memref<256x512xbf16, #tpu.memory_space<vmem>>, vector<256x512xbf16>
    %cst_52 = arith.constant dense<0.000000e+00> : vector<256x512xf32>
    %109 = tpu.matmul %107, %108, %cst_52 {dimension_numbers = #tpu.dot_dimension_numbers<[1], [0], [0], [1], [0, 0, 1, 1], [], []>} : vector<256x256xbf16>, vector<256x512xbf16>, vector<256x512xf32> -> vector<256x512xf32>
    %c0_53 = arith.constant 0 : index
    %c0_54 = arith.constant 0 : index
    %110 = vector.load %arg14[%c0_53, %c0_54] : memref<1x512xf32, #tpu.memory_space<vmem>>, vector<1x512xf32>
    %c0_55 = arith.constant 0 : index
    %c0_56 = arith.constant 0 : index
    %111 = vector.load %arg15[%c0_55, %c0_56] : memref<1x512xf32, #tpu.memory_space<vmem>>, vector<1x512xf32>
    %cst_57 = arith.constant dense<0.000000e+00> : vector<512xf32>
    %112 = vector.multi_reduction <add>, %109, %cst_57 [0] : vector<256x512xf32> to vector<512xf32>
    %113 = vector.shape_cast %112 : vector<512xf32> to vector<1x512xf32>
    %cst_58 = arith.constant 3.906250e-03 : f32
    %114 = vector.broadcast %cst_58 : f32 to vector<1x512xf32>
    %115 = arith.mulf %113, %114 : vector<1x512xf32>
    %116 = arith.mulf %109, %109 : vector<256x512xf32>
    %cst_59 = arith.constant dense<0.000000e+00> : vector<512xf32>
    %117 = vector.multi_reduction <add>, %116, %cst_59 [0] : vector<256x512xf32> to vector<512xf32>
    %118 = vector.shape_cast %117 : vector<512xf32> to vector<1x512xf32>
    %cst_60 = arith.constant 3.906250e-03 : f32
    %119 = vector.broadcast %cst_60 : f32 to vector<1x512xf32>
    %120 = arith.mulf %118, %119 : vector<1x512xf32>
    %121 = arith.mulf %115, %115 : vector<1x512xf32>
    %122 = arith.subf %120, %121 : vector<1x512xf32>
    %cst_61 = arith.constant 9.99999974E-6 : f32
    %123 = vector.broadcast %cst_61 : f32 to vector<1x512xf32>
    %124 = arith.addf %122, %123 : vector<1x512xf32>
    %125 = math.rsqrt %124 : vector<1x512xf32>
    %126 = arith.mulf %125, %110 : vector<1x512xf32>
    %127 = arith.mulf %115, %126 : vector<1x512xf32>
    %128 = arith.subf %111, %127 : vector<1x512xf32>
    %129 = vector.broadcast %126 : vector<1x512xf32> to vector<256x512xf32>
    %130 = arith.mulf %109, %129 : vector<256x512xf32>
    %131 = vector.broadcast %128 : vector<1x512xf32> to vector<256x512xf32>
    %132 = arith.addf %130, %131 : vector<256x512xf32>
    %cst_62 = arith.constant 2.000000e-01 : f32
    %133 = vector.broadcast %cst_62 : f32 to vector<256x512xf32>
    %134 = arith.mulf %133, %132 : vector<256x512xf32>
    %135 = arith.maximumf %132, %134 : vector<256x512xf32>
    %136 = arith.truncf %135 : vector<256x512xf32> to vector<256x512xbf16>
    %c0_63 = arith.constant 0 : index
    %c0_64 = arith.constant 0 : index
    %137 = vector.load %arg16[%c0_63, %c0_64] : memref<512x128xbf16, #tpu.memory_space<vmem>>, vector<512x128xbf16>
    %cst_65 = arith.constant dense<0.000000e+00> : vector<256x128xf32>
    %138 = tpu.matmul %136, %137, %cst_65 {dimension_numbers = #tpu.dot_dimension_numbers<[1], [0], [0], [1], [0, 0, 1, 1], [], []>} : vector<256x512xbf16>, vector<512x128xbf16>, vector<256x128xf32> -> vector<256x128xf32>
    %c0_66 = arith.constant 0 : index
    %c0_67 = arith.constant 0 : index
    %139 = vector.load %arg17[%c0_66, %c0_67] : memref<1x128xf32, #tpu.memory_space<vmem>>, vector<1x128xf32>
    %140 = vector.broadcast %139 : vector<1x128xf32> to vector<256x128xf32>
    %141 = arith.addf %138, %140 : vector<256x128xf32>
    %c0_68 = arith.constant 0 : index
    %c0_69 = arith.constant 0 : index
    %142 = vector.load %arg18[%c0_68, %c0_69] : memref<256x128xf32, #tpu.memory_space<vmem>>, vector<256x128xf32>
    tpu.vector_store %arg18[%c0_68, %c0_69], %141 {strides = array<i32>} : memref<256x128xf32, #tpu.memory_space<vmem>>, vector<256x128xf32>,
    return
  }
}

</mosaic_0001>

<llo_original>
// kernel: tpu_custom_call.1
$region0: #{tpu_custom_call.1}
  #allocation0 [shape = 'u32[]', space=smem, size = 0x4, offset = 0x4, fixed_abs, tag = 'smem constant byte address 0x4 - core index']
  #allocation1 [shape = 'u32[144,128]{1,0:T(1,128)}', space=vmem, size = 0x12000, scoped, tag = 'internal scratch']
  %s0 = inlined_call_operand.vmem [shape: f32[256,62], index: 0, kind: input, shape index: {}]
  %s1 = inlined_call_operand.vmem [shape: f32[256,128], index: 1, kind: input, shape index: {}]
  %s2 = inlined_call_operand.vmem [shape: bf16[62,512], index: 2, kind: input, shape index: {}]
  %s3 = inlined_call_operand.vmem [shape: f32[1,512], index: 3, kind: input, shape index: {}]
  %s4 = inlined_call_operand.hbm [shape: f32[1,512], index: 4, kind: input, shape index: {}]
  %s5 = inlined_call_operand.hbm [shape: bf16[512,256], index: 5, kind: input, shape index: {}]
  %s6 = inlined_call_operand.vmem [shape: f32[1,256], index: 6, kind: input, shape index: {}]
  %s7 = inlined_call_operand.hbm [shape: f32[1,256], index: 7, kind: input, shape index: {}]
  %s8 = inlined_call_operand.hbm [shape: bf16[256,128], index: 8, kind: input, shape index: {}]
  %s9 = inlined_call_operand.hbm [shape: f32[1,128], index: 9, kind: input, shape index: {}]
  %s10 = inlined_call_operand.hbm [shape: bf16[128,256], index: 10, kind: input, shape index: {}]
  %s11 = inlined_call_operand.vmem [shape: f32[1,256], index: 11, kind: input, shape index: {}]
  %s12 = inlined_call_operand.vmem [shape: f32[1,256], index: 12, kind: input, shape index: {}]
  %s13 = inlined_call_operand.hbm [shape: bf16[256,512], index: 13, kind: input, shape index: {}]
  %s14 = inlined_call_operand.vmem [shape: f32[1,512], index: 14, kind: input, shape index: {}]
  %s15 = inlined_call_operand.vmem [shape: f32[1,512], index: 15, kind: input, shape index: {}]
  %s16 = inlined_call_operand.hbm [shape: bf16[512,128], index: 16, kind: input, shape index: {}]
  %s17 = inlined_call_operand.vmem [shape: f32[1,128], index: 17, kind: input, shape index: {}]
  %s18 = inlined_call_operand.hbm [shape: f32[256,128], index: 18, kind: output, shape index: {0}]
  %s19 = inlined_call_operand.hbm [shape: f32[256,128], index: 19, kind: output, shape index: {1}]
  %20 = xla_tuple %s18, %s19
  %s21 = sld [smem:[#allocation0]]
  $region122: #{tpu_custom_call.1} parent=0
    _
  %s23 = ssub.s32 1, %s21
  %s24 = scalar_select 0, %s23, %s21
  $region1: #{tpu_custom_call.1} parent=0
    #allocation2 [shape = 'u8[2048]{0}', space=vmem, size = 0x800, scoped, tag = 'input window, operand 4, single buffered']
    #allocation3 [shape = 's32[1]{0}', space=sflag, size = 0x4, scoped, tag = 'scoped memory for tpu_custom_call.1']
    #allocation4 [shape = 's32[1]{0}', space=sflag, size = 0x4, scoped, tag = 'scoped memory for tpu_custom_call.1']
    #allocation5 [shape = 'u8[262144]{0}', space=vmem, size = 0x40000, scoped, tag = 'input window, operand 5, single buffered']
    #allocation6 [shape = 's32[1]{0}', space=sflag, size = 0x4, scoped, tag = 'scoped memory for tpu_custom_call.1']
    #allocation7 [shape = 'u8[1024]{0}', space=vmem, size = 0x400, scoped, tag = 'input window, operand 7, single buffered']
    #allocation8 [shape = 'u8[65536]{0}', space=vmem, size = 0x10000, scoped, tag = 'input window, operand 8, single buffered']
    #allocation9 [shape = 's32[1]{0}', space=sflag, size = 0x4, scoped, tag = 'scoped memory for tpu_custom_call.1']
    #allocation10 [shape = 'u8[512]{0}', space=vmem, size = 0x400, scoped, tag = 'input window, operand 9, single buffered']
    #allocation11 [shape = 'u8[65536]{0}', space=vmem, size = 0x10000, scoped, tag = 'input window, operand 10, single buffered']
    #allocation12 [shape = 's32[1]{0}', space=sflag, size = 0x4, scoped, tag = 'scoped memory for tpu_custom_call.1']
    #allocation13 [shape = 'u8[262144]{0}', space=vmem, size = 0x40000, scoped, tag = 'input window, operand 13, single buffered']
    #allocation14 [shape = 'u8[131072]{0}', space=vmem, size = 0x20000, scoped, tag = 'input window, operand 16, single buffered']
    #allocation15 [shape = 's32[1]{0}', space=sflag, size = 0x4, scoped, tag = 'scoped memory for tpu_custom_call.1']
    #allocation16 [shape = 'u8[131072]{0}', space=vmem, size = 0x20000, scoped, tag = 'output window, operand 0, single buffered']
    #allocation17 [shape = 'u8[131072]{0}', space=vmem, size = 0x20000, scoped, tag = 'output window, operand 1, single buffered']
    #allocation18 [shape = 's32[1]{0}', space=sflag, size = 0x4, scoped, tag = 'scoped memory for tpu_custom_call.1']
    %25 = vsyncpa [#allocation3], 0
    %26 = vsyncpa [#allocation6], 0
    %27 = vsyncpa [#allocation9], 0
    %28 = vsyncpa [#allocation12], 0
    %29 = vsyncpa [#allocation15], 0
    %30 = vsyncpa [#allocation4], 0
    %31 = vsyncpa [#allocation18], 0
    // Predicated region
    $region2: #{tpu_custom_call.1} parent=1 // pred_check
      _
    $region3: #{tpu_custom_call.1} parent=1 // pred_check_branch
      %33 = sbr.rel (0) target = $region5
    $region4: #{tpu_custom_call.1} parent=1 // pred_region
      _
    $region5: #{tpu_custom_call.1} parent=1 // pred_fallthru
      _
    // Predicated region
    $region6: #{tpu_custom_call.1} parent=1 // pred_check
      _
    $region7: #{tpu_custom_call.1} parent=1 // pred_check_branch
      %35 = sbr.rel (0) target = $region9
    $region8: #{tpu_custom_call.1} parent=1 // pred_region
      _
    $region9: #{tpu_custom_call.1} parent=1 // pred_fallthru
      _
    // Predicated region
    $region10: #{tpu_custom_call.1} parent=1 // pred_check
      _
    $region11: #{tpu_custom_call.1} parent=1 // pred_check_branch
      %37 = sbr.rel (0) target = $region13
    $region12: #{tpu_custom_call.1} parent=1 // pred_region
      _
    $region13: #{tpu_custom_call.1} parent=1 // pred_fallthru
      _
    // Predicated region
    $region14: #{tpu_custom_call.1} parent=1 // pred_check
      _
    $region15: #{tpu_custom_call.1} parent=1 // pred_check_branch
      %39 = sbr.rel (0) target = $region17
    $region16: #{tpu_custom_call.1} parent=1 // pred_region
      _
    $region17: #{tpu_custom_call.1} parent=1 // pred_fallthru
      _
    // Predicated region
    $region18: #{tpu_custom_call.1} parent=1 // pred_check
      _
    $region19: #{tpu_custom_call.1} parent=1 // pred_check_branch
      %41 = sbr.rel (0) target = $region21
    $region20: #{tpu_custom_call.1} parent=1 // pred_region
      %s43 = ssub.s32 64, 64
      %44 = vsyncadd [#allocation3], %s43
      %s46 = sshll.u32 [#allocation2], 4
      %s47 = int_to_ptr.vmem [resolvable:$true] %s46
      %49 = dma.hbm_to_vmem [thread:$0]  %s4, 64, %s47, [#allocation3]
    $region21: #{tpu_custom_call.1} parent=1 // pred_fallthru
      _
    // Predicated region
    $region22: #{tpu_custom_call.1} parent=1 // pred_check
      _
    $region23: #{tpu_custom_call.1} parent=1 // pred_check_branch
      %51 = sbr.rel (0) target = $region25
    $region24: #{tpu_custom_call.1} parent=1 // pred_region
      %s53 = ssub.s32 8192, 8192
      %54 = vsyncadd [#allocation6], %s53
      %s55 = sshll.u32 [#allocation5], 4
      %s56 = int_to_ptr.vmem [resolvable:$true] %s55
      %61 = dma.hbm_to_vmem [thread:$0]  %s5, 8192, %s56, [#allocation6], 128, 128, 8
    $region25: #{tpu_custom_call.1} parent=1 // pred_fallthru
      _
    // Predicated region
    $region26: #{tpu_custom_call.1} parent=1 // pred_check
      _
    $region27: #{tpu_custom_call.1} parent=1 // pred_check_branch
      %63 = sbr.rel (0) target = $region29
    $region28: #{tpu_custom_call.1} parent=1 // pred_region
      _
    $region29: #{tpu_custom_call.1} parent=1 // pred_fallthru
      _
    // Predicated region
    $region30: #{tpu_custom_call.1} parent=1 // pred_check
      _
    $region31: #{tpu_custom_call.1} parent=1 // pred_check_branch
      %65 = sbr.rel (0) target = $region33
    $region32: #{tpu_custom_call.1} parent=1 // pred_region
      %s67 = ssub.s32 32, 32
      %68 = vsyncadd [#allocation6], %s67
      %s70 = sshll.u32 [#allocation7], 4
      %s71 = int_to_ptr.vmem [resolvable:$true] %s70
      %73 = dma.hbm_to_vmem [thread:$0]  %s7, 32, %s71, [#allocation6]
    $region33: #{tpu_custom_call.1} parent=1 // pred_fallthru
      _
    // Predicated region
    $region34: #{tpu_custom_call.1} parent=1 // pred_check
      _
    $region35: #{tpu_custom_call.1} parent=1 // pred_check_branch
      %75 = sbr.rel (0) target = $region37
    $region36: #{tpu_custom_call.1} parent=1 // pred_region
      %s77 = ssub.s32 2048, 2048
      %78 = vsyncadd [#allocation9], %s77
      %s79 = sshll.u32 [#allocation8], 4
      %s80 = int_to_ptr.vmem [resolvable:$true] %s79
      %85 = dma.hbm_to_vmem [thread:$0]  %s8, 2048, %s80, [#allocation9], 64, 64, 4
    $region37: #{tpu_custom_call.1} parent=1 // pred_fallthru
      _
    // Predicated region
    $region38: #{tpu_custom_call.1} parent=1 // pred_check
      _
    $region39: #{tpu_custom_call.1} parent=1 // pred_check_branch
      %87 = sbr.rel (0) target = $region41
    $region40: #{tpu_custom_call.1} parent=1 // pred_region
      %s89 = ssub.s32 16, 16
      %90 = vsyncadd [#allocation9], %s89
      %s92 = sshll.u32 [#allocation10], 4
      %s93 = int_to_ptr.vmem [resolvable:$true] %s92
      %95 = dma.hbm_to_vmem [thread:$0]  %s9, 16, %s93, [#allocation9]
    $region41: #{tpu_custom_call.1} parent=1 // pred_fallthru
      _
    // Predicated region
    $region42: #{tpu_custom_call.1} parent=1 // pred_check
      _
    $region43: #{tpu_custom_call.1} parent=1 // pred_check_branch
      %97 = sbr.rel (0) target = $region45
    $region44: #{tpu_custom_call.1} parent=1 // pred_region
      %s99 = ssub.s32 2048, 2048
      %100 = vsyncadd [#allocation12], %s99
      %s101 = sshll.u32 [#allocation11], 4
      %s102 = int_to_ptr.vmem [resolvable:$true] %s101
      %107 = dma.hbm_to_vmem [thread:$0]  %s10, 2048, %s102, [#allocation12], 128, 128, 8
    $region45: #{tpu_custom_call.1} parent=1 // pred_fallthru
      _
    // Predicated region
    $region46: #{tpu_custom_call.1} parent=1 // pred_check
      _
    $region47: #{tpu_custom_call.1} parent=1 // pred_check_branch
      %109 = sbr.rel (0) target = $region49
    $region48: #{tpu_custom_call.1} parent=1 // pred_region
      _
    $region49: #{tpu_custom_call.1} parent=1 // pred_fallthru
      _
    // Predicated region
    $region50: #{tpu_custom_call.1} parent=1 // pred_check
      _
    $region51: #{tpu_custom_call.1} parent=1 // pred_check_branch
      %111 = sbr.rel (0) target = $region53
    $region52: #{tpu_custom_call.1} parent=1 // pred_region
      _
    $region53: #{tpu_custom_call.1} parent=1 // pred_fallthru
      _
    // Predicated region
    $region54: #{tpu_custom_call.1} parent=1 // pred_check
      _
    $region55: #{tpu_custom_call.1} parent=1 // pred_check_branch
      %113 = sbr.rel (0) target = $region57
    $region56: #{tpu_custom_call.1} parent=1 // pred_region
      %s115 = ssub.s32 8192, 8192
      %116 = vsyncadd [#allocation12], %s115
      %s117 = sshll.u32 [#allocation13], 4
      %s118 = int_to_ptr.vmem [resolvable:$true] %s117
      %123 = dma.hbm_to_vmem [thread:$0]  %s13, 8192, %s118, [#allocation12], 256, 256, 16
    $region57: #{tpu_custom_call.1} parent=1 // pred_fallthru
      _
    // Predicated region
    $region58: #{tpu_custom_call.1} parent=1 // pred_check
      _
    $region59: #{tpu_custom_call.1} parent=1 // pred_check_branch
      %125 = sbr.rel (0) target = $region61
    $region60: #{tpu_custom_call.1} parent=1 // pred_region
      _
    $region61: #{tpu_custom_call.1} parent=1 // pred_fallthru
      _
    // Predicated region
    $region62: #{tpu_custom_call.1} parent=1 // pred_check
      _
    $region63: #{tpu_custom_call.1} parent=1 // pred_check_branch
      %127 = sbr.rel (0) target = $region65
    $region64: #{tpu_custom_call.1} parent=1 // pred_region
      _
    $region65: #{tpu_custom_call.1} parent=1 // pred_fallthru
      _
    // Predicated region
    $region66: #{tpu_custom_call.1} parent=1 // pred_check
      _
    $region67: #{tpu_custom_call.1} parent=1 // pred_check_branch
      %129 = sbr.rel (0) target = $region69
    $region68: #{tpu_custom_call.1} parent=1 // pred_region
      %s131 = ssub.s32 4096, 4096
      %132 = vsyncadd [#allocation15], %s131
      %s133 = sshll.u32 [#allocation14], 4
      %s134 = int_to_ptr.vmem [resolvable:$true] %s133
      %139 = dma.hbm_to_vmem [thread:$0]  %s16, 4096, %s134, [#allocation15], 64, 64, 4
    $region69: #{tpu_custom_call.1} parent=1 // pred_fallthru
      _
    // Predicated region
    $region70: #{tpu_custom_call.1} parent=1 // pred_check
      _
    $region71: #{tpu_custom_call.1} parent=1 // pred_check_branch
      %141 = sbr.rel (0) target = $region73
    $region72: #{tpu_custom_call.1} parent=1 // pred_region
      _
    $region73: #{tpu_custom_call.1} parent=1 // pred_fallthru
      _
    // Predicated region
    $region74: #{tpu_custom_call.1} parent=1 // pred_check
      _
    $region75: #{tpu_custom_call.1} parent=1 // pred_check_branch
      %143 = sbr.rel (0) target = $region77
    $region76: #{tpu_custom_call.1} parent=1 // pred_region
      %144 = dma.done [#allocation3], 64
    $region77: #{tpu_custom_call.1} parent=1 // pred_fallthru
      _
    // Predicated region
    $region78: #{tpu_custom_call.1} parent=1 // pred_check
      _
    $region79: #{tpu_custom_call.1} parent=1 // pred_check_branch
      %146 = sbr.rel (0) target = $region81
    $region80: #{tpu_custom_call.1} parent=1 // pred_region
      %147 = dma.done [#allocation6], 8192
    $region81: #{tpu_custom_call.1} parent=1 // pred_fallthru
      _
    // Predicated region
    $region82: #{tpu_custom_call.1} parent=1 // pred_check
      _
    $region83: #{tpu_custom_call.1} parent=1 // pred_check_branch
      %149 = sbr.rel (0) target = $region85
    $region84: #{tpu_custom_call.1} parent=1 // pred_region
      %150 = dma.done [#allocation6], 32
    $region85: #{tpu_custom_call.1} parent=1 // pred_fallthru
      _
    // Predicated region
    $region86: #{tpu_custom_call.1} parent=1 // pred_check
      _
    $region87: #{tpu_custom_call.1} parent=1 // pred_check_branch
      %152 = sbr.rel (0) target = $region89
    $region88: #{tpu_custom_call.1} parent=1 // pred_region
      %153 = dma.done [#allocation9], 2048
    $region89: #{tpu_custom_call.1} parent=1 // pred_fallthru
      _
    // Predicated region
    $region90: #{tpu_custom_call.1} parent=1 // pred_check
      _
    $region91: #{tpu_custom_call.1} parent=1 // pred_check_branch
      %155 = sbr.rel (0) target = $region93
    $region92: #{tpu_custom_call.1} parent=1 // pred_region
      %156 = dma.done [#allocation9], 16
    $region93: #{tpu_custom_call.1} parent=1 // pred_fallthru
      _
    // Predicated region
    $region94: #{tpu_custom_call.1} parent=1 // pred_check
      _
    $region95: #{tpu_custom_call.1} parent=1 // pred_check_branch
      %158 = sbr.rel (0) target = $region97
    $region96: #{tpu_custom_call.1} parent=1 // pred_region
      %159 = dma.done [#allocation12], 2048
    $region97: #{tpu_custom_call.1} parent=1 // pred_fallthru
      _
    // Predicated region
    $region98: #{tpu_custom_call.1} parent=1 // pred_check
      _
    $region99: #{tpu_custom_call.1} parent=1 // pred_check_branch
      %161 = sbr.rel (0) target = $region101
    $region100: #{tpu_custom_call.1} parent=1 // pred_region
      %162 = dma.done [#allocation12], 8192
    $region101: #{tpu_custom_call.1} parent=1 // pred_fallthru
      _
    // Predicated region
    $region102: #{tpu_custom_call.1} parent=1 // pred_check
      _
    $region103: #{tpu_custom_call.1} parent=1 // pred_check_branch
      %164 = sbr.rel (0) target = $region105
    $region104: #{tpu_custom_call.1} parent=1 // pred_region
      %165 = dma.done [#allocation15], 4096
    $region105: #{tpu_custom_call.1} parent=1 // pred_fallthru
      _
    %v167 = vld [vmem:[%s0] sm:$0xff]
    %v168 = vld [vmem:[%s0 + $0x8] sm:$0xff]
    %v169 = vld [vmem:[%s0 + $0x10] sm:$0xff]
    %v170 = vld [vmem:[%s0 + $0x18] sm:$0xff]
    %v171 = vld [vmem:[%s0 + $0x20] sm:$0xff]
    %v172 = vld [vmem:[%s0 + $0x28] sm:$0xff]
    %v173 = vld [vmem:[%s0 + $0x30] sm:$0xff]
    %v174 = vld [vmem:[%s0 + $0x38] sm:$0xff]
    %v175 = vld [vmem:[%s0 + $0x40] sm:$0xff]
    %v176 = vld [vmem:[%s0 + $0x48] sm:$0xff]
    %v177 = vld [vmem:[%s0 + $0x50] sm:$0xff]
    %v178 = vld [vmem:[%s0 + $0x58] sm:$0xff]
    %v179 = vld [vmem:[%s0 + $0x60] sm:$0xff]
    %v180 = vld [vmem:[%s0 + $0x68] sm:$0xff]
    %v181 = vld [vmem:[%s0 + $0x70] sm:$0xff]
    %v182 = vld [vmem:[%s0 + $0x78] sm:$0xff]
    %v183 = vld [vmem:[%s0 + $0x80] sm:$0xff]
    %v184 = vld [vmem:[%s0 + $0x88] sm:$0xff]
    %v185 = vld [vmem:[%s0 + $0x90] sm:$0xff]
    %v186 = vld [vmem:[%s0 + $0x98] sm:$0xff]
    %v187 = vld [vmem:[%s0 + $0xa0] sm:$0xff]
    %v188 = vld [vmem:[%s0 + $0xa8] sm:$0xff]
    %v189 = vld [vmem:[%s0 + $0xb0] sm:$0xff]
    %v190 = vld [vmem:[%s0 + $0xb8] sm:$0xff]
    %v191 = vld [vmem:[%s0 + $0xc0] sm:$0xff]
    %v192 = vld [vmem:[%s0 + $0xc8] sm:$0xff]
    %v193 = vld [vmem:[%s0 + $0xd0] sm:$0xff]
    %v194 = vld [vmem:[%s0 + $0xd8] sm:$0xff]
    %v195 = vld [vmem:[%s0 + $0xe0] sm:$0xff]
    %v196 = vld [vmem:[%s0 + $0xe8] sm:$0xff]
    %v197 = vld [vmem:[%s0 + $0xf0] sm:$0xff]
    %v198 = vld [vmem:[%s0 + $0xf8] sm:$0xff]
    %v199 = vpack.c.bf16 %v168, %v167
    %v200 = vpack.c.bf16 %v170, %v169
    %v201 = vpack.c.bf16 %v172, %v171
    %v202 = vpack.c.bf16 %v174, %v173
    %v203 = vpack.c.bf16 %v176, %v175
    %v204 = vpack.c.bf16 %v178, %v177
    %v205 = vpack.c.bf16 %v180, %v179
    %v206 = vpack.c.bf16 %v182, %v181
    %v207 = vpack.c.bf16 %v184, %v183
    %v208 = vpack.c.bf16 %v186, %v185
    %v209 = vpack.c.bf16 %v188, %v187
    %v210 = vpack.c.bf16 %v190, %v189
    %v211 = vpack.c.bf16 %v192, %v191
    %v212 = vpack.c.bf16 %v194, %v193
    %v213 = vpack.c.bf16 %v196, %v195
    %v214 = vpack.c.bf16 %v198, %v197
    %v215 = vld [vmem:[%s2] sm:$0xff]
    %v216 = vld [vmem:[%s2 + $0x8] sm:$0xff]
    %v217 = vld [vmem:[%s2 + $0x10] sm:$0xff]
    %v218 = vld [vmem:[%s2 + $0x18] sm:$0xff]
    %v219 = vld [vmem:[%s2 + $0x20] sm:$0xff]
    %v220 = vld [vmem:[%s2 + $0x28] sm:$0xff]
    %v221 = vld [vmem:[%s2 + $0x30] sm:$0xff]
    %v222 = vld [vmem:[%s2 + $0x38] sm:$0xff]
    %v223 = vld [vmem:[%s2 + $0x40] sm:$0xff]
    %v224 = vld [vmem:[%s2 + $0x48] sm:$0xff]
    %v225 = vld [vmem:[%s2 + $0x50] sm:$0xff]
    %v226 = vld [vmem:[%s2 + $0x58] sm:$0xff]
    %v227 = vld [vmem:[%s2 + $0x60] sm:$0xff]
    %v228 = vld [vmem:[%s2 + $0x68] sm:$0xff]
    %v229 = vld [vmem:[%s2 + $0x70] sm:$0x77]
    %v230 = vld [vmem:[%s2 + $0x78] sm:$0x77]
    %v247 = vunpack.c.l.b16 %v215
    %v248 = vunpack.c.h.b16 %v215
    %v249 = vunpack.c.l.b16 %v216
    %v250 = vunpack.c.h.b16 %v216
    %v251 = vunpack.c.l.b16 %v217
    %v252 = vunpack.c.h.b16 %v217
    %v253 = vunpack.c.l.b16 %v218
    %v254 = vunpack.c.h.b16 %v218
    %v255 = vunpack.c.l.b16 %v219
    %v256 = vunpack.c.h.b16 %v219
    %v257 = vunpack.c.l.b16 %v220
    %v258 = vunpack.c.h.b16 %v220
    %v259 = vunpack.c.l.b16 %v221
    %v260 = vunpack.c.h.b16 %v221
    %v261 = vunpack.c.l.b16 %v222
    %v262 = vunpack.c.h.b16 %v222
    %v263 = vunpack.c.l.b16 %v223
    %v264 = vunpack.c.h.b16 %v223
    %v265 = vunpack.c.l.b16 %v224
    %v266 = vunpack.c.h.b16 %v224
    %v267 = vunpack.c.l.b16 %v225
    %v268 = vunpack.c.h.b16 %v225
    %v269 = vunpack.c.l.b16 %v226
    %v270 = vunpack.c.h.b16 %v226
    %v271 = vunpack.c.l.b16 %v227
    %v272 = vunpack.c.h.b16 %v227
    %v273 = vunpack.c.l.b16 %v228
    %v274 = vunpack.c.h.b16 %v228
    %v275 = vunpack.c.l.b16 %v229
    %v276 = vunpack.c.h.b16 %v229
    %v277 = vunpack.c.l.b16 %v230
    %v278 = vunpack.c.h.b16 %v230
    %v279 = vpack.c.b16 %v251, %v247
    %v280 = vpack.c.b16 %v252, %v248
    %v281 = vpack.c.b16 %v253, %v249
    %v282 = vpack.c.b16 %v254, %v250
    %v283 = vpack.c.b16 %v259, %v255
    %v284 = vpack.c.b16 %v260, %v256
    %v285 = vpack.c.b16 %v261, %v257
    %v286 = vpack.c.b16 %v262, %v258
    %v287 = vpack.c.b16 %v267, %v263
    %v288 = vpack.c.b16 %v268, %v264
    %v289 = vpack.c.b16 %v269, %v265
    %v290 = vpack.c.b16 %v270, %v266
    %v291 = vpack.c.b16 %v275, %v271
    %v292 = vpack.c.b16 %v276, %v272
    %v293 = vpack.c.b16 %v277, %v273
    %v294 = vpack.c.b16 %v278, %v274
    %vm307 = vcmask 506880
    %v309 = vsel %vm307, %v199, 0
    %v312 = vsel %vm307, %v200, 0
    %v315 = vsel %vm307, %v201, 0
    %v318 = vsel %vm307, %v202, 0
    %v321 = vsel %vm307, %v203, 0
    %v324 = vsel %vm307, %v204, 0
    %v327 = vsel %vm307, %v205, 0
    %v330 = vsel %vm307, %v206, 0
    %v333 = vsel %vm307, %v207, 0
    %v336 = vsel %vm307, %v208, 0
    %v339 = vsel %vm307, %v209, 0
    %v342 = vsel %vm307, %v210, 0
    %v345 = vsel %vm307, %v211, 0
    %v348 = vsel %vm307, %v212, 0
    %v351 = vsel %vm307, %v213, 0
    %v354 = vsel %vm307, %v214, 0
    %vm356 = vcmask 1046528
    %v358 = vsel %vm356, %v291, 0
    %v361 = vsel %vm356, %v292, 0
    %v364 = vsel %vm356, %v293, 0
    %v367 = vsel %vm356, %v294, 0
    %369 = vmatprep.subr.bf16.mxu0 0
    %370 = vmatpush1.bf16.msra.mxu0 0
    %371 = vmatprep.subr.bf16.mxu0 0
    %372 = vmatpush1.bf16.msra.mxu0 0
    %373 = vmatprep.subr.bf16.mxu0 0
    %374 = vmatpush1.bf16.msra.mxu0 0
    %375 = vmatprep.subr.bf16.mxu0 0
    %376 = vmatpush1.bf16.msra.mxu0 0
    %377 = vmatprep.subr.bf16.mxu0 %v361
    %378 = vmatpush1.bf16.msra.mxu0 %v358
    %379 = vmatprep.subr.bf16.mxu0 %v288
    %380 = vmatpush1.bf16.msra.mxu0 %v287
    %381 = vmatprep.subr.bf16.mxu0 %v284
    %382 = vmatpush1.bf16.msra.mxu0 %v283
    %383 = vmatprep.subr.bf16.mxu0 %v280
    %384 = vmatpush1.bf16.msra.mxu0 %v279
    %385 = vmatprep.subr.bf16.mxu0 0
    %386 = vmatpush2.bf16.msra.mxu0 0
    %387 = vmatprep.subr.bf16.mxu0 0
    %388 = vmatpush2.bf16.msra.mxu0 0
    %389 = vmatprep.subr.bf16.mxu0 0
    %390 = vmatpush2.bf16.msra.mxu0 0
    %391 = vmatprep.subr.bf16.mxu0 0
    %392 = vmatpush2.bf16.msra.mxu0 0
    %393 = vmatprep.subr.bf16.mxu0 0
    %394 = vmatpush2.bf16.msra.mxu0 0
    %395 = vmatprep.subr.bf16.mxu0 0
    %396 = vmatpush2.bf16.msra.mxu0 0
    %397 = vmatprep.subr.bf16.mxu0 0
    %398 = vmatpush2.bf16.msra.mxu0 0
    %399 = vmatprep.subr.bf16.mxu0 0
    %400 = vmatpush2.bf16.msra.mxu0 0
    %401 = vmatprep.mubr.bf16.mxu0 0
    %402 = vmatmul.mubr.bf16.gmra.mxu0 %v309
    %v403 = vpop.f32.mrf.mxu0
    %v404 = vadd.f32 0.0, %v403
    %v405 = vpop.f32.mrf.mxu0
    %v406 = vadd.f32 0.0, %v405
    %v407 = vpop.f32.mrf.mxu0
    %v408 = vadd.f32 0.0, %v407
    %v409 = vpop.f32.mrf.mxu0
    %v410 = vadd.f32 0.0, %v409
    %411 = vmatprep.mubr.bf16.mxu0 0
    %412 = vmatmul.mubr.bf16.gmra.mxu0 %v312
    %v413 = vpop.f32.mrf.mxu0
    %v414 = vadd.f32 0.0, %v413
    %v415 = vpop.f32.mrf.mxu0
    %v416 = vadd.f32 0.0, %v415
    %v417 = vpop.f32.mrf.mxu0
    %v418 = vadd.f32 0.0, %v417
    %v419 = vpop.f32.mrf.mxu0
    %v420 = vadd.f32 0.0, %v419
    %421 = vmatprep.mubr.bf16.mxu0 0
    %422 = vmatmul.mubr.bf16.gmra.mxu0 %v315
    %v423 = vpop.f32.mrf.mxu0
    %v424 = vadd.f32 0.0, %v423
    %v425 = vpop.f32.mrf.mxu0
    %v426 = vadd.f32 0.0, %v425
    %v427 = vpop.f32.mrf.mxu0
    %v428 = vadd.f32 0.0, %v427
    %v429 = vpop.f32.mrf.mxu0
    %v430 = vadd.f32 0.0, %v429
    %431 = vmatprep.mubr.bf16.mxu0 0
    %432 = vmatmul.mubr.bf16.gmra.mxu0 %v318
    %v433 = vpop.f32.mrf.mxu0
    %v434 = vadd.f32 0.0, %v433
    %v435 = vpop.f32.mrf.mxu0
    %v436 = vadd.f32 0.0, %v435
    %v437 = vpop.f32.mrf.mxu0
    %v438 = vadd.f32 0.0, %v437
    %v439 = vpop.f32.mrf.mxu0
    %v440 = vadd.f32 0.0, %v439
    %441 = vmatprep.mubr.bf16.mxu0 0
    %442 = vmatmul.mubr.bf16.gmra.mxu0 %v321
    %v443 = vpop.f32.mrf.mxu0
    %v444 = vadd.f32 0.0, %v443
    %v445 = vpop.f32.mrf.mxu0
    %v446 = vadd.f32 0.0, %v445
    %v447 = vpop.f32.mrf.mxu0
    %v448 = vadd.f32 0.0, %v447
    %v449 = vpop.f32.mrf.mxu0
    %v450 = vadd.f32 0.0, %v449
    %451 = vmatprep.mubr.bf16.mxu0 0
    %452 = vmatmul.mubr.bf16.gmra.mxu0 %v324
    %v453 = vpop.f32.mrf.mxu0
    %v454 = vadd.f32 0.0, %v453
    %v455 = vpop.f32.mrf.mxu0
    %v456 = vadd.f32 0.0, %v455
    %v457 = vpop.f32.mrf.mxu0
    %v458 = vadd.f32 0.0, %v457
    %v459 = vpop.f32.mrf.mxu0
    %v460 = vadd.f32 0.0, %v459
    %461 = vmatprep.mubr.bf16.mxu0 0
    %462 = vmatmul.mubr.bf16.gmra.mxu0 %v327
    %v463 = vpop.f32.mrf.mxu0
    %v464 = vadd.f32 0.0, %v463
    %v465 = vpop.f32.mrf.mxu0
    %v466 = vadd.f32 0.0, %v465
    %v467 = vpop.f32.mrf.mxu0
    %v468 = vadd.f32 0.0, %v467
    %v469 = vpop.f32.mrf.mxu0
    %v470 = vadd.f32 0.0, %v469
    %471 = vmatprep.mubr.bf16.mxu0 0
    %472 = vmatmul.mubr.bf16.gmra.mxu0 %v330
    %v473 = vpop.f32.mrf.mxu0
    %v474 = vadd.f32 0.0, %v473
    %v475 = vpop.f32.mrf.mxu0
    %v476 = vadd.f32 0.0, %v475
    %v477 = vpop.f32.mrf.mxu0
    %v478 = vadd.f32 0.0, %v477
    %v479 = vpop.f32.mrf.mxu0
    %v480 = vadd.f32 0.0, %v479
    %481 = vmatprep.mubr.bf16.mxu0 0
    %482 = vmatmul.mubr.bf16.gmra.mxu0 %v333
    %v483 = vpop.f32.mrf.mxu0
    %v484 = vadd.f32 0.0, %v483
    %v485 = vpop.f32.mrf.mxu0
    %v486 = vadd.f32 0.0, %v485
    %v487 = vpop.f32.mrf.mxu0
    %v488 = vadd.f32 0.0, %v487
    %v489 = vpop.f32.mrf.mxu0
    %v490 = vadd.f32 0.0, %v489
    %491 = vmatprep.mubr.bf16.mxu0 0
    %492 = vmatmul.mubr.bf16.gmra.mxu0 %v336
    %v493 = vpop.f32.mrf.mxu0
    %v494 = vadd.f32 0.0, %v493
    %v495 = vpop.f32.mrf.mxu0
    %v496 = vadd.f32 0.0, %v495
    %v497 = vpop.f32.mrf.mxu0
    %v498 = vadd.f32 0.0, %v497
    %v499 = vpop.f32.mrf.mxu0
    %v500 = vadd.f32 0.0, %v499
    %501 = vmatprep.mubr.bf16.mxu0 0
    %502 = vmatmul.mubr.bf16.gmra.mxu0 %v339
    %v503 = vpop.f32.mrf.mxu0
    %v504 = vadd.f32 0.0, %v503
    %v505 = vpop.f32.mrf.mxu0
    %v506 = vadd.f32 0.0, %v505
    %v507 = vpop.f32.mrf.mxu0
    %v508 = vadd.f32 0.0, %v507
    %v509 = vpop.f32.mrf.mxu0
    %v510 = vadd.f32 0.0, %v509
    %511 = vmatprep.mubr.bf16.mxu0 0
    %512 = vmatmul.mubr.bf16.gmra.mxu0 %v342
    %v513 = vpop.f32.mrf.mxu0
    %v514 = vadd.f32 0.0, %v513
    %v515 = vpop.f32.mrf.mxu0
    %v516 = vadd.f32 0.0, %v515
    %v517 = vpop.f32.mrf.mxu0
    %v518 = vadd.f32 0.0, %v517
    %v519 = vpop.f32.mrf.mxu0
    %v520 = vadd.f32 0.0, %v519
    %521 = vmatprep.mubr.bf16.mxu0 0
    %522 = vmatmul.mubr.bf16.gmra.mxu0 %v345
    %v523 = vpop.f32.mrf.mxu0
    %v524 = vadd.f32 0.0, %v523
    %v525 = vpop.f32.mrf.mxu0
    %v526 = vadd.f32 0.0, %v525
    %v527 = vpop.f32.mrf.mxu0
    %v528 = vadd.f32 0.0, %v527
    %v529 = vpop.f32.mrf.mxu0
    %v530 = vadd.f32 0.0, %v529
    %531 = vmatprep.mubr.bf16.mxu0 0
    %532 = vmatmul.mubr.bf16.gmra.mxu0 %v348
    %v533 = vpop.f32.mrf.mxu0
    %v534 = vadd.f32 0.0, %v533
    %v535 = vpop.f32.mrf.mxu0
    %v536 = vadd.f32 0.0, %v535
    %v537 = vpop.f32.mrf.mxu0
    %v538 = vadd.f32 0.0, %v537
    %v539 = vpop.f32.mrf.mxu0
    %v540 = vadd.f32 0.0, %v539
    %541 = vmatprep.mubr.bf16.mxu0 0
    %542 = vmatmul.mubr.bf16.gmra.mxu0 %v351
    %v543 = vpop.f32.mrf.mxu0
    %v544 = vadd.f32 0.0, %v543
    %v545 = vpop.f32.mrf.mxu0
    %v546 = vadd.f32 0.0, %v545
    %v547 = vpop.f32.mrf.mxu0
    %v548 = vadd.f32 0.0, %v547
    %v549 = vpop.f32.mrf.mxu0
    %v550 = vadd.f32 0.0, %v549
    %551 = vmatprep.mubr.bf16.mxu0 0
    %552 = vmatmul.mubr.bf16.gmra.mxu0 %v354
    %v553 = vpop.f32.mrf.mxu0
    %v554 = vadd.f32 0.0, %v553
    %v555 = vpop.f32.mrf.mxu0
    %v556 = vadd.f32 0.0, %v555
    %v557 = vpop.f32.mrf.mxu0
    %v558 = vadd.f32 0.0, %v557
    %v559 = vpop.f32.mrf.mxu0
    %v560 = vadd.f32 0.0, %v559
    %561 = vdwg.mxu0
    %562 = vmatprep.subr.bf16.mxu0 0
    %563 = vmatpush1.bf16.msra.mxu0 0
    %564 = vmatprep.subr.bf16.mxu0 0
    %565 = vmatpush1.bf16.msra.mxu0 0
    %566 = vmatprep.subr.bf16.mxu0 0
    %567 = vmatpush1.bf16.msra.mxu0 0
    %568 = vmatprep.subr.bf16.mxu0 0
    %569 = vmatpush1.bf16.msra.mxu0 0
    %570 = vmatprep.subr.bf16.mxu0 %v367
    %571 = vmatpush1.bf16.msra.mxu0 %v364
    %572 = vmatprep.subr.bf16.mxu0 %v290
    %573 = vmatpush1.bf16.msra.mxu0 %v289
    %574 = vmatprep.subr.bf16.mxu0 %v286
    %575 = vmatpush1.bf16.msra.mxu0 %v285
    %576 = vmatprep.subr.bf16.mxu0 %v282
    %577 = vmatpush1.bf16.msra.mxu0 %v281
    %578 = vmatprep.subr.bf16.mxu0 0
    %579 = vmatpush2.bf16.msra.mxu0 0
    %580 = vmatprep.subr.bf16.mxu0 0
    %581 = vmatpush2.bf16.msra.mxu0 0
    %582 = vmatprep.subr.bf16.mxu0 0
    %583 = vmatpush2.bf16.msra.mxu0 0
    %584 = vmatprep.subr.bf16.mxu0 0
    %585 = vmatpush2.bf16.msra.mxu0 0
    %586 = vmatprep.subr.bf16.mxu0 0
    %587 = vmatpush2.bf16.msra.mxu0 0
    %588 = vmatprep.subr.bf16.mxu0 0
    %589 = vmatpush2.bf16.msra.mxu0 0
    %590 = vmatprep.subr.bf16.mxu0 0
    %591 = vmatpush2.bf16.msra.mxu0 0
    %592 = vmatprep.subr.bf16.mxu0 0
    %593 = vmatpush2.bf16.msra.mxu0 0
    %594 = vmatprep.mubr.bf16.mxu0 0
    %595 = vmatmul.mubr.bf16.gmra.mxu0 %v309
    %v596 = vpop.f32.mrf.mxu0
    %v597 = vadd.f32 0.0, %v596
    %v598 = vpop.f32.mrf.mxu0
    %v599 = vadd.f32 0.0, %v598
    %v600 = vpop.f32.mrf.mxu0
    %v601 = vadd.f32 0.0, %v600
    %v602 = vpop.f32.mrf.mxu0
    %v603 = vadd.f32 0.0, %v602
    %604 = vmatprep.mubr.bf16.mxu0 0
    %605 = vmatmul.mubr.bf16.gmra.mxu0 %v312
    %v606 = vpop.f32.mrf.mxu0
    %v607 = vadd.f32 0.0, %v606
    %v608 = vpop.f32.mrf.mxu0
    %v609 = vadd.f32 0.0, %v608
    %v610 = vpop.f32.mrf.mxu0
    %v611 = vadd.f32 0.0, %v610
    %v612 = vpop.f32.mrf.mxu0
    %v613 = vadd.f32 0.0, %v612
    %614 = vmatprep.mubr.bf16.mxu0 0
    %615 = vmatmul.mubr.bf16.gmra.mxu0 %v315
    %v616 = vpop.f32.mrf.mxu0
    %v617 = vadd.f32 0.0, %v616
    %v618 = vpop.f32.mrf.mxu0
    %v619 = vadd.f32 0.0, %v618
    %v620 = vpop.f32.mrf.mxu0
    %v621 = vadd.f32 0.0, %v620
    %v622 = vpop.f32.mrf.mxu0
    %v623 = vadd.f32 0.0, %v622
    %624 = vmatprep.mubr.bf16.mxu0 0
    %625 = vmatmul.mubr.bf16.gmra.mxu0 %v318
    %v626 = vpop.f32.mrf.mxu0
    %v627 = vadd.f32 0.0, %v626
    %v628 = vpop.f32.mrf.mxu0
    %v629 = vadd.f32 0.0, %v628
    %v630 = vpop.f32.mrf.mxu0
    %v631 = vadd.f32 0.0, %v630
    %v632 = vpop.f32.mrf.mxu0
    %v633 = vadd.f32 0.0, %v632
    %634 = vmatprep.mubr.bf16.mxu0 0
    %635 = vmatmul.mubr.bf16.gmra.mxu0 %v321
    %v636 = vpop.f32.mrf.mxu0
    %v637 = vadd.f32 0.0, %v636
    %v638 = vpop.f32.mrf.mxu0
    %v639 = vadd.f32 0.0, %v638
    %v640 = vpop.f32.mrf.mxu0
    %v641 = vadd.f32 0.0, %v640
    %v642 = vpop.f32.mrf.mxu0
    %v643 = vadd.f32 0.0, %v642
    %644 = vmatprep.mubr.bf16.mxu0 0
    %645 = vmatmul.mubr.bf16.gmra.mxu0 %v324
    %v646 = vpop.f32.mrf.mxu0
    %v647 = vadd.f32 0.0, %v646
    %v648 = vpop.f32.mrf.mxu0
    %v649 = vadd.f32 0.0, %v648
    %v650 = vpop.f32.mrf.mxu0
    %v651 = vadd.f32 0.0, %v650
    %v652 = vpop.f32.mrf.mxu0
    %v653 = vadd.f32 0.0, %v652
    %654 = vmatprep.mubr.bf16.mxu0 0
    %655 = vmatmul.mubr.bf16.gmra.mxu0 %v327
    %v656 = vpop.f32.mrf.mxu0
    %v657 = vadd.f32 0.0, %v656
    %v658 = vpop.f32.mrf.mxu0
    %v659 = vadd.f32 0.0, %v658
    %v660 = vpop.f32.mrf.mxu0
    %v661 = vadd.f32 0.0, %v660
    %v662 = vpop.f32.mrf.mxu0
    %v663 = vadd.f32 0.0, %v662
    %664 = vmatprep.mubr.bf16.mxu0 0
    %665 = vmatmul.mubr.bf16.gmra.mxu0 %v330
    %v666 = vpop.f32.mrf.mxu0
    %v667 = vadd.f32 0.0, %v666
    %v668 = vpop.f32.mrf.mxu0
    %v669 = vadd.f32 0.0, %v668
    %v670 = vpop.f32.mrf.mxu0
    %v671 = vadd.f32 0.0, %v670
    %v672 = vpop.f32.mrf.mxu0
    %v673 = vadd.f32 0.0, %v672
    %674 = vmatprep.mubr.bf16.mxu0 0
    %675 = vmatmul.mubr.bf16.gmra.mxu0 %v333
    %v676 = vpop.f32.mrf.mxu0
    %v677 = vadd.f32 0.0, %v676
    %v678 = vpop.f32.mrf.mxu0
    %v679 = vadd.f32 0.0, %v678
    %v680 = vpop.f32.mrf.mxu0
    %v681 = vadd.f32 0.0, %v680
    %v682 = vpop.f32.mrf.mxu0
    %v683 = vadd.f32 0.0, %v682
    %684 = vmatprep.mubr.bf16.mxu0 0
    %685 = vmatmul.mubr.bf16.gmra.mxu0 %v336
    %v686 = vpop.f32.mrf.mxu0
    %v687 = vadd.f32 0.0, %v686
    %v688 = vpop.f32.mrf.mxu0
    %v689 = vadd.f32 0.0, %v688
    %v690 = vpop.f32.mrf.mxu0
    %v691 = vadd.f32 0.0, %v690
    %v692 = vpop.f32.mrf.mxu0
    %v693 = vadd.f32 0.0, %v692
    %694 = vmatprep.mubr.bf16.mxu0 0
    %695 = vmatmul.mubr.bf16.gmra.mxu0 %v339
    %v696 = vpop.f32.mrf.mxu0
    %v697 = vadd.f32 0.0, %v696
    %v698 = vpop.f32.mrf.mxu0
    %v699 = vadd.f32 0.0, %v698
    %v700 = vpop.f32.mrf.mxu0
    %v701 = vadd.f32 0.0, %v700
    %v702 = vpop.f32.mrf.mxu0
    %v703 = vadd.f32 0.0, %v702
    %704 = vmatprep.mubr.bf16.mxu0 0
    %705 = vmatmul.mubr.bf16.gmra.mxu0 %v342
    %v706 = vpop.f32.mrf.mxu0
    %v707 = vadd.f32 0.0, %v706
    %v708 = vpop.f32.mrf.mxu0
    %v709 = vadd.f32 0.0, %v708
    %v710 = vpop.f32.mrf.mxu0
    %v711 = vadd.f32 0.0, %v710
    %v712 = vpop.f32.mrf.mxu0
    %v713 = vadd.f32 0.0, %v712
    %714 = vmatprep.mubr.bf16.mxu0 0
    %715 = vmatmul.mubr.bf16.gmra.mxu0 %v345
    %v716 = vpop.f32.mrf.mxu0
    %v717 = vadd.f32 0.0, %v716
    %v718 = vpop.f32.mrf.mxu0
    %v719 = vadd.f32 0.0, %v718
    %v720 = vpop.f32.mrf.mxu0
    %v721 = vadd.f32 0.0, %v720
    %v722 = vpop.f32.mrf.mxu0
    %v723 = vadd.f32 0.0, %v722
    %724 = vmatprep.mubr.bf16.mxu0 0
    %725 = vmatmul.mubr.bf16.gmra.mxu0 %v348
    %v726 = vpop.f32.mrf.mxu0
    %v727 = vadd.f32 0.0, %v726
    %v728 = vpop.f32.mrf.mxu0
    %v729 = vadd.f32 0.0, %v728
    %v730 = vpop.f32.mrf.mxu0
    %v731 = vadd.f32 0.0, %v730
    %v732 = vpop.f32.mrf.mxu0
    %v733 = vadd.f32 0.0, %v732
    %734 = vmatprep.mubr.bf16.mxu0 0
    %735 = vmatmul.mubr.bf16.gmra.mxu0 %v351
    %v736 = vpop.f32.mrf.mxu0
    %v737 = vadd.f32 0.0, %v736
    %v738 = vpop.f32.mrf.mxu0
    %v739 = vadd.f32 0.0, %v738
    %v740 = vpop.f32.mrf.mxu0
    %v741 = vadd.f32 0.0, %v740
    %v742 = vpop.f32.mrf.mxu0
    %v743 = vadd.f32 0.0, %v742
    %744 = vmatprep.mubr.bf16.mxu0 0
    %745 = vmatmul.mubr.bf16.gmra.mxu0 %v354
    %v746 = vpop.f32.mrf.mxu0
    %v747 = vadd.f32 0.0, %v746
    %v748 = vpop.f32.mrf.mxu0
    %v749 = vadd.f32 0.0, %v748
    %v750 = vpop.f32.mrf.mxu0
    %v751 = vadd.f32 0.0, %v750
    %v752 = vpop.f32.mrf.mxu0
    %v753 = vadd.f32 0.0, %v752
    %754 = vdwg.mxu0
    %v755 = vld [vmem:[%s3] sm:$0xf]
    %v756 = vld [vmem:[#allocation2] sm:$0xf]
    %v757 = vadd.f32 %v404, %v408
    %v758 = vadd.f32 %v757, %v414
    %v759 = vadd.f32 %v758, %v418
    %v760 = vadd.f32 %v759, %v424
    %v761 = vadd.f32 %v760, %v428
    %v762 = vadd.f32 %v761, %v434
    %v763 = vadd.f32 %v762, %v438
    %v764 = vadd.f32 %v763, %v444
    %v765 = vadd.f32 %v764, %v448
    %v766 = vadd.f32 %v765, %v454
    %v767 = vadd.f32 %v766, %v458
    %v768 = vadd.f32 %v767, %v464
    %v769 = vadd.f32 %v768, %v468
    %v770 = vadd.f32 %v769, %v474
    %v771 = vadd.f32 %v770, %v478
    %v772 = vadd.f32 %v771, %v484
    %v773 = vadd.f32 %v772, %v488
    %v774 = vadd.f32 %v773, %v494
    %v775 = vadd.f32 %v774, %v498
    %v776 = vadd.f32 %v775, %v504
    %v777 = vadd.f32 %v776, %v508
    %v778 = vadd.f32 %v777, %v514
    %v779 = vadd.f32 %v778, %v518
    %v780 = vadd.f32 %v779, %v524
    %v781 = vadd.f32 %v780, %v528
    %v782 = vadd.f32 %v781, %v534
    %v783 = vadd.f32 %v782, %v538
    %v784 = vadd.f32 %v783, %v544
    %v785 = vadd.f32 %v784, %v548
    %v786 = vadd.f32 %v785, %v554
    %v787 = vadd.f32 %v786, %v558
    %v788 = vrot.slane %v787, 4
    %v789 = vadd.f32 %v787, %v788
    %v790 = vrot.slane %v789, 2
    %v791 = vadd.f32 %v789, %v790
    %v792 = vrot.slane %v791, 1
    %v793 = vadd.f32 %v791, %v792
    %v794 = vadd.f32 %v406, %v410
    %v795 = vadd.f32 %v794, %v416
    %v796 = vadd.f32 %v795, %v420
    %v797 = vadd.f32 %v796, %v426
    %v798 = vadd.f32 %v797, %v430
    %v799 = vadd.f32 %v798, %v436
    %v800 = vadd.f32 %v799, %v440
    %v801 = vadd.f32 %v800, %v446
    %v802 = vadd.f32 %v801, %v450
    %v803 = vadd.f32 %v802, %v456
    %v804 = vadd.f32 %v803, %v460
    %v805 = vadd.f32 %v804, %v466
    %v806 = vadd.f32 %v805, %v470
    %v807 = vadd.f32 %v806, %v476
    %v808 = vadd.f32 %v807, %v480
    %v809 = vadd.f32 %v808, %v486
    %v810 = vadd.f32 %v809, %v490
    %v811 = vadd.f32 %v810, %v496
    %v812 = vadd.f32 %v811, %v500
    %v813 = vadd.f32 %v812, %v506
    %v814 = vadd.f32 %v813, %v510
    %v815 = vadd.f32 %v814, %v516
    %v816 = vadd.f32 %v815, %v520
    %v817 = vadd.f32 %v816, %v526
    %v818 = vadd.f32 %v817, %v530
    %v819 = vadd.f32 %v818, %v536
    %v820 = vadd.f32 %v819, %v540
    %v821 = vadd.f32 %v820, %v546
    %v822 = vadd.f32 %v821, %v550
    %v823 = vadd.f32 %v822, %v556
    %v824 = vadd.f32 %v823, %v560
    %v825 = vrot.slane %v824, 4
    %v826 = vadd.f32 %v824, %v825
    %v827 = vrot.slane %v826, 2
    %v828 = vadd.f32 %v826, %v827
    %v829 = vrot.slane %v828, 1
    %v830 = vadd.f32 %v828, %v829
    %v831 = vadd.f32 %v597, %v601
    %v832 = vadd.f32 %v831, %v607
    %v833 = vadd.f32 %v832, %v611
    %v834 = vadd.f32 %v833, %v617
    %v835 = vadd.f32 %v834, %v621
    %v836 = vadd.f32 %v835, %v627
    %v837 = vadd.f32 %v836, %v631
    %v838 = vadd.f32 %v837, %v637
    %v839 = vadd.f32 %v838, %v641
    %v840 = vadd.f32 %v839, %v647
    %v841 = vadd.f32 %v840, %v651
    %v842 = vadd.f32 %v841, %v657
    %v843 = vadd.f32 %v842, %v661
    %v844 = vadd.f32 %v843, %v667
    %v845 = vadd.f32 %v844, %v671
    %v846 = vadd.f32 %v845, %v677
    %v847 = vadd.f32 %v846, %v681
    %v848 = vadd.f32 %v847, %v687
    %v849 = vadd.f32 %v848, %v691
    %v850 = vadd.f32 %v849, %v697
    %v851 = vadd.f32 %v850, %v701
    %v852 = vadd.f32 %v851, %v707
    %v853 = vadd.f32 %v852, %v711
    %v854 = vadd.f32 %v853, %v717
    %v855 = vadd.f32 %v854, %v721
    %v856 = vadd.f32 %v855, %v727
    %v857 = vadd.f32 %v856, %v731
    %v858 = vadd.f32 %v857, %v737
    %v859 = vadd.f32 %v858, %v741
    %v860 = vadd.f32 %v859, %v747
    %v861 = vadd.f32 %v860, %v751
    %v862 = vrot.slane %v861, 4
    %v863 = vadd.f32 %v861, %v862
    %v864 = vrot.slane %v863, 2
    %v865 = vadd.f32 %v863, %v864
    %v866 = vrot.slane %v865, 1
    %v867 = vadd.f32 %v865, %v866
    %v868 = vadd.f32 %v599, %v603
    %v869 = vadd.f32 %v868, %v609
    %v870 = vadd.f32 %v869, %v613
    %v871 = vadd.f32 %v870, %v619
    %v872 = vadd.f32 %v871, %v623
    %v873 = vadd.f32 %v872, %v629
    %v874 = vadd.f32 %v873, %v633
    %v875 = vadd.f32 %v874, %v639
    %v876 = vadd.f32 %v875, %v643
    %v877 = vadd.f32 %v876, %v649
    %v878 = vadd.f32 %v877, %v653
    %v879 = vadd.f32 %v878, %v659
    %v880 = vadd.f32 %v879, %v663
    %v881 = vadd.f32 %v880, %v669
    %v882 = vadd.f32 %v881, %v673
    %v883 = vadd.f32 %v882, %v679
    %v884 = vadd.f32 %v883, %v683
    %v885 = vadd.f32 %v884, %v689
    %v886 = vadd.f32 %v885, %v693
    %v887 = vadd.f32 %v886, %v699
    %v888 = vadd.f32 %v887, %v703
    %v889 = vadd.f32 %v888, %v709
    %v890 = vadd.f32 %v889, %v713
    %v891 = vadd.f32 %v890, %v719
    %v892 = vadd.f32 %v891, %v723
    %v893 = vadd.f32 %v892, %v729
    %v894 = vadd.f32 %v893, %v733
    %v895 = vadd.f32 %v894, %v739
    %v896 = vadd.f32 %v895, %v743
    %v897 = vadd.f32 %v896, %v749
    %v898 = vadd.f32 %v897, %v753
    %v899 = vrot.slane %v898, 4
    %v900 = vadd.f32 %v898, %v899
    %v901 = vrot.slane %v900, 2
    %v902 = vadd.f32 %v900, %v901
    %v903 = vrot.slane %v902, 1
    %v904 = vadd.f32 %v902, %v903
    %v905 = vmul.f32 %v793, 0.00390625
    %v906 = vmul.f32 %v830, 0.00390625
    %v907 = vmul.f32 %v867, 0.00390625
    %v908 = vmul.f32 %v904, 0.00390625
    %v909 = vmul.f32 %v404, %v404
    %v910 = vmul.f32 %v406, %v406
    %v911 = vmul.f32 %v597, %v597
    %v912 = vmul.f32 %v599, %v599
    %v913 = vmul.f32 %v408, %v408
    %v914 = vmul.f32 %v410, %v410
    %v915 = vmul.f32 %v601, %v601
    %v916 = vmul.f32 %v603, %v603
    %v917 = vmul.f32 %v414, %v414
    %v918 = vmul.f32 %v416, %v416
    %v919 = vmul.f32 %v607, %v607
    %v920 = vmul.f32 %v609, %v609
    %v921 = vmul.f32 %v418, %v418
    %v922 = vmul.f32 %v420, %v420
    %v923 = vmul.f32 %v611, %v611
    %v924 = vmul.f32 %v613, %v613
    %v925 = vmul.f32 %v424, %v424
    %v926 = vmul.f32 %v426, %v426
    %v927 = vmul.f32 %v617, %v617
    %v928 = vmul.f32 %v619, %v619
    %v929 = vmul.f32 %v428, %v428
    %v930 = vmul.f32 %v430, %v430
    %v931 = vmul.f32 %v621, %v621
    %v932 = vmul.f32 %v623, %v623
    %v933 = vmul.f32 %v434, %v434
    %v934 = vmul.f32 %v436, %v436
    %v935 = vmul.f32 %v627, %v627
    %v936 = vmul.f32 %v629, %v629
    %v937 = vmul.f32 %v438, %v438
    %v938 = vmul.f32 %v440, %v440
    %v939 = vmul.f32 %v631, %v631
    %v940 = vmul.f32 %v633, %v633
    %v941 = vmul.f32 %v444, %v444
    %v942 = vmul.f32 %v446, %v446
    %v943 = vmul.f32 %v637, %v637
    %v944 = vmul.f32 %v639, %v639
    %v945 = vmul.f32 %v448, %v448
    %v946 = vmul.f32 %v450, %v450
    %v947 = vmul.f32 %v641, %v641
    %v948 = vmul.f32 %v643, %v643
    %v949 = vmul.f32 %v454, %v454
    %v950 = vmul.f32 %v456, %v456
    %v951 = vmul.f32 %v647, %v647
    %v952 = vmul.f32 %v649, %v649
    %v953 = vmul.f32 %v458, %v458
    %v954 = vmul.f32 %v460, %v460
    %v955 = vmul.f32 %v651, %v651
    %v956 = vmul.f32 %v653, %v653
    %v957 = vmul.f32 %v464, %v464
    %v958 = vmul.f32 %v466, %v466
    %v959 = vmul.f32 %v657, %v657
    %v960 = vmul.f32 %v659, %v659
    %v961 = vmul.f32 %v468, %v468
    %v962 = vmul.f32 %v470, %v470
    %v963 = vmul.f32 %v661, %v661
    %v964 = vmul.f32 %v663, %v663
    %v965 = vmul.f32 %v474, %v474
    %v966 = vmul.f32 %v476, %v476
    %v967 = vmul.f32 %v667, %v667
    %v968 = vmul.f32 %v669, %v669
    %v969 = vmul.f32 %v478, %v478
    %v970 = vmul.f32 %v480, %v480
    %v971 = vmul.f32 %v671, %v671
    %v972 = vmul.f32 %v673, %v673
    %v973 = vmul.f32 %v484, %v484
    %v974 = vmul.f32 %v486, %v486
    %v975 = vmul.f32 %v677, %v677
    %v976 = vmul.f32 %v679, %v679
    %v977 = vmul.f32 %v488, %v488
    %v978 = vmul.f32 %v490, %v490
    %v979 = vmul.f32 %v681, %v681
    %v980 = vmul.f32 %v683, %v683
    %v981 = vmul.f32 %v494, %v494
    %v982 = vmul.f32 %v496, %v496
    %v983 = vmul.f32 %v687, %v687
    %v984 = vmul.f32 %v689, %v689
    %v985 = vmul.f32 %v498, %v498
    %v986 = vmul.f32 %v500, %v500
    %v987 = vmul.f32 %v691, %v691
    %v988 = vmul.f32 %v693, %v693
    %v989 = vmul.f32 %v504, %v504
    %v990 = vmul.f32 %v506, %v506
    %v991 = vmul.f32 %v697, %v697
    %v992 = vmul.f32 %v699, %v699
    %v993 = vmul.f32 %v508, %v508
    %v994 = vmul.f32 %v510, %v510
    %v995 = vmul.f32 %v701, %v701
    %v996 = vmul.f32 %v703, %v703
    %v997 = vmul.f32 %v514, %v514
    %v998 = vmul.f32 %v516, %v516
    %v999 = vmul.f32 %v707, %v707
    %v1000 = vmul.f32 %v709, %v709
    %v1001 = vmul.f32 %v518, %v518
    %v1002 = vmul.f32 %v520, %v520
    %v1003 = vmul.f32 %v711, %v711
    %v1004 = vmul.f32 %v713, %v713
    %v1005 = vmul.f32 %v524, %v524
    %v1006 = vmul.f32 %v526, %v526
    %v1007 = vmul.f32 %v717, %v717
    %v1008 = vmul.f32 %v719, %v719
    %v1009 = vmul.f32 %v528, %v528
    %v1010 = vmul.f32 %v530, %v530
    %v1011 = vmul.f32 %v721, %v721
    %v1012 = vmul.f32 %v723, %v723
    %v1013 = vmul.f32 %v534, %v534
    %v1014 = vmul.f32 %v536, %v536
    %v1015 = vmul.f32 %v727, %v727
    %v1016 = vmul.f32 %v729, %v729
    %v1017 = vmul.f32 %v538, %v538
    %v1018 = vmul.f32 %v540, %v540
    %v1019 = vmul.f32 %v731, %v731
    %v1020 = vmul.f32 %v733, %v733
    %v1021 = vmul.f32 %v544, %v544
    %v1022 = vmul.f32 %v546, %v546
    %v1023 = vmul.f32 %v737, %v737
    %v1024 = vmul.f32 %v739, %v739
    %v1025 = vmul.f32 %v548, %v548
    %v1026 = vmul.f32 %v550, %v550
    %v1027 = vmul.f32 %v741, %v741
    %v1028 = vmul.f32 %v743, %v743
    %v1029 = vmul.f32 %v554, %v554
    %v1030 = vmul.f32 %v556, %v556
    %v1031 = vmul.f32 %v747, %v747
    %v1032 = vmul.f32 %v749, %v749
    %v1033 = vmul.f32 %v558, %v558
    %v1034 = vmul.f32 %v560, %v560
    %v1035 = vmul.f32 %v751, %v751
    %v1036 = vmul.f32 %v753, %v753
    %v1037 = vadd.f32 %v909, %v913
    %v1038 = vadd.f32 %v1037, %v917
    %v1039 = vadd.f32 %v1038, %v921
    %v1040 = vadd.f32 %v1039, %v925
    %v1041 = vadd.f32 %v1040, %v929
    %v1042 = vadd.f32 %v1041, %v933
    %v1043 = vadd.f32 %v1042, %v937
    %v1044 = vadd.f32 %v1043, %v941
    %v1045 = vadd.f32 %v1044, %v945
    %v1046 = vadd.f32 %v1045, %v949
    %v1047 = vadd.f32 %v1046, %v953
    %v1048 = vadd.f32 %v1047, %v957
    %v1049 = vadd.f32 %v1048, %v961
    %v1050 = vadd.f32 %v1049, %v965
    %v1051 = vadd.f32 %v1050, %v969
    %v1052 = vadd.f32 %v1051, %v973
    %v1053 = vadd.f32 %v1052, %v977
    %v1054 = vadd.f32 %v1053, %v981
    %v1055 = vadd.f32 %v1054, %v985
    %v1056 = vadd.f32 %v1055, %v989
    %v1057 = vadd.f32 %v1056, %v993
    %v1058 = vadd.f32 %v1057, %v997
    %v1059 = vadd.f32 %v1058, %v1001
    %v1060 = vadd.f32 %v1059, %v1005
    %v1061 = vadd.f32 %v1060, %v1009
    %v1062 = vadd.f32 %v1061, %v1013
    %v1063 = vadd.f32 %v1062, %v1017
    %v1064 = vadd.f32 %v1063, %v1021
    %v1065 = vadd.f32 %v1064, %v1025
    %v1066 = vadd.f32 %v1065, %v1029
    %v1067 = vadd.f32 %v1066, %v1033
    %v1068 = vrot.slane %v1067, 4
    %v1069 = vadd.f32 %v1067, %v1068
    %v1070 = vrot.slane %v1069, 2
    %v1071 = vadd.f32 %v1069, %v1070
    %v1072 = vrot.slane %v1071, 1
    %v1073 = vadd.f32 %v1071, %v1072
    %v1074 = vadd.f32 %v910, %v914
    %v1075 = vadd.f32 %v1074, %v918
    %v1076 = vadd.f32 %v1075, %v922
    %v1077 = vadd.f32 %v1076, %v926
    %v1078 = vadd.f32 %v1077, %v930
    %v1079 = vadd.f32 %v1078, %v934
    %v1080 = vadd.f32 %v1079, %v938
    %v1081 = vadd.f32 %v1080, %v942
    %v1082 = vadd.f32 %v1081, %v946
    %v1083 = vadd.f32 %v1082, %v950
    %v1084 = vadd.f32 %v1083, %v954
    %v1085 = vadd.f32 %v1084, %v958
    %v1086 = vadd.f32 %v1085, %v962
    %v1087 = vadd.f32 %v1086, %v966
    %v1088 = vadd.f32 %v1087, %v970
    %v1089 = vadd.f32 %v1088, %v974
    %v1090 = vadd.f32 %v1089, %v978
    %v1091 = vadd.f32 %v1090, %v982
    %v1092 = vadd.f32 %v1091, %v986
    %v1093 = vadd.f32 %v1092, %v990
    %v1094 = vadd.f32 %v1093, %v994
    %v1095 = vadd.f32 %v1094, %v998
    %v1096 = vadd.f32 %v1095, %v1002
    %v1097 = vadd.f32 %v1096, %v1006
    %v1098 = vadd.f32 %v1097, %v1010
    %v1099 = vadd.f32 %v1098, %v1014
    %v1100 = vadd.f32 %v1099, %v1018
    %v1101 = vadd.f32 %v1100, %v1022
    %v1102 = vadd.f32 %v1101, %v1026
    %v1103 = vadd.f32 %v1102, %v1030
    %v1104 = vadd.f32 %v1103, %v1034
    %v1105 = vrot.slane %v1104, 4
    %v1106 = vadd.f32 %v1104, %v1105
    %v1107 = vrot.slane %v1106, 2
    %v1108 = vadd.f32 %v1106, %v1107
    %v1109 = vrot.slane %v1108, 1
    %v1110 = vadd.f32 %v1108, %v1109
    %v1111 = vadd.f32 %v911, %v915
    %v1112 = vadd.f32 %v1111, %v919
    %v1113 = vadd.f32 %v1112, %v923
    %v1114 = vadd.f32 %v1113, %v927
    %v1115 = vadd.f32 %v1114, %v931
    %v1116 = vadd.f32 %v1115, %v935
    %v1117 = vadd.f32 %v1116, %v939
    %v1118 = vadd.f32 %v1117, %v943
    %v1119 = vadd.f32 %v1118, %v947
    %v1120 = vadd.f32 %v1119, %v951
    %v1121 = vadd.f32 %v1120, %v955
    %v1122 = vadd.f32 %v1121, %v959
    %v1123 = vadd.f32 %v1122, %v963
    %v1124 = vadd.f32 %v1123, %v967
    %v1125 = vadd.f32 %v1124, %v971
    %v1126 = vadd.f32 %v1125, %v975
    %v1127 = vadd.f32 %v1126, %v979
    %v1128 = vadd.f32 %v1127, %v983
    %v1129 = vadd.f32 %v1128, %v987
    %v1130 = vadd.f32 %v1129, %v991
    %v1131 = vadd.f32 %v1130, %v995
    %v1132 = vadd.f32 %v1131, %v999
    %v1133 = vadd.f32 %v1132, %v1003
    %v1134 = vadd.f32 %v1133, %v1007
    %v1135 = vadd.f32 %v1134, %v1011
    %v1136 = vadd.f32 %v1135, %v1015
    %v1137 = vadd.f32 %v1136, %v1019
    %v1138 = vadd.f32 %v1137, %v1023
    %v1139 = vadd.f32 %v1138, %v1027
    %v1140 = vadd.f32 %v1139, %v1031
    %v1141 = vadd.f32 %v1140, %v1035
    %v1142 = vrot.slane %v1141, 4
    %v1143 = vadd.f32 %v1141, %v1142
    %v1144 = vrot.slane %v1143, 2
    %v1145 = vadd.f32 %v1143, %v1144
    %v1146 = vrot.slane %v1145, 1
    %v1147 = vadd.f32 %v1145, %v1146
    %v1148 = vadd.f32 %v912, %v916
    %v1149 = vadd.f32 %v1148, %v920
    %v1150 = vadd.f32 %v1149, %v924
    %v1151 = vadd.f32 %v1150, %v928
    %v1152 = vadd.f32 %v1151, %v932
    %v1153 = vadd.f32 %v1152, %v936
    %v1154 = vadd.f32 %v1153, %v940
    %v1155 = vadd.f32 %v1154, %v944
    %v1156 = vadd.f32 %v1155, %v948
    %v1157 = vadd.f32 %v1156, %v952
    %v1158 = vadd.f32 %v1157, %v956
    %v1159 = vadd.f32 %v1158, %v960
    %v1160 = vadd.f32 %v1159, %v964
    %v1161 = vadd.f32 %v1160, %v968
    %v1162 = vadd.f32 %v1161, %v972
    %v1163 = vadd.f32 %v1162, %v976
    %v1164 = vadd.f32 %v1163, %v980
    %v1165 = vadd.f32 %v1164, %v984
    %v1166 = vadd.f32 %v1165, %v988
    %v1167 = vadd.f32 %v1166, %v992
    %v1168 = vadd.f32 %v1167, %v996
    %v1169 = vadd.f32 %v1168, %v1000
    %v1170 = vadd.f32 %v1169, %v1004
    %v1171 = vadd.f32 %v1170, %v1008
    %v1172 = vadd.f32 %v1171, %v1012
    %v1173 = vadd.f32 %v1172, %v1016
    %v1174 = vadd.f32 %v1173, %v1020
    %v1175 = vadd.f32 %v1174, %v1024
    %v1176 = vadd.f32 %v1175, %v1028
    %v1177 = vadd.f32 %v1176, %v1032
    %v1178 = vadd.f32 %v1177, %v1036
    %v1179 = vrot.slane %v1178, 4
    %v1180 = vadd.f32 %v1178, %v1179
    %v1181 = vrot.slane %v1180, 2
    %v1182 = vadd.f32 %v1180, %v1181
    %v1183 = vrot.slane %v1182, 1
    %v1184 = vadd.f32 %v1182, %v1183
    %v1185 = vmul.f32 %v1073, 0.00390625
    %v1186 = vmul.f32 %v1110, 0.00390625
    %v1187 = vmul.f32 %v1147, 0.00390625
    %v1188 = vmul.f32 %v1184, 0.00390625
    %v1189 = vmul.f32 %v905, %v905
    %v1190 = vmul.f32 %v906, %v906
    %v1191 = vmul.f32 %v907, %v907
    %v1192 = vmul.f32 %v908, %v908
    %v1193 = vsub.f32 %v1185, %v1189
    %v1194 = vsub.f32 %v1186, %v1190
    %v1195 = vsub.f32 %v1187, %v1191
    %v1196 = vsub.f32 %v1188, %v1192
    %v1197 = vadd.f32 %v1193, 1e-05
    %v1198 = vadd.f32 %v1194, 1e-05
    %v1199 = vadd.f32 %v1195, 1e-05
    %v1200 = vadd.f32 %v1196, 1e-05
    %v1201 = vrsqrt.pop %v1197
    %v1202 = vrsqrt.pop %v1198
    %v1203 = vrsqrt.pop %v1199
    %v1204 = vrsqrt.pop %v1200
    %v1206 = vlaneseq
    %v1207 = vshrl.u32 %v1206, 7
    %v1208 = vsub.s32 0, %v1207
    %v1209 = vrot.slane %v755, %v1208
    %v1210 = vlaneseq
    %v1211 = vshrl.u32 %v1210, 7
    %v1212 = vsub.s32 1, %v1211
    %v1213 = vrot.slane %v755, %v1212
    %v1214 = vlaneseq
    %v1215 = vshrl.u32 %v1214, 7
    %v1216 = vsub.s32 2, %v1215
    %v1217 = vrot.slane %v755, %v1216
    %v1218 = vlaneseq
    %v1219 = vshrl.u32 %v1218, 7
    %v1220 = vsub.s32 3, %v1219
    %v1221 = vrot.slane %v755, %v1220
    %v1226 = vmul.f32 %v1201, %v1209
    %v1227 = vmul.f32 %v1202, %v1213
    %v1228 = vmul.f32 %v1203, %v1217
    %v1229 = vmul.f32 %v1204, %v1221
    %v1230 = vmul.f32 %v905, %v1226
    %v1231 = vmul.f32 %v906, %v1227
    %v1232 = vmul.f32 %v907, %v1228
    %v1233 = vmul.f32 %v908, %v1229
    %v1238 = vcombine.low %v1230, %v1231
    %v1239 = vcombine.low %v1232, %v1233
    %v1241 = vunpack.c.l.s4 1966171168
    %v1242 = vunpack.c.0.s8 %v1241
    %v1243 = vlaneseq
    %v1244 = vshrl.u32 %v1243, 7
    %v1245 = vsub.s32 %v1242, %v1244
    %v1246 = vrot.slane %v1238, %v1245
    %v1248 = vunpack.c.l.s4 1966171168
    %v1249 = vunpack.c.0.s8 %v1248
    %v1250 = vlaneseq
    %v1251 = vshrl.u32 %v1250, 7
    %v1252 = vsub.s32 %v1249, %v1251
    %v1253 = vrot.slane %v1239, %v1252
    %v1254 = vcombine.low %v1246, %v1253
    %v1256 = vunpack.c.l.s4 1966171168
    %v1257 = vunpack.c.0.s8 %v1256
    %v1258 = vlaneseq
    %v1259 = vshrl.u32 %v1258, 7
    %v1260 = vsub.s32 %v1257, %v1259
    %v1261 = vrot.slane %v1254, %v1260
    %v1263 = vsub.f32 %v756, %v1261
    %v1264 = vlaneseq
    %v1265 = vshrl.u32 %v1264, 7
    %v1266 = vsub.s32 0, %v1265
    %v1267 = vrot.slane %v1226, %v1266
    %v1268 = vlaneseq
    %v1269 = vshrl.u32 %v1268, 7
    %v1270 = vsub.s32 0, %v1269
    %v1271 = vrot.slane %v1227, %v1270
    %v1272 = vlaneseq
    %v1273 = vshrl.u32 %v1272, 7
    %v1274 = vsub.s32 0, %v1273
    %v1275 = vrot.slane %v1228, %v1274
    %v1276 = vlaneseq
    %v1277 = vshrl.u32 %v1276, 7
    %v1278 = vsub.s32 0, %v1277
    %v1279 = vrot.slane %v1229, %v1278
    %v1280 = vmul.f32 %v404, %v1267
    %v1281 = vmul.f32 %v406, %v1271
    %v1282 = vmul.f32 %v597, %v1275
    %v1283 = vmul.f32 %v599, %v1279
    %v1284 = vmul.f32 %v408, %v1267
    %v1285 = vmul.f32 %v410, %v1271
    %v1286 = vmul.f32 %v601, %v1275
    %v1287 = vmul.f32 %v603, %v1279
    %v1288 = vmul.f32 %v414, %v1267
    %v1289 = vmul.f32 %v416, %v1271
    %v1290 = vmul.f32 %v607, %v1275
    %v1291 = vmul.f32 %v609, %v1279
    %v1292 = vmul.f32 %v418, %v1267
    %v1293 = vmul.f32 %v420, %v1271
    %v1294 = vmul.f32 %v611, %v1275
    %v1295 = vmul.f32 %v613, %v1279
    %v1296 = vmul.f32 %v424, %v1267
    %v1297 = vmul.f32 %v426, %v1271
    %v1298 = vmul.f32 %v617, %v1275
    %v1299 = vmul.f32 %v619, %v1279
    %v1300 = vmul.f32 %v428, %v1267
    %v1301 = vmul.f32 %v430, %v1271
    %v1302 = vmul.f32 %v621, %v1275
    %v1303 = vmul.f32 %v623, %v1279
    %v1304 = vmul.f32 %v434, %v1267
    %v1305 = vmul.f32 %v436, %v1271
    %v1306 = vmul.f32 %v627, %v1275
    %v1307 = vmul.f32 %v629, %v1279
    %v1308 = vmul.f32 %v438, %v1267
    %v1309 = vmul.f32 %v440, %v1271
    %v1310 = vmul.f32 %v631, %v1275
    %v1311 = vmul.f32 %v633, %v1279
    %v1312 = vmul.f32 %v444, %v1267
    %v1313 = vmul.f32 %v446, %v1271
    %v1314 = vmul.f32 %v637, %v1275
    %v1315 = vmul.f32 %v639, %v1279
    %v1316 = vmul.f32 %v448, %v1267
    %v1317 = vmul.f32 %v450, %v1271
    %v1318 = vmul.f32 %v641, %v1275
    %v1319 = vmul.f32 %v643, %v1279
    %v1320 = vmul.f32 %v454, %v1267
    %v1321 = vmul.f32 %v456, %v1271
    %v1322 = vmul.f32 %v647, %v1275
    %v1323 = vmul.f32 %v649, %v1279
    %v1324 = vmul.f32 %v458, %v1267
    %v1325 = vmul.f32 %v460, %v1271
    %v1326 = vmul.f32 %v651, %v1275
    %v1327 = vmul.f32 %v653, %v1279
    %v1328 = vmul.f32 %v464, %v1267
    %v1329 = vmul.f32 %v466, %v1271
    %v1330 = vmul.f32 %v657, %v1275
    %v1331 = vmul.f32 %v659, %v1279
    %v1332 = vmul.f32 %v468, %v1267
    %v1333 = vmul.f32 %v470, %v1271
    %v1334 = vmul.f32 %v661, %v1275
    %v1335 = vmul.f32 %v663, %v1279
    %v1336 = vmul.f32 %v474, %v1267
    %v1337 = vmul.f32 %v476, %v1271
    %v1338 = vmul.f32 %v667, %v1275
    %v1339 = vmul.f32 %v669, %v1279
    %v1340 = vmul.f32 %v478, %v1267
    %v1341 = vmul.f32 %v480, %v1271
    %v1342 = vmul.f32 %v671, %v1275
    %v1343 = vmul.f32 %v673, %v1279
    %v1344 = vmul.f32 %v484, %v1267
    %v1345 = vmul.f32 %v486, %v1271
    %v1346 = vmul.f32 %v677, %v1275
    %v1347 = vmul.f32 %v679, %v1279
    %v1348 = vmul.f32 %v488, %v1267
    %v1349 = vmul.f32 %v490, %v1271
    %v1350 = vmul.f32 %v681, %v1275
    %v1351 = vmul.f32 %v683, %v1279
    %v1352 = vmul.f32 %v494, %v1267
    %v1353 = vmul.f32 %v496, %v1271
    %v1354 = vmul.f32 %v687, %v1275
    %v1355 = vmul.f32 %v689, %v1279
    %v1356 = vmul.f32 %v498, %v1267
    %v1357 = vmul.f32 %v500, %v1271
    %v1358 = vmul.f32 %v691, %v1275
    %v1359 = vmul.f32 %v693, %v1279
    %v1360 = vmul.f32 %v504, %v1267
    %v1361 = vmul.f32 %v506, %v1271
    %v1362 = vmul.f32 %v697, %v1275
    %v1363 = vmul.f32 %v699, %v1279
    %v1364 = vmul.f32 %v508, %v1267
    %v1365 = vmul.f32 %v510, %v1271
    %v1366 = vmul.f32 %v701, %v1275
    %v1367 = vmul.f32 %v703, %v1279
    %v1368 = vmul.f32 %v514, %v1267
    %v1369 = vmul.f32 %v516, %v1271
    %v1370 = vmul.f32 %v707, %v1275
    %v1371 = vmul.f32 %v709, %v1279
    %v1372 = vmul.f32 %v518, %v1267
    %v1373 = vmul.f32 %v520, %v1271
    %v1374 = vmul.f32 %v711, %v1275
    %v1375 = vmul.f32 %v713, %v1279
    %v1376 = vmul.f32 %v524, %v1267
    %v1377 = vmul.f32 %v526, %v1271
    %v1378 = vmul.f32 %v717, %v1275
    %v1379 = vmul.f32 %v719, %v1279
    %v1380 = vmul.f32 %v528, %v1267
    %v1381 = vmul.f32 %v530, %v1271
    %v1382 = vmul.f32 %v721, %v1275
    %v1383 = vmul.f32 %v723, %v1279
    %v1384 = vmul.f32 %v534, %v1267
    %v1385 = vmul.f32 %v536, %v1271
    %v1386 = vmul.f32 %v727, %v1275
    %v1387 = vmul.f32 %v729, %v1279
    %v1388 = vmul.f32 %v538, %v1267
    %v1389 = vmul.f32 %v540, %v1271
    %v1390 = vmul.f32 %v731, %v1275
    %v1391 = vmul.f32 %v733, %v1279
    %v1392 = vmul.f32 %v544, %v1267
    %v1393 = vmul.f32 %v546, %v1271
    %v1394 = vmul.f32 %v737, %v1275
    %v1395 = vmul.f32 %v739, %v1279
    %v1396 = vmul.f32 %v548, %v1267
    %v1397 = vmul.f32 %v550, %v1271
    %v1398 = vmul.f32 %v741, %v1275
    %v1399 = vmul.f32 %v743, %v1279
    %v1400 = vmul.f32 %v554, %v1267
    %v1401 = vmul.f32 %v556, %v1271
    %v1402 = vmul.f32 %v747, %v1275
    %v1403 = vmul.f32 %v749, %v1279
    %v1404 = vmul.f32 %v558, %v1267
    %v1405 = vmul.f32 %v560, %v1271
    %v1406 = vmul.f32 %v751, %v1275
    %v1407 = vmul.f32 %v753, %v1279
    %v1409 = vlaneseq
    %v1410 = vshrl.u32 %v1409, 7
    %v1411 = vsub.s32 0, %v1410
    %v1412 = vrot.slane %v1263, %v1411
    %v1413 = vlaneseq
    %v1414 = vshrl.u32 %v1413, 7
    %v1415 = vsub.s32 1, %v1414
    %v1416 = vrot.slane %v1263, %v1415
    %v1417 = vlaneseq
    %v1418 = vshrl.u32 %v1417, 7
    %v1419 = vsub.s32 2, %v1418
    %v1420 = vrot.slane %v1263, %v1419
    %v1421 = vlaneseq
    %v1422 = vshrl.u32 %v1421, 7
    %v1423 = vsub.s32 3, %v1422
    %v1424 = vrot.slane %v1263, %v1423
    %v1429 = vadd.f32 %v1280, %v1412
    %v1430 = vadd.f32 %v1281, %v1416
    %v1431 = vadd.f32 %v1282, %v1420
    %v1432 = vadd.f32 %v1283, %v1424
    %v1433 = vadd.f32 %v1284, %v1412
    %v1434 = vadd.f32 %v1285, %v1416
    %v1435 = vadd.f32 %v1286, %v1420
    %v1436 = vadd.f32 %v1287, %v1424
    %v1437 = vadd.f32 %v1288, %v1412
    %v1438 = vadd.f32 %v1289, %v1416
    %v1439 = vadd.f32 %v1290, %v1420
    %v1440 = vadd.f32 %v1291, %v1424
    %v1441 = vadd.f32 %v1292, %v1412
    %v1442 = vadd.f32 %v1293, %v1416
    %v1443 = vadd.f32 %v1294, %v1420
    %v1444 = vadd.f32 %v1295, %v1424
    %v1445 = vadd.f32 %v1296, %v1412
    %v1446 = vadd.f32 %v1297, %v1416
    %v1447 = vadd.f32 %v1298, %v1420
    %v1448 = vadd.f32 %v1299, %v1424
    %v1449 = vadd.f32 %v1300, %v1412
    %v1450 = vadd.f32 %v1301, %v1416
    %v1451 = vadd.f32 %v1302, %v1420
    %v1452 = vadd.f32 %v1303, %v1424
    %v1453 = vadd.f32 %v1304, %v1412
    %v1454 = vadd.f32 %v1305, %v1416
    %v1455 = vadd.f32 %v1306, %v1420
    %v1456 = vadd.f32 %v1307, %v1424
    %v1457 = vadd.f32 %v1308, %v1412
    %v1458 = vadd.f32 %v1309, %v1416
    %v1459 = vadd.f32 %v1310, %v1420
    %v1460 = vadd.f32 %v1311, %v1424
    %v1461 = vadd.f32 %v1312, %v1412
    %v1462 = vadd.f32 %v1313, %v1416
    %v1463 = vadd.f32 %v1314, %v1420
    %v1464 = vadd.f32 %v1315, %v1424
    %v1465 = vadd.f32 %v1316, %v1412
    %v1466 = vadd.f32 %v1317, %v1416
    %v1467 = vadd.f32 %v1318, %v1420
    %v1468 = vadd.f32 %v1319, %v1424
    %v1469 = vadd.f32 %v1320, %v1412
    %v1470 = vadd.f32 %v1321, %v1416
    %v1471 = vadd.f32 %v1322, %v1420
    %v1472 = vadd.f32 %v1323, %v1424
    %v1473 = vadd.f32 %v1324, %v1412
    %v1474 = vadd.f32 %v1325, %v1416
    %v1475 = vadd.f32 %v1326, %v1420
    %v1476 = vadd.f32 %v1327, %v1424
    %v1477 = vadd.f32 %v1328, %v1412
    %v1478 = vadd.f32 %v1329, %v1416
    %v1479 = vadd.f32 %v1330, %v1420
    %v1480 = vadd.f32 %v1331, %v1424
    %v1481 = vadd.f32 %v1332, %v1412
    %v1482 = vadd.f32 %v1333, %v1416
    %v1483 = vadd.f32 %v1334, %v1420
    %v1484 = vadd.f32 %v1335, %v1424
    %v1485 = vadd.f32 %v1336, %v1412
    %v1486 = vadd.f32 %v1337, %v1416
    %v1487 = vadd.f32 %v1338, %v1420
    %v1488 = vadd.f32 %v1339, %v1424
    %v1489 = vadd.f32 %v1340, %v1412
    %v1490 = vadd.f32 %v1341, %v1416
    %v1491 = vadd.f32 %v1342, %v1420
    %v1492 = vadd.f32 %v1343, %v1424
    %v1493 = vadd.f32 %v1344, %v1412
    %v1494 = vadd.f32 %v1345, %v1416
    %v1495 = vadd.f32 %v1346, %v1420
    %v1496 = vadd.f32 %v1347, %v1424
    %v1497 = vadd.f32 %v1348, %v1412
    %v1498 = vadd.f32 %v1349, %v1416
    %v1499 = vadd.f32 %v1350, %v1420
    %v1500 = vadd.f32 %v1351, %v1424
    %v1501 = vadd.f32 %v1352, %v1412
    %v1502 = vadd.f32 %v1353, %v1416
    %v1503 = vadd.f32 %v1354, %v1420
    %v1504 = vadd.f32 %v1355, %v1424
    %v1505 = vadd.f32 %v1356, %v1412
    %v1506 = vadd.f32 %v1357, %v1416
    %v1507 = vadd.f32 %v1358, %v1420
    %v1508 = vadd.f32 %v1359, %v1424
    %v1509 = vadd.f32 %v1360, %v1412
    %v1510 = vadd.f32 %v1361, %v1416
    %v1511 = vadd.f32 %v1362, %v1420
    %v1512 = vadd.f32 %v1363, %v1424
    %v1513 = vadd.f32 %v1364, %v1412
    %v1514 = vadd.f32 %v1365, %v1416
    %v1515 = vadd.f32 %v1366, %v1420
    %v1516 = vadd.f32 %v1367, %v1424
    %v1517 = vadd.f32 %v1368, %v1412
    %v1518 = vadd.f32 %v1369, %v1416
    %v1519 = vadd.f32 %v1370, %v1420
    %v1520 = vadd.f32 %v1371, %v1424
    %v1521 = vadd.f32 %v1372, %v1412
    %v1522 = vadd.f32 %v1373, %v1416
    %v1523 = vadd.f32 %v1374, %v1420
    %v1524 = vadd.f32 %v1375, %v1424
    %v1525 = vadd.f32 %v1376, %v1412
    %v1526 = vadd.f32 %v1377, %v1416
    %v1527 = vadd.f32 %v1378, %v1420
    %v1528 = vadd.f32 %v1379, %v1424
    %v1529 = vadd.f32 %v1380, %v1412
    %v1530 = vadd.f32 %v1381, %v1416
    %v1531 = vadd.f32 %v1382, %v1420
    %v1532 = vadd.f32 %v1383, %v1424
    %v1533 = vadd.f32 %v1384, %v1412
    %v1534 = vadd.f32 %v1385, %v1416
    %v1535 = vadd.f32 %v1386, %v1420
    %v1536 = vadd.f32 %v1387, %v1424
    %v1537 = vadd.f32 %v1388, %v1412
    %v1538 = vadd.f32 %v1389, %v1416
    %v1539 = vadd.f32 %v1390, %v1420
    %v1540 = vadd.f32 %v1391, %v1424
    %v1541 = vadd.f32 %v1392, %v1412
    %v1542 = vadd.f32 %v1393, %v1416
    %v1543 = vadd.f32 %v1394, %v1420
    %v1544 = vadd.f32 %v1395, %v1424
    %v1545 = vadd.f32 %v1396, %v1412
    %v1546 = vadd.f32 %v1397, %v1416
    %v1547 = vadd.f32 %v1398, %v1420
    %v1548 = vadd.f32 %v1399, %v1424
    %v1549 = vadd.f32 %v1400, %v1412
    %v1550 = vadd.f32 %v1401, %v1416
    %v1551 = vadd.f32 %v1402, %v1420
    %v1552 = vadd.f32 %v1403, %v1424
    %v1553 = vadd.f32 %v1404, %v1412
    %v1554 = vadd.f32 %v1405, %v1416
    %v1555 = vadd.f32 %v1406, %v1420
    %v1556 = vadd.f32 %v1407, %v1424
    %v1557 = vmul.f32 %v1429, 0.2
    %v1558 = vmul.f32 %v1430, 0.2
    %v1559 = vmul.f32 %v1431, 0.2
    %v1560 = vmul.f32 %v1432, 0.2
    %v1561 = vmul.f32 %v1433, 0.2
    %v1562 = vmul.f32 %v1434, 0.2
    %v1563 = vmul.f32 %v1435, 0.2
    %v1564 = vmul.f32 %v1436, 0.2
    %v1565 = vmul.f32 %v1437, 0.2
    %v1566 = vmul.f32 %v1438, 0.2
    %v1567 = vmul.f32 %v1439, 0.2
    %v1568 = vmul.f32 %v1440, 0.2
    %v1569 = vmul.f32 %v1441, 0.2
    %v1570 = vmul.f32 %v1442, 0.2
    %v1571 = vmul.f32 %v1443, 0.2
    %v1572 = vmul.f32 %v1444, 0.2
    %v1573 = vmul.f32 %v1445, 0.2
    %v1574 = vmul.f32 %v1446, 0.2
    %v1575 = vmul.f32 %v1447, 0.2
    %v1576 = vmul.f32 %v1448, 0.2
    %v1577 = vmul.f32 %v1449, 0.2
    %v1578 = vmul.f32 %v1450, 0.2
    %v1579 = vmul.f32 %v1451, 0.2
    %v1580 = vmul.f32 %v1452, 0.2
    %v1581 = vmul.f32 %v1453, 0.2
    %v1582 = vmul.f32 %v1454, 0.2
    %v1583 = vmul.f32 %v1455, 0.2
    %v1584 = vmul.f32 %v1456, 0.2
    %v1585 = vmul.f32 %v1457, 0.2
    %v1586 = vmul.f32 %v1458, 0.2
    %v1587 = vmul.f32 %v1459, 0.2
    %v1588 = vmul.f32 %v1460, 0.2
    %v1589 = vmul.f32 %v1461, 0.2
    %v1590 = vmul.f32 %v1462, 0.2
    %v1591 = vmul.f32 %v1463, 0.2
    %v1592 = vmul.f32 %v1464, 0.2
    %v1593 = vmul.f32 %v1465, 0.2
    %v1594 = vmul.f32 %v1466, 0.2
    %v1595 = vmul.f32 %v1467, 0.2
    %v1596 = vmul.f32 %v1468, 0.2
    %v1597 = vmul.f32 %v1469, 0.2
    %v1598 = vmul.f32 %v1470, 0.2
    %v1599 = vmul.f32 %v1471, 0.2
    %v1600 = vmul.f32 %v1472, 0.2
    %v1601 = vmul.f32 %v1473, 0.2
    %v1602 = vmul.f32 %v1474, 0.2
    %v1603 = vmul.f32 %v1475, 0.2
    %v1604 = vmul.f32 %v1476, 0.2
    %v1605 = vmul.f32 %v1477, 0.2
    %v1606 = vmul.f32 %v1478, 0.2
    %v1607 = vmul.f32 %v1479, 0.2
    %v1608 = vmul.f32 %v1480, 0.2
    %v1609 = vmul.f32 %v1481, 0.2
    %v1610 = vmul.f32 %v1482, 0.2
    %v1611 = vmul.f32 %v1483, 0.2
    %v1612 = vmul.f32 %v1484, 0.2
    %v1613 = vmul.f32 %v1485, 0.2
    %v1614 = vmul.f32 %v1486, 0.2
    %v1615 = vmul.f32 %v1487, 0.2
    %v1616 = vmul.f32 %v1488, 0.2
    %v1617 = vmul.f32 %v1489, 0.2
    %v1618 = vmul.f32 %v1490, 0.2
    %v1619 = vmul.f32 %v1491, 0.2
    %v1620 = vmul.f32 %v1492, 0.2
    %v1621 = vmul.f32 %v1493, 0.2
    %v1622 = vmul.f32 %v1494, 0.2
    %v1623 = vmul.f32 %v1495, 0.2
    %v1624 = vmul.f32 %v1496, 0.2
    %v1625 = vmul.f32 %v1497, 0.2
    %v1626 = vmul.f32 %v1498, 0.2
    %v1627 = vmul.f32 %v1499, 0.2
    %v1628 = vmul.f32 %v1500, 0.2
    %v1629 = vmul.f32 %v1501, 0.2
    %v1630 = vmul.f32 %v1502, 0.2
    %v1631 = vmul.f32 %v1503, 0.2
    %v1632 = vmul.f32 %v1504, 0.2
    %v1633 = vmul.f32 %v1505, 0.2
    %v1634 = vmul.f32 %v1506, 0.2
    %v1635 = vmul.f32 %v1507, 0.2
    %v1636 = vmul.f32 %v1508, 0.2
    %v1637 = vmul.f32 %v1509, 0.2
    %v1638 = vmul.f32 %v1510, 0.2
    %v1639 = vmul.f32 %v1511, 0.2
    %v1640 = vmul.f32 %v1512, 0.2
    %v1641 = vmul.f32 %v1513, 0.2
    %v1642 = vmul.f32 %v1514, 0.2
    %v1643 = vmul.f32 %v1515, 0.2
    %v1644 = vmul.f32 %v1516, 0.2
    %v1645 = vmul.f32 %v1517, 0.2
    %v1646 = vmul.f32 %v1518, 0.2
    %v1647 = vmul.f32 %v1519, 0.2
    %v1648 = vmul.f32 %v1520, 0.2
    %v1649 = vmul.f32 %v1521, 0.2
    %v1650 = vmul.f32 %v1522, 0.2
    %v1651 = vmul.f32 %v1523, 0.2
    %v1652 = vmul.f32 %v1524, 0.2
    %v1653 = vmul.f32 %v1525, 0.2
    %v1654 = vmul.f32 %v1526, 0.2
    %v1655 = vmul.f32 %v1527, 0.2
    %v1656 = vmul.f32 %v1528, 0.2
    %v1657 = vmul.f32 %v1529, 0.2
    %v1658 = vmul.f32 %v1530, 0.2
    %v1659 = vmul.f32 %v1531, 0.2
    %v1660 = vmul.f32 %v1532, 0.2
    %v1661 = vmul.f32 %v1533, 0.2
    %v1662 = vmul.f32 %v1534, 0.2
    %v1663 = vmul.f32 %v1535, 0.2
    %v1664 = vmul.f32 %v1536, 0.2
    %v1665 = vmul.f32 %v1537, 0.2
    %v1666 = vmul.f32 %v1538, 0.2
    %v1667 = vmul.f32 %v1539, 0.2
    %v1668 = vmul.f32 %v1540, 0.2
    %v1669 = vmul.f32 %v1541, 0.2
    %v1670 = vmul.f32 %v1542, 0.2
    %v1671 = vmul.f32 %v1543, 0.2
    %v1672 = vmul.f32 %v1544, 0.2
    %v1673 = vmul.f32 %v1545, 0.2
    %v1674 = vmul.f32 %v1546, 0.2
    %v1675 = vmul.f32 %v1547, 0.2
    %v1676 = vmul.f32 %v1548, 0.2
    %v1677 = vmul.f32 %v1549, 0.2
    %v1678 = vmul.f32 %v1550, 0.2
    %v1679 = vmul.f32 %v1551, 0.2
    %v1680 = vmul.f32 %v1552, 0.2
    %v1681 = vmul.f32 %v1553, 0.2
    %v1682 = vmul.f32 %v1554, 0.2
    %v1683 = vmul.f32 %v1555, 0.2
    %v1684 = vmul.f32 %v1556, 0.2
    %v1685 = vmax.f32 %v1429, %v1557
    %v1686 = vmax.f32 %v1430, %v1558
    %v1687 = vmax.f32 %v1431, %v1559
    %v1688 = vmax.f32 %v1432, %v1560
    %v1689 = vmax.f32 %v1433, %v1561
    %v1690 = vmax.f32 %v1434, %v1562
    %v1691 = vmax.f32 %v1435, %v1563
    %v1692 = vmax.f32 %v1436, %v1564
    %v1693 = vmax.f32 %v1437, %v1565
    %v1694 = vmax.f32 %v1438, %v1566
    %v1695 = vmax.f32 %v1439, %v1567
    %v1696 = vmax.f32 %v1440, %v1568
    %v1697 = vmax.f32 %v1441, %v1569
    %v1698 = vmax.f32 %v1442, %v1570
    %v1699 = vmax.f32 %v1443, %v1571
    %v1700 = vmax.f32 %v1444, %v1572
    %v1701 = vmax.f32 %v1445, %v1573
    %v1702 = vmax.f32 %v1446, %v1574
    %v1703 = vmax.f32 %v1447, %v1575
    %v1704 = vmax.f32 %v1448, %v1576
    %v1705 = vmax.f32 %v1449, %v1577
    %v1706 = vmax.f32 %v1450, %v1578
    %v1707 = vmax.f32 %v1451, %v1579
    %v1708 = vmax.f32 %v1452, %v1580
    %v1709 = vmax.f32 %v1453, %v1581
    %v1710 = vmax.f32 %v1454, %v1582
    %v1711 = vmax.f32 %v1455, %v1583
    %v1712 = vmax.f32 %v1456, %v1584
    %v1713 = vmax.f32 %v1457, %v1585
    %v1714 = vmax.f32 %v1458, %v1586
    %v1715 = vmax.f32 %v1459, %v1587
    %v1716 = vmax.f32 %v1460, %v1588
    %v1717 = vmax.f32 %v1461, %v1589
    %v1718 = vmax.f32 %v1462, %v1590
    %v1719 = vmax.f32 %v1463, %v1591
    %v1720 = vmax.f32 %v1464, %v1592
    %v1721 = vmax.f32 %v1465, %v1593
    %v1722 = vmax.f32 %v1466, %v1594
    %v1723 = vmax.f32 %v1467, %v1595
    %v1724 = vmax.f32 %v1468, %v1596
    %v1725 = vmax.f32 %v1469, %v1597
    %v1726 = vmax.f32 %v1470, %v1598
    %v1727 = vmax.f32 %v1471, %v1599
    %v1728 = vmax.f32 %v1472, %v1600
    %v1729 = vmax.f32 %v1473, %v1601
    %v1730 = vmax.f32 %v1474, %v1602
    %v1731 = vmax.f32 %v1475, %v1603
    %v1732 = vmax.f32 %v1476, %v1604
    %v1733 = vmax.f32 %v1477, %v1605
    %v1734 = vmax.f32 %v1478, %v1606
    %v1735 = vmax.f32 %v1479, %v1607
    %v1736 = vmax.f32 %v1480, %v1608
    %v1737 = vmax.f32 %v1481, %v1609
    %v1738 = vmax.f32 %v1482, %v1610
    %v1739 = vmax.f32 %v1483, %v1611
    %v1740 = vmax.f32 %v1484, %v1612
    %v1741 = vmax.f32 %v1485, %v1613
    %v1742 = vmax.f32 %v1486, %v1614
    %v1743 = vmax.f32 %v1487, %v1615
    %v1744 = vmax.f32 %v1488, %v1616
    %v1745 = vmax.f32 %v1489, %v1617
    %v1746 = vmax.f32 %v1490, %v1618
    %v1747 = vmax.f32 %v1491, %v1619
    %v1748 = vmax.f32 %v1492, %v1620
    %v1749 = vmax.f32 %v1493, %v1621
    %v1750 = vmax.f32 %v1494, %v1622
    %v1751 = vmax.f32 %v1495, %v1623
    %v1752 = vmax.f32 %v1496, %v1624
    %v1753 = vmax.f32 %v1497, %v1625
    %v1754 = vmax.f32 %v1498, %v1626
    %v1755 = vmax.f32 %v1499, %v1627
    %v1756 = vmax.f32 %v1500, %v1628
    %v1757 = vmax.f32 %v1501, %v1629
    %v1758 = vmax.f32 %v1502, %v1630
    %v1759 = vmax.f32 %v1503, %v1631
    %v1760 = vmax.f32 %v1504, %v1632
    %v1761 = vmax.f32 %v1505, %v1633
    %v1762 = vmax.f32 %v1506, %v1634
    %v1763 = vmax.f32 %v1507, %v1635
    %v1764 = vmax.f32 %v1508, %v1636
    %v1765 = vmax.f32 %v1509, %v1637
    %v1766 = vmax.f32 %v1510, %v1638
    %v1767 = vmax.f32 %v1511, %v1639
    %v1768 = vmax.f32 %v1512, %v1640
    %v1769 = vmax.f32 %v1513, %v1641
    %v1770 = vmax.f32 %v1514, %v1642
    %v1771 = vmax.f32 %v1515, %v1643
    %v1772 = vmax.f32 %v1516, %v1644
    %v1773 = vmax.f32 %v1517, %v1645
    %v1774 = vmax.f32 %v1518, %v1646
    %v1775 = vmax.f32 %v1519, %v1647
    %v1776 = vmax.f32 %v1520, %v1648
    %v1777 = vmax.f32 %v1521, %v1649
    %v1778 = vmax.f32 %v1522, %v1650
    %v1779 = vmax.f32 %v1523, %v1651
    %v1780 = vmax.f32 %v1524, %v1652
    %v1781 = vmax.f32 %v1525, %v1653
    %v1782 = vmax.f32 %v1526, %v1654
    %v1783 = vmax.f32 %v1527, %v1655
    %v1784 = vmax.f32 %v1528, %v1656
    %v1785 = vmax.f32 %v1529, %v1657
    %v1786 = vmax.f32 %v1530, %v1658
    %v1787 = vmax.f32 %v1531, %v1659
    %v1788 = vmax.f32 %v1532, %v1660
    %v1789 = vmax.f32 %v1533, %v1661
    %v1790 = vmax.f32 %v1534, %v1662
    %v1791 = vmax.f32 %v1535, %v1663
    %v1792 = vmax.f32 %v1536, %v1664
    %v1793 = vmax.f32 %v1537, %v1665
    %v1794 = vmax.f32 %v1538, %v1666
    %v1795 = vmax.f32 %v1539, %v1667
    %v1796 = vmax.f32 %v1540, %v1668
    %v1797 = vmax.f32 %v1541, %v1669
    %v1798 = vmax.f32 %v1542, %v1670
    %v1799 = vmax.f32 %v1543, %v1671
    %v1800 = vmax.f32 %v1544, %v1672
    %v1801 = vmax.f32 %v1545, %v1673
    %v1802 = vmax.f32 %v1546, %v1674
    %v1803 = vmax.f32 %v1547, %v1675
    %v1804 = vmax.f32 %v1548, %v1676
    %v1805 = vmax.f32 %v1549, %v1677
    %v1806 = vmax.f32 %v1550, %v1678
    %v1807 = vmax.f32 %v1551, %v1679
    %v1808 = vmax.f32 %v1552, %v1680
    %v1809 = vmax.f32 %v1553, %v1681
    %v1810 = vmax.f32 %v1554, %v1682
    %v1811 = vmax.f32 %v1555, %v1683
    %v1812 = vmax.f32 %v1556, %v1684
    %v1813 = vpack.c.bf16 %v1689, %v1685
    %v1814 = vpack.c.bf16 %v1690, %v1686
    %v1815 = vpack.c.bf16 %v1691, %v1687
    %v1816 = vpack.c.bf16 %v1692, %v1688
    %v1817 = vpack.c.bf16 %v1697, %v1693
    %v1818 = vpack.c.bf16 %v1698, %v1694
    %v1819 = vpack.c.bf16 %v1699, %v1695
    %v1820 = vpack.c.bf16 %v1700, %v1696
    %v1821 = vpack.c.bf16 %v1705, %v1701
    %v1822 = vpack.c.bf16 %v1706, %v1702
    %v1823 = vpack.c.bf16 %v1707, %v1703
    %v1824 = vpack.c.bf16 %v1708, %v1704
    %v1825 = vpack.c.bf16 %v1713, %v1709
    %v1826 = vpack.c.bf16 %v1714, %v1710
    %v1827 = vpack.c.bf16 %v1715, %v1711
    %v1828 = vpack.c.bf16 %v1716, %v1712
    %v1829 = vpack.c.bf16 %v1721, %v1717
    %v1830 = vpack.c.bf16 %v1722, %v1718
    %v1831 = vpack.c.bf16 %v1723, %v1719
    %v1832 = vpack.c.bf16 %v1724, %v1720
    %v1833 = vpack.c.bf16 %v1729, %v1725
    %v1834 = vpack.c.bf16 %v1730, %v1726
    %v1835 = vpack.c.bf16 %v1731, %v1727
    %v1836 = vpack.c.bf16 %v1732, %v1728
    %v1837 = vpack.c.bf16 %v1737, %v1733
    %v1838 = vpack.c.bf16 %v1738, %v1734
    %v1839 = vpack.c.bf16 %v1739, %v1735
    %v1840 = vpack.c.bf16 %v1740, %v1736
    %v1841 = vpack.c.bf16 %v1745, %v1741
    %v1842 = vpack.c.bf16 %v1746, %v1742
    %v1843 = vpack.c.bf16 %v1747, %v1743
    %v1844 = vpack.c.bf16 %v1748, %v1744
    %v1845 = vpack.c.bf16 %v1753, %v1749
    %v1846 = vpack.c.bf16 %v1754, %v1750
    %v1847 = vpack.c.bf16 %v1755, %v1751
    %v1848 = vpack.c.bf16 %v1756, %v1752
    %v1849 = vpack.c.bf16 %v1761, %v1757
    %v1850 = vpack.c.bf16 %v1762, %v1758
    %v1851 = vpack.c.bf16 %v1763, %v1759
    %v1852 = vpack.c.bf16 %v1764, %v1760
    %v1853 = vpack.c.bf16 %v1769, %v1765
    %v1854 = vpack.c.bf16 %v1770, %v1766
    %v1855 = vpack.c.bf16 %v1771, %v1767
    %v1856 = vpack.c.bf16 %v1772, %v1768
    %v1857 = vpack.c.bf16 %v1777, %v1773
    %v1858 = vpack.c.bf16 %v1778, %v1774
    %v1859 = vpack.c.bf16 %v1779, %v1775
    %v1860 = vpack.c.bf16 %v1780, %v1776
    %v1861 = vpack.c.bf16 %v1785, %v1781
    %v1862 = vpack.c.bf16 %v1786, %v1782
    %v1863 = vpack.c.bf16 %v1787, %v1783
    %v1864 = vpack.c.bf16 %v1788, %v1784
    %v1865 = vpack.c.bf16 %v1793, %v1789
    %v1866 = vpack.c.bf16 %v1794, %v1790
    %v1867 = vpack.c.bf16 %v1795, %v1791
    %v1868 = vpack.c.bf16 %v1796, %v1792
    %v1869 = vpack.c.bf16 %v1801, %v1797
    %v1870 = vpack.c.bf16 %v1802, %v1798
    %v1871 = vpack.c.bf16 %v1803, %v1799
    %v1872 = vpack.c.bf16 %v1804, %v1800
    %v1873 = vpack.c.bf16 %v1809, %v1805
    %v1874 = vpack.c.bf16 %v1810, %v1806
    %v1875 = vpack.c.bf16 %v1811, %v1807
    %v1876 = vpack.c.bf16 %v1812, %v1808
    %v1877 = vld [vmem:[#allocation5] sm:$0xff]
    %v1878 = vld [vmem:[#allocation5 + $0x8] sm:$0xff]
    %v1879 = vld [vmem:[#allocation5 + $0x10] sm:$0xff]
    %v1880 = vld [vmem:[#allocation5 + $0x18] sm:$0xff]
    %v1881 = vld [vmem:[#allocation5 + $0x20] sm:$0xff]
    %v1882 = vld [vmem:[#allocation5 + $0x28] sm:$0xff]
    %v1883 = vld [vmem:[#allocation5 + $0x30] sm:$0xff]
    %v1884 = vld [vmem:[#allocation5 + $0x38] sm:$0xff]
    %v1885 = vld [vmem:[#allocation5 + $0x40] sm:$0xff]
    %v1886 = vld [vmem:[#allocation5 + $0x48] sm:$0xff]
    %v1887 = vld [vmem:[#allocation5 + $0x50] sm:$0xff]
    %v1888 = vld [vmem:[#allocation5 + $0x58] sm:$0xff]
    %v1889 = vld [vmem:[#allocation5 + $0x60] sm:$0xff]
    %v1890 = vld [vmem:[#allocation5 + $0x68] sm:$0xff]
    %v1891 = vld [vmem:[#allocation5 + $0x70] sm:$0xff]
    %v1892 = vld [vmem:[#allocation5 + $0x78] sm:$0xff]
    %v1893 = vld [vmem:[#allocation5 + $0x80] sm:$0xff]
    %v1894 = vld [vmem:[#allocation5 + $0x88] sm:$0xff]
    %v1895 = vld [vmem:[#allocation5 + $0x90] sm:$0xff]
    %v1896 = vld [vmem:[#allocation5 + $0x98] sm:$0xff]
    %v1897 = vld [vmem:[#allocation5 + $0xa0] sm:$0xff]
    %v1898 = vld [vmem:[#allocation5 + $0xa8] sm:$0xff]
    %v1899 = vld [vmem:[#allocation5 + $0xb0] sm:$0xff]
    %v1900 = vld [vmem:[#allocation5 + $0xb8] sm:$0xff]
    %v1901 = vld [vmem:[#allocation5 + $0xc0] sm:$0xff]
    %v1902 = vld [vmem:[#allocation5 + $0xc8] sm:$0xff]
    %v1903 = vld [vmem:[#allocation5 + $0xd0] sm:$0xff]
    %v1904 = vld [vmem:[#allocation5 + $0xd8] sm:$0xff]
    %v1905 = vld [vmem:[#allocation5 + $0xe0] sm:$0xff]
    %v1906 = vld [vmem:[#allocation5 + $0xe8] sm:$0xff]
    %v1907 = vld [vmem:[#allocation5 + $0xf0] sm:$0xff]
    %v1908 = vld [vmem:[#allocation5 + $0xf8] sm:$0xff]
    %v1909 = vld [vmem:[#allocation5 + $0x100] sm:$0xff]
    %v1910 = vld [vmem:[#allocation5 + $0x108] sm:$0xff]
    %v1911 = vld [vmem:[#allocation5 + $0x110] sm:$0xff]
    %v1912 = vld [vmem:[#allocation5 + $0x118] sm:$0xff]
    %v1913 = vld [vmem:[#allocation5 + $0x120] sm:$0xff]
    %v1914 = vld [vmem:[#allocation5 + $0x128] sm:$0xff]
    %v1915 = vld [vmem:[#allocation5 + $0x130] sm:$0xff]
    %v1916 = vld [vmem:[#allocation5 + $0x138] sm:$0xff]
    %v1917 = vld [vmem:[#allocation5 + $0x140] sm:$0xff]
    %v1918 = vld [vmem:[#allocation5 + $0x148] sm:$0xff]
    %v1919 = vld [vmem:[#allocation5 + $0x150] sm:$0xff]
    %v1920 = vld [vmem:[#allocation5 + $0x158] sm:$0xff]
    %v1921 = vld [vmem:[#allocation5 + $0x160] sm:$0xff]
    %v1922 = vld [vmem:[#allocation5 + $0x168] sm:$0xff]
    %v1923 = vld [vmem:[#allocation5 + $0x170] sm:$0xff]
    %v1924 = vld [vmem:[#allocation5 + $0x178] sm:$0xff]
    %v1925 = vld [vmem:[#allocation5 + $0x180] sm:$0xff]
    %v1926 = vld [vmem:[#allocation5 + $0x188] sm:$0xff]
    %v1927 = vld [vmem:[#allocation5 + $0x190] sm:$0xff]
    %v1928 = vld [vmem:[#allocation5 + $0x198] sm:$0xff]
    %v1929 = vld [vmem:[#allocation5 + $0x1a0] sm:$0xff]
    %v1930 = vld [vmem:[#allocation5 + $0x1a8] sm:$0xff]
    %v1931 = vld [vmem:[#allocation5 + $0x1b0] sm:$0xff]
    %v1932 = vld [vmem:[#allocation5 + $0x1b8] sm:$0xff]
    %v1933 = vld [vmem:[#allocation5 + $0x1c0] sm:$0xff]
    %v1934 = vld [vmem:[#allocation5 + $0x1c8] sm:$0xff]
    %v1935 = vld [vmem:[#allocation5 + $0x1d0] sm:$0xff]
    %v1936 = vld [vmem:[#allocation5 + $0x1d8] sm:$0xff]
    %v1937 = vld [vmem:[#allocation5 + $0x1e0] sm:$0xff]
    %v1938 = vld [vmem:[#allocation5 + $0x1e8] sm:$0xff]
    %v1939 = vld [vmem:[#allocation5 + $0x1f0] sm:$0xff]
    %v1940 = vld [vmem:[#allocation5 + $0x1f8] sm:$0xff]
    %v2005 = vunpack.c.l.b16 %v1877
    %v2006 = vunpack.c.h.b16 %v1877
    %v2007 = vunpack.c.l.b16 %v1878
    %v2008 = vunpack.c.h.b16 %v1878
    %v2009 = vunpack.c.l.b16 %v1879
    %v2010 = vunpack.c.h.b16 %v1879
    %v2011 = vunpack.c.l.b16 %v1880
    %v2012 = vunpack.c.h.b16 %v1880
    %v2013 = vunpack.c.l.b16 %v1881
    %v2014 = vunpack.c.h.b16 %v1881
    %v2015 = vunpack.c.l.b16 %v1882
    %v2016 = vunpack.c.h.b16 %v1882
    %v2017 = vunpack.c.l.b16 %v1883
    %v2018 = vunpack.c.h.b16 %v1883
    %v2019 = vunpack.c.l.b16 %v1884
    %v2020 = vunpack.c.h.b16 %v1884
    %v2021 = vunpack.c.l.b16 %v1885
    %v2022 = vunpack.c.h.b16 %v1885
    %v2023 = vunpack.c.l.b16 %v1886
    %v2024 = vunpack.c.h.b16 %v1886
    %v2025 = vunpack.c.l.b16 %v1887
    %v2026 = vunpack.c.h.b16 %v1887
    %v2027 = vunpack.c.l.b16 %v1888
    %v2028 = vunpack.c.h.b16 %v1888
    %v2029 = vunpack.c.l.b16 %v1889
    %v2030 = vunpack.c.h.b16 %v1889
    %v2031 = vunpack.c.l.b16 %v1890
    %v2032 = vunpack.c.h.b16 %v1890
    %v2033 = vunpack.c.l.b16 %v1891
    %v2034 = vunpack.c.h.b16 %v1891
    %v2035 = vunpack.c.l.b16 %v1892
    %v2036 = vunpack.c.h.b16 %v1892
    %v2037 = vunpack.c.l.b16 %v1893
    %v2038 = vunpack.c.h.b16 %v1893
    %v2039 = vunpack.c.l.b16 %v1894
    %v2040 = vunpack.c.h.b16 %v1894
    %v2041 = vunpack.c.l.b16 %v1895
    %v2042 = vunpack.c.h.b16 %v1895
    %v2043 = vunpack.c.l.b16 %v1896
    %v2044 = vunpack.c.h.b16 %v1896
    %v2045 = vunpack.c.l.b16 %v1897
    %v2046 = vunpack.c.h.b16 %v1897
    %v2047 = vunpack.c.l.b16 %v1898
    %v2048 = vunpack.c.h.b16 %v1898
    %v2049 = vunpack.c.l.b16 %v1899
    %v2050 = vunpack.c.h.b16 %v1899
    %v2051 = vunpack.c.l.b16 %v1900
    %v2052 = vunpack.c.h.b16 %v1900
    %v2053 = vunpack.c.l.b16 %v1901
    %v2054 = vunpack.c.h.b16 %v1901
    %v2055 = vunpack.c.l.b16 %v1902
    %v2056 = vunpack.c.h.b16 %v1902
    %v2057 = vunpack.c.l.b16 %v1903
    %v2058 = vunpack.c.h.b16 %v1903
    %v2059 = vunpack.c.l.b16 %v1904
    %v2060 = vunpack.c.h.b16 %v1904
    %v2061 = vunpack.c.l.b16 %v1905
    %v2062 = vunpack.c.h.b16 %v1905
    %v2063 = vunpack.c.l.b16 %v1906
    %v2064 = vunpack.c.h.b16 %v1906
    %v2065 = vunpack.c.l.b16 %v1907
    %v2066 = vunpack.c.h.b16 %v1907
    %v2067 = vunpack.c.l.b16 %v1908
    %v2068 = vunpack.c.h.b16 %v1908
    %v2069 = vunpack.c.l.b16 %v1909
    %v2070 = vunpack.c.h.b16 %v1909
    %v2071 = vunpack.c.l.b16 %v1910
    %v2072 = vunpack.c.h.b16 %v1910
    %v2073 = vunpack.c.l.b16 %v1911
    %v2074 = vunpack.c.h.b16 %v1911
    %v2075 = vunpack.c.l.b16 %v1912
    %v2076 = vunpack.c.h.b16 %v1912
    %v2077 = vunpack.c.l.b16 %v1913
    %v2078 = vunpack.c.h.b16 %v1913
    %v2079 = vunpack.c.l.b16 %v1914
    %v2080 = vunpack.c.h.b16 %v1914
    %v2081 = vunpack.c.l.b16 %v1915
    %v2082 = vunpack.c.h.b16 %v1915
    %v2083 = vunpack.c.l.b16 %v1916
    %v2084 = vunpack.c.h.b16 %v1916
    %v2085 = vunpack.c.l.b16 %v1917
    %v2086 = vunpack.c.h.b16 %v1917
    %v2087 = vunpack.c.l.b16 %v1918
    %v2088 = vunpack.c.h.b16 %v1918
    %v2089 = vunpack.c.l.b16 %v1919
    %v2090 = vunpack.c.h.b16 %v1919
    %v2091 = vunpack.c.l.b16 %v1920
    %v2092 = vunpack.c.h.b16 %v1920
    %v2093 = vunpack.c.l.b16 %v1921
    %v2094 = vunpack.c.h.b16 %v1921
    %v2095 = vunpack.c.l.b16 %v1922
    %v2096 = vunpack.c.h.b16 %v1922
    %v2097 = vunpack.c.l.b16 %v1923
    %v2098 = vunpack.c.h.b16 %v1923
    %v2099 = vunpack.c.l.b16 %v1924
    %v2100 = vunpack.c.h.b16 %v1924
    %v2101 = vunpack.c.l.b16 %v1925
    %v2102 = vunpack.c.h.b16 %v1925
    %v2103 = vunpack.c.l.b16 %v1926
    %v2104 = vunpack.c.h.b16 %v1926
    %v2105 = vunpack.c.l.b16 %v1927
    %v2106 = vunpack.c.h.b16 %v1927
    %v2107 = vunpack.c.l.b16 %v1928
    %v2108 = vunpack.c.h.b16 %v1928
    %v2109 = vunpack.c.l.b16 %v1929
    %v2110 = vunpack.c.h.b16 %v1929
    %v2111 = vunpack.c.l.b16 %v1930
    %v2112 = vunpack.c.h.b16 %v1930
    %v2113 = vunpack.c.l.b16 %v1931
    %v2114 = vunpack.c.h.b16 %v1931
    %v2115 = vunpack.c.l.b16 %v1932
    %v2116 = vunpack.c.h.b16 %v1932
    %v2117 = vunpack.c.l.b16 %v1933
    %v2118 = vunpack.c.h.b16 %v1933
    %v2119 = vunpack.c.l.b16 %v1934
    %v2120 = vunpack.c.h.b16 %v1934
    %v2121 = vunpack.c.l.b16 %v1935
    %v2122 = vunpack.c.h.b16 %v1935
    %v2123 = vunpack.c.l.b16 %v1936
    %v2124 = vunpack.c.h.b16 %v1936
    %v2125 = vunpack.c.l.b16 %v1937
    %v2126 = vunpack.c.h.b16 %v1937
    %v2127 = vunpack.c.l.b16 %v1938
    %v2128 = vunpack.c.h.b16 %v1938
    %v2129 = vunpack.c.l.b16 %v1939
    %v2130 = vunpack.c.h.b16 %v1939
    %v2131 = vunpack.c.l.b16 %v1940
    %v2132 = vunpack.c.h.b16 %v1940
    %v2133 = vpack.c.b16 %v2007, %v2005
    %v2134 = vpack.c.b16 %v2008, %v2006
    %v2135 = vpack.c.b16 %v2011, %v2009
    %v2136 = vpack.c.b16 %v2012, %v2010
    %v2137 = vpack.c.b16 %v2015, %v2013
    %v2138 = vpack.c.b16 %v2016, %v2014
    %v2139 = vpack.c.b16 %v2019, %v2017
    %v2140 = vpack.c.b16 %v2020, %v2018
    %v2141 = vpack.c.b16 %v2023, %v2021
    %v2142 = vpack.c.b16 %v2024, %v2022
    %v2143 = vpack.c.b16 %v2027, %v2025
    %v2144 = vpack.c.b16 %v2028, %v2026
    %v2145 = vpack.c.b16 %v2031, %v2029
    %v2146 = vpack.c.b16 %v2032, %v2030
    %v2147 = vpack.c.b16 %v2035, %v2033
    %v2148 = vpack.c.b16 %v2036, %v2034
    %v2149 = vpack.c.b16 %v2039, %v2037
    %v2150 = vpack.c.b16 %v2040, %v2038
    %v2151 = vpack.c.b16 %v2043, %v2041
    %v2152 = vpack.c.b16 %v2044, %v2042
    %v2153 = vpack.c.b16 %v2047, %v2045
    %v2154 = vpack.c.b16 %v2048, %v2046
    %v2155 = vpack.c.b16 %v2051, %v2049
    %v2156 = vpack.c.b16 %v2052, %v2050
    %v2157 = vpack.c.b16 %v2055, %v2053
    %v2158 = vpack.c.b16 %v2056, %v2054
    %v2159 = vpack.c.b16 %v2059, %v2057
    %v2160 = vpack.c.b16 %v2060, %v2058
    %v2161 = vpack.c.b16 %v2063, %v2061
    %v2162 = vpack.c.b16 %v2064, %v2062
    %v2163 = vpack.c.b16 %v2067, %v2065
    %v2164 = vpack.c.b16 %v2068, %v2066
    %v2165 = vpack.c.b16 %v2071, %v2069
    %v2166 = vpack.c.b16 %v2072, %v2070
    %v2167 = vpack.c.b16 %v2075, %v2073
    %v2168 = vpack.c.b16 %v2076, %v2074
    %v2169 = vpack.c.b16 %v2079, %v2077
    %v2170 = vpack.c.b16 %v2080, %v2078
    %v2171 = vpack.c.b16 %v2083, %v2081
    %v2172 = vpack.c.b16 %v2084, %v2082
    %v2173 = vpack.c.b16 %v2087, %v2085
    %v2174 = vpack.c.b16 %v2088, %v2086
    %v2175 = vpack.c.b16 %v2091, %v2089
    %v2176 = vpack.c.b16 %v2092, %v2090
    %v2177 = vpack.c.b16 %v2095, %v2093
    %v2178 = vpack.c.b16 %v2096, %v2094
    %v2179 = vpack.c.b16 %v2099, %v2097
    %v2180 = vpack.c.b16 %v2100, %v2098
    %v2181 = vpack.c.b16 %v2103, %v2101
    %v2182 = vpack.c.b16 %v2104, %v2102
    %v2183 = vpack.c.b16 %v2107, %v2105
    %v2184 = vpack.c.b16 %v2108, %v2106
    %v2185 = vpack.c.b16 %v2111, %v2109
    %v2186 = vpack.c.b16 %v2112, %v2110
    %v2187 = vpack.c.b16 %v2115, %v2113
    %v2188 = vpack.c.b16 %v2116, %v2114
    %v2189 = vpack.c.b16 %v2119, %v2117
    %v2190 = vpack.c.b16 %v2120, %v2118
    %v2191 = vpack.c.b16 %v2123, %v2121
    %v2192 = vpack.c.b16 %v2124, %v2122
    %v2193 = vpack.c.b16 %v2127, %v2125
    %v2194 = vpack.c.b16 %v2128, %v2126
    %v2195 = vpack.c.b16 %v2131, %v2129
    %v2196 = vpack.c.b16 %v2132, %v2130
    %2261 = vmatprep.subr.bf16.mxu0 %v2148
    %2262 = vmatpush1.bf16.msra.mxu0 %v2147
    %2263 = vmatprep.subr.bf16.mxu0 %v2146
    %2264 = vmatpush1.bf16.msra.mxu0 %v2145
    %2265 = vmatprep.subr.bf16.mxu0 %v2144
    %2266 = vmatpush1.bf16.msra.mxu0 %v2143
    %2267 = vmatprep.subr.bf16.mxu0 %v2142
    %2268 = vmatpush1.bf16.msra.mxu0 %v2141
    %2269 = vmatprep.subr.bf16.mxu0 %v2140
    %2270 = vmatpush1.bf16.msra.mxu0 %v2139
    %2271 = vmatprep.subr.bf16.mxu0 %v2138
    %2272 = vmatpush1.bf16.msra.mxu0 %v2137
    %2273 = vmatprep.subr.bf16.mxu0 %v2136
    %2274 = vmatpush1.bf16.msra.mxu0 %v2135
    %2275 = vmatprep.subr.bf16.mxu0 %v2134
    %2276 = vmatpush1.bf16.msra.mxu0 %v2133
    %2277 = vmatprep.subr.bf16.mxu0 %v2164
    %2278 = vmatpush2.bf16.msra.mxu0 %v2163
    %2279 = vmatprep.subr.bf16.mxu0 %v2162
    %2280 = vmatpush2.bf16.msra.mxu0 %v2161
    %2281 = vmatprep.subr.bf16.mxu0 %v2160
    %2282 = vmatpush2.bf16.msra.mxu0 %v2159
    %2283 = vmatprep.subr.bf16.mxu0 %v2158
    %2284 = vmatpush2.bf16.msra.mxu0 %v2157
    %2285 = vmatprep.subr.bf16.mxu0 %v2156
    %2286 = vmatpush2.bf16.msra.mxu0 %v2155
    %2287 = vmatprep.subr.bf16.mxu0 %v2154
    %2288 = vmatpush2.bf16.msra.mxu0 %v2153
    %2289 = vmatprep.subr.bf16.mxu0 %v2152
    %2290 = vmatpush2.bf16.msra.mxu0 %v2151
    %2291 = vmatprep.subr.bf16.mxu0 %v2150
    %2292 = vmatpush2.bf16.msra.mxu0 %v2149
    %2293 = vmatprep.mubr.bf16.mxu0 %v1814
    %2294 = vmatmul.mubr.bf16.gmra.mxu0 %v1813
    %v2295 = vpop.f32.mrf.mxu0
    %v2296 = vadd.f32 0.0, %v2295
    %v2297 = vpop.f32.mrf.mxu0
    %v2298 = vadd.f32 0.0, %v2297
    %v2299 = vpop.f32.mrf.mxu0
    %v2300 = vadd.f32 0.0, %v2299
    %v2301 = vpop.f32.mrf.mxu0
    %v2302 = vadd.f32 0.0, %v2301
    %2303 = vmatprep.mubr.bf16.mxu0 %v1818
    %2304 = vmatmul.mubr.bf16.gmra.mxu0 %v1817
    %v2305 = vpop.f32.mrf.mxu0
    %v2306 = vadd.f32 0.0, %v2305
    %v2307 = vpop.f32.mrf.mxu0
    %v2308 = vadd.f32 0.0, %v2307
    %v2309 = vpop.f32.mrf.mxu0
    %v2310 = vadd.f32 0.0, %v2309
    %v2311 = vpop.f32.mrf.mxu0
    %v2312 = vadd.f32 0.0, %v2311
    %2313 = vmatprep.mubr.bf16.mxu0 %v1822
    %2314 = vmatmul.mubr.bf16.gmra.mxu0 %v1821
    %v2315 = vpop.f32.mrf.mxu0
    %v2316 = vadd.f32 0.0, %v2315
    %v2317 = vpop.f32.mrf.mxu0
    %v2318 = vadd.f32 0.0, %v2317
    %v2319 = vpop.f32.mrf.mxu0
    %v2320 = vadd.f32 0.0, %v2319
    %v2321 = vpop.f32.mrf.mxu0
    %v2322 = vadd.f32 0.0, %v2321
    %2323 = vmatprep.mubr.bf16.mxu0 %v1826
    %2324 = vmatmul.mubr.bf16.gmra.mxu0 %v1825
    %v2325 = vpop.f32.mrf.mxu0
    %v2326 = vadd.f32 0.0, %v2325
    %v2327 = vpop.f32.mrf.mxu0
    %v2328 = vadd.f32 0.0, %v2327
    %v2329 = vpop.f32.mrf.mxu0
    %v2330 = vadd.f32 0.0, %v2329
    %v2331 = vpop.f32.mrf.mxu0
    %v2332 = vadd.f32 0.0, %v2331
    %2333 = vmatprep.mubr.bf16.mxu0 %v1830
    %2334 = vmatmul.mubr.bf16.gmra.mxu0 %v1829
    %v2335 = vpop.f32.mrf.mxu0
    %v2336 = vadd.f32 0.0, %v2335
    %v2337 = vpop.f32.mrf.mxu0
    %v2338 = vadd.f32 0.0, %v2337
    %v2339 = vpop.f32.mrf.mxu0
    %v2340 = vadd.f32 0.0, %v2339
    %v2341 = vpop.f32.mrf.mxu0
    %v2342 = vadd.f32 0.0, %v2341
    %2343 = vmatprep.mubr.bf16.mxu0 %v1834
    %2344 = vmatmul.mubr.bf16.gmra.mxu0 %v1833
    %v2345 = vpop.f32.mrf.mxu0
    %v2346 = vadd.f32 0.0, %v2345
    %v2347 = vpop.f32.mrf.mxu0
    %v2348 = vadd.f32 0.0, %v2347
    %v2349 = vpop.f32.mrf.mxu0
    %v2350 = vadd.f32 0.0, %v2349
    %v2351 = vpop.f32.mrf.mxu0
    %v2352 = vadd.f32 0.0, %v2351
    %2353 = vmatprep.mubr.bf16.mxu0 %v1838
    %2354 = vmatmul.mubr.bf16.gmra.mxu0 %v1837
    %v2355 = vpop.f32.mrf.mxu0
    %v2356 = vadd.f32 0.0, %v2355
    %v2357 = vpop.f32.mrf.mxu0
    %v2358 = vadd.f32 0.0, %v2357
    %v2359 = vpop.f32.mrf.mxu0
    %v2360 = vadd.f32 0.0, %v2359
    %v2361 = vpop.f32.mrf.mxu0
    %v2362 = vadd.f32 0.0, %v2361
    %2363 = vmatprep.mubr.bf16.mxu0 %v1842
    %2364 = vmatmul.mubr.bf16.gmra.mxu0 %v1841
    %v2365 = vpop.f32.mrf.mxu0
    %v2366 = vadd.f32 0.0, %v2365
    %v2367 = vpop.f32.mrf.mxu0
    %v2368 = vadd.f32 0.0, %v2367
    %v2369 = vpop.f32.mrf.mxu0
    %v2370 = vadd.f32 0.0, %v2369
    %v2371 = vpop.f32.mrf.mxu0
    %v2372 = vadd.f32 0.0, %v2371
    %2373 = vmatprep.mubr.bf16.mxu0 %v1846
    %2374 = vmatmul.mubr.bf16.gmra.mxu0 %v1845
    %v2375 = vpop.f32.mrf.mxu0
    %v2376 = vadd.f32 0.0, %v2375
    %v2377 = vpop.f32.mrf.mxu0
    %v2378 = vadd.f32 0.0, %v2377
    %v2379 = vpop.f32.mrf.mxu0
    %v2380 = vadd.f32 0.0, %v2379
    %v2381 = vpop.f32.mrf.mxu0
    %v2382 = vadd.f32 0.0, %v2381
    %2383 = vmatprep.mubr.bf16.mxu0 %v1850
    %2384 = vmatmul.mubr.bf16.gmra.mxu0 %v1849
    %v2385 = vpop.f32.mrf.mxu0
    %v2386 = vadd.f32 0.0, %v2385
    %v2387 = vpop.f32.mrf.mxu0
    %v2388 = vadd.f32 0.0, %v2387
    %v2389 = vpop.f32.mrf.mxu0
    %v2390 = vadd.f32 0.0, %v2389
    %v2391 = vpop.f32.mrf.mxu0
    %v2392 = vadd.f32 0.0, %v2391
    %2393 = vmatprep.mubr.bf16.mxu0 %v1854
    %2394 = vmatmul.mubr.bf16.gmra.mxu0 %v1853
    %v2395 = vpop.f32.mrf.mxu0
    %v2396 = vadd.f32 0.0, %v2395
    %v2397 = vpop.f32.mrf.mxu0
    %v2398 = vadd.f32 0.0, %v2397
    %v2399 = vpop.f32.mrf.mxu0
    %v2400 = vadd.f32 0.0, %v2399
    %v2401 = vpop.f32.mrf.mxu0
    %v2402 = vadd.f32 0.0, %v2401
    %2403 = vmatprep.mubr.bf16.mxu0 %v1858
    %2404 = vmatmul.mubr.bf16.gmra.mxu0 %v1857
    %v2405 = vpop.f32.mrf.mxu0
    %v2406 = vadd.f32 0.0, %v2405
    %v2407 = vpop.f32.mrf.mxu0
    %v2408 = vadd.f32 0.0, %v2407
    %v2409 = vpop.f32.mrf.mxu0
    %v2410 = vadd.f32 0.0, %v2409
    %v2411 = vpop.f32.mrf.mxu0
    %v2412 = vadd.f32 0.0, %v2411
    %2413 = vmatprep.mubr.bf16.mxu0 %v1862
    %2414 = vmatmul.mubr.bf16.gmra.mxu0 %v1861
    %v2415 = vpop.f32.mrf.mxu0
    %v2416 = vadd.f32 0.0, %v2415
    %v2417 = vpop.f32.mrf.mxu0
    %v2418 = vadd.f32 0.0, %v2417
    %v2419 = vpop.f32.mrf.mxu0
    %v2420 = vadd.f32 0.0, %v2419
    %v2421 = vpop.f32.mrf.mxu0
    %v2422 = vadd.f32 0.0, %v2421
    %2423 = vmatprep.mubr.bf16.mxu0 %v1866
    %2424 = vmatmul.mubr.bf16.gmra.mxu0 %v1865
    %v2425 = vpop.f32.mrf.mxu0
    %v2426 = vadd.f32 0.0, %v2425
    %v2427 = vpop.f32.mrf.mxu0
    %v2428 = vadd.f32 0.0, %v2427
    %v2429 = vpop.f32.mrf.mxu0
    %v2430 = vadd.f32 0.0, %v2429
    %v2431 = vpop.f32.mrf.mxu0
    %v2432 = vadd.f32 0.0, %v2431
    %2433 = vmatprep.mubr.bf16.mxu0 %v1870
    %2434 = vmatmul.mubr.bf16.gmra.mxu0 %v1869
    %v2435 = vpop.f32.mrf.mxu0
    %v2436 = vadd.f32 0.0, %v2435
    %v2437 = vpop.f32.mrf.mxu0
    %v2438 = vadd.f32 0.0, %v2437
    %v2439 = vpop.f32.mrf.mxu0
    %v2440 = vadd.f32 0.0, %v2439
    %v2441 = vpop.f32.mrf.mxu0
    %v2442 = vadd.f32 0.0, %v2441
    %2443 = vmatprep.mubr.bf16.mxu0 %v1874
    %2444 = vmatmul.mubr.bf16.gmra.mxu0 %v1873
    %v2445 = vpop.f32.mrf.mxu0
    %v2446 = vadd.f32 0.0, %v2445
    %v2447 = vpop.f32.mrf.mxu0
    %v2448 = vadd.f32 0.0, %v2447
    %v2449 = vpop.f32.mrf.mxu0
    %v2450 = vadd.f32 0.0, %v2449
    %v2451 = vpop.f32.mrf.mxu0
    %v2452 = vadd.f32 0.0, %v2451
    %2453 = vdwg.mxu0
    %2454 = vmatprep.subr.bf16.mxu0 %v2180
    %2455 = vmatpush1.bf16.msra.mxu0 %v2179
    %2456 = vmatprep.subr.bf16.mxu0 %v2178
    %2457 = vmatpush1.bf16.msra.mxu0 %v2177
    %2458 = vmatprep.subr.bf16.mxu0 %v2176
    %2459 = vmatpush1.bf16.msra.mxu0 %v2175
    %2460 = vmatprep.subr.bf16.mxu0 %v2174
    %2461 = vmatpush1.bf16.msra.mxu0 %v2173
    %2462 = vmatprep.subr.bf16.mxu0 %v2172
    %2463 = vmatpush1.bf16.msra.mxu0 %v2171
    %2464 = vmatprep.subr.bf16.mxu0 %v2170
    %2465 = vmatpush1.bf16.msra.mxu0 %v2169
    %2466 = vmatprep.subr.bf16.mxu0 %v2168
    %2467 = vmatpush1.bf16.msra.mxu0 %v2167
    %2468 = vmatprep.subr.bf16.mxu0 %v2166
    %2469 = vmatpush1.bf16.msra.mxu0 %v2165
    %2470 = vmatprep.subr.bf16.mxu0 %v2196
    %2471 = vmatpush2.bf16.msra.mxu0 %v2195
    %2472 = vmatprep.subr.bf16.mxu0 %v2194
    %2473 = vmatpush2.bf16.msra.mxu0 %v2193
    %2474 = vmatprep.subr.bf16.mxu0 %v2192
    %2475 = vmatpush2.bf16.msra.mxu0 %v2191
    %2476 = vmatprep.subr.bf16.mxu0 %v2190
    %2477 = vmatpush2.bf16.msra.mxu0 %v2189
    %2478 = vmatprep.subr.bf16.mxu0 %v2188
    %2479 = vmatpush2.bf16.msra.mxu0 %v2187
    %2480 = vmatprep.subr.bf16.mxu0 %v2186
    %2481 = vmatpush2.bf16.msra.mxu0 %v2185
    %2482 = vmatprep.subr.bf16.mxu0 %v2184
    %2483 = vmatpush2.bf16.msra.mxu0 %v2183
    %2484 = vmatprep.subr.bf16.mxu0 %v2182
    %2485 = vmatpush2.bf16.msra.mxu0 %v2181
    %2486 = vmatprep.mubr.bf16.mxu0 %v1816
    %2487 = vmatmul.mubr.bf16.gmra.mxu0 %v1815
    %v2488 = vpop.f32.mrf.mxu0
    %v2489 = vadd.f32 %v2296, %v2488
    %v2490 = vpop.f32.mrf.mxu0
    %v2491 = vadd.f32 %v2298, %v2490
    %v2492 = vpop.f32.mrf.mxu0
    %v2493 = vadd.f32 %v2300, %v2492
    %v2494 = vpop.f32.mrf.mxu0
    %v2495 = vadd.f32 %v2302, %v2494
    %2496 = vmatprep.mubr.bf16.mxu0 %v1820
    %2497 = vmatmul.mubr.bf16.gmra.mxu0 %v1819
    %v2498 = vpop.f32.mrf.mxu0
    %v2499 = vadd.f32 %v2306, %v2498
    %v2500 = vpop.f32.mrf.mxu0
    %v2501 = vadd.f32 %v2308, %v2500
    %v2502 = vpop.f32.mrf.mxu0
    %v2503 = vadd.f32 %v2310, %v2502
    %v2504 = vpop.f32.mrf.mxu0
    %v2505 = vadd.f32 %v2312, %v2504
    %2506 = vmatprep.mubr.bf16.mxu0 %v1824
    %2507 = vmatmul.mubr.bf16.gmra.mxu0 %v1823
    %v2508 = vpop.f32.mrf.mxu0
    %v2509 = vadd.f32 %v2316, %v2508
    %v2510 = vpop.f32.mrf.mxu0
    %v2511 = vadd.f32 %v2318, %v2510
    %v2512 = vpop.f32.mrf.mxu0
    %v2513 = vadd.f32 %v2320, %v2512
    %v2514 = vpop.f32.mrf.mxu0
    %v2515 = vadd.f32 %v2322, %v2514
    %2516 = vmatprep.mubr.bf16.mxu0 %v1828
    %2517 = vmatmul.mubr.bf16.gmra.mxu0 %v1827
    %v2518 = vpop.f32.mrf.mxu0
    %v2519 = vadd.f32 %v2326, %v2518
    %v2520 = vpop.f32.mrf.mxu0
    %v2521 = vadd.f32 %v2328, %v2520
    %v2522 = vpop.f32.mrf.mxu0
    %v2523 = vadd.f32 %v2330, %v2522
    %v2524 = vpop.f32.mrf.mxu0
    %v2525 = vadd.f32 %v2332, %v2524
    %2526 = vmatprep.mubr.bf16.mxu0 %v1832
    %2527 = vmatmul.mubr.bf16.gmra.mxu0 %v1831
    %v2528 = vpop.f32.mrf.mxu0
    %v2529 = vadd.f32 %v2336, %v2528
    %v2530 = vpop.f32.mrf.mxu0
    %v2531 = vadd.f32 %v2338, %v2530
    %v2532 = vpop.f32.mrf.mxu0
    %v2533 = vadd.f32 %v2340, %v2532
    %v2534 = vpop.f32.mrf.mxu0
    %v2535 = vadd.f32 %v2342, %v2534
    %2536 = vmatprep.mubr.bf16.mxu0 %v1836
    %2537 = vmatmul.mubr.bf16.gmra.mxu0 %v1835
    %v2538 = vpop.f32.mrf.mxu0
    %v2539 = vadd.f32 %v2346, %v2538
    %v2540 = vpop.f32.mrf.mxu0
    %v2541 = vadd.f32 %v2348, %v2540
    %v2542 = vpop.f32.mrf.mxu0
    %v2543 = vadd.f32 %v2350, %v2542
    %v2544 = vpop.f32.mrf.mxu0
    %v2545 = vadd.f32 %v2352, %v2544
    %2546 = vmatprep.mubr.bf16.mxu0 %v1840
    %2547 = vmatmul.mubr.bf16.gmra.mxu0 %v1839
    %v2548 = vpop.f32.mrf.mxu0
    %v2549 = vadd.f32 %v2356, %v2548
    %v2550 = vpop.f32.mrf.mxu0
    %v2551 = vadd.f32 %v2358, %v2550
    %v2552 = vpop.f32.mrf.mxu0
    %v2553 = vadd.f32 %v2360, %v2552
    %v2554 = vpop.f32.mrf.mxu0
    %v2555 = vadd.f32 %v2362, %v2554
    %2556 = vmatprep.mubr.bf16.mxu0 %v1844
    %2557 = vmatmul.mubr.bf16.gmra.mxu0 %v1843
    %v2558 = vpop.f32.mrf.mxu0
    %v2559 = vadd.f32 %v2366, %v2558
    %v2560 = vpop.f32.mrf.mxu0
    %v2561 = vadd.f32 %v2368, %v2560
    %v2562 = vpop.f32.mrf.mxu0
    %v2563 = vadd.f32 %v2370, %v2562
    %v2564 = vpop.f32.mrf.mxu0
    %v2565 = vadd.f32 %v2372, %v2564
    %2566 = vmatprep.mubr.bf16.mxu0 %v1848
    %2567 = vmatmul.mubr.bf16.gmra.mxu0 %v1847
    %v2568 = vpop.f32.mrf.mxu0
    %v2569 = vadd.f32 %v2376, %v2568
    %v2570 = vpop.f32.mrf.mxu0
    %v2571 = vadd.f32 %v2378, %v2570
    %v2572 = vpop.f32.mrf.mxu0
    %v2573 = vadd.f32 %v2380, %v2572
    %v2574 = vpop.f32.mrf.mxu0
    %v2575 = vadd.f32 %v2382, %v2574
    %2576 = vmatprep.mubr.bf16.mxu0 %v1852
    %2577 = vmatmul.mubr.bf16.gmra.mxu0 %v1851
    %v2578 = vpop.f32.mrf.mxu0
    %v2579 = vadd.f32 %v2386, %v2578
    %v2580 = vpop.f32.mrf.mxu0
    %v2581 = vadd.f32 %v2388, %v2580
    %v2582 = vpop.f32.mrf.mxu0
    %v2583 = vadd.f32 %v2390, %v2582
    %v2584 = vpop.f32.mrf.mxu0
    %v2585 = vadd.f32 %v2392, %v2584
    %2586 = vmatprep.mubr.bf16.mxu0 %v1856
    %2587 = vmatmul.mubr.bf16.gmra.mxu0 %v1855
    %v2588 = vpop.f32.mrf.mxu0
    %v2589 = vadd.f32 %v2396, %v2588
    %v2590 = vpop.f32.mrf.mxu0
    %v2591 = vadd.f32 %v2398, %v2590
    %v2592 = vpop.f32.mrf.mxu0
    %v2593 = vadd.f32 %v2400, %v2592
    %v2594 = vpop.f32.mrf.mxu0
    %v2595 = vadd.f32 %v2402, %v2594
    %2596 = vmatprep.mubr.bf16.mxu0 %v1860
    %2597 = vmatmul.mubr.bf16.gmra.mxu0 %v1859
    %v2598 = vpop.f32.mrf.mxu0
    %v2599 = vadd.f32 %v2406, %v2598
    %v2600 = vpop.f32.mrf.mxu0
    %v2601 = vadd.f32 %v2408, %v2600
    %v2602 = vpop.f32.mrf.mxu0
    %v2603 = vadd.f32 %v2410, %v2602
    %v2604 = vpop.f32.mrf.mxu0
    %v2605 = vadd.f32 %v2412, %v2604
    %2606 = vmatprep.mubr.bf16.mxu0 %v1864
    %2607 = vmatmul.mubr.bf16.gmra.mxu0 %v1863
    %v2608 = vpop.f32.mrf.mxu0
    %v2609 = vadd.f32 %v2416, %v2608
    %v2610 = vpop.f32.mrf.mxu0
    %v2611 = vadd.f32 %v2418, %v2610
    %v2612 = vpop.f32.mrf.mxu0
    %v2613 = vadd.f32 %v2420, %v2612
    %v2614 = vpop.f32.mrf.mxu0
    %v2615 = vadd.f32 %v2422, %v2614
    %2616 = vmatprep.mubr.bf16.mxu0 %v1868
    %2617 = vmatmul.mubr.bf16.gmra.mxu0 %v1867
    %v2618 = vpop.f32.mrf.mxu0
    %v2619 = vadd.f32 %v2426, %v2618
    %v2620 = vpop.f32.mrf.mxu0
    %v2621 = vadd.f32 %v2428, %v2620
    %v2622 = vpop.f32.mrf.mxu0
    %v2623 = vadd.f32 %v2430, %v2622
    %v2624 = vpop.f32.mrf.mxu0
    %v2625 = vadd.f32 %v2432, %v2624
    %2626 = vmatprep.mubr.bf16.mxu0 %v1872
    %2627 = vmatmul.mubr.bf16.gmra.mxu0 %v1871
    %v2628 = vpop.f32.mrf.mxu0
    %v2629 = vadd.f32 %v2436, %v2628
    %v2630 = vpop.f32.mrf.mxu0
    %v2631 = vadd.f32 %v2438, %v2630
    %v2632 = vpop.f32.mrf.mxu0
    %v2633 = vadd.f32 %v2440, %v2632
    %v2634 = vpop.f32.mrf.mxu0
    %v2635 = vadd.f32 %v2442, %v2634
    %2636 = vmatprep.mubr.bf16.mxu0 %v1876
    %2637 = vmatmul.mubr.bf16.gmra.mxu0 %v1875
    %v2638 = vpop.f32.mrf.mxu0
    %v2639 = vadd.f32 %v2446, %v2638
    %v2640 = vpop.f32.mrf.mxu0
    %v2641 = vadd.f32 %v2448, %v2640
    %v2642 = vpop.f32.mrf.mxu0
    %v2643 = vadd.f32 %v2450, %v2642
    %v2644 = vpop.f32.mrf.mxu0
    %v2645 = vadd.f32 %v2452, %v2644
    %2646 = vdwg.mxu0
    %v2647 = vld [vmem:[%s6] sm:$0x3]
    %v2648 = vld [vmem:[#allocation7] sm:$0x3]
    %v2649 = vadd.f32 %v2489, %v2493
    %v2650 = vadd.f32 %v2649, %v2499
    %v2651 = vadd.f32 %v2650, %v2503
    %v2652 = vadd.f32 %v2651, %v2509
    %v2653 = vadd.f32 %v2652, %v2513
    %v2654 = vadd.f32 %v2653, %v2519
    %v2655 = vadd.f32 %v2654, %v2523
    %v2656 = vadd.f32 %v2655, %v2529
    %v2657 = vadd.f32 %v2656, %v2533
    %v2658 = vadd.f32 %v2657, %v2539
    %v2659 = vadd.f32 %v2658, %v2543
    %v2660 = vadd.f32 %v2659, %v2549
    %v2661 = vadd.f32 %v2660, %v2553
    %v2662 = vadd.f32 %v2661, %v2559
    %v2663 = vadd.f32 %v2662, %v2563
    %v2664 = vadd.f32 %v2663, %v2569
    %v2665 = vadd.f32 %v2664, %v2573
    %v2666 = vadd.f32 %v2665, %v2579
    %v2667 = vadd.f32 %v2666, %v2583
    %v2668 = vadd.f32 %v2667, %v2589
    %v2669 = vadd.f32 %v2668, %v2593
    %v2670 = vadd.f32 %v2669, %v2599
    %v2671 = vadd.f32 %v2670, %v2603
    %v2672 = vadd.f32 %v2671, %v2609
    %v2673 = vadd.f32 %v2672, %v2613
    %v2674 = vadd.f32 %v2673, %v2619
    %v2675 = vadd.f32 %v2674, %v2623
    %v2676 = vadd.f32 %v2675, %v2629
    %v2677 = vadd.f32 %v2676, %v2633
    %v2678 = vadd.f32 %v2677, %v2639
    %v2679 = vadd.f32 %v2678, %v2643
    %v2680 = vrot.slane %v2679, 4
    %v2681 = vadd.f32 %v2679, %v2680
    %v2682 = vrot.slane %v2681, 2
    %v2683 = vadd.f32 %v2681, %v2682
    %v2684 = vrot.slane %v2683, 1
    %v2685 = vadd.f32 %v2683, %v2684
    %v2686 = vadd.f32 %v2491, %v2495
    %v2687 = vadd.f32 %v2686, %v2501
    %v2688 = vadd.f32 %v2687, %v2505
    %v2689 = vadd.f32 %v2688, %v2511
    %v2690 = vadd.f32 %v2689, %v2515
    %v2691 = vadd.f32 %v2690, %v2521
    %v2692 = vadd.f32 %v2691, %v2525
    %v2693 = vadd.f32 %v2692, %v2531
    %v2694 = vadd.f32 %v2693, %v2535
    %v2695 = vadd.f32 %v2694, %v2541
    %v2696 = vadd.f32 %v2695, %v2545
    %v2697 = vadd.f32 %v2696, %v2551
    %v2698 = vadd.f32 %v2697, %v2555
    %v2699 = vadd.f32 %v2698, %v2561
    %v2700 = vadd.f32 %v2699, %v2565
    %v2701 = vadd.f32 %v2700, %v2571
    %v2702 = vadd.f32 %v2701, %v2575
    %v2703 = vadd.f32 %v2702, %v2581
    %v2704 = vadd.f32 %v2703, %v2585
    %v2705 = vadd.f32 %v2704, %v2591
    %v2706 = vadd.f32 %v2705, %v2595
    %v2707 = vadd.f32 %v2706, %v2601
    %v2708 = vadd.f32 %v2707, %v2605
    %v2709 = vadd.f32 %v2708, %v2611
    %v2710 = vadd.f32 %v2709, %v2615
    %v2711 = vadd.f32 %v2710, %v2621
    %v2712 = vadd.f32 %v2711, %v2625
    %v2713 = vadd.f32 %v2712, %v2631
    %v2714 = vadd.f32 %v2713, %v2635
    %v2715 = vadd.f32 %v2714, %v2641
    %v2716 = vadd.f32 %v2715, %v2645
    %v2717 = vrot.slane %v2716, 4
    %v2718 = vadd.f32 %v2716, %v2717
    %v2719 = vrot.slane %v2718, 2
    %v2720 = vadd.f32 %v2718, %v2719
    %v2721 = vrot.slane %v2720, 1
    %v2722 = vadd.f32 %v2720, %v2721
    %v2723 = vmul.f32 %v2685, 0.00390625
    %v2724 = vmul.f32 %v2722, 0.00390625
    %v2725 = vmul.f32 %v2489, %v2489
    %v2726 = vmul.f32 %v2491, %v2491
    %v2727 = vmul.f32 %v2493, %v2493
    %v2728 = vmul.f32 %v2495, %v2495
    %v2729 = vmul.f32 %v2499, %v2499
    %v2730 = vmul.f32 %v2501, %v2501
    %v2731 = vmul.f32 %v2503, %v2503
    %v2732 = vmul.f32 %v2505, %v2505
    %v2733 = vmul.f32 %v2509, %v2509
    %v2734 = vmul.f32 %v2511, %v2511
    %v2735 = vmul.f32 %v2513, %v2513
    %v2736 = vmul.f32 %v2515, %v2515
    %v2737 = vmul.f32 %v2519, %v2519
    %v2738 = vmul.f32 %v2521, %v2521
    %v2739 = vmul.f32 %v2523, %v2523
    %v2740 = vmul.f32 %v2525, %v2525
    %v2741 = vmul.f32 %v2529, %v2529
    %v2742 = vmul.f32 %v2531, %v2531
    %v2743 = vmul.f32 %v2533, %v2533
    %v2744 = vmul.f32 %v2535, %v2535
    %v2745 = vmul.f32 %v2539, %v2539
    %v2746 = vmul.f32 %v2541, %v2541
    %v2747 = vmul.f32 %v2543, %v2543
    %v2748 = vmul.f32 %v2545, %v2545
    %v2749 = vmul.f32 %v2549, %v2549
    %v2750 = vmul.f32 %v2551, %v2551
    %v2751 = vmul.f32 %v2553, %v2553
    %v2752 = vmul.f32 %v2555, %v2555
    %v2753 = vmul.f32 %v2559, %v2559
    %v2754 = vmul.f32 %v2561, %v2561
    %v2755 = vmul.f32 %v2563, %v2563
    %v2756 = vmul.f32 %v2565, %v2565
    %v2757 = vmul.f32 %v2569, %v2569
    %v2758 = vmul.f32 %v2571, %v2571
    %v2759 = vmul.f32 %v2573, %v2573
    %v2760 = vmul.f32 %v2575, %v2575
    %v2761 = vmul.f32 %v2579, %v2579
    %v2762 = vmul.f32 %v2581, %v2581
    %v2763 = vmul.f32 %v2583, %v2583
    %v2764 = vmul.f32 %v2585, %v2585
    %v2765 = vmul.f32 %v2589, %v2589
    %v2766 = vmul.f32 %v2591, %v2591
    %v2767 = vmul.f32 %v2593, %v2593
    %v2768 = vmul.f32 %v2595, %v2595
    %v2769 = vmul.f32 %v2599, %v2599
    %v2770 = vmul.f32 %v2601, %v2601
    %v2771 = vmul.f32 %v2603, %v2603
    %v2772 = vmul.f32 %v2605, %v2605
    %v2773 = vmul.f32 %v2609, %v2609
    %v2774 = vmul.f32 %v2611, %v2611
    %v2775 = vmul.f32 %v2613, %v2613
    %v2776 = vmul.f32 %v2615, %v2615
    %v2777 = vmul.f32 %v2619, %v2619
    %v2778 = vmul.f32 %v2621, %v2621
    %v2779 = vmul.f32 %v2623, %v2623
    %v2780 = vmul.f32 %v2625, %v2625
    %v2781 = vmul.f32 %v2629, %v2629
    %v2782 = vmul.f32 %v2631, %v2631
    %v2783 = vmul.f32 %v2633, %v2633
    %v2784 = vmul.f32 %v2635, %v2635
    %v2785 = vmul.f32 %v2639, %v2639
    %v2786 = vmul.f32 %v2641, %v2641
    %v2787 = vmul.f32 %v2643, %v2643
    %v2788 = vmul.f32 %v2645, %v2645
    %v2789 = vadd.f32 %v2725, %v2727
    %v2790 = vadd.f32 %v2789, %v2729
    %v2791 = vadd.f32 %v2790, %v2731
    %v2792 = vadd.f32 %v2791, %v2733
    %v2793 = vadd.f32 %v2792, %v2735
    %v2794 = vadd.f32 %v2793, %v2737
    %v2795 = vadd.f32 %v2794, %v2739
    %v2796 = vadd.f32 %v2795, %v2741
    %v2797 = vadd.f32 %v2796, %v2743
    %v2798 = vadd.f32 %v2797, %v2745
    %v2799 = vadd.f32 %v2798, %v2747
    %v2800 = vadd.f32 %v2799, %v2749
    %v2801 = vadd.f32 %v2800, %v2751
    %v2802 = vadd.f32 %v2801, %v2753
    %v2803 = vadd.f32 %v2802, %v2755
    %v2804 = vadd.f32 %v2803, %v2757
    %v2805 = vadd.f32 %v2804, %v2759
    %v2806 = vadd.f32 %v2805, %v2761
    %v2807 = vadd.f32 %v2806, %v2763
    %v2808 = vadd.f32 %v2807, %v2765
    %v2809 = vadd.f32 %v2808, %v2767
    %v2810 = vadd.f32 %v2809, %v2769
    %v2811 = vadd.f32 %v2810, %v2771
    %v2812 = vadd.f32 %v2811, %v2773
    %v2813 = vadd.f32 %v2812, %v2775
    %v2814 = vadd.f32 %v2813, %v2777
    %v2815 = vadd.f32 %v2814, %v2779
    %v2816 = vadd.f32 %v2815, %v2781
    %v2817 = vadd.f32 %v2816, %v2783
    %v2818 = vadd.f32 %v2817, %v2785
    %v2819 = vadd.f32 %v2818, %v2787
    %v2820 = vrot.slane %v2819, 4
    %v2821 = vadd.f32 %v2819, %v2820
    %v2822 = vrot.slane %v2821, 2
    %v2823 = vadd.f32 %v2821, %v2822
    %v2824 = vrot.slane %v2823, 1
    %v2825 = vadd.f32 %v2823, %v2824
    %v2826 = vadd.f32 %v2726, %v2728
    %v2827 = vadd.f32 %v2826, %v2730
    %v2828 = vadd.f32 %v2827, %v2732
    %v2829 = vadd.f32 %v2828, %v2734
    %v2830 = vadd.f32 %v2829, %v2736
    %v2831 = vadd.f32 %v2830, %v2738
    %v2832 = vadd.f32 %v2831, %v2740
    %v2833 = vadd.f32 %v2832, %v2742
    %v2834 = vadd.f32 %v2833, %v2744
    %v2835 = vadd.f32 %v2834, %v2746
    %v2836 = vadd.f32 %v2835, %v2748
    %v2837 = vadd.f32 %v2836, %v2750
    %v2838 = vadd.f32 %v2837, %v2752
    %v2839 = vadd.f32 %v2838, %v2754
    %v2840 = vadd.f32 %v2839, %v2756
    %v2841 = vadd.f32 %v2840, %v2758
    %v2842 = vadd.f32 %v2841, %v2760
    %v2843 = vadd.f32 %v2842, %v2762
    %v2844 = vadd.f32 %v2843, %v2764
    %v2845 = vadd.f32 %v2844, %v2766
    %v2846 = vadd.f32 %v2845, %v2768
    %v2847 = vadd.f32 %v2846, %v2770
    %v2848 = vadd.f32 %v2847, %v2772
    %v2849 = vadd.f32 %v2848, %v2774
    %v2850 = vadd.f32 %v2849, %v2776
    %v2851 = vadd.f32 %v2850, %v2778
    %v2852 = vadd.f32 %v2851, %v2780
    %v2853 = vadd.f32 %v2852, %v2782
    %v2854 = vadd.f32 %v2853, %v2784
    %v2855 = vadd.f32 %v2854, %v2786
    %v2856 = vadd.f32 %v2855, %v2788
    %v2857 = vrot.slane %v2856, 4
    %v2858 = vadd.f32 %v2856, %v2857
    %v2859 = vrot.slane %v2858, 2
    %v2860 = vadd.f32 %v2858, %v2859
    %v2861 = vrot.slane %v2860, 1
    %v2862 = vadd.f32 %v2860, %v2861
    %v2863 = vmul.f32 %v2825, 0.00390625
    %v2864 = vmul.f32 %v2862, 0.00390625
    %v2865 = vmul.f32 %v2723, %v2723
    %v2866 = vmul.f32 %v2724, %v2724
    %v2867 = vsub.f32 %v2863, %v2865
    %v2868 = vsub.f32 %v2864, %v2866
    %v2869 = vadd.f32 %v2867, 1e-05
    %v2870 = vadd.f32 %v2868, 1e-05
    %v2871 = vrsqrt.pop %v2869
    %v2872 = vrsqrt.pop %v2870
    %v2874 = vlaneseq
    %v2875 = vshrl.u32 %v2874, 7
    %v2876 = vsub.s32 0, %v2875
    %v2877 = vrot.slane %v2647, %v2876
    %v2878 = vlaneseq
    %v2879 = vshrl.u32 %v2878, 7
    %v2880 = vsub.s32 1, %v2879
    %v2881 = vrot.slane %v2647, %v2880
    %v2884 = vmul.f32 %v2871, %v2877
    %v2885 = vmul.f32 %v2872, %v2881
    %v2886 = vmul.f32 %v2723, %v2884
    %v2887 = vmul.f32 %v2724, %v2885
    %v2890 = vcombine.low %v2886, %v2887
    %v2892 = vunpack.c.l.s4 1966171168
    %v2893 = vunpack.c.0.s8 %v2892
    %v2894 = vlaneseq
    %v2895 = vshrl.u32 %v2894, 7
    %v2896 = vsub.s32 %v2893, %v2895
    %v2897 = vrot.slane %v2890, %v2896
    %v2899 = vunpack.c.l.s4 1966171168
    %v2900 = vunpack.c.0.s8 %v2899
    %v2901 = vlaneseq
    %v2902 = vshrl.u32 %v2901, 7
    %v2903 = vsub.s32 %v2900, %v2902
    %v2904 = vrot.slane %v2897, %v2903
    %v2906 = vsub.f32 %v2648, %v2904
    %v2907 = vlaneseq
    %v2908 = vshrl.u32 %v2907, 7
    %v2909 = vsub.s32 0, %v2908
    %v2910 = vrot.slane %v2884, %v2909
    %v2911 = vlaneseq
    %v2912 = vshrl.u32 %v2911, 7
    %v2913 = vsub.s32 0, %v2912
    %v2914 = vrot.slane %v2885, %v2913
    %v2915 = vmul.f32 %v2489, %v2910
    %v2916 = vmul.f32 %v2491, %v2914
    %v2917 = vmul.f32 %v2493, %v2910
    %v2918 = vmul.f32 %v2495, %v2914
    %v2919 = vmul.f32 %v2499, %v2910
    %v2920 = vmul.f32 %v2501, %v2914
    %v2921 = vmul.f32 %v2503, %v2910
    %v2922 = vmul.f32 %v2505, %v2914
    %v2923 = vmul.f32 %v2509, %v2910
    %v2924 = vmul.f32 %v2511, %v2914
    %v2925 = vmul.f32 %v2513, %v2910
    %v2926 = vmul.f32 %v2515, %v2914
    %v2927 = vmul.f32 %v2519, %v2910
    %v2928 = vmul.f32 %v2521, %v2914
    %v2929 = vmul.f32 %v2523, %v2910
    %v2930 = vmul.f32 %v2525, %v2914
    %v2931 = vmul.f32 %v2529, %v2910
    %v2932 = vmul.f32 %v2531, %v2914
    %v2933 = vmul.f32 %v2533, %v2910
    %v2934 = vmul.f32 %v2535, %v2914
    %v2935 = vmul.f32 %v2539, %v2910
    %v2936 = vmul.f32 %v2541, %v2914
    %v2937 = vmul.f32 %v2543, %v2910
    %v2938 = vmul.f32 %v2545, %v2914
    %v2939 = vmul.f32 %v2549, %v2910
    %v2940 = vmul.f32 %v2551, %v2914
    %v2941 = vmul.f32 %v2553, %v2910
    %v2942 = vmul.f32 %v2555, %v2914
    %v2943 = vmul.f32 %v2559, %v2910
    %v2944 = vmul.f32 %v2561, %v2914
    %v2945 = vmul.f32 %v2563, %v2910
    %v2946 = vmul.f32 %v2565, %v2914
    %v2947 = vmul.f32 %v2569, %v2910
    %v2948 = vmul.f32 %v2571, %v2914
    %v2949 = vmul.f32 %v2573, %v2910
    %v2950 = vmul.f32 %v2575, %v2914
    %v2951 = vmul.f32 %v2579, %v2910
    %v2952 = vmul.f32 %v2581, %v2914
    %v2953 = vmul.f32 %v2583, %v2910
    %v2954 = vmul.f32 %v2585, %v2914
    %v2955 = vmul.f32 %v2589, %v2910
    %v2956 = vmul.f32 %v2591, %v2914
    %v2957 = vmul.f32 %v2593, %v2910
    %v2958 = vmul.f32 %v2595, %v2914
    %v2959 = vmul.f32 %v2599, %v2910
    %v2960 = vmul.f32 %v2601, %v2914
    %v2961 = vmul.f32 %v2603, %v2910
    %v2962 = vmul.f32 %v2605, %v2914
    %v2963 = vmul.f32 %v2609, %v2910
    %v2964 = vmul.f32 %v2611, %v2914
    %v2965 = vmul.f32 %v2613, %v2910
    %v2966 = vmul.f32 %v2615, %v2914
    %v2967 = vmul.f32 %v2619, %v2910
    %v2968 = vmul.f32 %v2621, %v2914
    %v2969 = vmul.f32 %v2623, %v2910
    %v2970 = vmul.f32 %v2625, %v2914
    %v2971 = vmul.f32 %v2629, %v2910
    %v2972 = vmul.f32 %v2631, %v2914
    %v2973 = vmul.f32 %v2633, %v2910
    %v2974 = vmul.f32 %v2635, %v2914
    %v2975 = vmul.f32 %v2639, %v2910
    %v2976 = vmul.f32 %v2641, %v2914
    %v2977 = vmul.f32 %v2643, %v2910
    %v2978 = vmul.f32 %v2645, %v2914
    %v2980 = vlaneseq
    %v2981 = vshrl.u32 %v2980, 7
    %v2982 = vsub.s32 0, %v2981
    %v2983 = vrot.slane %v2906, %v2982
    %v2984 = vlaneseq
    %v2985 = vshrl.u32 %v2984, 7
    %v2986 = vsub.s32 1, %v2985
    %v2987 = vrot.slane %v2906, %v2986
    %v2990 = vadd.f32 %v2915, %v2983
    %v2991 = vadd.f32 %v2916, %v2987
    %v2992 = vadd.f32 %v2917, %v2983
    %v2993 = vadd.f32 %v2918, %v2987
    %v2994 = vadd.f32 %v2919, %v2983
    %v2995 = vadd.f32 %v2920, %v2987
    %v2996 = vadd.f32 %v2921, %v2983
    %v2997 = vadd.f32 %v2922, %v2987
    %v2998 = vadd.f32 %v2923, %v2983
    %v2999 = vadd.f32 %v2924, %v2987
    %v3000 = vadd.f32 %v2925, %v2983
    %v3001 = vadd.f32 %v2926, %v2987
    %v3002 = vadd.f32 %v2927, %v2983
    %v3003 = vadd.f32 %v2928, %v2987
    %v3004 = vadd.f32 %v2929, %v2983
    %v3005 = vadd.f32 %v2930, %v2987
    %v3006 = vadd.f32 %v2931, %v2983
    %v3007 = vadd.f32 %v2932, %v2987
    %v3008 = vadd.f32 %v2933, %v2983
    %v3009 = vadd.f32 %v2934, %v2987
    %v3010 = vadd.f32 %v2935, %v2983
    %v3011 = vadd.f32 %v2936, %v2987
    %v3012 = vadd.f32 %v2937, %v2983
    %v3013 = vadd.f32 %v2938, %v2987
    %v3014 = vadd.f32 %v2939, %v2983
    %v3015 = vadd.f32 %v2940, %v2987
    %v3016 = vadd.f32 %v2941, %v2983
    %v3017 = vadd.f32 %v2942, %v2987
    %v3018 = vadd.f32 %v2943, %v2983
    %v3019 = vadd.f32 %v2944, %v2987
    %v3020 = vadd.f32 %v2945, %v2983
    %v3021 = vadd.f32 %v2946, %v2987
    %v3022 = vadd.f32 %v2947, %v2983
    %v3023 = vadd.f32 %v2948, %v2987
    %v3024 = vadd.f32 %v2949, %v2983
    %v3025 = vadd.f32 %v2950, %v2987
    %v3026 = vadd.f32 %v2951, %v2983
    %v3027 = vadd.f32 %v2952, %v2987
    %v3028 = vadd.f32 %v2953, %v2983
    %v3029 = vadd.f32 %v2954, %v2987
    %v3030 = vadd.f32 %v2955, %v2983
    %v3031 = vadd.f32 %v2956, %v2987
    %v3032 = vadd.f32 %v2957, %v2983
    %v3033 = vadd.f32 %v2958, %v2987
    %v3034 = vadd.f32 %v2959, %v2983
    %v3035 = vadd.f32 %v2960, %v2987
    %v3036 = vadd.f32 %v2961, %v2983
    %v3037 = vadd.f32 %v2962, %v2987
    %v3038 = vadd.f32 %v2963, %v2983
    %v3039 = vadd.f32 %v2964, %v2987
    %v3040 = vadd.f32 %v2965, %v2983
    %v3041 = vadd.f32 %v2966, %v2987
    %v3042 = vadd.f32 %v2967, %v2983
    %v3043 = vadd.f32 %v2968, %v2987
    %v3044 = vadd.f32 %v2969, %v2983
    %v3045 = vadd.f32 %v2970, %v2987
    %v3046 = vadd.f32 %v2971, %v2983
    %v3047 = vadd.f32 %v2972, %v2987
    %v3048 = vadd.f32 %v2973, %v2983
    %v3049 = vadd.f32 %v2974, %v2987
    %v3050 = vadd.f32 %v2975, %v2983
    %v3051 = vadd.f32 %v2976, %v2987
    %v3052 = vadd.f32 %v2977, %v2983
    %v3053 = vadd.f32 %v2978, %v2987
    %v3054 = vmul.f32 %v2990, 0.2
    %v3055 = vmul.f32 %v2991, 0.2
    %v3056 = vmul.f32 %v2992, 0.2
    %v3057 = vmul.f32 %v2993, 0.2
    %v3058 = vmul.f32 %v2994, 0.2
    %v3059 = vmul.f32 %v2995, 0.2
    %v3060 = vmul.f32 %v2996, 0.2
    %v3061 = vmul.f32 %v2997, 0.2
    %v3062 = vmul.f32 %v2998, 0.2
    %v3063 = vmul.f32 %v2999, 0.2
    %v3064 = vmul.f32 %v3000, 0.2
    %v3065 = vmul.f32 %v3001, 0.2
    %v3066 = vmul.f32 %v3002, 0.2
    %v3067 = vmul.f32 %v3003, 0.2
    %v3068 = vmul.f32 %v3004, 0.2
    %v3069 = vmul.f32 %v3005, 0.2
    %v3070 = vmul.f32 %v3006, 0.2
    %v3071 = vmul.f32 %v3007, 0.2
    %v3072 = vmul.f32 %v3008, 0.2
    %v3073 = vmul.f32 %v3009, 0.2
    %v3074 = vmul.f32 %v3010, 0.2
    %v3075 = vmul.f32 %v3011, 0.2
    %v3076 = vmul.f32 %v3012, 0.2
    %v3077 = vmul.f32 %v3013, 0.2
    %v3078 = vmul.f32 %v3014, 0.2
    %v3079 = vmul.f32 %v3015, 0.2
    %v3080 = vmul.f32 %v3016, 0.2
    %v3081 = vmul.f32 %v3017, 0.2
    %v3082 = vmul.f32 %v3018, 0.2
    %v3083 = vmul.f32 %v3019, 0.2
    %v3084 = vmul.f32 %v3020, 0.2
    %v3085 = vmul.f32 %v3021, 0.2
    %v3086 = vmul.f32 %v3022, 0.2
    %v3087 = vmul.f32 %v3023, 0.2
    %v3088 = vmul.f32 %v3024, 0.2
    %v3089 = vmul.f32 %v3025, 0.2
    %v3090 = vmul.f32 %v3026, 0.2
    %v3091 = vmul.f32 %v3027, 0.2
    %v3092 = vmul.f32 %v3028, 0.2
    %v3093 = vmul.f32 %v3029, 0.2
    %v3094 = vmul.f32 %v3030, 0.2
    %v3095 = vmul.f32 %v3031, 0.2
    %v3096 = vmul.f32 %v3032, 0.2
    %v3097 = vmul.f32 %v3033, 0.2
    %v3098 = vmul.f32 %v3034, 0.2
    %v3099 = vmul.f32 %v3035, 0.2
    %v3100 = vmul.f32 %v3036, 0.2
    %v3101 = vmul.f32 %v3037, 0.2
    %v3102 = vmul.f32 %v3038, 0.2
    %v3103 = vmul.f32 %v3039, 0.2
    %v3104 = vmul.f32 %v3040, 0.2
    %v3105 = vmul.f32 %v3041, 0.2
    %v3106 = vmul.f32 %v3042, 0.2
    %v3107 = vmul.f32 %v3043, 0.2
    %v3108 = vmul.f32 %v3044, 0.2
    %v3109 = vmul.f32 %v3045, 0.2
    %v3110 = vmul.f32 %v3046, 0.2
    %v3111 = vmul.f32 %v3047, 0.2
    %v3112 = vmul.f32 %v3048, 0.2
    %v3113 = vmul.f32 %v3049, 0.2
    %v3114 = vmul.f32 %v3050, 0.2
    %v3115 = vmul.f32 %v3051, 0.2
    %v3116 = vmul.f32 %v3052, 0.2
    %v3117 = vmul.f32 %v3053, 0.2
    %v3118 = vmax.f32 %v2990, %v3054
    %v3119 = vmax.f32 %v2991, %v3055
    %v3120 = vmax.f32 %v2992, %v3056
    %v3121 = vmax.f32 %v2993, %v3057
    %v3122 = vmax.f32 %v2994, %v3058
    %v3123 = vmax.f32 %v2995, %v3059
    %v3124 = vmax.f32 %v2996, %v3060
    %v3125 = vmax.f32 %v2997, %v3061
    %v3126 = vmax.f32 %v2998, %v3062
    %v3127 = vmax.f32 %v2999, %v3063
    %v3128 = vmax.f32 %v3000, %v3064
    %v3129 = vmax.f32 %v3001, %v3065
    %v3130 = vmax.f32 %v3002, %v3066
    %v3131 = vmax.f32 %v3003, %v3067
    %v3132 = vmax.f32 %v3004, %v3068
    %v3133 = vmax.f32 %v3005, %v3069
    %v3134 = vmax.f32 %v3006, %v3070
    %v3135 = vmax.f32 %v3007, %v3071
    %v3136 = vmax.f32 %v3008, %v3072
    %v3137 = vmax.f32 %v3009, %v3073
    %v3138 = vmax.f32 %v3010, %v3074
    %v3139 = vmax.f32 %v3011, %v3075
    %v3140 = vmax.f32 %v3012, %v3076
    %v3141 = vmax.f32 %v3013, %v3077
    %v3142 = vmax.f32 %v3014, %v3078
    %v3143 = vmax.f32 %v3015, %v3079
    %v3144 = vmax.f32 %v3016, %v3080
    %v3145 = vmax.f32 %v3017, %v3081
    %v3146 = vmax.f32 %v3018, %v3082
    %v3147 = vmax.f32 %v3019, %v3083
    %v3148 = vmax.f32 %v3020, %v3084
    %v3149 = vmax.f32 %v3021, %v3085
    %v3150 = vmax.f32 %v3022, %v3086
    %v3151 = vmax.f32 %v3023, %v3087
    %v3152 = vmax.f32 %v3024, %v3088
    %v3153 = vmax.f32 %v3025, %v3089
    %v3154 = vmax.f32 %v3026, %v3090
    %v3155 = vmax.f32 %v3027, %v3091
    %v3156 = vmax.f32 %v3028, %v3092
    %v3157 = vmax.f32 %v3029, %v3093
    %v3158 = vmax.f32 %v3030, %v3094
    %v3159 = vmax.f32 %v3031, %v3095
    %v3160 = vmax.f32 %v3032, %v3096
    %v3161 = vmax.f32 %v3033, %v3097
    %v3162 = vmax.f32 %v3034, %v3098
    %v3163 = vmax.f32 %v3035, %v3099
    %v3164 = vmax.f32 %v3036, %v3100
    %v3165 = vmax.f32 %v3037, %v3101
    %v3166 = vmax.f32 %v3038, %v3102
    %v3167 = vmax.f32 %v3039, %v3103
    %v3168 = vmax.f32 %v3040, %v3104
    %v3169 = vmax.f32 %v3041, %v3105
    %v3170 = vmax.f32 %v3042, %v3106
    %v3171 = vmax.f32 %v3043, %v3107
    %v3172 = vmax.f32 %v3044, %v3108
    %v3173 = vmax.f32 %v3045, %v3109
    %v3174 = vmax.f32 %v3046, %v3110
    %v3175 = vmax.f32 %v3047, %v3111
    %v3176 = vmax.f32 %v3048, %v3112
    %v3177 = vmax.f32 %v3049, %v3113
    %v3178 = vmax.f32 %v3050, %v3114
    %v3179 = vmax.f32 %v3051, %v3115
    %v3180 = vmax.f32 %v3052, %v3116
    %v3181 = vmax.f32 %v3053, %v3117
    %v3182 = vpack.c.bf16 %v3120, %v3118
    %v3183 = vpack.c.bf16 %v3121, %v3119
    %v3184 = vpack.c.bf16 %v3124, %v3122
    %v3185 = vpack.c.bf16 %v3125, %v3123
    %v3186 = vpack.c.bf16 %v3128, %v3126
    %v3187 = vpack.c.bf16 %v3129, %v3127
    %v3188 = vpack.c.bf16 %v3132, %v3130
    %v3189 = vpack.c.bf16 %v3133, %v3131
    %v3190 = vpack.c.bf16 %v3136, %v3134
    %v3191 = vpack.c.bf16 %v3137, %v3135
    %v3192 = vpack.c.bf16 %v3140, %v3138
    %v3193 = vpack.c.bf16 %v3141, %v3139
    %v3194 = vpack.c.bf16 %v3144, %v3142
    %v3195 = vpack.c.bf16 %v3145, %v3143
    %v3196 = vpack.c.bf16 %v3148, %v3146
    %v3197 = vpack.c.bf16 %v3149, %v3147
    %v3198 = vpack.c.bf16 %v3152, %v3150
    %v3199 = vpack.c.bf16 %v3153, %v3151
    %v3200 = vpack.c.bf16 %v3156, %v3154
    %v3201 = vpack.c.bf16 %v3157, %v3155
    %v3202 = vpack.c.bf16 %v3160, %v3158
    %v3203 = vpack.c.bf16 %v3161, %v3159
    %v3204 = vpack.c.bf16 %v3164, %v3162
    %v3205 = vpack.c.bf16 %v3165, %v3163
    %v3206 = vpack.c.bf16 %v3168, %v3166
    %v3207 = vpack.c.bf16 %v3169, %v3167
    %v3208 = vpack.c.bf16 %v3172, %v3170
    %v3209 = vpack.c.bf16 %v3173, %v3171
    %v3210 = vpack.c.bf16 %v3176, %v3174
    %v3211 = vpack.c.bf16 %v3177, %v3175
    %v3212 = vpack.c.bf16 %v3180, %v3178
    %v3213 = vpack.c.bf16 %v3181, %v3179
    %v3214 = vld [vmem:[#allocation8] sm:$0xf]
    %v3215 = vld [vmem:[#allocation8 + $0x4] sm:$0xf]
    %v3216 = vld [vmem:[#allocation8 + $0x8] sm:$0xf]
    %v3217 = vld [vmem:[#allocation8 + $0xc] sm:$0xf]
    %v3218 = vld [vmem:[#allocation8 + $0x10] sm:$0xf]
    %v3219 = vld [vmem:[#allocation8 + $0x14] sm:$0xf]
    %v3220 = vld [vmem:[#allocation8 + $0x18] sm:$0xf]
    %v3221 = vld [vmem:[#allocation8 + $0x1c] sm:$0xf]
    %v3222 = vld [vmem:[#allocation8 + $0x20] sm:$0xf]
    %v3223 = vld [vmem:[#allocation8 + $0x24] sm:$0xf]
    %v3224 = vld [vmem:[#allocation8 + $0x28] sm:$0xf]
    %v3225 = vld [vmem:[#allocation8 + $0x2c] sm:$0xf]
    %v3226 = vld [vmem:[#allocation8 + $0x30] sm:$0xf]
    %v3227 = vld [vmem:[#allocation8 + $0x34] sm:$0xf]
    %v3228 = vld [vmem:[#allocation8 + $0x38] sm:$0xf]
    %v3229 = vld [vmem:[#allocation8 + $0x3c] sm:$0xf]
    %v3230 = vld [vmem:[#allocation8 + $0x40] sm:$0xf]
    %v3231 = vld [vmem:[#allocation8 + $0x44] sm:$0xf]
    %v3232 = vld [vmem:[#allocation8 + $0x48] sm:$0xf]
    %v3233 = vld [vmem:[#allocation8 + $0x4c] sm:$0xf]
    %v3234 = vld [vmem:[#allocation8 + $0x50] sm:$0xf]
    %v3235 = vld [vmem:[#allocation8 + $0x54] sm:$0xf]
    %v3236 = vld [vmem:[#allocation8 + $0x58] sm:$0xf]
    %v3237 = vld [vmem:[#allocation8 + $0x5c] sm:$0xf]
    %v3238 = vld [vmem:[#allocation8 + $0x60] sm:$0xf]
    %v3239 = vld [vmem:[#allocation8 + $0x64] sm:$0xf]
    %v3240 = vld [vmem:[#allocation8 + $0x68] sm:$0xf]
    %v3241 = vld [vmem:[#allocation8 + $0x6c] sm:$0xf]
    %v3242 = vld [vmem:[#allocation8 + $0x70] sm:$0xf]
    %v3243 = vld [vmem:[#allocation8 + $0x74] sm:$0xf]
    %v3244 = vld [vmem:[#allocation8 + $0x78] sm:$0xf]
    %v3245 = vld [vmem:[#allocation8 + $0x7c] sm:$0xf]
    %v3246 = vld [vmem:[#allocation10] sm:$0x1]
    %v3248 = vlaneseq
    %v3249 = vshrl.u32 %v3248, 7
    %v3250 = vsub.s32 0, %v3249
    %v3251 = vrot.slane %v3246, %v3250
    %v3285 = vunpack.c.l.b16 %v3214
    %v3286 = vunpack.c.l.b16 %v3215
    %v3287 = vunpack.c.l.b16 %v3216
    %v3288 = vunpack.c.l.b16 %v3217
    %v3289 = vunpack.c.l.b16 %v3218
    %v3290 = vunpack.c.l.b16 %v3219
    %v3291 = vunpack.c.l.b16 %v3220
    %v3292 = vunpack.c.l.b16 %v3221
    %v3293 = vunpack.c.l.b16 %v3222
    %v3294 = vunpack.c.l.b16 %v3223
    %v3295 = vunpack.c.l.b16 %v3224
    %v3296 = vunpack.c.l.b16 %v3225
    %v3297 = vunpack.c.l.b16 %v3226
    %v3298 = vunpack.c.l.b16 %v3227
    %v3299 = vunpack.c.l.b16 %v3228
    %v3300 = vunpack.c.l.b16 %v3229
    %v3301 = vunpack.c.l.b16 %v3230
    %v3302 = vunpack.c.l.b16 %v3231
    %v3303 = vunpack.c.l.b16 %v3232
    %v3304 = vunpack.c.l.b16 %v3233
    %v3305 = vunpack.c.l.b16 %v3234
    %v3306 = vunpack.c.l.b16 %v3235
    %v3307 = vunpack.c.l.b16 %v3236
    %v3308 = vunpack.c.l.b16 %v3237
    %v3309 = vunpack.c.l.b16 %v3238
    %v3310 = vunpack.c.l.b16 %v3239
    %v3311 = vunpack.c.l.b16 %v3240
    %v3312 = vunpack.c.l.b16 %v3241
    %v3313 = vunpack.c.l.b16 %v3242
    %v3314 = vunpack.c.l.b16 %v3243
    %v3315 = vunpack.c.l.b16 %v3244
    %v3316 = vunpack.c.l.b16 %v3245
    %v3317 = vpack.c.b16 %v3286, %v3285
    %v3318 = vpack.c.b16 %v3288, %v3287
    %v3319 = vpack.c.b16 %v3290, %v3289
    %v3320 = vpack.c.b16 %v3292, %v3291
    %v3321 = vpack.c.b16 %v3294, %v3293
    %v3322 = vpack.c.b16 %v3296, %v3295
    %v3323 = vpack.c.b16 %v3298, %v3297
    %v3324 = vpack.c.b16 %v3300, %v3299
    %v3325 = vpack.c.b16 %v3302, %v3301
    %v3326 = vpack.c.b16 %v3304, %v3303
    %v3327 = vpack.c.b16 %v3306, %v3305
    %v3328 = vpack.c.b16 %v3308, %v3307
    %v3329 = vpack.c.b16 %v3310, %v3309
    %v3330 = vpack.c.b16 %v3312, %v3311
    %v3331 = vpack.c.b16 %v3314, %v3313
    %v3332 = vpack.c.b16 %v3316, %v3315
    %3349 = vmatprep.subr.bf16.mxu0 0
    %3350 = vmatpush1.bf16.msra.mxu0 %v3324
    %3351 = vmatprep.subr.bf16.mxu0 0
    %3352 = vmatpush1.bf16.msra.mxu0 %v3323
    %3353 = vmatprep.subr.bf16.mxu0 0
    %3354 = vmatpush1.bf16.msra.mxu0 %v3322
    %3355 = vmatprep.subr.bf16.mxu0 0
    %3356 = vmatpush1.bf16.msra.mxu0 %v3321
    %3357 = vmatprep.subr.bf16.mxu0 0
    %3358 = vmatpush1.bf16.msra.mxu0 %v3320
    %3359 = vmatprep.subr.bf16.mxu0 0
    %3360 = vmatpush1.bf16.msra.mxu0 %v3319
    %3361 = vmatprep.subr.bf16.mxu0 0
    %3362 = vmatpush1.bf16.msra.mxu0 %v3318
    %3363 = vmatprep.subr.bf16.mxu0 0
    %3364 = vmatpush1.bf16.msra.mxu0 %v3317
    %3365 = vmatprep.subr.bf16.mxu0 0
    %3366 = vmatpush2.bf16.msra.mxu0 %v3332
    %3367 = vmatprep.subr.bf16.mxu0 0
    %3368 = vmatpush2.bf16.msra.mxu0 %v3331
    %3369 = vmatprep.subr.bf16.mxu0 0
    %3370 = vmatpush2.bf16.msra.mxu0 %v3330
    %3371 = vmatprep.subr.bf16.mxu0 0
    %3372 = vmatpush2.bf16.msra.mxu0 %v3329
    %3373 = vmatprep.subr.bf16.mxu0 0
    %3374 = vmatpush2.bf16.msra.mxu0 %v3328
    %3375 = vmatprep.subr.bf16.mxu0 0
    %3376 = vmatpush2.bf16.msra.mxu0 %v3327
    %3377 = vmatprep.subr.bf16.mxu0 0
    %3378 = vmatpush2.bf16.msra.mxu0 %v3326
    %3379 = vmatprep.subr.bf16.mxu0 0
    %3380 = vmatpush2.bf16.msra.mxu0 %v3325
    %3381 = vmatprep.mubr.bf16.mxu0 %v3183
    %3382 = vmatmul.mubr.bf16.gmra.mxu0 %v3182
    %v3383 = vpop.f32.mrf.mxu0
    %v3384 = vadd.f32 %v3251, %v3383
    %v3385 = vpop.f32.mrf.mxu0
    %v3386 = vpop.f32.mrf.mxu0
    %v3387 = vadd.f32 %v3251, %v3386
    %v3388 = vpop.f32.mrf.mxu0
    %3389 = vmatprep.mubr.bf16.mxu0 %v3185
    %3390 = vmatmul.mubr.bf16.gmra.mxu0 %v3184
    %v3391 = vpop.f32.mrf.mxu0
    %v3392 = vadd.f32 %v3251, %v3391
    %v3393 = vpop.f32.mrf.mxu0
    %v3394 = vpop.f32.mrf.mxu0
    %v3395 = vadd.f32 %v3251, %v3394
    %v3396 = vpop.f32.mrf.mxu0
    %3397 = vmatprep.mubr.bf16.mxu0 %v3187
    %3398 = vmatmul.mubr.bf16.gmra.mxu0 %v3186
    %v3399 = vpop.f32.mrf.mxu0
    %v3400 = vadd.f32 %v3251, %v3399
    %v3401 = vpop.f32.mrf.mxu0
    %v3402 = vpop.f32.mrf.mxu0
    %v3403 = vadd.f32 %v3251, %v3402
    %v3404 = vpop.f32.mrf.mxu0
    %3405 = vmatprep.mubr.bf16.mxu0 %v3189
    %3406 = vmatmul.mubr.bf16.gmra.mxu0 %v3188
    %v3407 = vpop.f32.mrf.mxu0
    %v3408 = vadd.f32 %v3251, %v3407
    %v3409 = vpop.f32.mrf.mxu0
    %v3410 = vpop.f32.mrf.mxu0
    %v3411 = vadd.f32 %v3251, %v3410
    %v3412 = vpop.f32.mrf.mxu0
    %3413 = vmatprep.mubr.bf16.mxu0 %v3191
    %3414 = vmatmul.mubr.bf16.gmra.mxu0 %v3190
    %v3415 = vpop.f32.mrf.mxu0
    %v3416 = vadd.f32 %v3251, %v3415
    %v3417 = vpop.f32.mrf.mxu0
    %v3418 = vpop.f32.mrf.mxu0
    %v3419 = vadd.f32 %v3251, %v3418
    %v3420 = vpop.f32.mrf.mxu0
    %3421 = vmatprep.mubr.bf16.mxu0 %v3193
    %3422 = vmatmul.mubr.bf16.gmra.mxu0 %v3192
    %v3423 = vpop.f32.mrf.mxu0
    %v3424 = vadd.f32 %v3251, %v3423
    %v3425 = vpop.f32.mrf.mxu0
    %v3426 = vpop.f32.mrf.mxu0
    %v3427 = vadd.f32 %v3251, %v3426
    %v3428 = vpop.f32.mrf.mxu0
    %3429 = vmatprep.mubr.bf16.mxu0 %v3195
    %3430 = vmatmul.mubr.bf16.gmra.mxu0 %v3194
    %v3431 = vpop.f32.mrf.mxu0
    %v3432 = vadd.f32 %v3251, %v3431
    %v3433 = vpop.f32.mrf.mxu0
    %v3434 = vpop.f32.mrf.mxu0
    %v3435 = vadd.f32 %v3251, %v3434
    %v3436 = vpop.f32.mrf.mxu0
    %3437 = vmatprep.mubr.bf16.mxu0 %v3197
    %3438 = vmatmul.mubr.bf16.gmra.mxu0 %v3196
    %v3439 = vpop.f32.mrf.mxu0
    %v3440 = vadd.f32 %v3251, %v3439
    %v3441 = vpop.f32.mrf.mxu0
    %v3442 = vpop.f32.mrf.mxu0
    %v3443 = vadd.f32 %v3251, %v3442
    %v3444 = vpop.f32.mrf.mxu0
    %3445 = vmatprep.mubr.bf16.mxu0 %v3199
    %3446 = vmatmul.mubr.bf16.gmra.mxu0 %v3198
    %v3447 = vpop.f32.mrf.mxu0
    %v3448 = vadd.f32 %v3251, %v3447
    %v3449 = vpop.f32.mrf.mxu0
    %v3450 = vpop.f32.mrf.mxu0
    %v3451 = vadd.f32 %v3251, %v3450
    %v3452 = vpop.f32.mrf.mxu0
    %3453 = vmatprep.mubr.bf16.mxu0 %v3201
    %3454 = vmatmul.mubr.bf16.gmra.mxu0 %v3200
    %v3455 = vpop.f32.mrf.mxu0
    %v3456 = vadd.f32 %v3251, %v3455
    %v3457 = vpop.f32.mrf.mxu0
    %v3458 = vpop.f32.mrf.mxu0
    %v3459 = vadd.f32 %v3251, %v3458
    %v3460 = vpop.f32.mrf.mxu0
    %3461 = vmatprep.mubr.bf16.mxu0 %v3203
    %3462 = vmatmul.mubr.bf16.gmra.mxu0 %v3202
    %v3463 = vpop.f32.mrf.mxu0
    %v3464 = vadd.f32 %v3251, %v3463
    %v3465 = vpop.f32.mrf.mxu0
    %v3466 = vpop.f32.mrf.mxu0
    %v3467 = vadd.f32 %v3251, %v3466
    %v3468 = vpop.f32.mrf.mxu0
    %3469 = vmatprep.mubr.bf16.mxu0 %v3205
    %3470 = vmatmul.mubr.bf16.gmra.mxu0 %v3204
    %v3471 = vpop.f32.mrf.mxu0
    %v3472 = vadd.f32 %v3251, %v3471
    %v3473 = vpop.f32.mrf.mxu0
    %v3474 = vpop.f32.mrf.mxu0
    %v3475 = vadd.f32 %v3251, %v3474
    %v3476 = vpop.f32.mrf.mxu0
    %3477 = vmatprep.mubr.bf16.mxu0 %v3207
    %3478 = vmatmul.mubr.bf16.gmra.mxu0 %v3206
    %v3479 = vpop.f32.mrf.mxu0
    %v3480 = vadd.f32 %v3251, %v3479
    %v3481 = vpop.f32.mrf.mxu0
    %v3482 = vpop.f32.mrf.mxu0
    %v3483 = vadd.f32 %v3251, %v3482
    %v3484 = vpop.f32.mrf.mxu0
    %3485 = vmatprep.mubr.bf16.mxu0 %v3209
    %3486 = vmatmul.mubr.bf16.gmra.mxu0 %v3208
    %v3487 = vpop.f32.mrf.mxu0
    %v3488 = vadd.f32 %v3251, %v3487
    %v3489 = vpop.f32.mrf.mxu0
    %v3490 = vpop.f32.mrf.mxu0
    %v3491 = vadd.f32 %v3251, %v3490
    %v3492 = vpop.f32.mrf.mxu0
    %3493 = vmatprep.mubr.bf16.mxu0 %v3211
    %3494 = vmatmul.mubr.bf16.gmra.mxu0 %v3210
    %v3495 = vpop.f32.mrf.mxu0
    %v3496 = vadd.f32 %v3251, %v3495
    %v3497 = vpop.f32.mrf.mxu0
    %v3498 = vpop.f32.mrf.mxu0
    %v3499 = vadd.f32 %v3251, %v3498
    %v3500 = vpop.f32.mrf.mxu0
    %3501 = vmatprep.mubr.bf16.mxu0 %v3213
    %3502 = vmatmul.mubr.bf16.gmra.mxu0 %v3212
    %v3503 = vpop.f32.mrf.mxu0
    %v3504 = vadd.f32 %v3251, %v3503
    %v3505 = vpop.f32.mrf.mxu0
    %v3506 = vpop.f32.mrf.mxu0
    %v3507 = vadd.f32 %v3251, %v3506
    %v3508 = vpop.f32.mrf.mxu0
    %3509 = vdwg.mxu0
    %3510 = vst [vmem:[#allocation17] sm:$0xff] %v3384
    %3511 = vst [vmem:[#allocation17 + $0x8] sm:$0xff] %v3387
    %3512 = vst [vmem:[#allocation17 + $0x10] sm:$0xff] %v3392
    %3513 = vst [vmem:[#allocation17 + $0x18] sm:$0xff] %v3395
    %3514 = vst [vmem:[#allocation17 + $0x20] sm:$0xff] %v3400
    %3515 = vst [vmem:[#allocation17 + $0x28] sm:$0xff] %v3403
    %3516 = vst [vmem:[#allocation17 + $0x30] sm:$0xff] %v3408
    %3517 = vst [vmem:[#allocation17 + $0x38] sm:$0xff] %v3411
    %3518 = vst [vmem:[#allocation17 + $0x40] sm:$0xff] %v3416
    %3519 = vst [vmem:[#allocation17 + $0x48] sm:$0xff] %v3419
    %3520 = vst [vmem:[#allocation17 + $0x50] sm:$0xff] %v3424
    %3521 = vst [vmem:[#allocation17 + $0x58] sm:$0xff] %v3427
    %3522 = vst [vmem:[#allocation17 + $0x60] sm:$0xff] %v3432
    %3523 = vst [vmem:[#allocation17 + $0x68] sm:$0xff] %v3435
    %3524 = vst [vmem:[#allocation17 + $0x70] sm:$0xff] %v3440
    %3525 = vst [vmem:[#allocation17 + $0x78] sm:$0xff] %v3443
    %3526 = vst [vmem:[#allocation17 + $0x80] sm:$0xff] %v3448
    %3527 = vst [vmem:[#allocation17 + $0x88] sm:$0xff] %v3451
    %3528 = vst [vmem:[#allocation17 + $0x90] sm:$0xff] %v3456
    %3529 = vst [vmem:[#allocation17 + $0x98] sm:$0xff] %v3459
    %3530 = vst [vmem:[#allocation17 + $0xa0] sm:$0xff] %v3464
    %3531 = vst [vmem:[#allocation17 + $0xa8] sm:$0xff] %v3467
    %3532 = vst [vmem:[#allocation17 + $0xb0] sm:$0xff] %v3472
    %3533 = vst [vmem:[#allocation17 + $0xb8] sm:$0xff] %v3475
    %3534 = vst [vmem:[#allocation17 + $0xc0] sm:$0xff] %v3480
    %3535 = vst [vmem:[#allocation17 + $0xc8] sm:$0xff] %v3483
    %3536 = vst [vmem:[#allocation17 + $0xd0] sm:$0xff] %v3488
    %3537 = vst [vmem:[#allocation17 + $0xd8] sm:$0xff] %v3491
    %3538 = vst [vmem:[#allocation17 + $0xe0] sm:$0xff] %v3496
    %3539 = vst [vmem:[#allocation17 + $0xe8] sm:$0xff] %v3499
    %3540 = vst [vmem:[#allocation17 + $0xf0] sm:$0xff] %v3504
    %3541 = vst [vmem:[#allocation17 + $0xf8] sm:$0xff] %v3507
    %3542 = vrot.lane.b32.xlu0 %v3384, 64
    %v3543 = vpop.permute.xlu0 %3542
    %3544 = vrot.lane.b32.xlu0 %v3387, 64
    %v3545 = vpop.permute.xlu0 %3544
    %3546 = vrot.lane.b32.xlu0 %v3392, 64
    %v3547 = vpop.permute.xlu0 %3546
    %3548 = vrot.lane.b32.xlu0 %v3395, 64
    %v3549 = vpop.permute.xlu0 %3548
    %3550 = vrot.lane.b32.xlu0 %v3400, 64
    %v3551 = vpop.permute.xlu0 %3550
    %3552 = vrot.lane.b32.xlu0 %v3403, 64
    %v3553 = vpop.permute.xlu0 %3552
    %3554 = vrot.lane.b32.xlu0 %v3408, 64
    %v3555 = vpop.permute.xlu0 %3554
    %3556 = vrot.lane.b32.xlu0 %v3411, 64
    %v3557 = vpop.permute.xlu0 %3556
    %3558 = vrot.lane.b32.xlu0 %v3416, 64
    %v3559 = vpop.permute.xlu0 %3558
    %3560 = vrot.lane.b32.xlu0 %v3419, 64
    %v3561 = vpop.permute.xlu0 %3560
    %3562 = vrot.lane.b32.xlu0 %v3424, 64
    %v3563 = vpop.permute.xlu0 %3562
    %3564 = vrot.lane.b32.xlu0 %v3427, 64
    %v3565 = vpop.permute.xlu0 %3564
    %3566 = vrot.lane.b32.xlu0 %v3432, 64
    %v3567 = vpop.permute.xlu0 %3566
    %3568 = vrot.lane.b32.xlu0 %v3435, 64
    %v3569 = vpop.permute.xlu0 %3568
    %3570 = vrot.lane.b32.xlu0 %v3440, 64
    %v3571 = vpop.permute.xlu0 %3570
    %3572 = vrot.lane.b32.xlu0 %v3443, 64
    %v3573 = vpop.permute.xlu0 %3572
    %3574 = vrot.lane.b32.xlu0 %v3448, 64
    %v3575 = vpop.permute.xlu0 %3574
    %3576 = vrot.lane.b32.xlu0 %v3451, 64
    %v3577 = vpop.permute.xlu0 %3576
    %3578 = vrot.lane.b32.xlu0 %v3456, 64
    %v3579 = vpop.permute.xlu0 %3578
    %3580 = vrot.lane.b32.xlu0 %v3459, 64
    %v3581 = vpop.permute.xlu0 %3580
    %3582 = vrot.lane.b32.xlu0 %v3464, 64
    %v3583 = vpop.permute.xlu0 %3582
    %3584 = vrot.lane.b32.xlu0 %v3467, 64
    %v3585 = vpop.permute.xlu0 %3584
    %3586 = vrot.lane.b32.xlu0 %v3472, 64
    %v3587 = vpop.permute.xlu0 %3586
    %3588 = vrot.lane.b32.xlu0 %v3475, 64
    %v3589 = vpop.permute.xlu0 %3588
    %3590 = vrot.lane.b32.xlu0 %v3480, 64
    %v3591 = vpop.permute.xlu0 %3590
    %3592 = vrot.lane.b32.xlu0 %v3483, 64
    %v3593 = vpop.permute.xlu0 %3592
    %3594 = vrot.lane.b32.xlu0 %v3488, 64
    %v3595 = vpop.permute.xlu0 %3594
    %3596 = vrot.lane.b32.xlu0 %v3491, 64
    %v3597 = vpop.permute.xlu0 %3596
    %3598 = vrot.lane.b32.xlu0 %v3496, 64
    %v3599 = vpop.permute.xlu0 %3598
    %3600 = vrot.lane.b32.xlu0 %v3499, 64
    %v3601 = vpop.permute.xlu0 %3600
    %3602 = vrot.lane.b32.xlu0 %v3504, 64
    %v3603 = vpop.permute.xlu0 %3602
    %3604 = vrot.lane.b32.xlu0 %v3507, 64
    %v3605 = vpop.permute.xlu0 %3604
    %v3606 = vld [vmem:[%s1] sm:$0xff]
    %v3607 = vld [vmem:[%s1 + $0x8] sm:$0xff]
    %v3608 = vld [vmem:[%s1 + $0x10] sm:$0xff]
    %v3609 = vld [vmem:[%s1 + $0x18] sm:$0xff]
    %v3610 = vld [vmem:[%s1 + $0x20] sm:$0xff]
    %v3611 = vld [vmem:[%s1 + $0x28] sm:$0xff]
    %v3612 = vld [vmem:[%s1 + $0x30] sm:$0xff]
    %v3613 = vld [vmem:[%s1 + $0x38] sm:$0xff]
    %v3614 = vld [vmem:[%s1 + $0x40] sm:$0xff]
    %v3615 = vld [vmem:[%s1 + $0x48] sm:$0xff]
    %v3616 = vld [vmem:[%s1 + $0x50] sm:$0xff]
    %v3617 = vld [vmem:[%s1 + $0x58] sm:$0xff]
    %v3618 = vld [vmem:[%s1 + $0x60] sm:$0xff]
    %v3619 = vld [vmem:[%s1 + $0x68] sm:$0xff]
    %v3620 = vld [vmem:[%s1 + $0x70] sm:$0xff]
    %v3621 = vld [vmem:[%s1 + $0x78] sm:$0xff]
    %v3622 = vld [vmem:[%s1 + $0x80] sm:$0xff]
    %v3623 = vld [vmem:[%s1 + $0x88] sm:$0xff]
    %v3624 = vld [vmem:[%s1 + $0x90] sm:$0xff]
    %v3625 = vld [vmem:[%s1 + $0x98] sm:$0xff]
    %v3626 = vld [vmem:[%s1 + $0xa0] sm:$0xff]
    %v3627 = vld [vmem:[%s1 + $0xa8] sm:$0xff]
    %v3628 = vld [vmem:[%s1 + $0xb0] sm:$0xff]
    %v3629 = vld [vmem:[%s1 + $0xb8] sm:$0xff]
    %v3630 = vld [vmem:[%s1 + $0xc0] sm:$0xff]
    %v3631 = vld [vmem:[%s1 + $0xc8] sm:$0xff]
    %v3632 = vld [vmem:[%s1 + $0xd0] sm:$0xff]
    %v3633 = vld [vmem:[%s1 + $0xd8] sm:$0xff]
    %v3634 = vld [vmem:[%s1 + $0xe0] sm:$0xff]
    %v3635 = vld [vmem:[%s1 + $0xe8] sm:$0xff]
    %v3636 = vld [vmem:[%s1 + $0xf0] sm:$0xff]
    %v3637 = vld [vmem:[%s1 + $0xf8] sm:$0xff]
    %v3638 = vmul.f32 %v3543, 0.5
    %v3639 = vmul.f32 %v3545, 0.5
    %v3640 = vmul.f32 %v3547, 0.5
    %v3641 = vmul.f32 %v3549, 0.5
    %v3642 = vmul.f32 %v3551, 0.5
    %v3643 = vmul.f32 %v3553, 0.5
    %v3644 = vmul.f32 %v3555, 0.5
    %v3645 = vmul.f32 %v3557, 0.5
    %v3646 = vmul.f32 %v3559, 0.5
    %v3647 = vmul.f32 %v3561, 0.5
    %v3648 = vmul.f32 %v3563, 0.5
    %v3649 = vmul.f32 %v3565, 0.5
    %v3650 = vmul.f32 %v3567, 0.5
    %v3651 = vmul.f32 %v3569, 0.5
    %v3652 = vmul.f32 %v3571, 0.5
    %v3653 = vmul.f32 %v3573, 0.5
    %v3654 = vmul.f32 %v3575, 0.5
    %v3655 = vmul.f32 %v3577, 0.5
    %v3656 = vmul.f32 %v3579, 0.5
    %v3657 = vmul.f32 %v3581, 0.5
    %v3658 = vmul.f32 %v3583, 0.5
    %v3659 = vmul.f32 %v3585, 0.5
    %v3660 = vmul.f32 %v3587, 0.5
    %v3661 = vmul.f32 %v3589, 0.5
    %v3662 = vmul.f32 %v3591, 0.5
    %v3663 = vmul.f32 %v3593, 0.5
    %v3664 = vmul.f32 %v3595, 0.5
    %v3665 = vmul.f32 %v3597, 0.5
    %v3666 = vmul.f32 %v3599, 0.5
    %v3667 = vmul.f32 %v3601, 0.5
    %v3668 = vmul.f32 %v3603, 0.5
    %v3669 = vmul.f32 %v3605, 0.5
    %v3670 = vmul.f32 %v3638, 1.442695
    %v3671 = vpow.pop %v3670
    %v3672 = vmul.f32 %v3639, 1.442695
    %v3673 = vpow.pop %v3672
    %v3674 = vmul.f32 %v3640, 1.442695
    %v3675 = vpow.pop %v3674
    %v3676 = vmul.f32 %v3641, 1.442695
    %v3677 = vpow.pop %v3676
    %v3678 = vmul.f32 %v3642, 1.442695
    %v3679 = vpow.pop %v3678
    %v3680 = vmul.f32 %v3643, 1.442695
    %v3681 = vpow.pop %v3680
    %v3682 = vmul.f32 %v3644, 1.442695
    %v3683 = vpow.pop %v3682
    %v3684 = vmul.f32 %v3645, 1.442695
    %v3685 = vpow.pop %v3684
    %v3686 = vmul.f32 %v3646, 1.442695
    %v3687 = vpow.pop %v3686
    %v3688 = vmul.f32 %v3647, 1.442695
    %v3689 = vpow.pop %v3688
    %v3690 = vmul.f32 %v3648, 1.442695
    %v3691 = vpow.pop %v3690
    %v3692 = vmul.f32 %v3649, 1.442695
    %v3693 = vpow.pop %v3692
    %v3694 = vmul.f32 %v3650, 1.442695
    %v3695 = vpow.pop %v3694
    %v3696 = vmul.f32 %v3651, 1.442695
    %v3697 = vpow.pop %v3696
    %v3698 = vmul.f32 %v3652, 1.442695
    %v3699 = vpow.pop %v3698
    %v3700 = vmul.f32 %v3653, 1.442695
    %v3701 = vpow.pop %v3700
    %v3702 = vmul.f32 %v3654, 1.442695
    %v3703 = vpow.pop %v3702
    %v3704 = vmul.f32 %v3655, 1.442695
    %v3705 = vpow.pop %v3704
    %v3706 = vmul.f32 %v3656, 1.442695
    %v3707 = vpow.pop %v3706
    %v3708 = vmul.f32 %v3657, 1.442695
    %v3709 = vpow.pop %v3708
    %v3710 = vmul.f32 %v3658, 1.442695
    %v3711 = vpow.pop %v3710
    %v3712 = vmul.f32 %v3659, 1.442695
    %v3713 = vpow.pop %v3712
    %v3714 = vmul.f32 %v3660, 1.442695
    %v3715 = vpow.pop %v3714
    %v3716 = vmul.f32 %v3661, 1.442695
    %v3717 = vpow.pop %v3716
    %v3718 = vmul.f32 %v3662, 1.442695
    %v3719 = vpow.pop %v3718
    %v3720 = vmul.f32 %v3663, 1.442695
    %v3721 = vpow.pop %v3720
    %v3722 = vmul.f32 %v3664, 1.442695
    %v3723 = vpow.pop %v3722
    %v3724 = vmul.f32 %v3665, 1.442695
    %v3725 = vpow.pop %v3724
    %v3726 = vmul.f32 %v3666, 1.442695
    %v3727 = vpow.pop %v3726
    %v3728 = vmul.f32 %v3667, 1.442695
    %v3729 = vpow.pop %v3728
    %v3730 = vmul.f32 %v3668, 1.442695
    %v3731 = vpow.pop %v3730
    %v3732 = vmul.f32 %v3669, 1.442695
    %v3733 = vpow.pop %v3732
    %v3734 = vmul.f32 %v3606, %v3671
    %v3735 = vmul.f32 %v3607, %v3673
    %v3736 = vmul.f32 %v3608, %v3675
    %v3737 = vmul.f32 %v3609, %v3677
    %v3738 = vmul.f32 %v3610, %v3679
    %v3739 = vmul.f32 %v3611, %v3681
    %v3740 = vmul.f32 %v3612, %v3683
    %v3741 = vmul.f32 %v3613, %v3685
    %v3742 = vmul.f32 %v3614, %v3687
    %v3743 = vmul.f32 %v3615, %v3689
    %v3744 = vmul.f32 %v3616, %v3691
    %v3745 = vmul.f32 %v3617, %v3693
    %v3746 = vmul.f32 %v3618, %v3695
    %v3747 = vmul.f32 %v3619, %v3697
    %v3748 = vmul.f32 %v3620, %v3699
    %v3749 = vmul.f32 %v3621, %v3701
    %v3750 = vmul.f32 %v3622, %v3703
    %v3751 = vmul.f32 %v3623, %v3705
    %v3752 = vmul.f32 %v3624, %v3707
    %v3753 = vmul.f32 %v3625, %v3709
    %v3754 = vmul.f32 %v3626, %v3711
    %v3755 = vmul.f32 %v3627, %v3713
    %v3756 = vmul.f32 %v3628, %v3715
    %v3757 = vmul.f32 %v3629, %v3717
    %v3758 = vmul.f32 %v3630, %v3719
    %v3759 = vmul.f32 %v3631, %v3721
    %v3760 = vmul.f32 %v3632, %v3723
    %v3761 = vmul.f32 %v3633, %v3725
    %v3762 = vmul.f32 %v3634, %v3727
    %v3763 = vmul.f32 %v3635, %v3729
    %v3764 = vmul.f32 %v3636, %v3731
    %v3765 = vmul.f32 %v3637, %v3733
    %v3766 = vadd.f32 %v3384, %v3734
    %v3767 = vadd.f32 %v3387, %v3735
    %v3768 = vadd.f32 %v3392, %v3736
    %v3769 = vadd.f32 %v3395, %v3737
    %v3770 = vadd.f32 %v3400, %v3738
    %v3771 = vadd.f32 %v3403, %v3739
    %v3772 = vadd.f32 %v3408, %v3740
    %v3773 = vadd.f32 %v3411, %v3741
    %v3774 = vadd.f32 %v3416, %v3742
    %v3775 = vadd.f32 %v3419, %v3743
    %v3776 = vadd.f32 %v3424, %v3744
    %v3777 = vadd.f32 %v3427, %v3745
    %v3778 = vadd.f32 %v3432, %v3746
    %v3779 = vadd.f32 %v3435, %v3747
    %v3780 = vadd.f32 %v3440, %v3748
    %v3781 = vadd.f32 %v3443, %v3749
    %v3782 = vadd.f32 %v3448, %v3750
    %v3783 = vadd.f32 %v3451, %v3751
    %v3784 = vadd.f32 %v3456, %v3752
    %v3785 = vadd.f32 %v3459, %v3753
    %v3786 = vadd.f32 %v3464, %v3754
    %v3787 = vadd.f32 %v3467, %v3755
    %v3788 = vadd.f32 %v3472, %v3756
    %v3789 = vadd.f32 %v3475, %v3757
    %v3790 = vadd.f32 %v3480, %v3758
    %v3791 = vadd.f32 %v3483, %v3759
    %v3792 = vadd.f32 %v3488, %v3760
    %v3793 = vadd.f32 %v3491, %v3761
    %v3794 = vadd.f32 %v3496, %v3762
    %v3795 = vadd.f32 %v3499, %v3763
    %v3796 = vadd.f32 %v3504, %v3764
    %v3797 = vadd.f32 %v3507, %v3765
    %v3798 = vlaneseq
    %v3799 = vand.u32 %v3798, 127
    %vm3800 = vcmp.lt.s32.totalorder %v3799, 30
    %v3801 = vsel %vm3800, %v3766, 0.0
    %v3802 = vsel %vm3800, %v3767, 0.0
    %v3803 = vsel %vm3800, %v3768, 0.0
    %v3804 = vsel %vm3800, %v3769, 0.0
    %v3805 = vsel %vm3800, %v3770, 0.0
    %v3806 = vsel %vm3800, %v3771, 0.0
    %v3807 = vsel %vm3800, %v3772, 0.0
    %v3808 = vsel %vm3800, %v3773, 0.0
    %v3809 = vsel %vm3800, %v3774, 0.0
    %v3810 = vsel %vm3800, %v3775, 0.0
    %v3811 = vsel %vm3800, %v3776, 0.0
    %v3812 = vsel %vm3800, %v3777, 0.0
    %v3813 = vsel %vm3800, %v3778, 0.0
    %v3814 = vsel %vm3800, %v3779, 0.0
    %v3815 = vsel %vm3800, %v3780, 0.0
    %v3816 = vsel %vm3800, %v3781, 0.0
    %v3817 = vsel %vm3800, %v3782, 0.0
    %v3818 = vsel %vm3800, %v3783, 0.0
    %v3819 = vsel %vm3800, %v3784, 0.0
    %v3820 = vsel %vm3800, %v3785, 0.0
    %v3821 = vsel %vm3800, %v3786, 0.0
    %v3822 = vsel %vm3800, %v3787, 0.0
    %v3823 = vsel %vm3800, %v3788, 0.0
    %v3824 = vsel %vm3800, %v3789, 0.0
    %v3825 = vsel %vm3800, %v3790, 0.0
    %v3826 = vsel %vm3800, %v3791, 0.0
    %v3827 = vsel %vm3800, %v3792, 0.0
    %v3828 = vsel %vm3800, %v3793, 0.0
    %v3829 = vsel %vm3800, %v3794, 0.0
    %v3830 = vsel %vm3800, %v3795, 0.0
    %v3831 = vsel %vm3800, %v3796, 0.0
    %v3832 = vsel %vm3800, %v3797, 0.0
    %v3833 = vpack.c.bf16 %v3802, %v3801
    %v3834 = vpack.c.bf16 %v3804, %v3803
    %v3835 = vpack.c.bf16 %v3806, %v3805
    %v3836 = vpack.c.bf16 %v3808, %v3807
    %v3837 = vpack.c.bf16 %v3810, %v3809
    %v3838 = vpack.c.bf16 %v3812, %v3811
    %v3839 = vpack.c.bf16 %v3814, %v3813
    %v3840 = vpack.c.bf16 %v3816, %v3815
    %v3841 = vpack.c.bf16 %v3818, %v3817
    %v3842 = vpack.c.bf16 %v3820, %v3819
    %v3843 = vpack.c.bf16 %v3822, %v3821
    %v3844 = vpack.c.bf16 %v3824, %v3823
    %v3845 = vpack.c.bf16 %v3826, %v3825
    %v3846 = vpack.c.bf16 %v3828, %v3827
    %v3847 = vpack.c.bf16 %v3830, %v3829
    %v3848 = vpack.c.bf16 %v3832, %v3831
    %v3849 = vld [vmem:[#allocation11] sm:$0xff]
    %v3850 = vld [vmem:[#allocation11 + $0x8] sm:$0xff]
    %v3851 = vld [vmem:[#allocation11 + $0x10] sm:$0xff]
    %v3852 = vld [vmem:[#allocation11 + $0x18] sm:$0xff]
    %v3853 = vld [vmem:[#allocation11 + $0x20] sm:$0xff]
    %v3854 = vld [vmem:[#allocation11 + $0x28] sm:$0xff]
    %v3855 = vld [vmem:[#allocation11 + $0x30] sm:$0xff]
    %v3856 = vld [vmem:[#allocation11 + $0x38] sm:$0xff]
    %v3857 = vld [vmem:[#allocation11 + $0x40] sm:$0xff]
    %v3858 = vld [vmem:[#allocation11 + $0x48] sm:$0xff]
    %v3859 = vld [vmem:[#allocation11 + $0x50] sm:$0xff]
    %v3860 = vld [vmem:[#allocation11 + $0x58] sm:$0xff]
    %v3861 = vld [vmem:[#allocation11 + $0x60] sm:$0xff]
    %v3862 = vld [vmem:[#allocation11 + $0x68] sm:$0xff]
    %v3863 = vld [vmem:[#allocation11 + $0x70] sm:$0xff]
    %v3864 = vld [vmem:[#allocation11 + $0x78] sm:$0xff]
    %v3881 = vunpack.c.l.b16 %v3849
    %v3882 = vunpack.c.h.b16 %v3849
    %v3883 = vunpack.c.l.b16 %v3850
    %v3884 = vunpack.c.h.b16 %v3850
    %v3885 = vunpack.c.l.b16 %v3851
    %v3886 = vunpack.c.h.b16 %v3851
    %v3887 = vunpack.c.l.b16 %v3852
    %v3888 = vunpack.c.h.b16 %v3852
    %v3889 = vunpack.c.l.b16 %v3853
    %v3890 = vunpack.c.h.b16 %v3853
    %v3891 = vunpack.c.l.b16 %v3854
    %v3892 = vunpack.c.h.b16 %v3854
    %v3893 = vunpack.c.l.b16 %v3855
    %v3894 = vunpack.c.h.b16 %v3855
    %v3895 = vunpack.c.l.b16 %v3856
    %v3896 = vunpack.c.h.b16 %v3856
    %v3897 = vunpack.c.l.b16 %v3857
    %v3898 = vunpack.c.h.b16 %v3857
    %v3899 = vunpack.c.l.b16 %v3858
    %v3900 = vunpack.c.h.b16 %v3858
    %v3901 = vunpack.c.l.b16 %v3859
    %v3902 = vunpack.c.h.b16 %v3859
    %v3903 = vunpack.c.l.b16 %v3860
    %v3904 = vunpack.c.h.b16 %v3860
    %v3905 = vunpack.c.l.b16 %v3861
    %v3906 = vunpack.c.h.b16 %v3861
    %v3907 = vunpack.c.l.b16 %v3862
    %v3908 = vunpack.c.h.b16 %v3862
    %v3909 = vunpack.c.l.b16 %v3863
    %v3910 = vunpack.c.h.b16 %v3863
    %v3911 = vunpack.c.l.b16 %v3864
    %v3912 = vunpack.c.h.b16 %v3864
    %v3913 = vpack.c.b16 %v3883, %v3881
    %v3914 = vpack.c.b16 %v3884, %v3882
    %v3915 = vpack.c.b16 %v3887, %v3885
    %v3916 = vpack.c.b16 %v3888, %v3886
    %v3917 = vpack.c.b16 %v3891, %v3889
    %v3918 = vpack.c.b16 %v3892, %v3890
    %v3919 = vpack.c.b16 %v3895, %v3893
    %v3920 = vpack.c.b16 %v3896, %v3894
    %v3921 = vpack.c.b16 %v3899, %v3897
    %v3922 = vpack.c.b16 %v3900, %v3898
    %v3923 = vpack.c.b16 %v3903, %v3901
    %v3924 = vpack.c.b16 %v3904, %v3902
    %v3925 = vpack.c.b16 %v3907, %v3905
    %v3926 = vpack.c.b16 %v3908, %v3906
    %v3927 = vpack.c.b16 %v3911, %v3909
    %v3928 = vpack.c.b16 %v3912, %v3910
    %3945 = vmatprep.subr.bf16.mxu0 %v3928
    %3946 = vmatpush1.bf16.msra.mxu0 %v3927
    %3947 = vmatprep.subr.bf16.mxu0 %v3926
    %3948 = vmatpush1.bf16.msra.mxu0 %v3925
    %3949 = vmatprep.subr.bf16.mxu0 %v3924
    %3950 = vmatpush1.bf16.msra.mxu0 %v3923
    %3951 = vmatprep.subr.bf16.mxu0 %v3922
    %3952 = vmatpush1.bf16.msra.mxu0 %v3921
    %3953 = vmatprep.subr.bf16.mxu0 %v3920
    %3954 = vmatpush1.bf16.msra.mxu0 %v3919
    %3955 = vmatprep.subr.bf16.mxu0 %v3918
    %3956 = vmatpush1.bf16.msra.mxu0 %v3917
    %3957 = vmatprep.subr.bf16.mxu0 %v3916
    %3958 = vmatpush1.bf16.msra.mxu0 %v3915
    %3959 = vmatprep.subr.bf16.mxu0 %v3914
    %3960 = vmatpush1.bf16.msra.mxu0 %v3913
    %3961 = vmatprep.subr.bf16.mxu0 0
    %3962 = vmatpush2.bf16.msra.mxu0 0
    %3963 = vmatprep.subr.bf16.mxu0 0
    %3964 = vmatpush2.bf16.msra.mxu0 0
    %3965 = vmatprep.subr.bf16.mxu0 0
    %3966 = vmatpush2.bf16.msra.mxu0 0
    %3967 = vmatprep.subr.bf16.mxu0 0
    %3968 = vmatpush2.bf16.msra.mxu0 0
    %3969 = vmatprep.subr.bf16.mxu0 0
    %3970 = vmatpush2.bf16.msra.mxu0 0
    %3971 = vmatprep.subr.bf16.mxu0 0
    %3972 = vmatpush2.bf16.msra.mxu0 0
    %3973 = vmatprep.subr.bf16.mxu0 0
    %3974 = vmatpush2.bf16.msra.mxu0 0
    %3975 = vmatprep.subr.bf16.mxu0 0
    %3976 = vmatpush2.bf16.msra.mxu0 0
    %3977 = vmatprep.mubr.bf16.mxu0 0
    %3978 = vmatmul.mubr.bf16.gmra.mxu0 %v3833
    %v3979 = vpop.f32.mrf.mxu0
    %v3980 = vadd.f32 0.0, %v3979
    %v3981 = vpop.f32.mrf.mxu0
    %v3982 = vadd.f32 0.0, %v3981
    %v3983 = vpop.f32.mrf.mxu0
    %v3984 = vadd.f32 0.0, %v3983
    %v3985 = vpop.f32.mrf.mxu0
    %v3986 = vadd.f32 0.0, %v3985
    %3987 = vmatprep.mubr.bf16.mxu0 0
    %3988 = vmatmul.mubr.bf16.gmra.mxu0 %v3834
    %v3989 = vpop.f32.mrf.mxu0
    %v3990 = vadd.f32 0.0, %v3989
    %v3991 = vpop.f32.mrf.mxu0
    %v3992 = vadd.f32 0.0, %v3991
    %v3993 = vpop.f32.mrf.mxu0
    %v3994 = vadd.f32 0.0, %v3993
    %v3995 = vpop.f32.mrf.mxu0
    %v3996 = vadd.f32 0.0, %v3995
    %3997 = vmatprep.mubr.bf16.mxu0 0
    %3998 = vmatmul.mubr.bf16.gmra.mxu0 %v3835
    %v3999 = vpop.f32.mrf.mxu0
    %v4000 = vadd.f32 0.0, %v3999
    %v4001 = vpop.f32.mrf.mxu0
    %v4002 = vadd.f32 0.0, %v4001
    %v4003 = vpop.f32.mrf.mxu0
    %v4004 = vadd.f32 0.0, %v4003
    %v4005 = vpop.f32.mrf.mxu0
    %v4006 = vadd.f32 0.0, %v4005
    %4007 = vmatprep.mubr.bf16.mxu0 0
    %4008 = vmatmul.mubr.bf16.gmra.mxu0 %v3836
    %v4009 = vpop.f32.mrf.mxu0
    %v4010 = vadd.f32 0.0, %v4009
    %v4011 = vpop.f32.mrf.mxu0
    %v4012 = vadd.f32 0.0, %v4011
    %v4013 = vpop.f32.mrf.mxu0
    %v4014 = vadd.f32 0.0, %v4013
    %v4015 = vpop.f32.mrf.mxu0
    %v4016 = vadd.f32 0.0, %v4015
    %4017 = vmatprep.mubr.bf16.mxu0 0
    %4018 = vmatmul.mubr.bf16.gmra.mxu0 %v3837
    %v4019 = vpop.f32.mrf.mxu0
    %v4020 = vadd.f32 0.0, %v4019
    %v4021 = vpop.f32.mrf.mxu0
    %v4022 = vadd.f32 0.0, %v4021
    %v4023 = vpop.f32.mrf.mxu0
    %v4024 = vadd.f32 0.0, %v4023
    %v4025 = vpop.f32.mrf.mxu0
    %v4026 = vadd.f32 0.0, %v4025
    %4027 = vmatprep.mubr.bf16.mxu0 0
    %4028 = vmatmul.mubr.bf16.gmra.mxu0 %v3838
    %v4029 = vpop.f32.mrf.mxu0
    %v4030 = vadd.f32 0.0, %v4029
    %v4031 = vpop.f32.mrf.mxu0
    %v4032 = vadd.f32 0.0, %v4031
    %v4033 = vpop.f32.mrf.mxu0
    %v4034 = vadd.f32 0.0, %v4033
    %v4035 = vpop.f32.mrf.mxu0
    %v4036 = vadd.f32 0.0, %v4035
    %4037 = vmatprep.mubr.bf16.mxu0 0
    %4038 = vmatmul.mubr.bf16.gmra.mxu0 %v3839
    %v4039 = vpop.f32.mrf.mxu0
    %v4040 = vadd.f32 0.0, %v4039
    %v4041 = vpop.f32.mrf.mxu0
    %v4042 = vadd.f32 0.0, %v4041
    %v4043 = vpop.f32.mrf.mxu0
    %v4044 = vadd.f32 0.0, %v4043
    %v4045 = vpop.f32.mrf.mxu0
    %v4046 = vadd.f32 0.0, %v4045
    %4047 = vmatprep.mubr.bf16.mxu0 0
    %4048 = vmatmul.mubr.bf16.gmra.mxu0 %v3840
    %v4049 = vpop.f32.mrf.mxu0
    %v4050 = vadd.f32 0.0, %v4049
    %v4051 = vpop.f32.mrf.mxu0
    %v4052 = vadd.f32 0.0, %v4051
    %v4053 = vpop.f32.mrf.mxu0
    %v4054 = vadd.f32 0.0, %v4053
    %v4055 = vpop.f32.mrf.mxu0
    %v4056 = vadd.f32 0.0, %v4055
    %4057 = vmatprep.mubr.bf16.mxu0 0
    %4058 = vmatmul.mubr.bf16.gmra.mxu0 %v3841
    %v4059 = vpop.f32.mrf.mxu0
    %v4060 = vadd.f32 0.0, %v4059
    %v4061 = vpop.f32.mrf.mxu0
    %v4062 = vadd.f32 0.0, %v4061
    %v4063 = vpop.f32.mrf.mxu0
    %v4064 = vadd.f32 0.0, %v4063
    %v4065 = vpop.f32.mrf.mxu0
    %v4066 = vadd.f32 0.0, %v4065
    %4067 = vmatprep.mubr.bf16.mxu0 0
    %4068 = vmatmul.mubr.bf16.gmra.mxu0 %v3842
    %v4069 = vpop.f32.mrf.mxu0
    %v4070 = vadd.f32 0.0, %v4069
    %v4071 = vpop.f32.mrf.mxu0
    %v4072 = vadd.f32 0.0, %v4071
    %v4073 = vpop.f32.mrf.mxu0
    %v4074 = vadd.f32 0.0, %v4073
    %v4075 = vpop.f32.mrf.mxu0
    %v4076 = vadd.f32 0.0, %v4075
    %4077 = vmatprep.mubr.bf16.mxu0 0
    %4078 = vmatmul.mubr.bf16.gmra.mxu0 %v3843
    %v4079 = vpop.f32.mrf.mxu0
    %v4080 = vadd.f32 0.0, %v4079
    %v4081 = vpop.f32.mrf.mxu0
    %v4082 = vadd.f32 0.0, %v4081
    %v4083 = vpop.f32.mrf.mxu0
    %v4084 = vadd.f32 0.0, %v4083
    %v4085 = vpop.f32.mrf.mxu0
    %v4086 = vadd.f32 0.0, %v4085
    %4087 = vmatprep.mubr.bf16.mxu0 0
    %4088 = vmatmul.mubr.bf16.gmra.mxu0 %v3844
    %v4089 = vpop.f32.mrf.mxu0
    %v4090 = vadd.f32 0.0, %v4089
    %v4091 = vpop.f32.mrf.mxu0
    %v4092 = vadd.f32 0.0, %v4091
    %v4093 = vpop.f32.mrf.mxu0
    %v4094 = vadd.f32 0.0, %v4093
    %v4095 = vpop.f32.mrf.mxu0
    %v4096 = vadd.f32 0.0, %v4095
    %4097 = vmatprep.mubr.bf16.mxu0 0
    %4098 = vmatmul.mubr.bf16.gmra.mxu0 %v3845
    %v4099 = vpop.f32.mrf.mxu0
    %v4100 = vadd.f32 0.0, %v4099
    %v4101 = vpop.f32.mrf.mxu0
    %v4102 = vadd.f32 0.0, %v4101
    %v4103 = vpop.f32.mrf.mxu0
    %v4104 = vadd.f32 0.0, %v4103
    %v4105 = vpop.f32.mrf.mxu0
    %v4106 = vadd.f32 0.0, %v4105
    %4107 = vmatprep.mubr.bf16.mxu0 0
    %4108 = vmatmul.mubr.bf16.gmra.mxu0 %v3846
    %v4109 = vpop.f32.mrf.mxu0
    %v4110 = vadd.f32 0.0, %v4109
    %v4111 = vpop.f32.mrf.mxu0
    %v4112 = vadd.f32 0.0, %v4111
    %v4113 = vpop.f32.mrf.mxu0
    %v4114 = vadd.f32 0.0, %v4113
    %v4115 = vpop.f32.mrf.mxu0
    %v4116 = vadd.f32 0.0, %v4115
    %4117 = vmatprep.mubr.bf16.mxu0 0
    %4118 = vmatmul.mubr.bf16.gmra.mxu0 %v3847
    %v4119 = vpop.f32.mrf.mxu0
    %v4120 = vadd.f32 0.0, %v4119
    %v4121 = vpop.f32.mrf.mxu0
    %v4122 = vadd.f32 0.0, %v4121
    %v4123 = vpop.f32.mrf.mxu0
    %v4124 = vadd.f32 0.0, %v4123
    %v4125 = vpop.f32.mrf.mxu0
    %v4126 = vadd.f32 0.0, %v4125
    %4127 = vmatprep.mubr.bf16.mxu0 0
    %4128 = vmatmul.mubr.bf16.gmra.mxu0 %v3848
    %v4129 = vpop.f32.mrf.mxu0
    %v4130 = vadd.f32 0.0, %v4129
    %v4131 = vpop.f32.mrf.mxu0
    %v4132 = vadd.f32 0.0, %v4131
    %v4133 = vpop.f32.mrf.mxu0
    %v4134 = vadd.f32 0.0, %v4133
    %v4135 = vpop.f32.mrf.mxu0
    %v4136 = vadd.f32 0.0, %v4135
    %4137 = vdwg.mxu0
    %v4138 = vld [vmem:[%s11] sm:$0x3]
    %v4139 = vld [vmem:[%s12] sm:$0x3]
    %v4140 = vadd.f32 %v3980, %v3984
    %v4141 = vadd.f32 %v4140, %v3990
    %v4142 = vadd.f32 %v4141, %v3994
    %v4143 = vadd.f32 %v4142, %v4000
    %v4144 = vadd.f32 %v4143, %v4004
    %v4145 = vadd.f32 %v4144, %v4010
    %v4146 = vadd.f32 %v4145, %v4014
    %v4147 = vadd.f32 %v4146, %v4020
    %v4148 = vadd.f32 %v4147, %v4024
    %v4149 = vadd.f32 %v4148, %v4030
    %v4150 = vadd.f32 %v4149, %v4034
    %v4151 = vadd.f32 %v4150, %v4040
    %v4152 = vadd.f32 %v4151, %v4044
    %v4153 = vadd.f32 %v4152, %v4050
    %v4154 = vadd.f32 %v4153, %v4054
    %v4155 = vadd.f32 %v4154, %v4060
    %v4156 = vadd.f32 %v4155, %v4064
    %v4157 = vadd.f32 %v4156, %v4070
    %v4158 = vadd.f32 %v4157, %v4074
    %v4159 = vadd.f32 %v4158, %v4080
    %v4160 = vadd.f32 %v4159, %v4084
    %v4161 = vadd.f32 %v4160, %v4090
    %v4162 = vadd.f32 %v4161, %v4094
    %v4163 = vadd.f32 %v4162, %v4100
    %v4164 = vadd.f32 %v4163, %v4104
    %v4165 = vadd.f32 %v4164, %v4110
    %v4166 = vadd.f32 %v4165, %v4114
    %v4167 = vadd.f32 %v4166, %v4120
    %v4168 = vadd.f32 %v4167, %v4124
    %v4169 = vadd.f32 %v4168, %v4130
    %v4170 = vadd.f32 %v4169, %v4134
    %v4171 = vrot.slane %v4170, 4
    %v4172 = vadd.f32 %v4170, %v4171
    %v4173 = vrot.slane %v4172, 2
    %v4174 = vadd.f32 %v4172, %v4173
    %v4175 = vrot.slane %v4174, 1
    %v4176 = vadd.f32 %v4174, %v4175
    %v4177 = vadd.f32 %v3982, %v3986
    %v4178 = vadd.f32 %v4177, %v3992
    %v4179 = vadd.f32 %v4178, %v3996
    %v4180 = vadd.f32 %v4179, %v4002
    %v4181 = vadd.f32 %v4180, %v4006
    %v4182 = vadd.f32 %v4181, %v4012
    %v4183 = vadd.f32 %v4182, %v4016
    %v4184 = vadd.f32 %v4183, %v4022
    %v4185 = vadd.f32 %v4184, %v4026
    %v4186 = vadd.f32 %v4185, %v4032
    %v4187 = vadd.f32 %v4186, %v4036
    %v4188 = vadd.f32 %v4187, %v4042
    %v4189 = vadd.f32 %v4188, %v4046
    %v4190 = vadd.f32 %v4189, %v4052
    %v4191 = vadd.f32 %v4190, %v4056
    %v4192 = vadd.f32 %v4191, %v4062
    %v4193 = vadd.f32 %v4192, %v4066
    %v4194 = vadd.f32 %v4193, %v4072
    %v4195 = vadd.f32 %v4194, %v4076
    %v4196 = vadd.f32 %v4195, %v4082
    %v4197 = vadd.f32 %v4196, %v4086
    %v4198 = vadd.f32 %v4197, %v4092
    %v4199 = vadd.f32 %v4198, %v4096
    %v4200 = vadd.f32 %v4199, %v4102
    %v4201 = vadd.f32 %v4200, %v4106
    %v4202 = vadd.f32 %v4201, %v4112
    %v4203 = vadd.f32 %v4202, %v4116
    %v4204 = vadd.f32 %v4203, %v4122
    %v4205 = vadd.f32 %v4204, %v4126
    %v4206 = vadd.f32 %v4205, %v4132
    %v4207 = vadd.f32 %v4206, %v4136
    %v4208 = vrot.slane %v4207, 4
    %v4209 = vadd.f32 %v4207, %v4208
    %v4210 = vrot.slane %v4209, 2
    %v4211 = vadd.f32 %v4209, %v4210
    %v4212 = vrot.slane %v4211, 1
    %v4213 = vadd.f32 %v4211, %v4212
    %v4214 = vmul.f32 %v4176, 0.00390625
    %v4215 = vmul.f32 %v4213, 0.00390625
    %v4216 = vmul.f32 %v3980, %v3980
    %v4217 = vmul.f32 %v3982, %v3982
    %v4218 = vmul.f32 %v3984, %v3984
    %v4219 = vmul.f32 %v3986, %v3986
    %v4220 = vmul.f32 %v3990, %v3990
    %v4221 = vmul.f32 %v3992, %v3992
    %v4222 = vmul.f32 %v3994, %v3994
    %v4223 = vmul.f32 %v3996, %v3996
    %v4224 = vmul.f32 %v4000, %v4000
    %v4225 = vmul.f32 %v4002, %v4002
    %v4226 = vmul.f32 %v4004, %v4004
    %v4227 = vmul.f32 %v4006, %v4006
    %v4228 = vmul.f32 %v4010, %v4010
    %v4229 = vmul.f32 %v4012, %v4012
    %v4230 = vmul.f32 %v4014, %v4014
    %v4231 = vmul.f32 %v4016, %v4016
    %v4232 = vmul.f32 %v4020, %v4020
    %v4233 = vmul.f32 %v4022, %v4022
    %v4234 = vmul.f32 %v4024, %v4024
    %v4235 = vmul.f32 %v4026, %v4026
    %v4236 = vmul.f32 %v4030, %v4030
    %v4237 = vmul.f32 %v4032, %v4032
    %v4238 = vmul.f32 %v4034, %v4034
    %v4239 = vmul.f32 %v4036, %v4036
    %v4240 = vmul.f32 %v4040, %v4040
    %v4241 = vmul.f32 %v4042, %v4042
    %v4242 = vmul.f32 %v4044, %v4044
    %v4243 = vmul.f32 %v4046, %v4046
    %v4244 = vmul.f32 %v4050, %v4050
    %v4245 = vmul.f32 %v4052, %v4052
    %v4246 = vmul.f32 %v4054, %v4054
    %v4247 = vmul.f32 %v4056, %v4056
    %v4248 = vmul.f32 %v4060, %v4060
    %v4249 = vmul.f32 %v4062, %v4062
    %v4250 = vmul.f32 %v4064, %v4064
    %v4251 = vmul.f32 %v4066, %v4066
    %v4252 = vmul.f32 %v4070, %v4070
    %v4253 = vmul.f32 %v4072, %v4072
    %v4254 = vmul.f32 %v4074, %v4074
    %v4255 = vmul.f32 %v4076, %v4076
    %v4256 = vmul.f32 %v4080, %v4080
    %v4257 = vmul.f32 %v4082, %v4082
    %v4258 = vmul.f32 %v4084, %v4084
    %v4259 = vmul.f32 %v4086, %v4086
    %v4260 = vmul.f32 %v4090, %v4090
    %v4261 = vmul.f32 %v4092, %v4092
    %v4262 = vmul.f32 %v4094, %v4094
    %v4263 = vmul.f32 %v4096, %v4096
    %v4264 = vmul.f32 %v4100, %v4100
    %v4265 = vmul.f32 %v4102, %v4102
    %v4266 = vmul.f32 %v4104, %v4104
    %v4267 = vmul.f32 %v4106, %v4106
    %v4268 = vmul.f32 %v4110, %v4110
    %v4269 = vmul.f32 %v4112, %v4112
    %v4270 = vmul.f32 %v4114, %v4114
    %v4271 = vmul.f32 %v4116, %v4116
    %v4272 = vmul.f32 %v4120, %v4120
    %v4273 = vmul.f32 %v4122, %v4122
    %v4274 = vmul.f32 %v4124, %v4124
    %v4275 = vmul.f32 %v4126, %v4126
    %v4276 = vmul.f32 %v4130, %v4130
    %v4277 = vmul.f32 %v4132, %v4132
    %v4278 = vmul.f32 %v4134, %v4134
    %v4279 = vmul.f32 %v4136, %v4136
    %v4280 = vadd.f32 %v4216, %v4218
    %v4281 = vadd.f32 %v4280, %v4220
    %v4282 = vadd.f32 %v4281, %v4222
    %v4283 = vadd.f32 %v4282, %v4224
    %v4284 = vadd.f32 %v4283, %v4226
    %v4285 = vadd.f32 %v4284, %v4228
    %v4286 = vadd.f32 %v4285, %v4230
    %v4287 = vadd.f32 %v4286, %v4232
    %v4288 = vadd.f32 %v4287, %v4234
    %v4289 = vadd.f32 %v4288, %v4236
    %v4290 = vadd.f32 %v4289, %v4238
    %v4291 = vadd.f32 %v4290, %v4240
    %v4292 = vadd.f32 %v4291, %v4242
    %v4293 = vadd.f32 %v4292, %v4244
    %v4294 = vadd.f32 %v4293, %v4246
    %v4295 = vadd.f32 %v4294, %v4248
    %v4296 = vadd.f32 %v4295, %v4250
    %v4297 = vadd.f32 %v4296, %v4252
    %v4298 = vadd.f32 %v4297, %v4254
    %v4299 = vadd.f32 %v4298, %v4256
    %v4300 = vadd.f32 %v4299, %v4258
    %v4301 = vadd.f32 %v4300, %v4260
    %v4302 = vadd.f32 %v4301, %v4262
    %v4303 = vadd.f32 %v4302, %v4264
    %v4304 = vadd.f32 %v4303, %v4266
    %v4305 = vadd.f32 %v4304, %v4268
    %v4306 = vadd.f32 %v4305, %v4270
    %v4307 = vadd.f32 %v4306, %v4272
    %v4308 = vadd.f32 %v4307, %v4274
    %v4309 = vadd.f32 %v4308, %v4276
    %v4310 = vadd.f32 %v4309, %v4278
    %v4311 = vrot.slane %v4310, 4
    %v4312 = vadd.f32 %v4310, %v4311
    %v4313 = vrot.slane %v4312, 2
    %v4314 = vadd.f32 %v4312, %v4313
    %v4315 = vrot.slane %v4314, 1
    %v4316 = vadd.f32 %v4314, %v4315
    %v4317 = vadd.f32 %v4217, %v4219
    %v4318 = vadd.f32 %v4317, %v4221
    %v4319 = vadd.f32 %v4318, %v4223
    %v4320 = vadd.f32 %v4319, %v4225
    %v4321 = vadd.f32 %v4320, %v4227
    %v4322 = vadd.f32 %v4321, %v4229
    %v4323 = vadd.f32 %v4322, %v4231
    %v4324 = vadd.f32 %v4323, %v4233
    %v4325 = vadd.f32 %v4324, %v4235
    %v4326 = vadd.f32 %v4325, %v4237
    %v4327 = vadd.f32 %v4326, %v4239
    %v4328 = vadd.f32 %v4327, %v4241
    %v4329 = vadd.f32 %v4328, %v4243
    %v4330 = vadd.f32 %v4329, %v4245
    %v4331 = vadd.f32 %v4330, %v4247
    %v4332 = vadd.f32 %v4331, %v4249
    %v4333 = vadd.f32 %v4332, %v4251
    %v4334 = vadd.f32 %v4333, %v4253
    %v4335 = vadd.f32 %v4334, %v4255
    %v4336 = vadd.f32 %v4335, %v4257
    %v4337 = vadd.f32 %v4336, %v4259
    %v4338 = vadd.f32 %v4337, %v4261
    %v4339 = vadd.f32 %v4338, %v4263
    %v4340 = vadd.f32 %v4339, %v4265
    %v4341 = vadd.f32 %v4340, %v4267
    %v4342 = vadd.f32 %v4341, %v4269
    %v4343 = vadd.f32 %v4342, %v4271
    %v4344 = vadd.f32 %v4343, %v4273
    %v4345 = vadd.f32 %v4344, %v4275
    %v4346 = vadd.f32 %v4345, %v4277
    %v4347 = vadd.f32 %v4346, %v4279
    %v4348 = vrot.slane %v4347, 4
    %v4349 = vadd.f32 %v4347, %v4348
    %v4350 = vrot.slane %v4349, 2
    %v4351 = vadd.f32 %v4349, %v4350
    %v4352 = vrot.slane %v4351, 1
    %v4353 = vadd.f32 %v4351, %v4352
    %v4354 = vmul.f32 %v4316, 0.00390625
    %v4355 = vmul.f32 %v4353, 0.00390625
    %v4356 = vmul.f32 %v4214, %v4214
    %v4357 = vmul.f32 %v4215, %v4215
    %v4358 = vsub.f32 %v4354, %v4356
    %v4359 = vsub.f32 %v4355, %v4357
    %v4360 = vadd.f32 %v4358, 1e-05
    %v4361 = vadd.f32 %v4359, 1e-05
    %v4362 = vrsqrt.pop %v4360
    %v4363 = vrsqrt.pop %v4361
    %v4365 = vlaneseq
    %v4366 = vshrl.u32 %v4365, 7
    %v4367 = vsub.s32 0, %v4366
    %v4368 = vrot.slane %v4138, %v4367
    %v4369 = vlaneseq
    %v4370 = vshrl.u32 %v4369, 7
    %v4371 = vsub.s32 1, %v4370
    %v4372 = vrot.slane %v4138, %v4371
    %v4375 = vmul.f32 %v4362, %v4368
    %v4376 = vmul.f32 %v4363, %v4372
    %v4377 = vmul.f32 %v4214, %v4375
    %v4378 = vmul.f32 %v4215, %v4376
    %v4381 = vcombine.low %v4377, %v4378
    %v4383 = vunpack.c.l.s4 1966171168
    %v4384 = vunpack.c.0.s8 %v4383
    %v4385 = vlaneseq
    %v4386 = vshrl.u32 %v4385, 7
    %v4387 = vsub.s32 %v4384, %v4386
    %v4388 = vrot.slane %v4381, %v4387
    %v4390 = vunpack.c.l.s4 1966171168
    %v4391 = vunpack.c.0.s8 %v4390
    %v4392 = vlaneseq
    %v4393 = vshrl.u32 %v4392, 7
    %v4394 = vsub.s32 %v4391, %v4393
    %v4395 = vrot.slane %v4388, %v4394
    %v4397 = vsub.f32 %v4139, %v4395
    %v4398 = vlaneseq
    %v4399 = vshrl.u32 %v4398, 7
    %v4400 = vsub.s32 0, %v4399
    %v4401 = vrot.slane %v4375, %v4400
    %v4402 = vlaneseq
    %v4403 = vshrl.u32 %v4402, 7
    %v4404 = vsub.s32 0, %v4403
    %v4405 = vrot.slane %v4376, %v4404
    %v4406 = vmul.f32 %v3980, %v4401
    %v4407 = vmul.f32 %v3982, %v4405
    %v4408 = vmul.f32 %v3984, %v4401
    %v4409 = vmul.f32 %v3986, %v4405
    %v4410 = vmul.f32 %v3990, %v4401
    %v4411 = vmul.f32 %v3992, %v4405
    %v4412 = vmul.f32 %v3994, %v4401
    %v4413 = vmul.f32 %v3996, %v4405
    %v4414 = vmul.f32 %v4000, %v4401
    %v4415 = vmul.f32 %v4002, %v4405
    %v4416 = vmul.f32 %v4004, %v4401
    %v4417 = vmul.f32 %v4006, %v4405
    %v4418 = vmul.f32 %v4010, %v4401
    %v4419 = vmul.f32 %v4012, %v4405
    %v4420 = vmul.f32 %v4014, %v4401
    %v4421 = vmul.f32 %v4016, %v4405
    %v4422 = vmul.f32 %v4020, %v4401
    %v4423 = vmul.f32 %v4022, %v4405
    %v4424 = vmul.f32 %v4024, %v4401
    %v4425 = vmul.f32 %v4026, %v4405
    %v4426 = vmul.f32 %v4030, %v4401
    %v4427 = vmul.f32 %v4032, %v4405
    %v4428 = vmul.f32 %v4034, %v4401
    %v4429 = vmul.f32 %v4036, %v4405
    %v4430 = vmul.f32 %v4040, %v4401
    %v4431 = vmul.f32 %v4042, %v4405
    %v4432 = vmul.f32 %v4044, %v4401
    %v4433 = vmul.f32 %v4046, %v4405
    %v4434 = vmul.f32 %v4050, %v4401
    %v4435 = vmul.f32 %v4052, %v4405
    %v4436 = vmul.f32 %v4054, %v4401
    %v4437 = vmul.f32 %v4056, %v4405
    %v4438 = vmul.f32 %v4060, %v4401
    %v4439 = vmul.f32 %v4062, %v4405
    %v4440 = vmul.f32 %v4064, %v4401
    %v4441 = vmul.f32 %v4066, %v4405
    %v4442 = vmul.f32 %v4070, %v4401
    %v4443 = vmul.f32 %v4072, %v4405
    %v4444 = vmul.f32 %v4074, %v4401
    %v4445 = vmul.f32 %v4076, %v4405
    %v4446 = vmul.f32 %v4080, %v4401
    %v4447 = vmul.f32 %v4082, %v4405
    %v4448 = vmul.f32 %v4084, %v4401
    %v4449 = vmul.f32 %v4086, %v4405
    %v4450 = vmul.f32 %v4090, %v4401
    %v4451 = vmul.f32 %v4092, %v4405
    %v4452 = vmul.f32 %v4094, %v4401
    %v4453 = vmul.f32 %v4096, %v4405
    %v4454 = vmul.f32 %v4100, %v4401
    %v4455 = vmul.f32 %v4102, %v4405
    %v4456 = vmul.f32 %v4104, %v4401
    %v4457 = vmul.f32 %v4106, %v4405
    %v4458 = vmul.f32 %v4110, %v4401
    %v4459 = vmul.f32 %v4112, %v4405
    %v4460 = vmul.f32 %v4114, %v4401
    %v4461 = vmul.f32 %v4116, %v4405
    %v4462 = vmul.f32 %v4120, %v4401
    %v4463 = vmul.f32 %v4122, %v4405
    %v4464 = vmul.f32 %v4124, %v4401
    %v4465 = vmul.f32 %v4126, %v4405
    %v4466 = vmul.f32 %v4130, %v4401
    %v4467 = vmul.f32 %v4132, %v4405
    %v4468 = vmul.f32 %v4134, %v4401
    %v4469 = vmul.f32 %v4136, %v4405
    %v4471 = vlaneseq
    %v4472 = vshrl.u32 %v4471, 7
    %v4473 = vsub.s32 0, %v4472
    %v4474 = vrot.slane %v4397, %v4473
    %v4475 = vlaneseq
    %v4476 = vshrl.u32 %v4475, 7
    %v4477 = vsub.s32 1, %v4476
    %v4478 = vrot.slane %v4397, %v4477
    %v4481 = vadd.f32 %v4406, %v4474
    %v4482 = vadd.f32 %v4407, %v4478
    %v4483 = vadd.f32 %v4408, %v4474
    %v4484 = vadd.f32 %v4409, %v4478
    %v4485 = vadd.f32 %v4410, %v4474
    %v4486 = vadd.f32 %v4411, %v4478
    %v4487 = vadd.f32 %v4412, %v4474
    %v4488 = vadd.f32 %v4413, %v4478
    %v4489 = vadd.f32 %v4414, %v4474
    %v4490 = vadd.f32 %v4415, %v4478
    %v4491 = vadd.f32 %v4416, %v4474
    %v4492 = vadd.f32 %v4417, %v4478
    %v4493 = vadd.f32 %v4418, %v4474
    %v4494 = vadd.f32 %v4419, %v4478
    %v4495 = vadd.f32 %v4420, %v4474
    %v4496 = vadd.f32 %v4421, %v4478
    %v4497 = vadd.f32 %v4422, %v4474
    %v4498 = vadd.f32 %v4423, %v4478
    %v4499 = vadd.f32 %v4424, %v4474
    %v4500 = vadd.f32 %v4425, %v4478
    %v4501 = vadd.f32 %v4426, %v4474
    %v4502 = vadd.f32 %v4427, %v4478
    %v4503 = vadd.f32 %v4428, %v4474
    %v4504 = vadd.f32 %v4429, %v4478
    %v4505 = vadd.f32 %v4430, %v4474
    %v4506 = vadd.f32 %v4431, %v4478
    %v4507 = vadd.f32 %v4432, %v4474
    %v4508 = vadd.f32 %v4433, %v4478
    %v4509 = vadd.f32 %v4434, %v4474
    %v4510 = vadd.f32 %v4435, %v4478
    %v4511 = vadd.f32 %v4436, %v4474
    %v4512 = vadd.f32 %v4437, %v4478
    %v4513 = vadd.f32 %v4438, %v4474
    %v4514 = vadd.f32 %v4439, %v4478
    %v4515 = vadd.f32 %v4440, %v4474
    %v4516 = vadd.f32 %v4441, %v4478
    %v4517 = vadd.f32 %v4442, %v4474
    %v4518 = vadd.f32 %v4443, %v4478
    %v4519 = vadd.f32 %v4444, %v4474
    %v4520 = vadd.f32 %v4445, %v4478
    %v4521 = vadd.f32 %v4446, %v4474
    %v4522 = vadd.f32 %v4447, %v4478
    %v4523 = vadd.f32 %v4448, %v4474
    %v4524 = vadd.f32 %v4449, %v4478
    %v4525 = vadd.f32 %v4450, %v4474
    %v4526 = vadd.f32 %v4451, %v4478
    %v4527 = vadd.f32 %v4452, %v4474
    %v4528 = vadd.f32 %v4453, %v4478
    %v4529 = vadd.f32 %v4454, %v4474
    %v4530 = vadd.f32 %v4455, %v4478
    %v4531 = vadd.f32 %v4456, %v4474
    %v4532 = vadd.f32 %v4457, %v4478
    %v4533 = vadd.f32 %v4458, %v4474
    %v4534 = vadd.f32 %v4459, %v4478
    %v4535 = vadd.f32 %v4460, %v4474
    %v4536 = vadd.f32 %v4461, %v4478
    %v4537 = vadd.f32 %v4462, %v4474
    %v4538 = vadd.f32 %v4463, %v4478
    %v4539 = vadd.f32 %v4464, %v4474
    %v4540 = vadd.f32 %v4465, %v4478
    %v4541 = vadd.f32 %v4466, %v4474
    %v4542 = vadd.f32 %v4467, %v4478
    %v4543 = vadd.f32 %v4468, %v4474
    %v4544 = vadd.f32 %v4469, %v4478
    %v4545 = vmul.f32 %v4481, 0.2
    %v4546 = vmul.f32 %v4482, 0.2
    %v4547 = vmul.f32 %v4483, 0.2
    %v4548 = vmul.f32 %v4484, 0.2
    %v4549 = vmul.f32 %v4485, 0.2
    %v4550 = vmul.f32 %v4486, 0.2
    %v4551 = vmul.f32 %v4487, 0.2
    %v4552 = vmul.f32 %v4488, 0.2
    %v4553 = vmul.f32 %v4489, 0.2
    %v4554 = vmul.f32 %v4490, 0.2
    %v4555 = vmul.f32 %v4491, 0.2
    %v4556 = vmul.f32 %v4492, 0.2
    %v4557 = vmul.f32 %v4493, 0.2
    %v4558 = vmul.f32 %v4494, 0.2
    %v4559 = vmul.f32 %v4495, 0.2
    %v4560 = vmul.f32 %v4496, 0.2
    %v4561 = vmul.f32 %v4497, 0.2
    %v4562 = vmul.f32 %v4498, 0.2
    %v4563 = vmul.f32 %v4499, 0.2
    %v4564 = vmul.f32 %v4500, 0.2
    %v4565 = vmul.f32 %v4501, 0.2
    %v4566 = vmul.f32 %v4502, 0.2
    %v4567 = vmul.f32 %v4503, 0.2
    %v4568 = vmul.f32 %v4504, 0.2
    %v4569 = vmul.f32 %v4505, 0.2
    %v4570 = vmul.f32 %v4506, 0.2
    %v4571 = vmul.f32 %v4507, 0.2
    %v4572 = vmul.f32 %v4508, 0.2
    %v4573 = vmul.f32 %v4509, 0.2
    %v4574 = vmul.f32 %v4510, 0.2
    %v4575 = vmul.f32 %v4511, 0.2
    %v4576 = vmul.f32 %v4512, 0.2
    %v4577 = vmul.f32 %v4513, 0.2
    %v4578 = vmul.f32 %v4514, 0.2
    %v4579 = vmul.f32 %v4515, 0.2
    %v4580 = vmul.f32 %v4516, 0.2
    %v4581 = vmul.f32 %v4517, 0.2
    %v4582 = vmul.f32 %v4518, 0.2
    %v4583 = vmul.f32 %v4519, 0.2
    %v4584 = vmul.f32 %v4520, 0.2
    %v4585 = vmul.f32 %v4521, 0.2
    %v4586 = vmul.f32 %v4522, 0.2
    %v4587 = vmul.f32 %v4523, 0.2
    %v4588 = vmul.f32 %v4524, 0.2
    %v4589 = vmul.f32 %v4525, 0.2
    %v4590 = vmul.f32 %v4526, 0.2
    %v4591 = vmul.f32 %v4527, 0.2
    %v4592 = vmul.f32 %v4528, 0.2
    %v4593 = vmul.f32 %v4529, 0.2
    %v4594 = vmul.f32 %v4530, 0.2
    %v4595 = vmul.f32 %v4531, 0.2
    %v4596 = vmul.f32 %v4532, 0.2
    %v4597 = vmul.f32 %v4533, 0.2
    %v4598 = vmul.f32 %v4534, 0.2
    %v4599 = vmul.f32 %v4535, 0.2
    %v4600 = vmul.f32 %v4536, 0.2
    %v4601 = vmul.f32 %v4537, 0.2
    %v4602 = vmul.f32 %v4538, 0.2
    %v4603 = vmul.f32 %v4539, 0.2
    %v4604 = vmul.f32 %v4540, 0.2
    %v4605 = vmul.f32 %v4541, 0.2
    %v4606 = vmul.f32 %v4542, 0.2
    %v4607 = vmul.f32 %v4543, 0.2
    %v4608 = vmul.f32 %v4544, 0.2
    %v4609 = vmax.f32 %v4481, %v4545
    %v4610 = vmax.f32 %v4482, %v4546
    %v4611 = vmax.f32 %v4483, %v4547
    %v4612 = vmax.f32 %v4484, %v4548
    %v4613 = vmax.f32 %v4485, %v4549
    %v4614 = vmax.f32 %v4486, %v4550
    %v4615 = vmax.f32 %v4487, %v4551
    %v4616 = vmax.f32 %v4488, %v4552
    %v4617 = vmax.f32 %v4489, %v4553
    %v4618 = vmax.f32 %v4490, %v4554
    %v4619 = vmax.f32 %v4491, %v4555
    %v4620 = vmax.f32 %v4492, %v4556
    %v4621 = vmax.f32 %v4493, %v4557
    %v4622 = vmax.f32 %v4494, %v4558
    %v4623 = vmax.f32 %v4495, %v4559
    %v4624 = vmax.f32 %v4496, %v4560
    %v4625 = vmax.f32 %v4497, %v4561
    %v4626 = vmax.f32 %v4498, %v4562
    %v4627 = vmax.f32 %v4499, %v4563
    %v4628 = vmax.f32 %v4500, %v4564
    %v4629 = vmax.f32 %v4501, %v4565
    %v4630 = vmax.f32 %v4502, %v4566
    %v4631 = vmax.f32 %v4503, %v4567
    %v4632 = vmax.f32 %v4504, %v4568
    %v4633 = vmax.f32 %v4505, %v4569
    %v4634 = vmax.f32 %v4506, %v4570
    %v4635 = vmax.f32 %v4507, %v4571
    %v4636 = vmax.f32 %v4508, %v4572
    %v4637 = vmax.f32 %v4509, %v4573
    %v4638 = vmax.f32 %v4510, %v4574
    %v4639 = vmax.f32 %v4511, %v4575
    %v4640 = vmax.f32 %v4512, %v4576
    %v4641 = vmax.f32 %v4513, %v4577
    %v4642 = vmax.f32 %v4514, %v4578
    %v4643 = vmax.f32 %v4515, %v4579
    %v4644 = vmax.f32 %v4516, %v4580
    %v4645 = vmax.f32 %v4517, %v4581
    %v4646 = vmax.f32 %v4518, %v4582
    %v4647 = vmax.f32 %v4519, %v4583
    %v4648 = vmax.f32 %v4520, %v4584
    %v4649 = vmax.f32 %v4521, %v4585
    %v4650 = vmax.f32 %v4522, %v4586
    %v4651 = vmax.f32 %v4523, %v4587
    %v4652 = vmax.f32 %v4524, %v4588
    %v4653 = vmax.f32 %v4525, %v4589
    %v4654 = vmax.f32 %v4526, %v4590
    %v4655 = vmax.f32 %v4527, %v4591
    %v4656 = vmax.f32 %v4528, %v4592
    %v4657 = vmax.f32 %v4529, %v4593
    %v4658 = vmax.f32 %v4530, %v4594
    %v4659 = vmax.f32 %v4531, %v4595
    %v4660 = vmax.f32 %v4532, %v4596
    %v4661 = vmax.f32 %v4533, %v4597
    %v4662 = vmax.f32 %v4534, %v4598
    %v4663 = vmax.f32 %v4535, %v4599
    %v4664 = vmax.f32 %v4536, %v4600
    %v4665 = vmax.f32 %v4537, %v4601
    %v4666 = vmax.f32 %v4538, %v4602
    %v4667 = vmax.f32 %v4539, %v4603
    %v4668 = vmax.f32 %v4540, %v4604
    %v4669 = vmax.f32 %v4541, %v4605
    %v4670 = vmax.f32 %v4542, %v4606
    %v4671 = vmax.f32 %v4543, %v4607
    %v4672 = vmax.f32 %v4544, %v4608
    %v4673 = vpack.c.bf16 %v4611, %v4609
    %v4674 = vpack.c.bf16 %v4612, %v4610
    %v4675 = vpack.c.bf16 %v4615, %v4613
    %v4676 = vpack.c.bf16 %v4616, %v4614
    %v4677 = vpack.c.bf16 %v4619, %v4617
    %v4678 = vpack.c.bf16 %v4620, %v4618
    %v4679 = vpack.c.bf16 %v4623, %v4621
    %v4680 = vpack.c.bf16 %v4624, %v4622
    %v4681 = vpack.c.bf16 %v4627, %v4625
    %v4682 = vpack.c.bf16 %v4628, %v4626
    %v4683 = vpack.c.bf16 %v4631, %v4629
    %v4684 = vpack.c.bf16 %v4632, %v4630
    %v4685 = vpack.c.bf16 %v4635, %v4633
    %v4686 = vpack.c.bf16 %v4636, %v4634
    %v4687 = vpack.c.bf16 %v4639, %v4637
    %v4688 = vpack.c.bf16 %v4640, %v4638
    %v4689 = vpack.c.bf16 %v4643, %v4641
    %v4690 = vpack.c.bf16 %v4644, %v4642
    %v4691 = vpack.c.bf16 %v4647, %v4645
    %v4692 = vpack.c.bf16 %v4648, %v4646
    %v4693 = vpack.c.bf16 %v4651, %v4649
    %v4694 = vpack.c.bf16 %v4652, %v4650
    %v4695 = vpack.c.bf16 %v4655, %v4653
    %v4696 = vpack.c.bf16 %v4656, %v4654
    %v4697 = vpack.c.bf16 %v4659, %v4657
    %v4698 = vpack.c.bf16 %v4660, %v4658
    %v4699 = vpack.c.bf16 %v4663, %v4661
    %v4700 = vpack.c.bf16 %v4664, %v4662
    %v4701 = vpack.c.bf16 %v4667, %v4665
    %v4702 = vpack.c.bf16 %v4668, %v4666
    %v4703 = vpack.c.bf16 %v4671, %v4669
    %v4704 = vpack.c.bf16 %v4672, %v4670
    %v4705 = vld [vmem:[#allocation13] sm:$0xff]
    %v4706 = vld [vmem:[#allocation13 + $0x8] sm:$0xff]
    %v4707 = vld [vmem:[#allocation13 + $0x10] sm:$0xff]
    %v4708 = vld [vmem:[#allocation13 + $0x18] sm:$0xff]
    %v4709 = vld [vmem:[#allocation13 + $0x20] sm:$0xff]
    %v4710 = vld [vmem:[#allocation13 + $0x28] sm:$0xff]
    %v4711 = vld [vmem:[#allocation13 + $0x30] sm:$0xff]
    %v4712 = vld [vmem:[#allocation13 + $0x38] sm:$0xff]
    %v4713 = vld [vmem:[#allocation13 + $0x40] sm:$0xff]
    %v4714 = vld [vmem:[#allocation13 + $0x48] sm:$0xff]
    %v4715 = vld [vmem:[#allocation13 + $0x50] sm:$0xff]
    %v4716 = vld [vmem:[#allocation13 + $0x58] sm:$0xff]
    %v4717 = vld [vmem:[#allocation13 + $0x60] sm:$0xff]
    %v4718 = vld [vmem:[#allocation13 + $0x68] sm:$0xff]
    %v4719 = vld [vmem:[#allocation13 + $0x70] sm:$0xff]
    %v4720 = vld [vmem:[#allocation13 + $0x78] sm:$0xff]
    %v4721 = vld [vmem:[#allocation13 + $0x80] sm:$0xff]
    %v4722 = vld [vmem:[#allocation13 + $0x88] sm:$0xff]
    %v4723 = vld [vmem:[#allocation13 + $0x90] sm:$0xff]
    %v4724 = vld [vmem:[#allocation13 + $0x98] sm:$0xff]
    %v4725 = vld [vmem:[#allocation13 + $0xa0] sm:$0xff]
    %v4726 = vld [vmem:[#allocation13 + $0xa8] sm:$0xff]
    %v4727 = vld [vmem:[#allocation13 + $0xb0] sm:$0xff]
    %v4728 = vld [vmem:[#allocation13 + $0xb8] sm:$0xff]
    %v4729 = vld [vmem:[#allocation13 + $0xc0] sm:$0xff]
    %v4730 = vld [vmem:[#allocation13 + $0xc8] sm:$0xff]
    %v4731 = vld [vmem:[#allocation13 + $0xd0] sm:$0xff]
    %v4732 = vld [vmem:[#allocation13 + $0xd8] sm:$0xff]
    %v4733 = vld [vmem:[#allocation13 + $0xe0] sm:$0xff]
    %v4734 = vld [vmem:[#allocation13 + $0xe8] sm:$0xff]
    %v4735 = vld [vmem:[#allocation13 + $0xf0] sm:$0xff]
    %v4736 = vld [vmem:[#allocation13 + $0xf8] sm:$0xff]
    %v4737 = vld [vmem:[#allocation13 + $0x100] sm:$0xff]
    %v4738 = vld [vmem:[#allocation13 + $0x108] sm:$0xff]
    %v4739 = vld [vmem:[#allocation13 + $0x110] sm:$0xff]
    %v4740 = vld [vmem:[#allocation13 + $0x118] sm:$0xff]
    %v4741 = vld [vmem:[#allocation13 + $0x120] sm:$0xff]
    %v4742 = vld [vmem:[#allocation13 + $0x128] sm:$0xff]
    %v4743 = vld [vmem:[#allocation13 + $0x130] sm:$0xff]
    %v4744 = vld [vmem:[#allocation13 + $0x138] sm:$0xff]
    %v4745 = vld [vmem:[#allocation13 + $0x140] sm:$0xff]
    %v4746 = vld [vmem:[#allocation13 + $0x148] sm:$0xff]
    %v4747 = vld [vmem:[#allocation13 + $0x150] sm:$0xff]
    %v4748 = vld [vmem:[#allocation13 + $0x158] sm:$0xff]
    %v4749 = vld [vmem:[#allocation13 + $0x160] sm:$0xff]
    %v4750 = vld [vmem:[#allocation13 + $0x168] sm:$0xff]
    %v4751 = vld [vmem:[#allocation13 + $0x170] sm:$0xff]
    %v4752 = vld [vmem:[#allocation13 + $0x178] sm:$0xff]
    %v4753 = vld [vmem:[#allocation13 + $0x180] sm:$0xff]
    %v4754 = vld [vmem:[#allocation13 + $0x188] sm:$0xff]
    %v4755 = vld [vmem:[#allocation13 + $0x190] sm:$0xff]
    %v4756 = vld [vmem:[#allocation13 + $0x198] sm:$0xff]
    %v4757 = vld [vmem:[#allocation13 + $0x1a0] sm:$0xff]
    %v4758 = vld [vmem:[#allocation13 + $0x1a8] sm:$0xff]
    %v4759 = vld [vmem:[#allocation13 + $0x1b0] sm:$0xff]
    %v4760 = vld [vmem:[#allocation13 + $0x1b8] sm:$0xff]
    %v4761 = vld [vmem:[#allocation13 + $0x1c0] sm:$0xff]
    %v4762 = vld [vmem:[#allocation13 + $0x1c8] sm:$0xff]
    %v4763 = vld [vmem:[#allocation13 + $0x1d0] sm:$0xff]
    %v4764 = vld [vmem:[#allocation13 + $0x1d8] sm:$0xff]
    %v4765 = vld [vmem:[#allocation13 + $0x1e0] sm:$0xff]
    %v4766 = vld [vmem:[#allocation13 + $0x1e8] sm:$0xff]
    %v4767 = vld [vmem:[#allocation13 + $0x1f0] sm:$0xff]
    %v4768 = vld [vmem:[#allocation13 + $0x1f8] sm:$0xff]
    %v4833 = vunpack.c.l.b16 %v4705
    %v4834 = vunpack.c.h.b16 %v4705
    %v4835 = vunpack.c.l.b16 %v4706
    %v4836 = vunpack.c.h.b16 %v4706
    %v4837 = vunpack.c.l.b16 %v4707
    %v4838 = vunpack.c.h.b16 %v4707
    %v4839 = vunpack.c.l.b16 %v4708
    %v4840 = vunpack.c.h.b16 %v4708
    %v4841 = vunpack.c.l.b16 %v4709
    %v4842 = vunpack.c.h.b16 %v4709
    %v4843 = vunpack.c.l.b16 %v4710
    %v4844 = vunpack.c.h.b16 %v4710
    %v4845 = vunpack.c.l.b16 %v4711
    %v4846 = vunpack.c.h.b16 %v4711
    %v4847 = vunpack.c.l.b16 %v4712
    %v4848 = vunpack.c.h.b16 %v4712
    %v4849 = vunpack.c.l.b16 %v4713
    %v4850 = vunpack.c.h.b16 %v4713
    %v4851 = vunpack.c.l.b16 %v4714
    %v4852 = vunpack.c.h.b16 %v4714
    %v4853 = vunpack.c.l.b16 %v4715
    %v4854 = vunpack.c.h.b16 %v4715
    %v4855 = vunpack.c.l.b16 %v4716
    %v4856 = vunpack.c.h.b16 %v4716
    %v4857 = vunpack.c.l.b16 %v4717
    %v4858 = vunpack.c.h.b16 %v4717
    %v4859 = vunpack.c.l.b16 %v4718
    %v4860 = vunpack.c.h.b16 %v4718
    %v4861 = vunpack.c.l.b16 %v4719
    %v4862 = vunpack.c.h.b16 %v4719
    %v4863 = vunpack.c.l.b16 %v4720
    %v4864 = vunpack.c.h.b16 %v4720
    %v4865 = vunpack.c.l.b16 %v4721
    %v4866 = vunpack.c.h.b16 %v4721
    %v4867 = vunpack.c.l.b16 %v4722
    %v4868 = vunpack.c.h.b16 %v4722
    %v4869 = vunpack.c.l.b16 %v4723
    %v4870 = vunpack.c.h.b16 %v4723
    %v4871 = vunpack.c.l.b16 %v4724
    %v4872 = vunpack.c.h.b16 %v4724
    %v4873 = vunpack.c.l.b16 %v4725
    %v4874 = vunpack.c.h.b16 %v4725
    %v4875 = vunpack.c.l.b16 %v4726
    %v4876 = vunpack.c.h.b16 %v4726
    %v4877 = vunpack.c.l.b16 %v4727
    %v4878 = vunpack.c.h.b16 %v4727
    %v4879 = vunpack.c.l.b16 %v4728
    %v4880 = vunpack.c.h.b16 %v4728
    %v4881 = vunpack.c.l.b16 %v4729
    %v4882 = vunpack.c.h.b16 %v4729
    %v4883 = vunpack.c.l.b16 %v4730
    %v4884 = vunpack.c.h.b16 %v4730
    %v4885 = vunpack.c.l.b16 %v4731
    %v4886 = vunpack.c.h.b16 %v4731
    %v4887 = vunpack.c.l.b16 %v4732
    %v4888 = vunpack.c.h.b16 %v4732
    %v4889 = vunpack.c.l.b16 %v4733
    %v4890 = vunpack.c.h.b16 %v4733
    %v4891 = vunpack.c.l.b16 %v4734
    %v4892 = vunpack.c.h.b16 %v4734
    %v4893 = vunpack.c.l.b16 %v4735
    %v4894 = vunpack.c.h.b16 %v4735
    %v4895 = vunpack.c.l.b16 %v4736
    %v4896 = vunpack.c.h.b16 %v4736
    %v4897 = vunpack.c.l.b16 %v4737
    %v4898 = vunpack.c.h.b16 %v4737
    %v4899 = vunpack.c.l.b16 %v4738
    %v4900 = vunpack.c.h.b16 %v4738
    %v4901 = vunpack.c.l.b16 %v4739
    %v4902 = vunpack.c.h.b16 %v4739
    %v4903 = vunpack.c.l.b16 %v4740
    %v4904 = vunpack.c.h.b16 %v4740
    %v4905 = vunpack.c.l.b16 %v4741
    %v4906 = vunpack.c.h.b16 %v4741
    %v4907 = vunpack.c.l.b16 %v4742
    %v4908 = vunpack.c.h.b16 %v4742
    %v4909 = vunpack.c.l.b16 %v4743
    %v4910 = vunpack.c.h.b16 %v4743
    %v4911 = vunpack.c.l.b16 %v4744
    %v4912 = vunpack.c.h.b16 %v4744
    %v4913 = vunpack.c.l.b16 %v4745
    %v4914 = vunpack.c.h.b16 %v4745
    %v4915 = vunpack.c.l.b16 %v4746
    %v4916 = vunpack.c.h.b16 %v4746
    %v4917 = vunpack.c.l.b16 %v4747
    %v4918 = vunpack.c.h.b16 %v4747
    %v4919 = vunpack.c.l.b16 %v4748
    %v4920 = vunpack.c.h.b16 %v4748
    %v4921 = vunpack.c.l.b16 %v4749
    %v4922 = vunpack.c.h.b16 %v4749
    %v4923 = vunpack.c.l.b16 %v4750
    %v4924 = vunpack.c.h.b16 %v4750
    %v4925 = vunpack.c.l.b16 %v4751
    %v4926 = vunpack.c.h.b16 %v4751
    %v4927 = vunpack.c.l.b16 %v4752
    %v4928 = vunpack.c.h.b16 %v4752
    %v4929 = vunpack.c.l.b16 %v4753
    %v4930 = vunpack.c.h.b16 %v4753
    %v4931 = vunpack.c.l.b16 %v4754
    %v4932 = vunpack.c.h.b16 %v4754
    %v4933 = vunpack.c.l.b16 %v4755
    %v4934 = vunpack.c.h.b16 %v4755
    %v4935 = vunpack.c.l.b16 %v4756
    %v4936 = vunpack.c.h.b16 %v4756
    %v4937 = vunpack.c.l.b16 %v4757
    %v4938 = vunpack.c.h.b16 %v4757
    %v4939 = vunpack.c.l.b16 %v4758
    %v4940 = vunpack.c.h.b16 %v4758
    %v4941 = vunpack.c.l.b16 %v4759
    %v4942 = vunpack.c.h.b16 %v4759
    %v4943 = vunpack.c.l.b16 %v4760
    %v4944 = vunpack.c.h.b16 %v4760
    %v4945 = vunpack.c.l.b16 %v4761
    %v4946 = vunpack.c.h.b16 %v4761
    %v4947 = vunpack.c.l.b16 %v4762
    %v4948 = vunpack.c.h.b16 %v4762
    %v4949 = vunpack.c.l.b16 %v4763
    %v4950 = vunpack.c.h.b16 %v4763
    %v4951 = vunpack.c.l.b16 %v4764
    %v4952 = vunpack.c.h.b16 %v4764
    %v4953 = vunpack.c.l.b16 %v4765
    %v4954 = vunpack.c.h.b16 %v4765
    %v4955 = vunpack.c.l.b16 %v4766
    %v4956 = vunpack.c.h.b16 %v4766
    %v4957 = vunpack.c.l.b16 %v4767
    %v4958 = vunpack.c.h.b16 %v4767
    %v4959 = vunpack.c.l.b16 %v4768
    %v4960 = vunpack.c.h.b16 %v4768
    %v4961 = vpack.c.b16 %v4837, %v4833
    %v4962 = vpack.c.b16 %v4838, %v4834
    %v4963 = vpack.c.b16 %v4839, %v4835
    %v4964 = vpack.c.b16 %v4840, %v4836
    %v4965 = vpack.c.b16 %v4845, %v4841
    %v4966 = vpack.c.b16 %v4846, %v4842
    %v4967 = vpack.c.b16 %v4847, %v4843
    %v4968 = vpack.c.b16 %v4848, %v4844
    %v4969 = vpack.c.b16 %v4853, %v4849
    %v4970 = vpack.c.b16 %v4854, %v4850
    %v4971 = vpack.c.b16 %v4855, %v4851
    %v4972 = vpack.c.b16 %v4856, %v4852
    %v4973 = vpack.c.b16 %v4861, %v4857
    %v4974 = vpack.c.b16 %v4862, %v4858
    %v4975 = vpack.c.b16 %v4863, %v4859
    %v4976 = vpack.c.b16 %v4864, %v4860
    %v4977 = vpack.c.b16 %v4869, %v4865
    %v4978 = vpack.c.b16 %v4870, %v4866
    %v4979 = vpack.c.b16 %v4871, %v4867
    %v4980 = vpack.c.b16 %v4872, %v4868
    %v4981 = vpack.c.b16 %v4877, %v4873
    %v4982 = vpack.c.b16 %v4878, %v4874
    %v4983 = vpack.c.b16 %v4879, %v4875
    %v4984 = vpack.c.b16 %v4880, %v4876
    %v4985 = vpack.c.b16 %v4885, %v4881
    %v4986 = vpack.c.b16 %v4886, %v4882
    %v4987 = vpack.c.b16 %v4887, %v4883
    %v4988 = vpack.c.b16 %v4888, %v4884
    %v4989 = vpack.c.b16 %v4893, %v4889
    %v4990 = vpack.c.b16 %v4894, %v4890
    %v4991 = vpack.c.b16 %v4895, %v4891
    %v4992 = vpack.c.b16 %v4896, %v4892
    %v4993 = vpack.c.b16 %v4901, %v4897
    %v4994 = vpack.c.b16 %v4902, %v4898
    %v4995 = vpack.c.b16 %v4903, %v4899
    %v4996 = vpack.c.b16 %v4904, %v4900
    %v4997 = vpack.c.b16 %v4909, %v4905
    %v4998 = vpack.c.b16 %v4910, %v4906
    %v4999 = vpack.c.b16 %v4911, %v4907
    %v5000 = vpack.c.b16 %v4912, %v4908
    %v5001 = vpack.c.b16 %v4917, %v4913
    %v5002 = vpack.c.b16 %v4918, %v4914
    %v5003 = vpack.c.b16 %v4919, %v4915
    %v5004 = vpack.c.b16 %v4920, %v4916
    %v5005 = vpack.c.b16 %v4925, %v4921
    %v5006 = vpack.c.b16 %v4926, %v4922
    %v5007 = vpack.c.b16 %v4927, %v4923
    %v5008 = vpack.c.b16 %v4928, %v4924
    %v5009 = vpack.c.b16 %v4933, %v4929
    %v5010 = vpack.c.b16 %v4934, %v4930
    %v5011 = vpack.c.b16 %v4935, %v4931
    %v5012 = vpack.c.b16 %v4936, %v4932
    %v5013 = vpack.c.b16 %v4941, %v4937
    %v5014 = vpack.c.b16 %v4942, %v4938
    %v5015 = vpack.c.b16 %v4943, %v4939
    %v5016 = vpack.c.b16 %v4944, %v4940
    %v5017 = vpack.c.b16 %v4949, %v4945
    %v5018 = vpack.c.b16 %v4950, %v4946
    %v5019 = vpack.c.b16 %v4951, %v4947
    %v5020 = vpack.c.b16 %v4952, %v4948
    %v5021 = vpack.c.b16 %v4957, %v4953
    %v5022 = vpack.c.b16 %v4958, %v4954
    %v5023 = vpack.c.b16 %v4959, %v4955
    %v5024 = vpack.c.b16 %v4960, %v4956
    %5089 = vmatprep.subr.bf16.mxu0 %v4990
    %5090 = vmatpush1.bf16.msra.mxu0 %v4989
    %5091 = vmatprep.subr.bf16.mxu0 %v4986
    %5092 = vmatpush1.bf16.msra.mxu0 %v4985
    %5093 = vmatprep.subr.bf16.mxu0 %v4982
    %5094 = vmatpush1.bf16.msra.mxu0 %v4981
    %5095 = vmatprep.subr.bf16.mxu0 %v4978
    %5096 = vmatpush1.bf16.msra.mxu0 %v4977
    %5097 = vmatprep.subr.bf16.mxu0 %v4974
    %5098 = vmatpush1.bf16.msra.mxu0 %v4973
    %5099 = vmatprep.subr.bf16.mxu0 %v4970
    %5100 = vmatpush1.bf16.msra.mxu0 %v4969
    %5101 = vmatprep.subr.bf16.mxu0 %v4966
    %5102 = vmatpush1.bf16.msra.mxu0 %v4965
    %5103 = vmatprep.subr.bf16.mxu0 %v4962
    %5104 = vmatpush1.bf16.msra.mxu0 %v4961
    %5105 = vmatprep.subr.bf16.mxu0 %v5022
    %5106 = vmatpush2.bf16.msra.mxu0 %v5021
    %5107 = vmatprep.subr.bf16.mxu0 %v5018
    %5108 = vmatpush2.bf16.msra.mxu0 %v5017
    %5109 = vmatprep.subr.bf16.mxu0 %v5014
    %5110 = vmatpush2.bf16.msra.mxu0 %v5013
    %5111 = vmatprep.subr.bf16.mxu0 %v5010
    %5112 = vmatpush2.bf16.msra.mxu0 %v5009
    %5113 = vmatprep.subr.bf16.mxu0 %v5006
    %5114 = vmatpush2.bf16.msra.mxu0 %v5005
    %5115 = vmatprep.subr.bf16.mxu0 %v5002
    %5116 = vmatpush2.bf16.msra.mxu0 %v5001
    %5117 = vmatprep.subr.bf16.mxu0 %v4998
    %5118 = vmatpush2.bf16.msra.mxu0 %v4997
    %5119 = vmatprep.subr.bf16.mxu0 %v4994
    %5120 = vmatpush2.bf16.msra.mxu0 %v4993
    %5121 = vmatprep.mubr.bf16.mxu0 %v4674
    %5122 = vmatmul.mubr.bf16.gmra.mxu0 %v4673
    %v5123 = vpop.f32.mrf.mxu0
    %v5124 = vadd.f32 0.0, %v5123
    %v5125 = vpop.f32.mrf.mxu0
    %v5126 = vadd.f32 0.0, %v5125
    %v5127 = vpop.f32.mrf.mxu0
    %v5128 = vadd.f32 0.0, %v5127
    %v5129 = vpop.f32.mrf.mxu0
    %v5130 = vadd.f32 0.0, %v5129
    %5131 = vmatprep.mubr.bf16.mxu0 %v4676
    %5132 = vmatmul.mubr.bf16.gmra.mxu0 %v4675
    %v5133 = vpop.f32.mrf.mxu0
    %v5134 = vadd.f32 0.0, %v5133
    %v5135 = vpop.f32.mrf.mxu0
    %v5136 = vadd.f32 0.0, %v5135
    %v5137 = vpop.f32.mrf.mxu0
    %v5138 = vadd.f32 0.0, %v5137
    %v5139 = vpop.f32.mrf.mxu0
    %v5140 = vadd.f32 0.0, %v5139
    %5141 = vmatprep.mubr.bf16.mxu0 %v4678
    %5142 = vmatmul.mubr.bf16.gmra.mxu0 %v4677
    %v5143 = vpop.f32.mrf.mxu0
    %v5144 = vadd.f32 0.0, %v5143
    %v5145 = vpop.f32.mrf.mxu0
    %v5146 = vadd.f32 0.0, %v5145
    %v5147 = vpop.f32.mrf.mxu0
    %v5148 = vadd.f32 0.0, %v5147
    %v5149 = vpop.f32.mrf.mxu0
    %v5150 = vadd.f32 0.0, %v5149
    %5151 = vmatprep.mubr.bf16.mxu0 %v4680
    %5152 = vmatmul.mubr.bf16.gmra.mxu0 %v4679
    %v5153 = vpop.f32.mrf.mxu0
    %v5154 = vadd.f32 0.0, %v5153
    %v5155 = vpop.f32.mrf.mxu0
    %v5156 = vadd.f32 0.0, %v5155
    %v5157 = vpop.f32.mrf.mxu0
    %v5158 = vadd.f32 0.0, %v5157
    %v5159 = vpop.f32.mrf.mxu0
    %v5160 = vadd.f32 0.0, %v5159
    %5161 = vmatprep.mubr.bf16.mxu0 %v4682
    %5162 = vmatmul.mubr.bf16.gmra.mxu0 %v4681
    %v5163 = vpop.f32.mrf.mxu0
    %v5164 = vadd.f32 0.0, %v5163
    %v5165 = vpop.f32.mrf.mxu0
    %v5166 = vadd.f32 0.0, %v5165
    %v5167 = vpop.f32.mrf.mxu0
    %v5168 = vadd.f32 0.0, %v5167
    %v5169 = vpop.f32.mrf.mxu0
    %v5170 = vadd.f32 0.0, %v5169
    %5171 = vmatprep.mubr.bf16.mxu0 %v4684
    %5172 = vmatmul.mubr.bf16.gmra.mxu0 %v4683
    %v5173 = vpop.f32.mrf.mxu0
    %v5174 = vadd.f32 0.0, %v5173
    %v5175 = vpop.f32.mrf.mxu0
    %v5176 = vadd.f32 0.0, %v5175
    %v5177 = vpop.f32.mrf.mxu0
    %v5178 = vadd.f32 0.0, %v5177
    %v5179 = vpop.f32.mrf.mxu0
    %v5180 = vadd.f32 0.0, %v5179
    %5181 = vmatprep.mubr.bf16.mxu0 %v4686
    %5182 = vmatmul.mubr.bf16.gmra.mxu0 %v4685
    %v5183 = vpop.f32.mrf.mxu0
    %v5184 = vadd.f32 0.0, %v5183
    %v5185 = vpop.f32.mrf.mxu0
    %v5186 = vadd.f32 0.0, %v5185
    %v5187 = vpop.f32.mrf.mxu0
    %v5188 = vadd.f32 0.0, %v5187
    %v5189 = vpop.f32.mrf.mxu0
    %v5190 = vadd.f32 0.0, %v5189
    %5191 = vmatprep.mubr.bf16.mxu0 %v4688
    %5192 = vmatmul.mubr.bf16.gmra.mxu0 %v4687
    %v5193 = vpop.f32.mrf.mxu0
    %v5194 = vadd.f32 0.0, %v5193
    %v5195 = vpop.f32.mrf.mxu0
    %v5196 = vadd.f32 0.0, %v5195
    %v5197 = vpop.f32.mrf.mxu0
    %v5198 = vadd.f32 0.0, %v5197
    %v5199 = vpop.f32.mrf.mxu0
    %v5200 = vadd.f32 0.0, %v5199
    %5201 = vmatprep.mubr.bf16.mxu0 %v4690
    %5202 = vmatmul.mubr.bf16.gmra.mxu0 %v4689
    %v5203 = vpop.f32.mrf.mxu0
    %v5204 = vadd.f32 0.0, %v5203
    %v5205 = vpop.f32.mrf.mxu0
    %v5206 = vadd.f32 0.0, %v5205
    %v5207 = vpop.f32.mrf.mxu0
    %v5208 = vadd.f32 0.0, %v5207
    %v5209 = vpop.f32.mrf.mxu0
    %v5210 = vadd.f32 0.0, %v5209
    %5211 = vmatprep.mubr.bf16.mxu0 %v4692
    %5212 = vmatmul.mubr.bf16.gmra.mxu0 %v4691
    %v5213 = vpop.f32.mrf.mxu0
    %v5214 = vadd.f32 0.0, %v5213
    %v5215 = vpop.f32.mrf.mxu0
    %v5216 = vadd.f32 0.0, %v5215
    %v5217 = vpop.f32.mrf.mxu0
    %v5218 = vadd.f32 0.0, %v5217
    %v5219 = vpop.f32.mrf.mxu0
    %v5220 = vadd.f32 0.0, %v5219
    %5221 = vmatprep.mubr.bf16.mxu0 %v4694
    %5222 = vmatmul.mubr.bf16.gmra.mxu0 %v4693
    %v5223 = vpop.f32.mrf.mxu0
    %v5224 = vadd.f32 0.0, %v5223
    %v5225 = vpop.f32.mrf.mxu0
    %v5226 = vadd.f32 0.0, %v5225
    %v5227 = vpop.f32.mrf.mxu0
    %v5228 = vadd.f32 0.0, %v5227
    %v5229 = vpop.f32.mrf.mxu0
    %v5230 = vadd.f32 0.0, %v5229
    %5231 = vmatprep.mubr.bf16.mxu0 %v4696
    %5232 = vmatmul.mubr.bf16.gmra.mxu0 %v4695
    %v5233 = vpop.f32.mrf.mxu0
    %v5234 = vadd.f32 0.0, %v5233
    %v5235 = vpop.f32.mrf.mxu0
    %v5236 = vadd.f32 0.0, %v5235
    %v5237 = vpop.f32.mrf.mxu0
    %v5238 = vadd.f32 0.0, %v5237
    %v5239 = vpop.f32.mrf.mxu0
    %v5240 = vadd.f32 0.0, %v5239
    %5241 = vmatprep.mubr.bf16.mxu0 %v4698
    %5242 = vmatmul.mubr.bf16.gmra.mxu0 %v4697
    %v5243 = vpop.f32.mrf.mxu0
    %v5244 = vadd.f32 0.0, %v5243
    %v5245 = vpop.f32.mrf.mxu0
    %v5246 = vadd.f32 0.0, %v5245
    %v5247 = vpop.f32.mrf.mxu0
    %v5248 = vadd.f32 0.0, %v5247
    %v5249 = vpop.f32.mrf.mxu0
    %v5250 = vadd.f32 0.0, %v5249
    %5251 = vmatprep.mubr.bf16.mxu0 %v4700
    %5252 = vmatmul.mubr.bf16.gmra.mxu0 %v4699
    %v5253 = vpop.f32.mrf.mxu0
    %v5254 = vadd.f32 0.0, %v5253
    %v5255 = vpop.f32.mrf.mxu0
    %v5256 = vadd.f32 0.0, %v5255
    %v5257 = vpop.f32.mrf.mxu0
    %v5258 = vadd.f32 0.0, %v5257
    %v5259 = vpop.f32.mrf.mxu0
    %v5260 = vadd.f32 0.0, %v5259
    %5261 = vmatprep.mubr.bf16.mxu0 %v4702
    %5262 = vmatmul.mubr.bf16.gmra.mxu0 %v4701
    %v5263 = vpop.f32.mrf.mxu0
    %v5264 = vadd.f32 0.0, %v5263
    %v5265 = vpop.f32.mrf.mxu0
    %v5266 = vadd.f32 0.0, %v5265
    %v5267 = vpop.f32.mrf.mxu0
    %v5268 = vadd.f32 0.0, %v5267
    %v5269 = vpop.f32.mrf.mxu0
    %v5270 = vadd.f32 0.0, %v5269
    %5271 = vmatprep.mubr.bf16.mxu0 %v4704
    %5272 = vmatmul.mubr.bf16.gmra.mxu0 %v4703
    %v5273 = vpop.f32.mrf.mxu0
    %v5274 = vadd.f32 0.0, %v5273
    %v5275 = vpop.f32.mrf.mxu0
    %v5276 = vadd.f32 0.0, %v5275
    %v5277 = vpop.f32.mrf.mxu0
    %v5278 = vadd.f32 0.0, %v5277
    %v5279 = vpop.f32.mrf.mxu0
    %v5280 = vadd.f32 0.0, %v5279
    %5281 = vdwg.mxu0
    %5282 = vmatprep.subr.bf16.mxu0 %v4992
    %5283 = vmatpush1.bf16.msra.mxu0 %v4991
    %5284 = vmatprep.subr.bf16.mxu0 %v4988
    %5285 = vmatpush1.bf16.msra.mxu0 %v4987
    %5286 = vmatprep.subr.bf16.mxu0 %v4984
    %5287 = vmatpush1.bf16.msra.mxu0 %v4983
    %5288 = vmatprep.subr.bf16.mxu0 %v4980
    %5289 = vmatpush1.bf16.msra.mxu0 %v4979
    %5290 = vmatprep.subr.bf16.mxu0 %v4976
    %5291 = vmatpush1.bf16.msra.mxu0 %v4975
    %5292 = vmatprep.subr.bf16.mxu0 %v4972
    %5293 = vmatpush1.bf16.msra.mxu0 %v4971
    %5294 = vmatprep.subr.bf16.mxu0 %v4968
    %5295 = vmatpush1.bf16.msra.mxu0 %v4967
    %5296 = vmatprep.subr.bf16.mxu0 %v4964
    %5297 = vmatpush1.bf16.msra.mxu0 %v4963
    %5298 = vmatprep.subr.bf16.mxu0 %v5024
    %5299 = vmatpush2.bf16.msra.mxu0 %v5023
    %5300 = vmatprep.subr.bf16.mxu0 %v5020
    %5301 = vmatpush2.bf16.msra.mxu0 %v5019
    %5302 = vmatprep.subr.bf16.mxu0 %v5016
    %5303 = vmatpush2.bf16.msra.mxu0 %v5015
    %5304 = vmatprep.subr.bf16.mxu0 %v5012
    %5305 = vmatpush2.bf16.msra.mxu0 %v5011
    %5306 = vmatprep.subr.bf16.mxu0 %v5008
    %5307 = vmatpush2.bf16.msra.mxu0 %v5007
    %5308 = vmatprep.subr.bf16.mxu0 %v5004
    %5309 = vmatpush2.bf16.msra.mxu0 %v5003
    %5310 = vmatprep.subr.bf16.mxu0 %v5000
    %5311 = vmatpush2.bf16.msra.mxu0 %v4999
    %5312 = vmatprep.subr.bf16.mxu0 %v4996
    %5313 = vmatpush2.bf16.msra.mxu0 %v4995
    %5314 = vmatprep.mubr.bf16.mxu0 %v4674
    %5315 = vmatmul.mubr.bf16.gmra.mxu0 %v4673
    %v5316 = vpop.f32.mrf.mxu0
    %v5317 = vadd.f32 0.0, %v5316
    %v5318 = vpop.f32.mrf.mxu0
    %v5319 = vadd.f32 0.0, %v5318
    %v5320 = vpop.f32.mrf.mxu0
    %v5321 = vadd.f32 0.0, %v5320
    %v5322 = vpop.f32.mrf.mxu0
    %v5323 = vadd.f32 0.0, %v5322
    %5324 = vmatprep.mubr.bf16.mxu0 %v4676
    %5325 = vmatmul.mubr.bf16.gmra.mxu0 %v4675
    %v5326 = vpop.f32.mrf.mxu0
    %v5327 = vadd.f32 0.0, %v5326
    %v5328 = vpop.f32.mrf.mxu0
    %v5329 = vadd.f32 0.0, %v5328
    %v5330 = vpop.f32.mrf.mxu0
    %v5331 = vadd.f32 0.0, %v5330
    %v5332 = vpop.f32.mrf.mxu0
    %v5333 = vadd.f32 0.0, %v5332
    %5334 = vmatprep.mubr.bf16.mxu0 %v4678
    %5335 = vmatmul.mubr.bf16.gmra.mxu0 %v4677
    %v5336 = vpop.f32.mrf.mxu0
    %v5337 = vadd.f32 0.0, %v5336
    %v5338 = vpop.f32.mrf.mxu0
    %v5339 = vadd.f32 0.0, %v5338
    %v5340 = vpop.f32.mrf.mxu0
    %v5341 = vadd.f32 0.0, %v5340
    %v5342 = vpop.f32.mrf.mxu0
    %v5343 = vadd.f32 0.0, %v5342
    %5344 = vmatprep.mubr.bf16.mxu0 %v4680
    %5345 = vmatmul.mubr.bf16.gmra.mxu0 %v4679
    %v5346 = vpop.f32.mrf.mxu0
    %v5347 = vadd.f32 0.0, %v5346
    %v5348 = vpop.f32.mrf.mxu0
    %v5349 = vadd.f32 0.0, %v5348
    %v5350 = vpop.f32.mrf.mxu0
    %v5351 = vadd.f32 0.0, %v5350
    %v5352 = vpop.f32.mrf.mxu0
    %v5353 = vadd.f32 0.0, %v5352
    %5354 = vmatprep.mubr.bf16.mxu0 %v4682
    %5355 = vmatmul.mubr.bf16.gmra.mxu0 %v4681
    %v5356 = vpop.f32.mrf.mxu0
    %v5357 = vadd.f32 0.0, %v5356
    %v5358 = vpop.f32.mrf.mxu0
    %v5359 = vadd.f32 0.0, %v5358
    %v5360 = vpop.f32.mrf.mxu0
    %v5361 = vadd.f32 0.0, %v5360
    %v5362 = vpop.f32.mrf.mxu0
    %v5363 = vadd.f32 0.0, %v5362
    %5364 = vmatprep.mubr.bf16.mxu0 %v4684
    %5365 = vmatmul.mubr.bf16.gmra.mxu0 %v4683
    %v5366 = vpop.f32.mrf.mxu0
    %v5367 = vadd.f32 0.0, %v5366
    %v5368 = vpop.f32.mrf.mxu0
    %v5369 = vadd.f32 0.0, %v5368
    %v5370 = vpop.f32.mrf.mxu0
    %v5371 = vadd.f32 0.0, %v5370
    %v5372 = vpop.f32.mrf.mxu0
    %v5373 = vadd.f32 0.0, %v5372
    %5374 = vmatprep.mubr.bf16.mxu0 %v4686
    %5375 = vmatmul.mubr.bf16.gmra.mxu0 %v4685
    %v5376 = vpop.f32.mrf.mxu0
    %v5377 = vadd.f32 0.0, %v5376
    %v5378 = vpop.f32.mrf.mxu0
    %v5379 = vadd.f32 0.0, %v5378
    %v5380 = vpop.f32.mrf.mxu0
    %v5381 = vadd.f32 0.0, %v5380
    %v5382 = vpop.f32.mrf.mxu0
    %v5383 = vadd.f32 0.0, %v5382
    %5384 = vmatprep.mubr.bf16.mxu0 %v4688
    %5385 = vmatmul.mubr.bf16.gmra.mxu0 %v4687
    %v5386 = vpop.f32.mrf.mxu0
    %v5387 = vadd.f32 0.0, %v5386
    %v5388 = vpop.f32.mrf.mxu0
    %v5389 = vadd.f32 0.0, %v5388
    %v5390 = vpop.f32.mrf.mxu0
    %v5391 = vadd.f32 0.0, %v5390
    %v5392 = vpop.f32.mrf.mxu0
    %v5393 = vadd.f32 0.0, %v5392
    %5394 = vmatprep.mubr.bf16.mxu0 %v4690
    %5395 = vmatmul.mubr.bf16.gmra.mxu0 %v4689
    %v5396 = vpop.f32.mrf.mxu0
    %v5397 = vadd.f32 0.0, %v5396
    %v5398 = vpop.f32.mrf.mxu0
    %v5399 = vadd.f32 0.0, %v5398
    %v5400 = vpop.f32.mrf.mxu0
    %v5401 = vadd.f32 0.0, %v5400
    %v5402 = vpop.f32.mrf.mxu0
    %v5403 = vadd.f32 0.0, %v5402
    %5404 = vmatprep.mubr.bf16.mxu0 %v4692
    %5405 = vmatmul.mubr.bf16.gmra.mxu0 %v4691
    %v5406 = vpop.f32.mrf.mxu0
    %v5407 = vadd.f32 0.0, %v5406
    %v5408 = vpop.f32.mrf.mxu0
    %v5409 = vadd.f32 0.0, %v5408
    %v5410 = vpop.f32.mrf.mxu0
    %v5411 = vadd.f32 0.0, %v5410
    %v5412 = vpop.f32.mrf.mxu0
    %v5413 = vadd.f32 0.0, %v5412
    %5414 = vmatprep.mubr.bf16.mxu0 %v4694
    %5415 = vmatmul.mubr.bf16.gmra.mxu0 %v4693
    %v5416 = vpop.f32.mrf.mxu0
    %v5417 = vadd.f32 0.0, %v5416
    %v5418 = vpop.f32.mrf.mxu0
    %v5419 = vadd.f32 0.0, %v5418
    %v5420 = vpop.f32.mrf.mxu0
    %v5421 = vadd.f32 0.0, %v5420
    %v5422 = vpop.f32.mrf.mxu0
    %v5423 = vadd.f32 0.0, %v5422
    %5424 = vmatprep.mubr.bf16.mxu0 %v4696
    %5425 = vmatmul.mubr.bf16.gmra.mxu0 %v4695
    %v5426 = vpop.f32.mrf.mxu0
    %v5427 = vadd.f32 0.0, %v5426
    %v5428 = vpop.f32.mrf.mxu0
    %v5429 = vadd.f32 0.0, %v5428
    %v5430 = vpop.f32.mrf.mxu0
    %v5431 = vadd.f32 0.0, %v5430
    %v5432 = vpop.f32.mrf.mxu0
    %v5433 = vadd.f32 0.0, %v5432
    %5434 = vmatprep.mubr.bf16.mxu0 %v4698
    %5435 = vmatmul.mubr.bf16.gmra.mxu0 %v4697
    %v5436 = vpop.f32.mrf.mxu0
    %v5437 = vadd.f32 0.0, %v5436
    %v5438 = vpop.f32.mrf.mxu0
    %v5439 = vadd.f32 0.0, %v5438
    %v5440 = vpop.f32.mrf.mxu0
    %v5441 = vadd.f32 0.0, %v5440
    %v5442 = vpop.f32.mrf.mxu0
    %v5443 = vadd.f32 0.0, %v5442
    %5444 = vmatprep.mubr.bf16.mxu0 %v4700
    %5445 = vmatmul.mubr.bf16.gmra.mxu0 %v4699
    %v5446 = vpop.f32.mrf.mxu0
    %v5447 = vadd.f32 0.0, %v5446
    %v5448 = vpop.f32.mrf.mxu0
    %v5449 = vadd.f32 0.0, %v5448
    %v5450 = vpop.f32.mrf.mxu0
    %v5451 = vadd.f32 0.0, %v5450
    %v5452 = vpop.f32.mrf.mxu0
    %v5453 = vadd.f32 0.0, %v5452
    %5454 = vmatprep.mubr.bf16.mxu0 %v4702
    %5455 = vmatmul.mubr.bf16.gmra.mxu0 %v4701
    %v5456 = vpop.f32.mrf.mxu0
    %v5457 = vadd.f32 0.0, %v5456
    %v5458 = vpop.f32.mrf.mxu0
    %v5459 = vadd.f32 0.0, %v5458
    %v5460 = vpop.f32.mrf.mxu0
    %v5461 = vadd.f32 0.0, %v5460
    %v5462 = vpop.f32.mrf.mxu0
    %v5463 = vadd.f32 0.0, %v5462
    %5464 = vmatprep.mubr.bf16.mxu0 %v4704
    %5465 = vmatmul.mubr.bf16.gmra.mxu0 %v4703
    %v5466 = vpop.f32.mrf.mxu0
    %v5467 = vadd.f32 0.0, %v5466
    %v5468 = vpop.f32.mrf.mxu0
    %v5469 = vadd.f32 0.0, %v5468
    %v5470 = vpop.f32.mrf.mxu0
    %v5471 = vadd.f32 0.0, %v5470
    %v5472 = vpop.f32.mrf.mxu0
    %v5473 = vadd.f32 0.0, %v5472
    %5474 = vdwg.mxu0
    %v5475 = vld [vmem:[%s14] sm:$0xf]
    %v5476 = vld [vmem:[%s15] sm:$0xf]
    %v5477 = vadd.f32 %v5124, %v5128
    %v5478 = vadd.f32 %v5477, %v5134
    %v5479 = vadd.f32 %v5478, %v5138
    %v5480 = vadd.f32 %v5479, %v5144
    %v5481 = vadd.f32 %v5480, %v5148
    %v5482 = vadd.f32 %v5481, %v5154
    %v5483 = vadd.f32 %v5482, %v5158
    %v5484 = vadd.f32 %v5483, %v5164
    %v5485 = vadd.f32 %v5484, %v5168
    %v5486 = vadd.f32 %v5485, %v5174
    %v5487 = vadd.f32 %v5486, %v5178
    %v5488 = vadd.f32 %v5487, %v5184
    %v5489 = vadd.f32 %v5488, %v5188
    %v5490 = vadd.f32 %v5489, %v5194
    %v5491 = vadd.f32 %v5490, %v5198
    %v5492 = vadd.f32 %v5491, %v5204
    %v5493 = vadd.f32 %v5492, %v5208
    %v5494 = vadd.f32 %v5493, %v5214
    %v5495 = vadd.f32 %v5494, %v5218
    %v5496 = vadd.f32 %v5495, %v5224
    %v5497 = vadd.f32 %v5496, %v5228
    %v5498 = vadd.f32 %v5497, %v5234
    %v5499 = vadd.f32 %v5498, %v5238
    %v5500 = vadd.f32 %v5499, %v5244
    %v5501 = vadd.f32 %v5500, %v5248
    %v5502 = vadd.f32 %v5501, %v5254
    %v5503 = vadd.f32 %v5502, %v5258
    %v5504 = vadd.f32 %v5503, %v5264
    %v5505 = vadd.f32 %v5504, %v5268
    %v5506 = vadd.f32 %v5505, %v5274
    %v5507 = vadd.f32 %v5506, %v5278
    %v5508 = vrot.slane %v5507, 4
    %v5509 = vadd.f32 %v5507, %v5508
    %v5510 = vrot.slane %v5509, 2
    %v5511 = vadd.f32 %v5509, %v5510
    %v5512 = vrot.slane %v5511, 1
    %v5513 = vadd.f32 %v5511, %v5512
    %v5514 = vadd.f32 %v5126, %v5130
    %v5515 = vadd.f32 %v5514, %v5136
    %v5516 = vadd.f32 %v5515, %v5140
    %v5517 = vadd.f32 %v5516, %v5146
    %v5518 = vadd.f32 %v5517, %v5150
    %v5519 = vadd.f32 %v5518, %v5156
    %v5520 = vadd.f32 %v5519, %v5160
    %v5521 = vadd.f32 %v5520, %v5166
    %v5522 = vadd.f32 %v5521, %v5170
    %v5523 = vadd.f32 %v5522, %v5176
    %v5524 = vadd.f32 %v5523, %v5180
    %v5525 = vadd.f32 %v5524, %v5186
    %v5526 = vadd.f32 %v5525, %v5190
    %v5527 = vadd.f32 %v5526, %v5196
    %v5528 = vadd.f32 %v5527, %v5200
    %v5529 = vadd.f32 %v5528, %v5206
    %v5530 = vadd.f32 %v5529, %v5210
    %v5531 = vadd.f32 %v5530, %v5216
    %v5532 = vadd.f32 %v5531, %v5220
    %v5533 = vadd.f32 %v5532, %v5226
    %v5534 = vadd.f32 %v5533, %v5230
    %v5535 = vadd.f32 %v5534, %v5236
    %v5536 = vadd.f32 %v5535, %v5240
    %v5537 = vadd.f32 %v5536, %v5246
    %v5538 = vadd.f32 %v5537, %v5250
    %v5539 = vadd.f32 %v5538, %v5256
    %v5540 = vadd.f32 %v5539, %v5260
    %v5541 = vadd.f32 %v5540, %v5266
    %v5542 = vadd.f32 %v5541, %v5270
    %v5543 = vadd.f32 %v5542, %v5276
    %v5544 = vadd.f32 %v5543, %v5280
    %v5545 = vrot.slane %v5544, 4
    %v5546 = vadd.f32 %v5544, %v5545
    %v5547 = vrot.slane %v5546, 2
    %v5548 = vadd.f32 %v5546, %v5547
    %v5549 = vrot.slane %v5548, 1
    %v5550 = vadd.f32 %v5548, %v5549
    %v5551 = vadd.f32 %v5317, %v5321
    %v5552 = vadd.f32 %v5551, %v5327
    %v5553 = vadd.f32 %v5552, %v5331
    %v5554 = vadd.f32 %v5553, %v5337
    %v5555 = vadd.f32 %v5554, %v5341
    %v5556 = vadd.f32 %v5555, %v5347
    %v5557 = vadd.f32 %v5556, %v5351
    %v5558 = vadd.f32 %v5557, %v5357
    %v5559 = vadd.f32 %v5558, %v5361
    %v5560 = vadd.f32 %v5559, %v5367
    %v5561 = vadd.f32 %v5560, %v5371
    %v5562 = vadd.f32 %v5561, %v5377
    %v5563 = vadd.f32 %v5562, %v5381
    %v5564 = vadd.f32 %v5563, %v5387
    %v5565 = vadd.f32 %v5564, %v5391
    %v5566 = vadd.f32 %v5565, %v5397
    %v5567 = vadd.f32 %v5566, %v5401
    %v5568 = vadd.f32 %v5567, %v5407
    %v5569 = vadd.f32 %v5568, %v5411
    %v5570 = vadd.f32 %v5569, %v5417
    %v5571 = vadd.f32 %v5570, %v5421
    %v5572 = vadd.f32 %v5571, %v5427
    %v5573 = vadd.f32 %v5572, %v5431
    %v5574 = vadd.f32 %v5573, %v5437
    %v5575 = vadd.f32 %v5574, %v5441
    %v5576 = vadd.f32 %v5575, %v5447
    %v5577 = vadd.f32 %v5576, %v5451
    %v5578 = vadd.f32 %v5577, %v5457
    %v5579 = vadd.f32 %v5578, %v5461
    %v5580 = vadd.f32 %v5579, %v5467
    %v5581 = vadd.f32 %v5580, %v5471
    %v5582 = vrot.slane %v5581, 4
    %v5583 = vadd.f32 %v5581, %v5582
    %v5584 = vrot.slane %v5583, 2
    %v5585 = vadd.f32 %v5583, %v5584
    %v5586 = vrot.slane %v5585, 1
    %v5587 = vadd.f32 %v5585, %v5586
    %v5588 = vadd.f32 %v5319, %v5323
    %v5589 = vadd.f32 %v5588, %v5329
    %v5590 = vadd.f32 %v5589, %v5333
    %v5591 = vadd.f32 %v5590, %v5339
    %v5592 = vadd.f32 %v5591, %v5343
    %v5593 = vadd.f32 %v5592, %v5349
    %v5594 = vadd.f32 %v5593, %v5353
    %v5595 = vadd.f32 %v5594, %v5359
    %v5596 = vadd.f32 %v5595, %v5363
    %v5597 = vadd.f32 %v5596, %v5369
    %v5598 = vadd.f32 %v5597, %v5373
    %v5599 = vadd.f32 %v5598, %v5379
    %v5600 = vadd.f32 %v5599, %v5383
    %v5601 = vadd.f32 %v5600, %v5389
    %v5602 = vadd.f32 %v5601, %v5393
    %v5603 = vadd.f32 %v5602, %v5399
    %v5604 = vadd.f32 %v5603, %v5403
    %v5605 = vadd.f32 %v5604, %v5409
    %v5606 = vadd.f32 %v5605, %v5413
    %v5607 = vadd.f32 %v5606, %v5419
    %v5608 = vadd.f32 %v5607, %v5423
    %v5609 = vadd.f32 %v5608, %v5429
    %v5610 = vadd.f32 %v5609, %v5433
    %v5611 = vadd.f32 %v5610, %v5439
    %v5612 = vadd.f32 %v5611, %v5443
    %v5613 = vadd.f32 %v5612, %v5449
    %v5614 = vadd.f32 %v5613, %v5453
    %v5615 = vadd.f32 %v5614, %v5459
    %v5616 = vadd.f32 %v5615, %v5463
    %v5617 = vadd.f32 %v5616, %v5469
    %v5618 = vadd.f32 %v5617, %v5473
    %v5619 = vrot.slane %v5618, 4
    %v5620 = vadd.f32 %v5618, %v5619
    %v5621 = vrot.slane %v5620, 2
    %v5622 = vadd.f32 %v5620, %v5621
    %v5623 = vrot.slane %v5622, 1
    %v5624 = vadd.f32 %v5622, %v5623
    %v5625 = vmul.f32 %v5513, 0.00390625
    %v5626 = vmul.f32 %v5550, 0.00390625
    %v5627 = vmul.f32 %v5587, 0.00390625
    %v5628 = vmul.f32 %v5624, 0.00390625
    %v5629 = vmul.f32 %v5124, %v5124
    %v5630 = vmul.f32 %v5126, %v5126
    %v5631 = vmul.f32 %v5317, %v5317
    %v5632 = vmul.f32 %v5319, %v5319
    %v5633 = vmul.f32 %v5128, %v5128
    %v5634 = vmul.f32 %v5130, %v5130
    %v5635 = vmul.f32 %v5321, %v5321
    %v5636 = vmul.f32 %v5323, %v5323
    %v5637 = vmul.f32 %v5134, %v5134
    %v5638 = vmul.f32 %v5136, %v5136
    %v5639 = vmul.f32 %v5327, %v5327
    %v5640 = vmul.f32 %v5329, %v5329
    %v5641 = vmul.f32 %v5138, %v5138
    %v5642 = vmul.f32 %v5140, %v5140
    %v5643 = vmul.f32 %v5331, %v5331
    %v5644 = vmul.f32 %v5333, %v5333
    %v5645 = vmul.f32 %v5144, %v5144
    %v5646 = vmul.f32 %v5146, %v5146
    %v5647 = vmul.f32 %v5337, %v5337
    %v5648 = vmul.f32 %v5339, %v5339
    %v5649 = vmul.f32 %v5148, %v5148
    %v5650 = vmul.f32 %v5150, %v5150
    %v5651 = vmul.f32 %v5341, %v5341
    %v5652 = vmul.f32 %v5343, %v5343
    %v5653 = vmul.f32 %v5154, %v5154
    %v5654 = vmul.f32 %v5156, %v5156
    %v5655 = vmul.f32 %v5347, %v5347
    %v5656 = vmul.f32 %v5349, %v5349
    %v5657 = vmul.f32 %v5158, %v5158
    %v5658 = vmul.f32 %v5160, %v5160
    %v5659 = vmul.f32 %v5351, %v5351
    %v5660 = vmul.f32 %v5353, %v5353
    %v5661 = vmul.f32 %v5164, %v5164
    %v5662 = vmul.f32 %v5166, %v5166
    %v5663 = vmul.f32 %v5357, %v5357
    %v5664 = vmul.f32 %v5359, %v5359
    %v5665 = vmul.f32 %v5168, %v5168
    %v5666 = vmul.f32 %v5170, %v5170
    %v5667 = vmul.f32 %v5361, %v5361
    %v5668 = vmul.f32 %v5363, %v5363
    %v5669 = vmul.f32 %v5174, %v5174
    %v5670 = vmul.f32 %v5176, %v5176
    %v5671 = vmul.f32 %v5367, %v5367
    %v5672 = vmul.f32 %v5369, %v5369
    %v5673 = vmul.f32 %v5178, %v5178
    %v5674 = vmul.f32 %v5180, %v5180
    %v5675 = vmul.f32 %v5371, %v5371
    %v5676 = vmul.f32 %v5373, %v5373
    %v5677 = vmul.f32 %v5184, %v5184
    %v5678 = vmul.f32 %v5186, %v5186
    %v5679 = vmul.f32 %v5377, %v5377
    %v5680 = vmul.f32 %v5379, %v5379
    %v5681 = vmul.f32 %v5188, %v5188
    %v5682 = vmul.f32 %v5190, %v5190
    %v5683 = vmul.f32 %v5381, %v5381
    %v5684 = vmul.f32 %v5383, %v5383
    %v5685 = vmul.f32 %v5194, %v5194
    %v5686 = vmul.f32 %v5196, %v5196
    %v5687 = vmul.f32 %v5387, %v5387
    %v5688 = vmul.f32 %v5389, %v5389
    %v5689 = vmul.f32 %v5198, %v5198
    %v5690 = vmul.f32 %v5200, %v5200
    %v5691 = vmul.f32 %v5391, %v5391
    %v5692 = vmul.f32 %v5393, %v5393
    %v5693 = vmul.f32 %v5204, %v5204
    %v5694 = vmul.f32 %v5206, %v5206
    %v5695 = vmul.f32 %v5397, %v5397
    %v5696 = vmul.f32 %v5399, %v5399
    %v5697 = vmul.f32 %v5208, %v5208
    %v5698 = vmul.f32 %v5210, %v5210
    %v5699 = vmul.f32 %v5401, %v5401
    %v5700 = vmul.f32 %v5403, %v5403
    %v5701 = vmul.f32 %v5214, %v5214
    %v5702 = vmul.f32 %v5216, %v5216
    %v5703 = vmul.f32 %v5407, %v5407
    %v5704 = vmul.f32 %v5409, %v5409
    %v5705 = vmul.f32 %v5218, %v5218
    %v5706 = vmul.f32 %v5220, %v5220
    %v5707 = vmul.f32 %v5411, %v5411
    %v5708 = vmul.f32 %v5413, %v5413
    %v5709 = vmul.f32 %v5224, %v5224
    %v5710 = vmul.f32 %v5226, %v5226
    %v5711 = vmul.f32 %v5417, %v5417
    %v5712 = vmul.f32 %v5419, %v5419
    %v5713 = vmul.f32 %v5228, %v5228
    %v5714 = vmul.f32 %v5230, %v5230
    %v5715 = vmul.f32 %v5421, %v5421
    %v5716 = vmul.f32 %v5423, %v5423
    %v5717 = vmul.f32 %v5234, %v5234
    %v5718 = vmul.f32 %v5236, %v5236
    %v5719 = vmul.f32 %v5427, %v5427
    %v5720 = vmul.f32 %v5429, %v5429
    %v5721 = vmul.f32 %v5238, %v5238
    %v5722 = vmul.f32 %v5240, %v5240
    %v5723 = vmul.f32 %v5431, %v5431
    %v5724 = vmul.f32 %v5433, %v5433
    %v5725 = vmul.f32 %v5244, %v5244
    %v5726 = vmul.f32 %v5246, %v5246
    %v5727 = vmul.f32 %v5437, %v5437
    %v5728 = vmul.f32 %v5439, %v5439
    %v5729 = vmul.f32 %v5248, %v5248
    %v5730 = vmul.f32 %v5250, %v5250
    %v5731 = vmul.f32 %v5441, %v5441
    %v5732 = vmul.f32 %v5443, %v5443
    %v5733 = vmul.f32 %v5254, %v5254
    %v5734 = vmul.f32 %v5256, %v5256
    %v5735 = vmul.f32 %v5447, %v5447
    %v5736 = vmul.f32 %v5449, %v5449
    %v5737 = vmul.f32 %v5258, %v5258
    %v5738 = vmul.f32 %v5260, %v5260
    %v5739 = vmul.f32 %v5451, %v5451
    %v5740 = vmul.f32 %v5453, %v5453
    %v5741 = vmul.f32 %v5264, %v5264
    %v5742 = vmul.f32 %v5266, %v5266
    %v5743 = vmul.f32 %v5457, %v5457
    %v5744 = vmul.f32 %v5459, %v5459
    %v5745 = vmul.f32 %v5268, %v5268
    %v5746 = vmul.f32 %v5270, %v5270
    %v5747 = vmul.f32 %v5461, %v5461
    %v5748 = vmul.f32 %v5463, %v5463
    %v5749 = vmul.f32 %v5274, %v5274
    %v5750 = vmul.f32 %v5276, %v5276
    %v5751 = vmul.f32 %v5467, %v5467
    %v5752 = vmul.f32 %v5469, %v5469
    %v5753 = vmul.f32 %v5278, %v5278
    %v5754 = vmul.f32 %v5280, %v5280
    %v5755 = vmul.f32 %v5471, %v5471
    %v5756 = vmul.f32 %v5473, %v5473
    %v5757 = vadd.f32 %v5629, %v5633
    %v5758 = vadd.f32 %v5757, %v5637
    %v5759 = vadd.f32 %v5758, %v5641
    %v5760 = vadd.f32 %v5759, %v5645
    %v5761 = vadd.f32 %v5760, %v5649
    %v5762 = vadd.f32 %v5761, %v5653
    %v5763 = vadd.f32 %v5762, %v5657
    %v5764 = vadd.f32 %v5763, %v5661
    %v5765 = vadd.f32 %v5764, %v5665
    %v5766 = vadd.f32 %v5765, %v5669
    %v5767 = vadd.f32 %v5766, %v5673
    %v5768 = vadd.f32 %v5767, %v5677
    %v5769 = vadd.f32 %v5768, %v5681
    %v5770 = vadd.f32 %v5769, %v5685
    %v5771 = vadd.f32 %v5770, %v5689
    %v5772 = vadd.f32 %v5771, %v5693
    %v5773 = vadd.f32 %v5772, %v5697
    %v5774 = vadd.f32 %v5773, %v5701
    %v5775 = vadd.f32 %v5774, %v5705
    %v5776 = vadd.f32 %v5775, %v5709
    %v5777 = vadd.f32 %v5776, %v5713
    %v5778 = vadd.f32 %v5777, %v5717
    %v5779 = vadd.f32 %v5778, %v5721
    %v5780 = vadd.f32 %v5779, %v5725
    %v5781 = vadd.f32 %v5780, %v5729
    %v5782 = vadd.f32 %v5781, %v5733
    %v5783 = vadd.f32 %v5782, %v5737
    %v5784 = vadd.f32 %v5783, %v5741
    %v5785 = vadd.f32 %v5784, %v5745
    %v5786 = vadd.f32 %v5785, %v5749
    %v5787 = vadd.f32 %v5786, %v5753
    %v5788 = vrot.slane %v5787, 4
    %v5789 = vadd.f32 %v5787, %v5788
    %v5790 = vrot.slane %v5789, 2
    %v5791 = vadd.f32 %v5789, %v5790
    %v5792 = vrot.slane %v5791, 1
    %v5793 = vadd.f32 %v5791, %v5792
    %v5794 = vadd.f32 %v5630, %v5634
    %v5795 = vadd.f32 %v5794, %v5638
    %v5796 = vadd.f32 %v5795, %v5642
    %v5797 = vadd.f32 %v5796, %v5646
    %v5798 = vadd.f32 %v5797, %v5650
    %v5799 = vadd.f32 %v5798, %v5654
    %v5800 = vadd.f32 %v5799, %v5658
    %v5801 = vadd.f32 %v5800, %v5662
    %v5802 = vadd.f32 %v5801, %v5666
    %v5803 = vadd.f32 %v5802, %v5670
    %v5804 = vadd.f32 %v5803, %v5674
    %v5805 = vadd.f32 %v5804, %v5678
    %v5806 = vadd.f32 %v5805, %v5682
    %v5807 = vadd.f32 %v5806, %v5686
    %v5808 = vadd.f32 %v5807, %v5690
    %v5809 = vadd.f32 %v5808, %v5694
    %v5810 = vadd.f32 %v5809, %v5698
    %v5811 = vadd.f32 %v5810, %v5702
    %v5812 = vadd.f32 %v5811, %v5706
    %v5813 = vadd.f32 %v5812, %v5710
    %v5814 = vadd.f32 %v5813, %v5714
    %v5815 = vadd.f32 %v5814, %v5718
    %v5816 = vadd.f32 %v5815, %v5722
    %v5817 = vadd.f32 %v5816, %v5726
    %v5818 = vadd.f32 %v5817, %v5730
    %v5819 = vadd.f32 %v5818, %v5734
    %v5820 = vadd.f32 %v5819, %v5738
    %v5821 = vadd.f32 %v5820, %v5742
    %v5822 = vadd.f32 %v5821, %v5746
    %v5823 = vadd.f32 %v5822, %v5750
    %v5824 = vadd.f32 %v5823, %v5754
    %v5825 = vrot.slane %v5824, 4
    %v5826 = vadd.f32 %v5824, %v5825
    %v5827 = vrot.slane %v5826, 2
    %v5828 = vadd.f32 %v5826, %v5827
    %v5829 = vrot.slane %v5828, 1
    %v5830 = vadd.f32 %v5828, %v5829
    %v5831 = vadd.f32 %v5631, %v5635
    %v5832 = vadd.f32 %v5831, %v5639
    %v5833 = vadd.f32 %v5832, %v5643
    %v5834 = vadd.f32 %v5833, %v5647
    %v5835 = vadd.f32 %v5834, %v5651
    %v5836 = vadd.f32 %v5835, %v5655
    %v5837 = vadd.f32 %v5836, %v5659
    %v5838 = vadd.f32 %v5837, %v5663
    %v5839 = vadd.f32 %v5838, %v5667
    %v5840 = vadd.f32 %v5839, %v5671
    %v5841 = vadd.f32 %v5840, %v5675
    %v5842 = vadd.f32 %v5841, %v5679
    %v5843 = vadd.f32 %v5842, %v5683
    %v5844 = vadd.f32 %v5843, %v5687
    %v5845 = vadd.f32 %v5844, %v5691
    %v5846 = vadd.f32 %v5845, %v5695
    %v5847 = vadd.f32 %v5846, %v5699
    %v5848 = vadd.f32 %v5847, %v5703
    %v5849 = vadd.f32 %v5848, %v5707
    %v5850 = vadd.f32 %v5849, %v5711
    %v5851 = vadd.f32 %v5850, %v5715
    %v5852 = vadd.f32 %v5851, %v5719
    %v5853 = vadd.f32 %v5852, %v5723
    %v5854 = vadd.f32 %v5853, %v5727
    %v5855 = vadd.f32 %v5854, %v5731
    %v5856 = vadd.f32 %v5855, %v5735
    %v5857 = vadd.f32 %v5856, %v5739
    %v5858 = vadd.f32 %v5857, %v5743
    %v5859 = vadd.f32 %v5858, %v5747
    %v5860 = vadd.f32 %v5859, %v5751
    %v5861 = vadd.f32 %v5860, %v5755
    %v5862 = vrot.slane %v5861, 4
    %v5863 = vadd.f32 %v5861, %v5862
    %v5864 = vrot.slane %v5863, 2
    %v5865 = vadd.f32 %v5863, %v5864
    %v5866 = vrot.slane %v5865, 1
    %v5867 = vadd.f32 %v5865, %v5866
    %v5868 = vadd.f32 %v5632, %v5636
    %v5869 = vadd.f32 %v5868, %v5640
    %v5870 = vadd.f32 %v5869, %v5644
    %v5871 = vadd.f32 %v5870, %v5648
    %v5872 = vadd.f32 %v5871, %v5652
    %v5873 = vadd.f32 %v5872, %v5656
    %v5874 = vadd.f32 %v5873, %v5660
    %v5875 = vadd.f32 %v5874, %v5664
    %v5876 = vadd.f32 %v5875, %v5668
    %v5877 = vadd.f32 %v5876, %v5672
    %v5878 = vadd.f32 %v5877, %v5676
    %v5879 = vadd.f32 %v5878, %v5680
    %v5880 = vadd.f32 %v5879, %v5684
    %v5881 = vadd.f32 %v5880, %v5688
    %v5882 = vadd.f32 %v5881, %v5692
    %v5883 = vadd.f32 %v5882, %v5696
    %v5884 = vadd.f32 %v5883, %v5700
    %v5885 = vadd.f32 %v5884, %v5704
    %v5886 = vadd.f32 %v5885, %v5708
    %v5887 = vadd.f32 %v5886, %v5712
    %v5888 = vadd.f32 %v5887, %v5716
    %v5889 = vadd.f32 %v5888, %v5720
    %v5890 = vadd.f32 %v5889, %v5724
    %v5891 = vadd.f32 %v5890, %v5728
    %v5892 = vadd.f32 %v5891, %v5732
    %v5893 = vadd.f32 %v5892, %v5736
    %v5894 = vadd.f32 %v5893, %v5740
    %v5895 = vadd.f32 %v5894, %v5744
    %v5896 = vadd.f32 %v5895, %v5748
    %v5897 = vadd.f32 %v5896, %v5752
    %v5898 = vadd.f32 %v5897, %v5756
    %v5899 = vrot.slane %v5898, 4
    %v5900 = vadd.f32 %v5898, %v5899
    %v5901 = vrot.slane %v5900, 2
    %v5902 = vadd.f32 %v5900, %v5901
    %v5903 = vrot.slane %v5902, 1
    %v5904 = vadd.f32 %v5902, %v5903
    %v5905 = vmul.f32 %v5793, 0.00390625
    %v5906 = vmul.f32 %v5830, 0.00390625
    %v5907 = vmul.f32 %v5867, 0.00390625
    %v5908 = vmul.f32 %v5904, 0.00390625
    %v5909 = vmul.f32 %v5625, %v5625
    %v5910 = vmul.f32 %v5626, %v5626
    %v5911 = vmul.f32 %v5627, %v5627
    %v5912 = vmul.f32 %v5628, %v5628
    %v5913 = vsub.f32 %v5905, %v5909
    %v5914 = vsub.f32 %v5906, %v5910
    %v5915 = vsub.f32 %v5907, %v5911
    %v5916 = vsub.f32 %v5908, %v5912
    %v5917 = vadd.f32 %v5913, 1e-05
    %v5918 = vadd.f32 %v5914, 1e-05
    %v5919 = vadd.f32 %v5915, 1e-05
    %v5920 = vadd.f32 %v5916, 1e-05
    %v5921 = vrsqrt.pop %v5917
    %v5922 = vrsqrt.pop %v5918
    %v5923 = vrsqrt.pop %v5919
    %v5924 = vrsqrt.pop %v5920
    %v5926 = vlaneseq
    %v5927 = vshrl.u32 %v5926, 7
    %v5928 = vsub.s32 0, %v5927
    %v5929 = vrot.slane %v5475, %v5928
    %v5930 = vlaneseq
    %v5931 = vshrl.u32 %v5930, 7
    %v5932 = vsub.s32 1, %v5931
    %v5933 = vrot.slane %v5475, %v5932
    %v5934 = vlaneseq
    %v5935 = vshrl.u32 %v5934, 7
    %v5936 = vsub.s32 2, %v5935
    %v5937 = vrot.slane %v5475, %v5936
    %v5938 = vlaneseq
    %v5939 = vshrl.u32 %v5938, 7
    %v5940 = vsub.s32 3, %v5939
    %v5941 = vrot.slane %v5475, %v5940
    %v5946 = vmul.f32 %v5921, %v5929
    %v5947 = vmul.f32 %v5922, %v5933
    %v5948 = vmul.f32 %v5923, %v5937
    %v5949 = vmul.f32 %v5924, %v5941
    %v5950 = vmul.f32 %v5625, %v5946
    %v5951 = vmul.f32 %v5626, %v5947
    %v5952 = vmul.f32 %v5627, %v5948
    %v5953 = vmul.f32 %v5628, %v5949
    %v5958 = vcombine.low %v5950, %v5951
    %v5959 = vcombine.low %v5952, %v5953
    %v5961 = vunpack.c.l.s4 1966171168
    %v5962 = vunpack.c.0.s8 %v5961
    %v5963 = vlaneseq
    %v5964 = vshrl.u32 %v5963, 7
    %v5965 = vsub.s32 %v5962, %v5964
    %v5966 = vrot.slane %v5958, %v5965
    %v5968 = vunpack.c.l.s4 1966171168
    %v5969 = vunpack.c.0.s8 %v5968
    %v5970 = vlaneseq
    %v5971 = vshrl.u32 %v5970, 7
    %v5972 = vsub.s32 %v5969, %v5971
    %v5973 = vrot.slane %v5959, %v5972
    %v5974 = vcombine.low %v5966, %v5973
    %v5976 = vunpack.c.l.s4 1966171168
    %v5977 = vunpack.c.0.s8 %v5976
    %v5978 = vlaneseq
    %v5979 = vshrl.u32 %v5978, 7
    %v5980 = vsub.s32 %v5977, %v5979
    %v5981 = vrot.slane %v5974, %v5980
    %v5983 = vsub.f32 %v5476, %v5981
    %v5984 = vlaneseq
    %v5985 = vshrl.u32 %v5984, 7
    %v5986 = vsub.s32 0, %v5985
    %v5987 = vrot.slane %v5946, %v5986
    %v5988 = vlaneseq
    %v5989 = vshrl.u32 %v5988, 7
    %v5990 = vsub.s32 0, %v5989
    %v5991 = vrot.slane %v5947, %v5990
    %v5992 = vlaneseq
    %v5993 = vshrl.u32 %v5992, 7
    %v5994 = vsub.s32 0, %v5993
    %v5995 = vrot.slane %v5948, %v5994
    %v5996 = vlaneseq
    %v5997 = vshrl.u32 %v5996, 7
    %v5998 = vsub.s32 0, %v5997
    %v5999 = vrot.slane %v5949, %v5998
    %v6000 = vmul.f32 %v5124, %v5987
    %v6001 = vmul.f32 %v5126, %v5991
    %v6002 = vmul.f32 %v5317, %v5995
    %v6003 = vmul.f32 %v5319, %v5999
    %v6004 = vmul.f32 %v5128, %v5987
    %v6005 = vmul.f32 %v5130, %v5991
    %v6006 = vmul.f32 %v5321, %v5995
    %v6007 = vmul.f32 %v5323, %v5999
    %v6008 = vmul.f32 %v5134, %v5987
    %v6009 = vmul.f32 %v5136, %v5991
    %v6010 = vmul.f32 %v5327, %v5995
    %v6011 = vmul.f32 %v5329, %v5999
    %v6012 = vmul.f32 %v5138, %v5987
    %v6013 = vmul.f32 %v5140, %v5991
    %v6014 = vmul.f32 %v5331, %v5995
    %v6015 = vmul.f32 %v5333, %v5999
    %v6016 = vmul.f32 %v5144, %v5987
    %v6017 = vmul.f32 %v5146, %v5991
    %v6018 = vmul.f32 %v5337, %v5995
    %v6019 = vmul.f32 %v5339, %v5999
    %v6020 = vmul.f32 %v5148, %v5987
    %v6021 = vmul.f32 %v5150, %v5991
    %v6022 = vmul.f32 %v5341, %v5995
    %v6023 = vmul.f32 %v5343, %v5999
    %v6024 = vmul.f32 %v5154, %v5987
    %v6025 = vmul.f32 %v5156, %v5991
    %v6026 = vmul.f32 %v5347, %v5995
    %v6027 = vmul.f32 %v5349, %v5999
    %v6028 = vmul.f32 %v5158, %v5987
    %v6029 = vmul.f32 %v5160, %v5991
    %v6030 = vmul.f32 %v5351, %v5995
    %v6031 = vmul.f32 %v5353, %v5999
    %v6032 = vmul.f32 %v5164, %v5987
    %v6033 = vmul.f32 %v5166, %v5991
    %v6034 = vmul.f32 %v5357, %v5995
    %v6035 = vmul.f32 %v5359, %v5999
    %v6036 = vmul.f32 %v5168, %v5987
    %v6037 = vmul.f32 %v5170, %v5991
    %v6038 = vmul.f32 %v5361, %v5995
    %v6039 = vmul.f32 %v5363, %v5999
    %v6040 = vmul.f32 %v5174, %v5987
    %v6041 = vmul.f32 %v5176, %v5991
    %v6042 = vmul.f32 %v5367, %v5995
    %v6043 = vmul.f32 %v5369, %v5999
    %v6044 = vmul.f32 %v5178, %v5987
    %v6045 = vmul.f32 %v5180, %v5991
    %v6046 = vmul.f32 %v5371, %v5995
    %v6047 = vmul.f32 %v5373, %v5999
    %v6048 = vmul.f32 %v5184, %v5987
    %v6049 = vmul.f32 %v5186, %v5991
    %v6050 = vmul.f32 %v5377, %v5995
    %v6051 = vmul.f32 %v5379, %v5999
    %v6052 = vmul.f32 %v5188, %v5987
    %v6053 = vmul.f32 %v5190, %v5991
    %v6054 = vmul.f32 %v5381, %v5995
    %v6055 = vmul.f32 %v5383, %v5999
    %v6056 = vmul.f32 %v5194, %v5987
    %v6057 = vmul.f32 %v5196, %v5991
    %v6058 = vmul.f32 %v5387, %v5995
    %v6059 = vmul.f32 %v5389, %v5999
    %v6060 = vmul.f32 %v5198, %v5987
    %v6061 = vmul.f32 %v5200, %v5991
    %v6062 = vmul.f32 %v5391, %v5995
    %v6063 = vmul.f32 %v5393, %v5999
    %v6064 = vmul.f32 %v5204, %v5987
    %v6065 = vmul.f32 %v5206, %v5991
    %v6066 = vmul.f32 %v5397, %v5995
    %v6067 = vmul.f32 %v5399, %v5999
    %v6068 = vmul.f32 %v5208, %v5987
    %v6069 = vmul.f32 %v5210, %v5991
    %v6070 = vmul.f32 %v5401, %v5995
    %v6071 = vmul.f32 %v5403, %v5999
    %v6072 = vmul.f32 %v5214, %v5987
    %v6073 = vmul.f32 %v5216, %v5991
    %v6074 = vmul.f32 %v5407, %v5995
    %v6075 = vmul.f32 %v5409, %v5999
    %v6076 = vmul.f32 %v5218, %v5987
    %v6077 = vmul.f32 %v5220, %v5991
    %v6078 = vmul.f32 %v5411, %v5995
    %v6079 = vmul.f32 %v5413, %v5999
    %v6080 = vmul.f32 %v5224, %v5987
    %v6081 = vmul.f32 %v5226, %v5991
    %v6082 = vmul.f32 %v5417, %v5995
    %v6083 = vmul.f32 %v5419, %v5999
    %v6084 = vmul.f32 %v5228, %v5987
    %v6085 = vmul.f32 %v5230, %v5991
    %v6086 = vmul.f32 %v5421, %v5995
    %v6087 = vmul.f32 %v5423, %v5999
    %v6088 = vmul.f32 %v5234, %v5987
    %v6089 = vmul.f32 %v5236, %v5991
    %v6090 = vmul.f32 %v5427, %v5995
    %v6091 = vmul.f32 %v5429, %v5999
    %v6092 = vmul.f32 %v5238, %v5987
    %v6093 = vmul.f32 %v5240, %v5991
    %v6094 = vmul.f32 %v5431, %v5995
    %v6095 = vmul.f32 %v5433, %v5999
    %v6096 = vmul.f32 %v5244, %v5987
    %v6097 = vmul.f32 %v5246, %v5991
    %v6098 = vmul.f32 %v5437, %v5995
    %v6099 = vmul.f32 %v5439, %v5999
    %v6100 = vmul.f32 %v5248, %v5987
    %v6101 = vmul.f32 %v5250, %v5991
    %v6102 = vmul.f32 %v5441, %v5995
    %v6103 = vmul.f32 %v5443, %v5999
    %v6104 = vmul.f32 %v5254, %v5987
    %v6105 = vmul.f32 %v5256, %v5991
    %v6106 = vmul.f32 %v5447, %v5995
    %v6107 = vmul.f32 %v5449, %v5999
    %v6108 = vmul.f32 %v5258, %v5987
    %v6109 = vmul.f32 %v5260, %v5991
    %v6110 = vmul.f32 %v5451, %v5995
    %v6111 = vmul.f32 %v5453, %v5999
    %v6112 = vmul.f32 %v5264, %v5987
    %v6113 = vmul.f32 %v5266, %v5991
    %v6114 = vmul.f32 %v5457, %v5995
    %v6115 = vmul.f32 %v5459, %v5999
    %v6116 = vmul.f32 %v5268, %v5987
    %v6117 = vmul.f32 %v5270, %v5991
    %v6118 = vmul.f32 %v5461, %v5995
    %v6119 = vmul.f32 %v5463, %v5999
    %v6120 = vmul.f32 %v5274, %v5987
    %v6121 = vmul.f32 %v5276, %v5991
    %v6122 = vmul.f32 %v5467, %v5995
    %v6123 = vmul.f32 %v5469, %v5999
    %v6124 = vmul.f32 %v5278, %v5987
    %v6125 = vmul.f32 %v5280, %v5991
    %v6126 = vmul.f32 %v5471, %v5995
    %v6127 = vmul.f32 %v5473, %v5999
    %v6129 = vlaneseq
    %v6130 = vshrl.u32 %v6129, 7
    %v6131 = vsub.s32 0, %v6130
    %v6132 = vrot.slane %v5983, %v6131
    %v6133 = vlaneseq
    %v6134 = vshrl.u32 %v6133, 7
    %v6135 = vsub.s32 1, %v6134
    %v6136 = vrot.slane %v5983, %v6135
    %v6137 = vlaneseq
    %v6138 = vshrl.u32 %v6137, 7
    %v6139 = vsub.s32 2, %v6138
    %v6140 = vrot.slane %v5983, %v6139
    %v6141 = vlaneseq
    %v6142 = vshrl.u32 %v6141, 7
    %v6143 = vsub.s32 3, %v6142
    %v6144 = vrot.slane %v5983, %v6143
    %v6149 = vadd.f32 %v6000, %v6132
    %v6150 = vadd.f32 %v6001, %v6136
    %v6151 = vadd.f32 %v6002, %v6140
    %v6152 = vadd.f32 %v6003, %v6144
    %v6153 = vadd.f32 %v6004, %v6132
    %v6154 = vadd.f32 %v6005, %v6136
    %v6155 = vadd.f32 %v6006, %v6140
    %v6156 = vadd.f32 %v6007, %v6144
    %v6157 = vadd.f32 %v6008, %v6132
    %v6158 = vadd.f32 %v6009, %v6136
    %v6159 = vadd.f32 %v6010, %v6140
    %v6160 = vadd.f32 %v6011, %v6144
    %v6161 = vadd.f32 %v6012, %v6132
    %v6162 = vadd.f32 %v6013, %v6136
    %v6163 = vadd.f32 %v6014, %v6140
    %v6164 = vadd.f32 %v6015, %v6144
    %v6165 = vadd.f32 %v6016, %v6132
    %v6166 = vadd.f32 %v6017, %v6136
    %v6167 = vadd.f32 %v6018, %v6140
    %v6168 = vadd.f32 %v6019, %v6144
    %v6169 = vadd.f32 %v6020, %v6132
    %v6170 = vadd.f32 %v6021, %v6136
    %v6171 = vadd.f32 %v6022, %v6140
    %v6172 = vadd.f32 %v6023, %v6144
    %v6173 = vadd.f32 %v6024, %v6132
    %v6174 = vadd.f32 %v6025, %v6136
    %v6175 = vadd.f32 %v6026, %v6140
    %v6176 = vadd.f32 %v6027, %v6144
    %v6177 = vadd.f32 %v6028, %v6132
    %v6178 = vadd.f32 %v6029, %v6136
    %v6179 = vadd.f32 %v6030, %v6140
    %v6180 = vadd.f32 %v6031, %v6144
    %v6181 = vadd.f32 %v6032, %v6132
    %v6182 = vadd.f32 %v6033, %v6136
    %v6183 = vadd.f32 %v6034, %v6140
    %v6184 = vadd.f32 %v6035, %v6144
    %v6185 = vadd.f32 %v6036, %v6132
    %v6186 = vadd.f32 %v6037, %v6136
    %v6187 = vadd.f32 %v6038, %v6140
    %v6188 = vadd.f32 %v6039, %v6144
    %v6189 = vadd.f32 %v6040, %v6132
    %v6190 = vadd.f32 %v6041, %v6136
    %v6191 = vadd.f32 %v6042, %v6140
    %v6192 = vadd.f32 %v6043, %v6144
    %v6193 = vadd.f32 %v6044, %v6132
    %v6194 = vadd.f32 %v6045, %v6136
    %v6195 = vadd.f32 %v6046, %v6140
    %v6196 = vadd.f32 %v6047, %v6144
    %v6197 = vadd.f32 %v6048, %v6132
    %v6198 = vadd.f32 %v6049, %v6136
    %v6199 = vadd.f32 %v6050, %v6140
    %v6200 = vadd.f32 %v6051, %v6144
    %v6201 = vadd.f32 %v6052, %v6132
    %v6202 = vadd.f32 %v6053, %v6136
    %v6203 = vadd.f32 %v6054, %v6140
    %v6204 = vadd.f32 %v6055, %v6144
    %v6205 = vadd.f32 %v6056, %v6132
    %v6206 = vadd.f32 %v6057, %v6136
    %v6207 = vadd.f32 %v6058, %v6140
    %v6208 = vadd.f32 %v6059, %v6144
    %v6209 = vadd.f32 %v6060, %v6132
    %v6210 = vadd.f32 %v6061, %v6136
    %v6211 = vadd.f32 %v6062, %v6140
    %v6212 = vadd.f32 %v6063, %v6144
    %v6213 = vadd.f32 %v6064, %v6132
    %v6214 = vadd.f32 %v6065, %v6136
    %v6215 = vadd.f32 %v6066, %v6140
    %v6216 = vadd.f32 %v6067, %v6144
    %v6217 = vadd.f32 %v6068, %v6132
    %v6218 = vadd.f32 %v6069, %v6136
    %v6219 = vadd.f32 %v6070, %v6140
    %v6220 = vadd.f32 %v6071, %v6144
    %v6221 = vadd.f32 %v6072, %v6132
    %v6222 = vadd.f32 %v6073, %v6136
    %v6223 = vadd.f32 %v6074, %v6140
    %v6224 = vadd.f32 %v6075, %v6144
    %v6225 = vadd.f32 %v6076, %v6132
    %v6226 = vadd.f32 %v6077, %v6136
    %v6227 = vadd.f32 %v6078, %v6140
    %v6228 = vadd.f32 %v6079, %v6144
    %v6229 = vadd.f32 %v6080, %v6132
    %v6230 = vadd.f32 %v6081, %v6136
    %v6231 = vadd.f32 %v6082, %v6140
    %v6232 = vadd.f32 %v6083, %v6144
    %v6233 = vadd.f32 %v6084, %v6132
    %v6234 = vadd.f32 %v6085, %v6136
    %v6235 = vadd.f32 %v6086, %v6140
    %v6236 = vadd.f32 %v6087, %v6144
    %v6237 = vadd.f32 %v6088, %v6132
    %v6238 = vadd.f32 %v6089, %v6136
    %v6239 = vadd.f32 %v6090, %v6140
    %v6240 = vadd.f32 %v6091, %v6144
    %v6241 = vadd.f32 %v6092, %v6132
    %v6242 = vadd.f32 %v6093, %v6136
    %v6243 = vadd.f32 %v6094, %v6140
    %v6244 = vadd.f32 %v6095, %v6144
    %v6245 = vadd.f32 %v6096, %v6132
    %v6246 = vadd.f32 %v6097, %v6136
    %v6247 = vadd.f32 %v6098, %v6140
    %v6248 = vadd.f32 %v6099, %v6144
    %v6249 = vadd.f32 %v6100, %v6132
    %v6250 = vadd.f32 %v6101, %v6136
    %v6251 = vadd.f32 %v6102, %v6140
    %v6252 = vadd.f32 %v6103, %v6144
    %v6253 = vadd.f32 %v6104, %v6132
    %v6254 = vadd.f32 %v6105, %v6136
    %v6255 = vadd.f32 %v6106, %v6140
    %v6256 = vadd.f32 %v6107, %v6144
    %v6257 = vadd.f32 %v6108, %v6132
    %v6258 = vadd.f32 %v6109, %v6136
    %v6259 = vadd.f32 %v6110, %v6140
    %v6260 = vadd.f32 %v6111, %v6144
    %v6261 = vadd.f32 %v6112, %v6132
    %v6262 = vadd.f32 %v6113, %v6136
    %v6263 = vadd.f32 %v6114, %v6140
    %v6264 = vadd.f32 %v6115, %v6144
    %v6265 = vadd.f32 %v6116, %v6132
    %v6266 = vadd.f32 %v6117, %v6136
    %v6267 = vadd.f32 %v6118, %v6140
    %v6268 = vadd.f32 %v6119, %v6144
    %v6269 = vadd.f32 %v6120, %v6132
    %v6270 = vadd.f32 %v6121, %v6136
    %v6271 = vadd.f32 %v6122, %v6140
    %v6272 = vadd.f32 %v6123, %v6144
    %v6273 = vadd.f32 %v6124, %v6132
    %v6274 = vadd.f32 %v6125, %v6136
    %v6275 = vadd.f32 %v6126, %v6140
    %v6276 = vadd.f32 %v6127, %v6144
    %v6277 = vmul.f32 %v6149, 0.2
    %v6278 = vmul.f32 %v6150, 0.2
    %v6279 = vmul.f32 %v6151, 0.2
    %v6280 = vmul.f32 %v6152, 0.2
    %v6281 = vmul.f32 %v6153, 0.2
    %v6282 = vmul.f32 %v6154, 0.2
    %v6283 = vmul.f32 %v6155, 0.2
    %v6284 = vmul.f32 %v6156, 0.2
    %v6285 = vmul.f32 %v6157, 0.2
    %v6286 = vmul.f32 %v6158, 0.2
    %v6287 = vmul.f32 %v6159, 0.2
    %v6288 = vmul.f32 %v6160, 0.2
    %v6289 = vmul.f32 %v6161, 0.2
    %v6290 = vmul.f32 %v6162, 0.2
    %v6291 = vmul.f32 %v6163, 0.2
    %v6292 = vmul.f32 %v6164, 0.2
    %v6293 = vmul.f32 %v6165, 0.2
    %v6294 = vmul.f32 %v6166, 0.2
    %v6295 = vmul.f32 %v6167, 0.2
    %v6296 = vmul.f32 %v6168, 0.2
    %v6297 = vmul.f32 %v6169, 0.2
    %v6298 = vmul.f32 %v6170, 0.2
    %v6299 = vmul.f32 %v6171, 0.2
    %v6300 = vmul.f32 %v6172, 0.2
    %v6301 = vmul.f32 %v6173, 0.2
    %v6302 = vmul.f32 %v6174, 0.2
    %v6303 = vmul.f32 %v6175, 0.2
    %v6304 = vmul.f32 %v6176, 0.2
    %v6305 = vmul.f32 %v6177, 0.2
    %v6306 = vmul.f32 %v6178, 0.2
    %v6307 = vmul.f32 %v6179, 0.2
    %v6308 = vmul.f32 %v6180, 0.2
    %v6309 = vmul.f32 %v6181, 0.2
    %v6310 = vmul.f32 %v6182, 0.2
    %v6311 = vmul.f32 %v6183, 0.2
    %v6312 = vmul.f32 %v6184, 0.2
    %v6313 = vmul.f32 %v6185, 0.2
    %v6314 = vmul.f32 %v6186, 0.2
    %v6315 = vmul.f32 %v6187, 0.2
    %v6316 = vmul.f32 %v6188, 0.2
    %v6317 = vmul.f32 %v6189, 0.2
    %v6318 = vmul.f32 %v6190, 0.2
    %v6319 = vmul.f32 %v6191, 0.2
    %v6320 = vmul.f32 %v6192, 0.2
    %v6321 = vmul.f32 %v6193, 0.2
    %v6322 = vmul.f32 %v6194, 0.2
    %v6323 = vmul.f32 %v6195, 0.2
    %v6324 = vmul.f32 %v6196, 0.2
    %v6325 = vmul.f32 %v6197, 0.2
    %v6326 = vmul.f32 %v6198, 0.2
    %v6327 = vmul.f32 %v6199, 0.2
    %v6328 = vmul.f32 %v6200, 0.2
    %v6329 = vmul.f32 %v6201, 0.2
    %v6330 = vmul.f32 %v6202, 0.2
    %v6331 = vmul.f32 %v6203, 0.2
    %v6332 = vmul.f32 %v6204, 0.2
    %v6333 = vmul.f32 %v6205, 0.2
    %v6334 = vmul.f32 %v6206, 0.2
    %v6335 = vmul.f32 %v6207, 0.2
    %v6336 = vmul.f32 %v6208, 0.2
    %v6337 = vmul.f32 %v6209, 0.2
    %v6338 = vmul.f32 %v6210, 0.2
    %v6339 = vmul.f32 %v6211, 0.2
    %v6340 = vmul.f32 %v6212, 0.2
    %v6341 = vmul.f32 %v6213, 0.2
    %v6342 = vmul.f32 %v6214, 0.2
    %v6343 = vmul.f32 %v6215, 0.2
    %v6344 = vmul.f32 %v6216, 0.2
    %v6345 = vmul.f32 %v6217, 0.2
    %v6346 = vmul.f32 %v6218, 0.2
    %v6347 = vmul.f32 %v6219, 0.2
    %v6348 = vmul.f32 %v6220, 0.2
    %v6349 = vmul.f32 %v6221, 0.2
    %v6350 = vmul.f32 %v6222, 0.2
    %v6351 = vmul.f32 %v6223, 0.2
    %v6352 = vmul.f32 %v6224, 0.2
    %v6353 = vmul.f32 %v6225, 0.2
    %v6354 = vmul.f32 %v6226, 0.2
    %v6355 = vmul.f32 %v6227, 0.2
    %v6356 = vmul.f32 %v6228, 0.2
    %v6357 = vmul.f32 %v6229, 0.2
    %v6358 = vmul.f32 %v6230, 0.2
    %v6359 = vmul.f32 %v6231, 0.2
    %v6360 = vmul.f32 %v6232, 0.2
    %v6361 = vmul.f32 %v6233, 0.2
    %v6362 = vmul.f32 %v6234, 0.2
    %v6363 = vmul.f32 %v6235, 0.2
    %v6364 = vmul.f32 %v6236, 0.2
    %v6365 = vmul.f32 %v6237, 0.2
    %v6366 = vmul.f32 %v6238, 0.2
    %v6367 = vmul.f32 %v6239, 0.2
    %v6368 = vmul.f32 %v6240, 0.2
    %v6369 = vmul.f32 %v6241, 0.2
    %v6370 = vmul.f32 %v6242, 0.2
    %v6371 = vmul.f32 %v6243, 0.2
    %v6372 = vmul.f32 %v6244, 0.2
    %v6373 = vmul.f32 %v6245, 0.2
    %v6374 = vmul.f32 %v6246, 0.2
    %v6375 = vmul.f32 %v6247, 0.2
    %v6376 = vmul.f32 %v6248, 0.2
    %v6377 = vmul.f32 %v6249, 0.2
    %v6378 = vmul.f32 %v6250, 0.2
    %v6379 = vmul.f32 %v6251, 0.2
    %v6380 = vmul.f32 %v6252, 0.2
    %v6381 = vmul.f32 %v6253, 0.2
    %v6382 = vmul.f32 %v6254, 0.2
    %v6383 = vmul.f32 %v6255, 0.2
    %v6384 = vmul.f32 %v6256, 0.2
    %v6385 = vmul.f32 %v6257, 0.2
    %v6386 = vmul.f32 %v6258, 0.2
    %v6387 = vmul.f32 %v6259, 0.2
    %v6388 = vmul.f32 %v6260, 0.2
    %v6389 = vmul.f32 %v6261, 0.2
    %v6390 = vmul.f32 %v6262, 0.2
    %v6391 = vmul.f32 %v6263, 0.2
    %v6392 = vmul.f32 %v6264, 0.2
    %v6393 = vmul.f32 %v6265, 0.2
    %v6394 = vmul.f32 %v6266, 0.2
    %v6395 = vmul.f32 %v6267, 0.2
    %v6396 = vmul.f32 %v6268, 0.2
    %v6397 = vmul.f32 %v6269, 0.2
    %v6398 = vmul.f32 %v6270, 0.2
    %v6399 = vmul.f32 %v6271, 0.2
    %v6400 = vmul.f32 %v6272, 0.2
    %v6401 = vmul.f32 %v6273, 0.2
    %v6402 = vmul.f32 %v6274, 0.2
    %v6403 = vmul.f32 %v6275, 0.2
    %v6404 = vmul.f32 %v6276, 0.2
    %v6405 = vmax.f32 %v6149, %v6277
    %v6406 = vmax.f32 %v6150, %v6278
    %v6407 = vmax.f32 %v6151, %v6279
    %v6408 = vmax.f32 %v6152, %v6280
    %v6409 = vmax.f32 %v6153, %v6281
    %v6410 = vmax.f32 %v6154, %v6282
    %v6411 = vmax.f32 %v6155, %v6283
    %v6412 = vmax.f32 %v6156, %v6284
    %v6413 = vmax.f32 %v6157, %v6285
    %v6414 = vmax.f32 %v6158, %v6286
    %v6415 = vmax.f32 %v6159, %v6287
    %v6416 = vmax.f32 %v6160, %v6288
    %v6417 = vmax.f32 %v6161, %v6289
    %v6418 = vmax.f32 %v6162, %v6290
    %v6419 = vmax.f32 %v6163, %v6291
    %v6420 = vmax.f32 %v6164, %v6292
    %v6421 = vmax.f32 %v6165, %v6293
    %v6422 = vmax.f32 %v6166, %v6294
    %v6423 = vmax.f32 %v6167, %v6295
    %v6424 = vmax.f32 %v6168, %v6296
    %v6425 = vmax.f32 %v6169, %v6297
    %v6426 = vmax.f32 %v6170, %v6298
    %v6427 = vmax.f32 %v6171, %v6299
    %v6428 = vmax.f32 %v6172, %v6300
    %v6429 = vmax.f32 %v6173, %v6301
    %v6430 = vmax.f32 %v6174, %v6302
    %v6431 = vmax.f32 %v6175, %v6303
    %v6432 = vmax.f32 %v6176, %v6304
    %v6433 = vmax.f32 %v6177, %v6305
    %v6434 = vmax.f32 %v6178, %v6306
    %v6435 = vmax.f32 %v6179, %v6307
    %v6436 = vmax.f32 %v6180, %v6308
    %v6437 = vmax.f32 %v6181, %v6309
    %v6438 = vmax.f32 %v6182, %v6310
    %v6439 = vmax.f32 %v6183, %v6311
    %v6440 = vmax.f32 %v6184, %v6312
    %v6441 = vmax.f32 %v6185, %v6313
    %v6442 = vmax.f32 %v6186, %v6314
    %v6443 = vmax.f32 %v6187, %v6315
    %v6444 = vmax.f32 %v6188, %v6316
    %v6445 = vmax.f32 %v6189, %v6317
    %v6446 = vmax.f32 %v6190, %v6318
    %v6447 = vmax.f32 %v6191, %v6319
    %v6448 = vmax.f32 %v6192, %v6320
    %v6449 = vmax.f32 %v6193, %v6321
    %v6450 = vmax.f32 %v6194, %v6322
    %v6451 = vmax.f32 %v6195, %v6323
    %v6452 = vmax.f32 %v6196, %v6324
    %v6453 = vmax.f32 %v6197, %v6325
    %v6454 = vmax.f32 %v6198, %v6326
    %v6455 = vmax.f32 %v6199, %v6327
    %v6456 = vmax.f32 %v6200, %v6328
    %v6457 = vmax.f32 %v6201, %v6329
    %v6458 = vmax.f32 %v6202, %v6330
    %v6459 = vmax.f32 %v6203, %v6331
    %v6460 = vmax.f32 %v6204, %v6332
    %v6461 = vmax.f32 %v6205, %v6333
    %v6462 = vmax.f32 %v6206, %v6334
    %v6463 = vmax.f32 %v6207, %v6335
    %v6464 = vmax.f32 %v6208, %v6336
    %v6465 = vmax.f32 %v6209, %v6337
    %v6466 = vmax.f32 %v6210, %v6338
    %v6467 = vmax.f32 %v6211, %v6339
    %v6468 = vmax.f32 %v6212, %v6340
    %v6469 = vmax.f32 %v6213, %v6341
    %v6470 = vmax.f32 %v6214, %v6342
    %v6471 = vmax.f32 %v6215, %v6343
    %v6472 = vmax.f32 %v6216, %v6344
    %v6473 = vmax.f32 %v6217, %v6345
    %v6474 = vmax.f32 %v6218, %v6346
    %v6475 = vmax.f32 %v6219, %v6347
    %v6476 = vmax.f32 %v6220, %v6348
    %v6477 = vmax.f32 %v6221, %v6349
    %v6478 = vmax.f32 %v6222, %v6350
    %v6479 = vmax.f32 %v6223, %v6351
    %v6480 = vmax.f32 %v6224, %v6352
    %v6481 = vmax.f32 %v6225, %v6353
    %v6482 = vmax.f32 %v6226, %v6354
    %v6483 = vmax.f32 %v6227, %v6355
    %v6484 = vmax.f32 %v6228, %v6356
    %v6485 = vmax.f32 %v6229, %v6357
    %v6486 = vmax.f32 %v6230, %v6358
    %v6487 = vmax.f32 %v6231, %v6359
    %v6488 = vmax.f32 %v6232, %v6360
    %v6489 = vmax.f32 %v6233, %v6361
    %v6490 = vmax.f32 %v6234, %v6362
    %v6491 = vmax.f32 %v6235, %v6363
    %v6492 = vmax.f32 %v6236, %v6364
    %v6493 = vmax.f32 %v6237, %v6365
    %v6494 = vmax.f32 %v6238, %v6366
    %v6495 = vmax.f32 %v6239, %v6367
    %v6496 = vmax.f32 %v6240, %v6368
    %v6497 = vmax.f32 %v6241, %v6369
    %v6498 = vmax.f32 %v6242, %v6370
    %v6499 = vmax.f32 %v6243, %v6371
    %v6500 = vmax.f32 %v6244, %v6372
    %v6501 = vmax.f32 %v6245, %v6373
    %v6502 = vmax.f32 %v6246, %v6374
    %v6503 = vmax.f32 %v6247, %v6375
    %v6504 = vmax.f32 %v6248, %v6376
    %v6505 = vmax.f32 %v6249, %v6377
    %v6506 = vmax.f32 %v6250, %v6378
    %v6507 = vmax.f32 %v6251, %v6379
    %v6508 = vmax.f32 %v6252, %v6380
    %v6509 = vmax.f32 %v6253, %v6381
    %v6510 = vmax.f32 %v6254, %v6382
    %v6511 = vmax.f32 %v6255, %v6383
    %v6512 = vmax.f32 %v6256, %v6384
    %v6513 = vmax.f32 %v6257, %v6385
    %v6514 = vmax.f32 %v6258, %v6386
    %v6515 = vmax.f32 %v6259, %v6387
    %v6516 = vmax.f32 %v6260, %v6388
    %v6517 = vmax.f32 %v6261, %v6389
    %v6518 = vmax.f32 %v6262, %v6390
    %v6519 = vmax.f32 %v6263, %v6391
    %v6520 = vmax.f32 %v6264, %v6392
    %v6521 = vmax.f32 %v6265, %v6393
    %v6522 = vmax.f32 %v6266, %v6394
    %v6523 = vmax.f32 %v6267, %v6395
    %v6524 = vmax.f32 %v6268, %v6396
    %v6525 = vmax.f32 %v6269, %v6397
    %v6526 = vmax.f32 %v6270, %v6398
    %v6527 = vmax.f32 %v6271, %v6399
    %v6528 = vmax.f32 %v6272, %v6400
    %v6529 = vmax.f32 %v6273, %v6401
    %v6530 = vmax.f32 %v6274, %v6402
    %v6531 = vmax.f32 %v6275, %v6403
    %v6532 = vmax.f32 %v6276, %v6404
    %v6533 = vpack.c.bf16 %v6409, %v6405
    %v6534 = vpack.c.bf16 %v6410, %v6406
    %v6535 = vpack.c.bf16 %v6411, %v6407
    %v6536 = vpack.c.bf16 %v6412, %v6408
    %v6537 = vpack.c.bf16 %v6417, %v6413
    %v6538 = vpack.c.bf16 %v6418, %v6414
    %v6539 = vpack.c.bf16 %v6419, %v6415
    %v6540 = vpack.c.bf16 %v6420, %v6416
    %v6541 = vpack.c.bf16 %v6425, %v6421
    %v6542 = vpack.c.bf16 %v6426, %v6422
    %v6543 = vpack.c.bf16 %v6427, %v6423
    %v6544 = vpack.c.bf16 %v6428, %v6424
    %v6545 = vpack.c.bf16 %v6433, %v6429
    %v6546 = vpack.c.bf16 %v6434, %v6430
    %v6547 = vpack.c.bf16 %v6435, %v6431
    %v6548 = vpack.c.bf16 %v6436, %v6432
    %v6549 = vpack.c.bf16 %v6441, %v6437
    %v6550 = vpack.c.bf16 %v6442, %v6438
    %v6551 = vpack.c.bf16 %v6443, %v6439
    %v6552 = vpack.c.bf16 %v6444, %v6440
    %v6553 = vpack.c.bf16 %v6449, %v6445
    %v6554 = vpack.c.bf16 %v6450, %v6446
    %v6555 = vpack.c.bf16 %v6451, %v6447
    %v6556 = vpack.c.bf16 %v6452, %v6448
    %v6557 = vpack.c.bf16 %v6457, %v6453
    %v6558 = vpack.c.bf16 %v6458, %v6454
    %v6559 = vpack.c.bf16 %v6459, %v6455
    %v6560 = vpack.c.bf16 %v6460, %v6456
    %v6561 = vpack.c.bf16 %v6465, %v6461
    %v6562 = vpack.c.bf16 %v6466, %v6462
    %v6563 = vpack.c.bf16 %v6467, %v6463
    %v6564 = vpack.c.bf16 %v6468, %v6464
    %v6565 = vpack.c.bf16 %v6473, %v6469
    %v6566 = vpack.c.bf16 %v6474, %v6470
    %v6567 = vpack.c.bf16 %v6475, %v6471
    %v6568 = vpack.c.bf16 %v6476, %v6472
    %v6569 = vpack.c.bf16 %v6481, %v6477
    %v6570 = vpack.c.bf16 %v6482, %v6478
    %v6571 = vpack.c.bf16 %v6483, %v6479
    %v6572 = vpack.c.bf16 %v6484, %v6480
    %v6573 = vpack.c.bf16 %v6489, %v6485
    %v6574 = vpack.c.bf16 %v6490, %v6486
    %v6575 = vpack.c.bf16 %v6491, %v6487
    %v6576 = vpack.c.bf16 %v6492, %v6488
    %v6577 = vpack.c.bf16 %v6497, %v6493
    %v6578 = vpack.c.bf16 %v6498, %v6494
    %v6579 = vpack.c.bf16 %v6499, %v6495
    %v6580 = vpack.c.bf16 %v6500, %v6496
    %v6581 = vpack.c.bf16 %v6505, %v6501
    %v6582 = vpack.c.bf16 %v6506, %v6502
    %v6583 = vpack.c.bf16 %v6507, %v6503
    %v6584 = vpack.c.bf16 %v6508, %v6504
    %v6585 = vpack.c.bf16 %v6513, %v6509
    %v6586 = vpack.c.bf16 %v6514, %v6510
    %v6587 = vpack.c.bf16 %v6515, %v6511
    %v6588 = vpack.c.bf16 %v6516, %v6512
    %v6589 = vpack.c.bf16 %v6521, %v6517
    %v6590 = vpack.c.bf16 %v6522, %v6518
    %v6591 = vpack.c.bf16 %v6523, %v6519
    %v6592 = vpack.c.bf16 %v6524, %v6520
    %v6593 = vpack.c.bf16 %v6529, %v6525
    %v6594 = vpack.c.bf16 %v6530, %v6526
    %v6595 = vpack.c.bf16 %v6531, %v6527
    %v6596 = vpack.c.bf16 %v6532, %v6528
    %v6597 = vld [vmem:[#allocation14] sm:$0xf]
    %v6598 = vld [vmem:[#allocation14 + $0x4] sm:$0xf]
    %v6599 = vld [vmem:[#allocation14 + $0x8] sm:$0xf]
    %v6600 = vld [vmem:[#allocation14 + $0xc] sm:$0xf]
    %v6601 = vld [vmem:[#allocation14 + $0x10] sm:$0xf]
    %v6602 = vld [vmem:[#allocation14 + $0x14] sm:$0xf]
    %v6603 = vld [vmem:[#allocation14 + $0x18] sm:$0xf]
    %v6604 = vld [vmem:[#allocation14 + $0x1c] sm:$0xf]
    %v6605 = vld [vmem:[#allocation14 + $0x20] sm:$0xf]
    %v6606 = vld [vmem:[#allocation14 + $0x24] sm:$0xf]
    %v6607 = vld [vmem:[#allocation14 + $0x28] sm:$0xf]
    %v6608 = vld [vmem:[#allocation14 + $0x2c] sm:$0xf]
    %v6609 = vld [vmem:[#allocation14 + $0x30] sm:$0xf]
    %v6610 = vld [vmem:[#allocation14 + $0x34] sm:$0xf]
    %v6611 = vld [vmem:[#allocation14 + $0x38] sm:$0xf]
    %v6612 = vld [vmem:[#allocation14 + $0x3c] sm:$0xf]
    %v6613 = vld [vmem:[#allocation14 + $0x40] sm:$0xf]
    %v6614 = vld [vmem:[#allocation14 + $0x44] sm:$0xf]
    %v6615 = vld [vmem:[#allocation14 + $0x48] sm:$0xf]
    %v6616 = vld [vmem:[#allocation14 + $0x4c] sm:$0xf]
    %v6617 = vld [vmem:[#allocation14 + $0x50] sm:$0xf]
    %v6618 = vld [vmem:[#allocation14 + $0x54] sm:$0xf]
    %v6619 = vld [vmem:[#allocation14 + $0x58] sm:$0xf]
    %v6620 = vld [vmem:[#allocation14 + $0x5c] sm:$0xf]
    %v6621 = vld [vmem:[#allocation14 + $0x60] sm:$0xf]
    %v6622 = vld [vmem:[#allocation14 + $0x64] sm:$0xf]
    %v6623 = vld [vmem:[#allocation14 + $0x68] sm:$0xf]
    %v6624 = vld [vmem:[#allocation14 + $0x6c] sm:$0xf]
    %v6625 = vld [vmem:[#allocation14 + $0x70] sm:$0xf]
    %v6626 = vld [vmem:[#allocation14 + $0x74] sm:$0xf]
    %v6627 = vld [vmem:[#allocation14 + $0x78] sm:$0xf]
    %v6628 = vld [vmem:[#allocation14 + $0x7c] sm:$0xf]
    %v6629 = vld [vmem:[#allocation14 + $0x80] sm:$0xf]
    %v6630 = vld [vmem:[#allocation14 + $0x84] sm:$0xf]
    %v6631 = vld [vmem:[#allocation14 + $0x88] sm:$0xf]
    %v6632 = vld [vmem:[#allocation14 + $0x8c] sm:$0xf]
    %v6633 = vld [vmem:[#allocation14 + $0x90] sm:$0xf]
    %v6634 = vld [vmem:[#allocation14 + $0x94] sm:$0xf]
    %v6635 = vld [vmem:[#allocation14 + $0x98] sm:$0xf]
    %v6636 = vld [vmem:[#allocation14 + $0x9c] sm:$0xf]
    %v6637 = vld [vmem:[#allocation14 + $0xa0] sm:$0xf]
    %v6638 = vld [vmem:[#allocation14 + $0xa4] sm:$0xf]
    %v6639 = vld [vmem:[#allocation14 + $0xa8] sm:$0xf]
    %v6640 = vld [vmem:[#allocation14 + $0xac] sm:$0xf]
    %v6641 = vld [vmem:[#allocation14 + $0xb0] sm:$0xf]
    %v6642 = vld [vmem:[#allocation14 + $0xb4] sm:$0xf]
    %v6643 = vld [vmem:[#allocation14 + $0xb8] sm:$0xf]
    %v6644 = vld [vmem:[#allocation14 + $0xbc] sm:$0xf]
    %v6645 = vld [vmem:[#allocation14 + $0xc0] sm:$0xf]
    %v6646 = vld [vmem:[#allocation14 + $0xc4] sm:$0xf]
    %v6647 = vld [vmem:[#allocation14 + $0xc8] sm:$0xf]
    %v6648 = vld [vmem:[#allocation14 + $0xcc] sm:$0xf]
    %v6649 = vld [vmem:[#allocation14 + $0xd0] sm:$0xf]
    %v6650 = vld [vmem:[#allocation14 + $0xd4] sm:$0xf]
    %v6651 = vld [vmem:[#allocation14 + $0xd8] sm:$0xf]
    %v6652 = vld [vmem:[#allocation14 + $0xdc] sm:$0xf]
    %v6653 = vld [vmem:[#allocation14 + $0xe0] sm:$0xf]
    %v6654 = vld [vmem:[#allocation14 + $0xe4] sm:$0xf]
    %v6655 = vld [vmem:[#allocation14 + $0xe8] sm:$0xf]
    %v6656 = vld [vmem:[#allocation14 + $0xec] sm:$0xf]
    %v6657 = vld [vmem:[#allocation14 + $0xf0] sm:$0xf]
    %v6658 = vld [vmem:[#allocation14 + $0xf4] sm:$0xf]
    %v6659 = vld [vmem:[#allocation14 + $0xf8] sm:$0xf]
    %v6660 = vld [vmem:[#allocation14 + $0xfc] sm:$0xf]
    %v6661 = vld [vmem:[%s17] sm:$0x1]
    %v6663 = vlaneseq
    %v6664 = vshrl.u32 %v6663, 7
    %v6665 = vsub.s32 0, %v6664
    %v6666 = vrot.slane %v6661, %v6665
    %v6732 = vunpack.c.l.b16 %v6597
    %v6733 = vunpack.c.l.b16 %v6598
    %v6734 = vunpack.c.l.b16 %v6599
    %v6735 = vunpack.c.l.b16 %v6600
    %v6736 = vunpack.c.l.b16 %v6601
    %v6737 = vunpack.c.l.b16 %v6602
    %v6738 = vunpack.c.l.b16 %v6603
    %v6739 = vunpack.c.l.b16 %v6604
    %v6740 = vunpack.c.l.b16 %v6605
    %v6741 = vunpack.c.l.b16 %v6606
    %v6742 = vunpack.c.l.b16 %v6607
    %v6743 = vunpack.c.l.b16 %v6608
    %v6744 = vunpack.c.l.b16 %v6609
    %v6745 = vunpack.c.l.b16 %v6610
    %v6746 = vunpack.c.l.b16 %v6611
    %v6747 = vunpack.c.l.b16 %v6612
    %v6748 = vunpack.c.l.b16 %v6613
    %v6749 = vunpack.c.l.b16 %v6614
    %v6750 = vunpack.c.l.b16 %v6615
    %v6751 = vunpack.c.l.b16 %v6616
    %v6752 = vunpack.c.l.b16 %v6617
    %v6753 = vunpack.c.l.b16 %v6618
    %v6754 = vunpack.c.l.b16 %v6619
    %v6755 = vunpack.c.l.b16 %v6620
    %v6756 = vunpack.c.l.b16 %v6621
    %v6757 = vunpack.c.l.b16 %v6622
    %v6758 = vunpack.c.l.b16 %v6623
    %v6759 = vunpack.c.l.b16 %v6624
    %v6760 = vunpack.c.l.b16 %v6625
    %v6761 = vunpack.c.l.b16 %v6626
    %v6762 = vunpack.c.l.b16 %v6627
    %v6763 = vunpack.c.l.b16 %v6628
    %v6764 = vunpack.c.l.b16 %v6629
    %v6765 = vunpack.c.l.b16 %v6630
    %v6766 = vunpack.c.l.b16 %v6631
    %v6767 = vunpack.c.l.b16 %v6632
    %v6768 = vunpack.c.l.b16 %v6633
    %v6769 = vunpack.c.l.b16 %v6634
    %v6770 = vunpack.c.l.b16 %v6635
    %v6771 = vunpack.c.l.b16 %v6636
    %v6772 = vunpack.c.l.b16 %v6637
    %v6773 = vunpack.c.l.b16 %v6638
    %v6774 = vunpack.c.l.b16 %v6639
    %v6775 = vunpack.c.l.b16 %v6640
    %v6776 = vunpack.c.l.b16 %v6641
    %v6777 = vunpack.c.l.b16 %v6642
    %v6778 = vunpack.c.l.b16 %v6643
    %v6779 = vunpack.c.l.b16 %v6644
    %v6780 = vunpack.c.l.b16 %v6645
    %v6781 = vunpack.c.l.b16 %v6646
    %v6782 = vunpack.c.l.b16 %v6647
    %v6783 = vunpack.c.l.b16 %v6648
    %v6784 = vunpack.c.l.b16 %v6649
    %v6785 = vunpack.c.l.b16 %v6650
    %v6786 = vunpack.c.l.b16 %v6651
    %v6787 = vunpack.c.l.b16 %v6652
    %v6788 = vunpack.c.l.b16 %v6653
    %v6789 = vunpack.c.l.b16 %v6654
    %v6790 = vunpack.c.l.b16 %v6655
    %v6791 = vunpack.c.l.b16 %v6656
    %v6792 = vunpack.c.l.b16 %v6657
    %v6793 = vunpack.c.l.b16 %v6658
    %v6794 = vunpack.c.l.b16 %v6659
    %v6795 = vunpack.c.l.b16 %v6660
    %v6796 = vpack.c.b16 %v6733, %v6732
    %v6797 = vpack.c.b16 %v6735, %v6734
    %v6798 = vpack.c.b16 %v6737, %v6736
    %v6799 = vpack.c.b16 %v6739, %v6738
    %v6800 = vpack.c.b16 %v6741, %v6740
    %v6801 = vpack.c.b16 %v6743, %v6742
    %v6802 = vpack.c.b16 %v6745, %v6744
    %v6803 = vpack.c.b16 %v6747, %v6746
    %v6804 = vpack.c.b16 %v6749, %v6748
    %v6805 = vpack.c.b16 %v6751, %v6750
    %v6806 = vpack.c.b16 %v6753, %v6752
    %v6807 = vpack.c.b16 %v6755, %v6754
    %v6808 = vpack.c.b16 %v6757, %v6756
    %v6809 = vpack.c.b16 %v6759, %v6758
    %v6810 = vpack.c.b16 %v6761, %v6760
    %v6811 = vpack.c.b16 %v6763, %v6762
    %v6812 = vpack.c.b16 %v6765, %v6764
    %v6813 = vpack.c.b16 %v6767, %v6766
    %v6814 = vpack.c.b16 %v6769, %v6768
    %v6815 = vpack.c.b16 %v6771, %v6770
    %v6816 = vpack.c.b16 %v6773, %v6772
    %v6817 = vpack.c.b16 %v6775, %v6774
    %v6818 = vpack.c.b16 %v6777, %v6776
    %v6819 = vpack.c.b16 %v6779, %v6778
    %v6820 = vpack.c.b16 %v6781, %v6780
    %v6821 = vpack.c.b16 %v6783, %v6782
    %v6822 = vpack.c.b16 %v6785, %v6784
    %v6823 = vpack.c.b16 %v6787, %v6786
    %v6824 = vpack.c.b16 %v6789, %v6788
    %v6825 = vpack.c.b16 %v6791, %v6790
    %v6826 = vpack.c.b16 %v6793, %v6792
    %v6827 = vpack.c.b16 %v6795, %v6794
    %6860 = vmatprep.subr.bf16.mxu0 0
    %6861 = vmatpush1.bf16.msra.mxu0 %v6803
    %6862 = vmatprep.subr.bf16.mxu0 0
    %6863 = vmatpush1.bf16.msra.mxu0 %v6802
    %6864 = vmatprep.subr.bf16.mxu0 0
    %6865 = vmatpush1.bf16.msra.mxu0 %v6801
    %6866 = vmatprep.subr.bf16.mxu0 0
    %6867 = vmatpush1.bf16.msra.mxu0 %v6800
    %6868 = vmatprep.subr.bf16.mxu0 0
    %6869 = vmatpush1.bf16.msra.mxu0 %v6799
    %6870 = vmatprep.subr.bf16.mxu0 0
    %6871 = vmatpush1.bf16.msra.mxu0 %v6798
    %6872 = vmatprep.subr.bf16.mxu0 0
    %6873 = vmatpush1.bf16.msra.mxu0 %v6797
    %6874 = vmatprep.subr.bf16.mxu0 0
    %6875 = vmatpush1.bf16.msra.mxu0 %v6796
    %6876 = vmatprep.subr.bf16.mxu0 0
    %6877 = vmatpush2.bf16.msra.mxu0 %v6811
    %6878 = vmatprep.subr.bf16.mxu0 0
    %6879 = vmatpush2.bf16.msra.mxu0 %v6810
    %6880 = vmatprep.subr.bf16.mxu0 0
    %6881 = vmatpush2.bf16.msra.mxu0 %v6809
    %6882 = vmatprep.subr.bf16.mxu0 0
    %6883 = vmatpush2.bf16.msra.mxu0 %v6808
    %6884 = vmatprep.subr.bf16.mxu0 0
    %6885 = vmatpush2.bf16.msra.mxu0 %v6807
    %6886 = vmatprep.subr.bf16.mxu0 0
    %6887 = vmatpush2.bf16.msra.mxu0 %v6806
    %6888 = vmatprep.subr.bf16.mxu0 0
    %6889 = vmatpush2.bf16.msra.mxu0 %v6805
    %6890 = vmatprep.subr.bf16.mxu0 0
    %6891 = vmatpush2.bf16.msra.mxu0 %v6804
    %6892 = vmatprep.mubr.bf16.mxu0 %v6534
    %6893 = vmatmul.mubr.bf16.gmra.mxu0 %v6533
    %v6894 = vpop.f32.mrf.mxu0
    %v6895 = vadd.f32 %v6666, %v6894
    %v6896 = vpop.f32.mrf.mxu0
    %v6897 = vpop.f32.mrf.mxu0
    %v6898 = vadd.f32 %v6666, %v6897
    %v6899 = vpop.f32.mrf.mxu0
    %6900 = vmatprep.mubr.bf16.mxu0 %v6538
    %6901 = vmatmul.mubr.bf16.gmra.mxu0 %v6537
    %v6902 = vpop.f32.mrf.mxu0
    %v6903 = vadd.f32 %v6666, %v6902
    %v6904 = vpop.f32.mrf.mxu0
    %v6905 = vpop.f32.mrf.mxu0
    %v6906 = vadd.f32 %v6666, %v6905
    %v6907 = vpop.f32.mrf.mxu0
    %6908 = vmatprep.mubr.bf16.mxu0 %v6542
    %6909 = vmatmul.mubr.bf16.gmra.mxu0 %v6541
    %v6910 = vpop.f32.mrf.mxu0
    %v6911 = vadd.f32 %v6666, %v6910
    %v6912 = vpop.f32.mrf.mxu0
    %v6913 = vpop.f32.mrf.mxu0
    %v6914 = vadd.f32 %v6666, %v6913
    %v6915 = vpop.f32.mrf.mxu0
    %6916 = vmatprep.mubr.bf16.mxu0 %v6546
    %6917 = vmatmul.mubr.bf16.gmra.mxu0 %v6545
    %v6918 = vpop.f32.mrf.mxu0
    %v6919 = vadd.f32 %v6666, %v6918
    %v6920 = vpop.f32.mrf.mxu0
    %v6921 = vpop.f32.mrf.mxu0
    %v6922 = vadd.f32 %v6666, %v6921
    %v6923 = vpop.f32.mrf.mxu0
    %6924 = vmatprep.mubr.bf16.mxu0 %v6550
    %6925 = vmatmul.mubr.bf16.gmra.mxu0 %v6549
    %v6926 = vpop.f32.mrf.mxu0
    %v6927 = vadd.f32 %v6666, %v6926
    %v6928 = vpop.f32.mrf.mxu0
    %v6929 = vpop.f32.mrf.mxu0
    %v6930 = vadd.f32 %v6666, %v6929
    %v6931 = vpop.f32.mrf.mxu0
    %6932 = vmatprep.mubr.bf16.mxu0 %v6554
    %6933 = vmatmul.mubr.bf16.gmra.mxu0 %v6553
    %v6934 = vpop.f32.mrf.mxu0
    %v6935 = vadd.f32 %v6666, %v6934
    %v6936 = vpop.f32.mrf.mxu0
    %v6937 = vpop.f32.mrf.mxu0
    %v6938 = vadd.f32 %v6666, %v6937
    %v6939 = vpop.f32.mrf.mxu0
    %6940 = vmatprep.mubr.bf16.mxu0 %v6558
    %6941 = vmatmul.mubr.bf16.gmra.mxu0 %v6557
    %v6942 = vpop.f32.mrf.mxu0
    %v6943 = vadd.f32 %v6666, %v6942
    %v6944 = vpop.f32.mrf.mxu0
    %v6945 = vpop.f32.mrf.mxu0
    %v6946 = vadd.f32 %v6666, %v6945
    %v6947 = vpop.f32.mrf.mxu0
    %6948 = vmatprep.mubr.bf16.mxu0 %v6562
    %6949 = vmatmul.mubr.bf16.gmra.mxu0 %v6561
    %v6950 = vpop.f32.mrf.mxu0
    %v6951 = vadd.f32 %v6666, %v6950
    %v6952 = vpop.f32.mrf.mxu0
    %v6953 = vpop.f32.mrf.mxu0
    %v6954 = vadd.f32 %v6666, %v6953
    %v6955 = vpop.f32.mrf.mxu0
    %6956 = vmatprep.mubr.bf16.mxu0 %v6566
    %6957 = vmatmul.mubr.bf16.gmra.mxu0 %v6565
    %v6958 = vpop.f32.mrf.mxu0
    %v6959 = vadd.f32 %v6666, %v6958
    %v6960 = vpop.f32.mrf.mxu0
    %v6961 = vpop.f32.mrf.mxu0
    %v6962 = vadd.f32 %v6666, %v6961
    %v6963 = vpop.f32.mrf.mxu0
    %6964 = vmatprep.mubr.bf16.mxu0 %v6570
    %6965 = vmatmul.mubr.bf16.gmra.mxu0 %v6569
    %v6966 = vpop.f32.mrf.mxu0
    %v6967 = vadd.f32 %v6666, %v6966
    %v6968 = vpop.f32.mrf.mxu0
    %v6969 = vpop.f32.mrf.mxu0
    %v6970 = vadd.f32 %v6666, %v6969
    %v6971 = vpop.f32.mrf.mxu0
    %6972 = vmatprep.mubr.bf16.mxu0 %v6574
    %6973 = vmatmul.mubr.bf16.gmra.mxu0 %v6573
    %v6974 = vpop.f32.mrf.mxu0
    %v6975 = vadd.f32 %v6666, %v6974
    %v6976 = vpop.f32.mrf.mxu0
    %v6977 = vpop.f32.mrf.mxu0
    %v6978 = vadd.f32 %v6666, %v6977
    %v6979 = vpop.f32.mrf.mxu0
    %6980 = vmatprep.mubr.bf16.mxu0 %v6578
    %6981 = vmatmul.mubr.bf16.gmra.mxu0 %v6577
    %v6982 = vpop.f32.mrf.mxu0
    %v6983 = vadd.f32 %v6666, %v6982
    %v6984 = vpop.f32.mrf.mxu0
    %v6985 = vpop.f32.mrf.mxu0
    %v6986 = vadd.f32 %v6666, %v6985
    %v6987 = vpop.f32.mrf.mxu0
    %6988 = vmatprep.mubr.bf16.mxu0 %v6582
    %6989 = vmatmul.mubr.bf16.gmra.mxu0 %v6581
    %v6990 = vpop.f32.mrf.mxu0
    %v6991 = vadd.f32 %v6666, %v6990
    %v6992 = vpop.f32.mrf.mxu0
    %v6993 = vpop.f32.mrf.mxu0
    %v6994 = vadd.f32 %v6666, %v6993
    %v6995 = vpop.f32.mrf.mxu0
    %6996 = vmatprep.mubr.bf16.mxu0 %v6586
    %6997 = vmatmul.mubr.bf16.gmra.mxu0 %v6585
    %v6998 = vpop.f32.mrf.mxu0
    %v6999 = vadd.f32 %v6666, %v6998
    %v7000 = vpop.f32.mrf.mxu0
    %v7001 = vpop.f32.mrf.mxu0
    %v7002 = vadd.f32 %v6666, %v7001
    %v7003 = vpop.f32.mrf.mxu0
    %7004 = vmatprep.mubr.bf16.mxu0 %v6590
    %7005 = vmatmul.mubr.bf16.gmra.mxu0 %v6589
    %v7006 = vpop.f32.mrf.mxu0
    %v7007 = vadd.f32 %v6666, %v7006
    %v7008 = vpop.f32.mrf.mxu0
    %v7009 = vpop.f32.mrf.mxu0
    %v7010 = vadd.f32 %v6666, %v7009
    %v7011 = vpop.f32.mrf.mxu0
    %7012 = vmatprep.mubr.bf16.mxu0 %v6594
    %7013 = vmatmul.mubr.bf16.gmra.mxu0 %v6593
    %v7014 = vpop.f32.mrf.mxu0
    %v7015 = vadd.f32 %v6666, %v7014
    %v7016 = vpop.f32.mrf.mxu0
    %v7017 = vpop.f32.mrf.mxu0
    %v7018 = vadd.f32 %v6666, %v7017
    %v7019 = vpop.f32.mrf.mxu0
    %7020 = vdwg.mxu0
    %7021 = vmatprep.subr.bf16.mxu0 0
    %7022 = vmatpush1.bf16.msra.mxu0 %v6819
    %7023 = vmatprep.subr.bf16.mxu0 0
    %7024 = vmatpush1.bf16.msra.mxu0 %v6818
    %7025 = vmatprep.subr.bf16.mxu0 0
    %7026 = vmatpush1.bf16.msra.mxu0 %v6817
    %7027 = vmatprep.subr.bf16.mxu0 0
    %7028 = vmatpush1.bf16.msra.mxu0 %v6816
    %7029 = vmatprep.subr.bf16.mxu0 0
    %7030 = vmatpush1.bf16.msra.mxu0 %v6815
    %7031 = vmatprep.subr.bf16.mxu0 0
    %7032 = vmatpush1.bf16.msra.mxu0 %v6814
    %7033 = vmatprep.subr.bf16.mxu0 0
    %7034 = vmatpush1.bf16.msra.mxu0 %v6813
    %7035 = vmatprep.subr.bf16.mxu0 0
    %7036 = vmatpush1.bf16.msra.mxu0 %v6812
    %7037 = vmatprep.subr.bf16.mxu0 0
    %7038 = vmatpush2.bf16.msra.mxu0 %v6827
    %7039 = vmatprep.subr.bf16.mxu0 0
    %7040 = vmatpush2.bf16.msra.mxu0 %v6826
    %7041 = vmatprep.subr.bf16.mxu0 0
    %7042 = vmatpush2.bf16.msra.mxu0 %v6825
    %7043 = vmatprep.subr.bf16.mxu0 0
    %7044 = vmatpush2.bf16.msra.mxu0 %v6824
    %7045 = vmatprep.subr.bf16.mxu0 0
    %7046 = vmatpush2.bf16.msra.mxu0 %v6823
    %7047 = vmatprep.subr.bf16.mxu0 0
    %7048 = vmatpush2.bf16.msra.mxu0 %v6822
    %7049 = vmatprep.subr.bf16.mxu0 0
    %7050 = vmatpush2.bf16.msra.mxu0 %v6821
    %7051 = vmatprep.subr.bf16.mxu0 0
    %7052 = vmatpush2.bf16.msra.mxu0 %v6820
    %7053 = vmatprep.mubr.bf16.mxu0 %v6536
    %7054 = vmatmul.mubr.bf16.gmra.mxu0 %v6535
    %v7055 = vpop.f32.mrf.mxu0
    %v7056 = vadd.f32 %v6895, %v7055
    %v7057 = vpop.f32.mrf.mxu0
    %v7058 = vpop.f32.mrf.mxu0
    %v7059 = vadd.f32 %v6898, %v7058
    %v7060 = vpop.f32.mrf.mxu0
    %7061 = vmatprep.mubr.bf16.mxu0 %v6540
    %7062 = vmatmul.mubr.bf16.gmra.mxu0 %v6539
    %v7063 = vpop.f32.mrf.mxu0
    %v7064 = vadd.f32 %v6903, %v7063
    %v7065 = vpop.f32.mrf.mxu0
    %v7066 = vpop.f32.mrf.mxu0
    %v7067 = vadd.f32 %v6906, %v7066
    %v7068 = vpop.f32.mrf.mxu0
    %7069 = vmatprep.mubr.bf16.mxu0 %v6544
    %7070 = vmatmul.mubr.bf16.gmra.mxu0 %v6543
    %v7071 = vpop.f32.mrf.mxu0
    %v7072 = vadd.f32 %v6911, %v7071
    %v7073 = vpop.f32.mrf.mxu0
    %v7074 = vpop.f32.mrf.mxu0
    %v7075 = vadd.f32 %v6914, %v7074
    %v7076 = vpop.f32.mrf.mxu0
    %7077 = vmatprep.mubr.bf16.mxu0 %v6548
    %7078 = vmatmul.mubr.bf16.gmra.mxu0 %v6547
    %v7079 = vpop.f32.mrf.mxu0
    %v7080 = vadd.f32 %v6919, %v7079
    %v7081 = vpop.f32.mrf.mxu0
    %v7082 = vpop.f32.mrf.mxu0
    %v7083 = vadd.f32 %v6922, %v7082
    %v7084 = vpop.f32.mrf.mxu0
    %7085 = vmatprep.mubr.bf16.mxu0 %v6552
    %7086 = vmatmul.mubr.bf16.gmra.mxu0 %v6551
    %v7087 = vpop.f32.mrf.mxu0
    %v7088 = vadd.f32 %v6927, %v7087
    %v7089 = vpop.f32.mrf.mxu0
    %v7090 = vpop.f32.mrf.mxu0
    %v7091 = vadd.f32 %v6930, %v7090
    %v7092 = vpop.f32.mrf.mxu0
    %7093 = vmatprep.mubr.bf16.mxu0 %v6556
    %7094 = vmatmul.mubr.bf16.gmra.mxu0 %v6555
    %v7095 = vpop.f32.mrf.mxu0
    %v7096 = vadd.f32 %v6935, %v7095
    %v7097 = vpop.f32.mrf.mxu0
    %v7098 = vpop.f32.mrf.mxu0
    %v7099 = vadd.f32 %v6938, %v7098
    %v7100 = vpop.f32.mrf.mxu0
    %7101 = vmatprep.mubr.bf16.mxu0 %v6560
    %7102 = vmatmul.mubr.bf16.gmra.mxu0 %v6559
    %v7103 = vpop.f32.mrf.mxu0
    %v7104 = vadd.f32 %v6943, %v7103
    %v7105 = vpop.f32.mrf.mxu0
    %v7106 = vpop.f32.mrf.mxu0
    %v7107 = vadd.f32 %v6946, %v7106
    %v7108 = vpop.f32.mrf.mxu0
    %7109 = vmatprep.mubr.bf16.mxu0 %v6564
    %7110 = vmatmul.mubr.bf16.gmra.mxu0 %v6563
    %v7111 = vpop.f32.mrf.mxu0
    %v7112 = vadd.f32 %v6951, %v7111
    %v7113 = vpop.f32.mrf.mxu0
    %v7114 = vpop.f32.mrf.mxu0
    %v7115 = vadd.f32 %v6954, %v7114
    %v7116 = vpop.f32.mrf.mxu0
    %7117 = vmatprep.mubr.bf16.mxu0 %v6568
    %7118 = vmatmul.mubr.bf16.gmra.mxu0 %v6567
    %v7119 = vpop.f32.mrf.mxu0
    %v7120 = vadd.f32 %v6959, %v7119
    %v7121 = vpop.f32.mrf.mxu0
    %v7122 = vpop.f32.mrf.mxu0
    %v7123 = vadd.f32 %v6962, %v7122
    %v7124 = vpop.f32.mrf.mxu0
    %7125 = vmatprep.mubr.bf16.mxu0 %v6572
    %7126 = vmatmul.mubr.bf16.gmra.mxu0 %v6571
    %v7127 = vpop.f32.mrf.mxu0
    %v7128 = vadd.f32 %v6967, %v7127
    %v7129 = vpop.f32.mrf.mxu0
    %v7130 = vpop.f32.mrf.mxu0
    %v7131 = vadd.f32 %v6970, %v7130
    %v7132 = vpop.f32.mrf.mxu0
    %7133 = vmatprep.mubr.bf16.mxu0 %v6576
    %7134 = vmatmul.mubr.bf16.gmra.mxu0 %v6575
    %v7135 = vpop.f32.mrf.mxu0
    %v7136 = vadd.f32 %v6975, %v7135
    %v7137 = vpop.f32.mrf.mxu0
    %v7138 = vpop.f32.mrf.mxu0
    %v7139 = vadd.f32 %v6978, %v7138
    %v7140 = vpop.f32.mrf.mxu0
    %7141 = vmatprep.mubr.bf16.mxu0 %v6580
    %7142 = vmatmul.mubr.bf16.gmra.mxu0 %v6579
    %v7143 = vpop.f32.mrf.mxu0
    %v7144 = vadd.f32 %v6983, %v7143
    %v7145 = vpop.f32.mrf.mxu0
    %v7146 = vpop.f32.mrf.mxu0
    %v7147 = vadd.f32 %v6986, %v7146
    %v7148 = vpop.f32.mrf.mxu0
    %7149 = vmatprep.mubr.bf16.mxu0 %v6584
    %7150 = vmatmul.mubr.bf16.gmra.mxu0 %v6583
    %v7151 = vpop.f32.mrf.mxu0
    %v7152 = vadd.f32 %v6991, %v7151
    %v7153 = vpop.f32.mrf.mxu0
    %v7154 = vpop.f32.mrf.mxu0
    %v7155 = vadd.f32 %v6994, %v7154
    %v7156 = vpop.f32.mrf.mxu0
    %7157 = vmatprep.mubr.bf16.mxu0 %v6588
    %7158 = vmatmul.mubr.bf16.gmra.mxu0 %v6587
    %v7159 = vpop.f32.mrf.mxu0
    %v7160 = vadd.f32 %v6999, %v7159
    %v7161 = vpop.f32.mrf.mxu0
    %v7162 = vpop.f32.mrf.mxu0
    %v7163 = vadd.f32 %v7002, %v7162
    %v7164 = vpop.f32.mrf.mxu0
    %7165 = vmatprep.mubr.bf16.mxu0 %v6592
    %7166 = vmatmul.mubr.bf16.gmra.mxu0 %v6591
    %v7167 = vpop.f32.mrf.mxu0
    %v7168 = vadd.f32 %v7007, %v7167
    %v7169 = vpop.f32.mrf.mxu0
    %v7170 = vpop.f32.mrf.mxu0
    %v7171 = vadd.f32 %v7010, %v7170
    %v7172 = vpop.f32.mrf.mxu0
    %7173 = vmatprep.mubr.bf16.mxu0 %v6596
    %7174 = vmatmul.mubr.bf16.gmra.mxu0 %v6595
    %v7175 = vpop.f32.mrf.mxu0
    %v7176 = vadd.f32 %v7015, %v7175
    %v7177 = vpop.f32.mrf.mxu0
    %v7178 = vpop.f32.mrf.mxu0
    %v7179 = vadd.f32 %v7018, %v7178
    %v7180 = vpop.f32.mrf.mxu0
    %7181 = vdwg.mxu0
    %7182 = vst [vmem:[#allocation16] sm:$0xff] %v7056
    %7183 = vst [vmem:[#allocation16 + $0x8] sm:$0xff] %v7059
    %7184 = vst [vmem:[#allocation16 + $0x10] sm:$0xff] %v7064
    %7185 = vst [vmem:[#allocation16 + $0x18] sm:$0xff] %v7067
    %7186 = vst [vmem:[#allocation16 + $0x20] sm:$0xff] %v7072
    %7187 = vst [vmem:[#allocation16 + $0x28] sm:$0xff] %v7075
    %7188 = vst [vmem:[#allocation16 + $0x30] sm:$0xff] %v7080
    %7189 = vst [vmem:[#allocation16 + $0x38] sm:$0xff] %v7083
    %7190 = vst [vmem:[#allocation16 + $0x40] sm:$0xff] %v7088
    %7191 = vst [vmem:[#allocation16 + $0x48] sm:$0xff] %v7091
    %7192 = vst [vmem:[#allocation16 + $0x50] sm:$0xff] %v7096
    %7193 = vst [vmem:[#allocation16 + $0x58] sm:$0xff] %v7099
    %7194 = vst [vmem:[#allocation16 + $0x60] sm:$0xff] %v7104
    %7195 = vst [vmem:[#allocation16 + $0x68] sm:$0xff] %v7107
    %7196 = vst [vmem:[#allocation16 + $0x70] sm:$0xff] %v7112
    %7197 = vst [vmem:[#allocation16 + $0x78] sm:$0xff] %v7115
    %7198 = vst [vmem:[#allocation16 + $0x80] sm:$0xff] %v7120
    %7199 = vst [vmem:[#allocation16 + $0x88] sm:$0xff] %v7123
    %7200 = vst [vmem:[#allocation16 + $0x90] sm:$0xff] %v7128
    %7201 = vst [vmem:[#allocation16 + $0x98] sm:$0xff] %v7131
    %7202 = vst [vmem:[#allocation16 + $0xa0] sm:$0xff] %v7136
    %7203 = vst [vmem:[#allocation16 + $0xa8] sm:$0xff] %v7139
    %7204 = vst [vmem:[#allocation16 + $0xb0] sm:$0xff] %v7144
    %7205 = vst [vmem:[#allocation16 + $0xb8] sm:$0xff] %v7147
    %7206 = vst [vmem:[#allocation16 + $0xc0] sm:$0xff] %v7152
    %7207 = vst [vmem:[#allocation16 + $0xc8] sm:$0xff] %v7155
    %7208 = vst [vmem:[#allocation16 + $0xd0] sm:$0xff] %v7160
    %7209 = vst [vmem:[#allocation16 + $0xd8] sm:$0xff] %v7163
    %7210 = vst [vmem:[#allocation16 + $0xe0] sm:$0xff] %v7168
    %7211 = vst [vmem:[#allocation16 + $0xe8] sm:$0xff] %v7171
    %7212 = vst [vmem:[#allocation16 + $0xf0] sm:$0xff] %v7176
    %7213 = vst [vmem:[#allocation16 + $0xf8] sm:$0xff] %v7179
    // Predicated region
    $region106: #{tpu_custom_call.1} parent=1 // pred_check
      _
    $region107: #{tpu_custom_call.1} parent=1 // pred_check_branch
      %7215 = sbr.rel (0) target = $region109
    $region108: #{tpu_custom_call.1} parent=1 // pred_region
      %s7217 = ssub.s32 4096, 4096
      %7218 = vsyncadd [#allocation4], %s7217
      %s7219 = sshll.u32 [#allocation16], 4
      %s7220 = int_to_ptr.vmem [resolvable:$true] %s7219
      %7225 = dma.vmem_to_hbm [thread:$0]  %s7220, 4096, %s18, [#allocation4], 128, 128, 8
    $region109: #{tpu_custom_call.1} parent=1 // pred_fallthru
      _
    // Predicated region
    $region110: #{tpu_custom_call.1} parent=1 // pred_check
      _
    $region111: #{tpu_custom_call.1} parent=1 // pred_check_branch
      %7227 = sbr.rel (0) target = $region113
    $region112: #{tpu_custom_call.1} parent=1 // pred_region
      %s7229 = ssub.s32 4096, 4096
      %7230 = vsyncadd [#allocation18], %s7229
      %s7231 = sshll.u32 [#allocation17], 4
      %s7232 = int_to_ptr.vmem [resolvable:$true] %s7231
      %7237 = dma.vmem_to_hbm [thread:$0]  %s7232, 4096, %s19, [#allocation18], 128, 128, 8
    $region113: #{tpu_custom_call.1} parent=1 // pred_fallthru
      _
    // Predicated region
    $region114: #{tpu_custom_call.1} parent=1 // pred_check
      _
    $region115: #{tpu_custom_call.1} parent=1 // pred_check_branch
      %7239 = sbr.rel (0) target = $region117
    $region116: #{tpu_custom_call.1} parent=1 // pred_region
      %7240 = dma.done [#allocation4], 4096
    $region117: #{tpu_custom_call.1} parent=1 // pred_fallthru
      _
    // Predicated region
    $region118: #{tpu_custom_call.1} parent=1 // pred_check
      _
    $region119: #{tpu_custom_call.1} parent=1 // pred_check_branch
      %7242 = sbr.rel (0) target = $region121
    $region120: #{tpu_custom_call.1} parent=1 // pred_region
      %7243 = dma.done [#allocation18], 4096
    $region121: #{tpu_custom_call.1} parent=1 // pred_fallthru
      _
    %7244 = vsyncpa [#allocation3], 1
    %7245 = vsyncpa [#allocation6], 1
    %7246 = vsyncpa [#allocation9], 1
    %7247 = vsyncpa [#allocation12], 1
    %7248 = vsyncpa [#allocation15], 1
    %7249 = vsyncpa [#allocation4], 1
    %7250 = vsyncpa [#allocation18], 1

</llo_original>
